<compile_context>
chip_gen: v7x
topology: tpu7x:2x2x1
jax: 0.10.0
libtpu: 0.0.40
codegen_flags: <defaults>
</compile_context>

<pallas_src>
import jax
import jax.numpy as jnp
from jax import lax
from jax.experimental import pallas as pl
from jax.experimental.pallas import tpu as pltpu

HEADS = 4
DIM_HEAD = 32
HIDDEN = HEADS * DIM_HEAD          # 128
EPS = 1e-5                         # nn.GroupNorm default eps


def prenorm_linear_attention_kernel(x_ref, wqkv_ref, wout_ref, bout_ref,
                                    g_pre_ref, b_pre_ref, g_post_ref, b_post_ref,
                                    mask_scale_ref, sel_ref, expand_ref, o_ref):
    Bt, C, N = x_ref.shape
    inv_cn = 1.0 / (C * N)

    # Hoist shared (VMEM-resident) operands out of the unrolled per-sample loop.
    wqkv = wqkv_ref[...]                 # (3H, C)   bf16
    wout = wout_ref[...]                 # (C, H)    bf16
    bout = bout_ref[...]                 # (C, 1)    f32
    g_pre, b_pre = g_pre_ref[...], b_pre_ref[...]
    g_post, b_post = g_post_ref[...], b_post_ref[...]
    mask_scale = mask_scale_ref[...]     # (H, H)    f32: block-diag head mask * q-scale
    sel = sel_ref[...]                   # (HEADS,H) bf16 0/1 head selector
    expand = expand_ref[...]             # (H,HEADS) bf16 0/1 head expander (= sel.T)

    # Statically unrolled loop over the Bt samples owned by this grid step.
    for s in range(Bt):
        x = x_ref[s]                                             # (C, N) f32, N on lanes

        # ---- PreNorm GroupNorm(1, C): single pass (sum + sum of squares) ----
        s1 = jnp.sum(x)
        s2 = jnp.sum(x * x)
        mean = s1 * inv_cn
        var = jnp.maximum(s2 * inv_cn - mean * mean, 0.0)
        xn = (x - mean) * lax.rsqrt(var + EPS) * g_pre + b_pre   # per-channel affine

        # ---- to_qkv: 1x1 conv, no bias (bf16 operands, f32 acc; K=C=4) ----
        qkv = jnp.dot(wqkv, xn.astype(jnp.bfloat16),
                      preferred_element_type=jnp.float32)        # (3H, N)
        q = qkv[0:HIDDEN, :]
        k = qkv[HIDDEN:2 * HIDDEN, :]
        v = qkv[2 * HIDDEN:3 * HIDDEN, :]

        # ---- q softmax over dim_head, all heads batched (segmented softmax) ----
        # Per-head per-column maxima (exact: the same value is subtracted in numerator
        # and denominator), broadcast back per head with an exact 0/1 matmul.
        m4 = jnp.concatenate(
            [jnp.max(q[h * DIM_HEAD:(h + 1) * DIM_HEAD, :], axis=0, keepdims=True)
             for h in range(HEADS)], axis=0)                     # (HEADS, N)
        m_full = jnp.dot(expand, m4.astype(jnp.bfloat16),
                         preferred_element_type=jnp.float32)     # (H, N), exact bcast
        qe = jnp.exp(q - m_full)                                 # (H, N)
        qe_b = qe.astype(jnp.bfloat16)
        den4 = jnp.dot(sel, qe_b, preferred_element_type=jnp.float32)   # (HEADS, N)
        inv4 = pl.reciprocal(den4, approx=True)                  # only HEADS*N EUP rcp
        inv_full = jnp.dot(expand, inv4.astype(jnp.bfloat16),
                           preferred_element_type=jnp.float32)   # (H, N)
        qb = (qe * inv_full).astype(jnp.bfloat16)                # softmax(dim=-2); scale folded below

        # ---- k softmax over the spatial axis ----
        ke = jnp.exp(k - jnp.max(k, axis=1, keepdims=True))
        k_sm = ke * pl.reciprocal(jnp.sum(ke, axis=1, keepdims=True), approx=True)

        # ---- batched-heads linear attention: two MXU matmuls (bf16 ops, f32 acc) ----
        kb = k_sm.astype(jnp.bfloat16)
        vb = v.astype(jnp.bfloat16)
        # context[d, e] = sum_n k_sm[d, n] * v[e, n]   (all heads at once)
        context = lax.dot_general(kb, vb, (((1,), (1,)), ((), ())),
                                  preferred_element_type=jnp.float32)   # (H, H)
        # Zero cross-head blocks and fold in the q scale (precomputed mask).
        context_b = (context * mask_scale).astype(jnp.bfloat16)
        # out[e, n] = sum_d context[d, e] * q[d, n]    (all heads at once)
        out = lax.dot_general(context_b, qb, (((0,), (0,)), ((), ())),
                              preferred_element_type=jnp.float32)       # (H, N)

        # ---- to_out[0]: 1x1 conv with bias ----
        y = jnp.dot(wout, out.astype(jnp.bfloat16),
                    preferred_element_type=jnp.float32) + bout          # (C, N)

        # ---- to_out[1]: GroupNorm(1, C): single pass ----
        t1 = jnp.sum(y)
        t2 = jnp.sum(y * y)
        m2 = t1 * inv_cn
        v2 = jnp.maximum(t2 * inv_cn - m2 * m2, 0.0)
        o_ref[s] = (y - m2) * lax.rsqrt(v2 + EPS) * g_post + b_post


def prenorm_linear_attention(x, w_qkv, w_out, b_out, g_pre, b_pre, g_post, b_post,
                             *, block_b=4):
    B, C, H, W = x.shape
    N = H * W
    # Single-block-in-N design keeps the (3H, N) qkv slab + temporaries in VMEM.
    # TODO(synk): add an N-tiled, two-pass-GroupNorm variant (with vmem_limit_bytes
    #             re-budgeted for v7x 64 MiB / v5e 16 MiB scoped default) for large H*W.
    assert N <= 2048, "N = H*W too large for the single-block kernel; add N-tiling"

    Bt = max(1, min(block_b, B))
    nb = pl.cdiv(B, Bt)
    B_pad = nb * Bt

    x_flat = x.reshape(B, C, N).astype(jnp.float32)
    if B_pad != B:
        x_flat = jnp.pad(x_flat, ((0, B_pad - B), (0, 0), (0, 0)))

    # Precomputed head-structure constants (constant index_map -> VMEM resident).
    head_id = jnp.arange(HIDDEN, dtype=jnp.int32) // DIM_HEAD
    sel = (jnp.arange(HEADS, dtype=jnp.int32)[:, None] == head_id[None, :]
           ).astype(jnp.bfloat16)                                 # (HEADS, H)
    expand = jnp.transpose(sel)                                   # (H, HEADS)
    mask_scale = ((head_id[:, None] == head_id[None, :]).astype(jnp.float32)
                  * (DIM_HEAD ** -0.5))                           # (H, H), q-scale folded

    wqkv_b = w_qkv.astype(jnp.bfloat16)
    wout_b = w_out.astype(jnp.bfloat16)
    bout2 = b_out.reshape(C, 1).astype(jnp.float32)
    g_pre2 = g_pre.reshape(C, 1).astype(jnp.float32)
    b_pre2 = b_pre.reshape(C, 1).astype(jnp.float32)
    g_post2 = g_post.reshape(C, 1).astype(jnp.float32)
    b_post2 = b_post.reshape(C, 1).astype(jnp.float32)

    def const(b):
        return (0, 0)

    out = pl.pallas_call(
        prenorm_linear_attention_kernel,
        out_shape=jax.ShapeDtypeStruct((B_pad, C, N), jnp.float32),
        grid_spec=pltpu.PrefetchScalarGridSpec(
            num_scalar_prefetch=0,
            grid=(nb,),
            in_specs=[
                pl.BlockSpec((Bt, C, N), lambda b: (b, 0, 0)),    # x (Bt samples / step)
                pl.BlockSpec((3 * HIDDEN, C), const),             # to_qkv weight (bf16)
                pl.BlockSpec((C, HIDDEN), const),                 # to_out conv weight (bf16)
                pl.BlockSpec((C, 1), const),                      # to_out conv bias
                pl.BlockSpec((C, 1), const),                      # PreNorm GN gamma
                pl.BlockSpec((C, 1), const),                      # PreNorm GN beta
                pl.BlockSpec((C, 1), const),                      # to_out GN gamma
                pl.BlockSpec((C, 1), const),                      # to_out GN beta
                pl.BlockSpec((HIDDEN, HIDDEN), const),            # block-diag head mask * scale
                pl.BlockSpec((HEADS, HIDDEN), const),             # head selector (bf16)
                pl.BlockSpec((HIDDEN, HEADS), const),             # head expander (bf16)
            ],
            out_specs=pl.BlockSpec((Bt, C, N), lambda b: (b, 0, 0)),
        ),
        # Batch axis is fully independent work -> "parallel" so megacore / v7x's two
        # TensorCores can shard the grid.
        compiler_params=pltpu.CompilerParams(dimension_semantics=("parallel",)),
    )(x_flat, wqkv_b, wout_b, bout2, g_pre2, b_pre2, g_post2, b_post2,
      mask_scale, sel, expand)
    return out[:B].reshape(B, C, H, W)


def reference(x, w_qkv, w_out, b_out, g_pre, b_pre, g_post, b_post):
    """Pure-JAX f32 reference mirroring PreNorm(dim, LinearAttention(dim)).forward."""
    B, C, H, W = x.shape
    N = H * W
    scale = DIM_HEAD ** (-0.5)
    xf = x.reshape(B, C, N)
    # PreNorm GroupNorm(1, C)
    mean = xf.mean(axis=(1, 2), keepdims=True)
    var = ((xf - mean) ** 2).mean(axis=(1, 2), keepdims=True)
    xn = (xf - mean) / jnp.sqrt(var + EPS) * g_pre.reshape(1, C, 1) + b_pre.reshape(1, C, 1)
    # LinearAttention
    qkv = jnp.einsum('oc,bcn->bon', w_qkv, xn)
    q, k, v = jnp.split(qkv, 3, axis=1)
    q, k, v = (t.reshape(B, HEADS, DIM_HEAD, N) for t in (q, k, v))
    q = jax.nn.softmax(q, axis=-2) * scale
    k = jax.nn.softmax(k, axis=-1)
    context = jnp.einsum('bhdn,bhen->bhde', k, v)
    out = jnp.einsum('bhde,bhdn->bhen', context, q).reshape(B, HIDDEN, N)
    y = jnp.einsum('ch,bhn->bcn', w_out, out) + b_out.reshape(1, C, 1)
    # to_out GroupNorm(1, C)
    m2 = y.mean(axis=(1, 2), keepdims=True)
    v2 = ((y - m2) ** 2).mean(axis=(1, 2), keepdims=True)
    y = (y - m2) / jnp.sqrt(v2 + EPS) * g_post.reshape(1, C, 1) + b_post.reshape(1, C, 1)
    return y.reshape(B, C, H, W)


if __name__ == "__main__":
    B, C, H, W = 8, 4, 16, 16      # dim=4, NCHW like the PyTorch module; 2 grid steps of 4
    key = jax.random.PRNGKey(0)
    ks = jax.random.split(key, 8)

    x = jax.random.normal(ks[0], (B, C, H, W), jnp.float32)
    # Deterministic synthetic parameters (shapes from the tutorial __init__s):
    w_qkv = 0.1 * jax.random.normal(ks[1], (3 * HIDDEN, C), jnp.float32)   # Conv2d(dim, 3*hidden, 1, bias=False)
    w_out = 0.1 * jax.random.normal(ks[2], (C, HIDDEN), jnp.float32)       # Conv2d(hidden, dim, 1)
    b_out = 0.1 * jax.random.normal(ks[3], (C,), jnp.float32)
    g_pre = 1.0 + 0.1 * jax.random.normal(ks[4], (C,), jnp.float32)        # PreNorm GroupNorm(1, dim) weight
    b_pre = 0.1 * jax.random.normal(ks[5], (C,), jnp.float32)              # PreNorm GroupNorm(1, dim) bias
    g_post = 1.0 + 0.1 * jax.random.normal(ks[6], (C,), jnp.float32)       # to_out GroupNorm(1, dim) weight
    b_post = 0.1 * jax.random.normal(ks[7], (C,), jnp.float32)             # to_out GroupNorm(1, dim) bias

    out = prenorm_linear_attention(x, w_qkv, w_out, b_out, g_pre, b_pre, g_post, b_post)
    jax.block_until_ready(out)

    ref = reference(x, w_qkv, w_out, b_out, g_pre, b_pre, g_post, b_post)
    max_err = float(jnp.max(jnp.abs(out - ref)))
    # Tolerance budget: 5 bf16-operand MXU matmuls + EUP approx reciprocals + bf16
    # denominator/max expansion vs. a pure-f32 reference.
    assert jnp.allclose(out, ref, atol=2e-2, rtol=2e-2), f"max err {max_err}"
    print("KERNEL_OK")
</pallas_src>

<mosaic_0001>
module attributes {stable_mosaic.version = 11 : i64} {
  func.func @prenorm_linear_attention_kernel(%arg0: i32, %arg1: memref<4x4x256xf32, #tpu.memory_space<vmem>>, %arg2: memref<384x4xbf16, #tpu.memory_space<vmem>>, %arg3: memref<4x128xbf16, #tpu.memory_space<vmem>>, %arg4: memref<4x1xf32, #tpu.memory_space<vmem>>, %arg5: memref<4x1xf32, #tpu.memory_space<vmem>>, %arg6: memref<4x1xf32, #tpu.memory_space<vmem>>, %arg7: memref<4x1xf32, #tpu.memory_space<vmem>>, %arg8: memref<4x1xf32, #tpu.memory_space<vmem>>, %arg9: memref<128x128xf32, #tpu.memory_space<vmem>>, %arg10: memref<4x128xbf16, #tpu.memory_space<vmem>>, %arg11: memref<128x4xbf16, #tpu.memory_space<vmem>>, %arg12: memref<4x4x256xf32, #tpu.memory_space<vmem>>) attributes {dimension_semantics = [#tpu.dimension_semantics<parallel>], iteration_bounds = array<i64: 2>, scalar_prefetch = 0 : i64, scratch_operands = 0 : i64, tpu.core_type = #tpu.core_type<tc>, window_params = [{transform_indices = @transform_0, window_bounds = array<i64: 4, 4, 256>}, {pipeline_mode = #tpu.pipeline_mode<synchronous>, transform_indices = @transform_1, window_bounds = array<i64: 384, 4>}, {pipeline_mode = #tpu.pipeline_mode<synchronous>, transform_indices = @transform_2, window_bounds = array<i64: 4, 128>}, {pipeline_mode = #tpu.pipeline_mode<synchronous>, transform_indices = @transform_3, window_bounds = array<i64: 4, 1>}, {pipeline_mode = #tpu.pipeline_mode<synchronous>, transform_indices = @transform_4, window_bounds = array<i64: 4, 1>}, {pipeline_mode = #tpu.pipeline_mode<synchronous>, transform_indices = @transform_5, window_bounds = array<i64: 4, 1>}, {pipeline_mode = #tpu.pipeline_mode<synchronous>, transform_indices = @transform_6, window_bounds = array<i64: 4, 1>}, {pipeline_mode = #tpu.pipeline_mode<synchronous>, transform_indices = @transform_7, window_bounds = array<i64: 4, 1>}, {pipeline_mode = #tpu.pipeline_mode<synchronous>, transform_indices = @transform_8, window_bounds = array<i64: 128, 128>}, {pipeline_mode = #tpu.pipeline_mode<synchronous>, transform_indices = @transform_9, window_bounds = array<i64: 4, 128>}, {pipeline_mode = #tpu.pipeline_mode<synchronous>, transform_indices = @transform_10, window_bounds = array<i64: 128, 4>}, {transform_indices = @transform_11, window_bounds = array<i64: 4, 4, 256>}]} {
    %c0 = arith.constant 0 : index
    %c0_0 = arith.constant 0 : index
    %0 = vector.load %arg2[%c0, %c0_0] : memref<384x4xbf16, #tpu.memory_space<vmem>>, vector<384x4xbf16>
    %c0_1 = arith.constant 0 : index
    %c0_2 = arith.constant 0 : index
    %1 = vector.load %arg3[%c0_1, %c0_2] : memref<4x128xbf16, #tpu.memory_space<vmem>>, vector<4x128xbf16>
    %c0_3 = arith.constant 0 : index
    %c0_4 = arith.constant 0 : index
    %2 = vector.load %arg4[%c0_3, %c0_4] : memref<4x1xf32, #tpu.memory_space<vmem>>, vector<4x1xf32>
    %c0_5 = arith.constant 0 : index
    %c0_6 = arith.constant 0 : index
    %3 = vector.load %arg5[%c0_5, %c0_6] : memref<4x1xf32, #tpu.memory_space<vmem>>, vector<4x1xf32>
    %c0_7 = arith.constant 0 : index
    %c0_8 = arith.constant 0 : index
    %4 = vector.load %arg6[%c0_7, %c0_8] : memref<4x1xf32, #tpu.memory_space<vmem>>, vector<4x1xf32>
    %c0_9 = arith.constant 0 : index
    %c0_10 = arith.constant 0 : index
    %5 = vector.load %arg7[%c0_9, %c0_10] : memref<4x1xf32, #tpu.memory_space<vmem>>, vector<4x1xf32>
    %c0_11 = arith.constant 0 : index
    %c0_12 = arith.constant 0 : index
    %6 = vector.load %arg8[%c0_11, %c0_12] : memref<4x1xf32, #tpu.memory_space<vmem>>, vector<4x1xf32>
    %c0_13 = arith.constant 0 : index
    %c0_14 = arith.constant 0 : index
    %7 = vector.load %arg9[%c0_13, %c0_14] : memref<128x128xf32, #tpu.memory_space<vmem>>, vector<128x128xf32>
    %c0_15 = arith.constant 0 : index
    %c0_16 = arith.constant 0 : index
    %8 = vector.load %arg10[%c0_15, %c0_16] : memref<4x128xbf16, #tpu.memory_space<vmem>>, vector<4x128xbf16>
    %c0_17 = arith.constant 0 : index
    %c0_18 = arith.constant 0 : index
    %9 = vector.load %arg11[%c0_17, %c0_18] : memref<128x4xbf16, #tpu.memory_space<vmem>>, vector<128x4xbf16>
    %c0_19 = arith.constant 0 : index
    %c0_20 = arith.constant 0 : index
    %c0_21 = arith.constant 0 : index
    %10 = vector.load %arg1[%c0_19, %c0_20, %c0_21] : memref<4x4x256xf32, #tpu.memory_space<vmem>>, vector<1x4x256xf32>
    %11 = vector.shape_cast %10 : vector<1x4x256xf32> to vector<4x256xf32>
    %12 = vector.shape_cast %11 : vector<4x256xf32> to vector<1x4x256xf32>
    %cst = arith.constant dense<0.000000e+00> : vector<1xf32>
    %13 = vector.multi_reduction <add>, %12, %cst [1, 2] : vector<1x4x256xf32> to vector<1xf32>
    %14 = vector.shape_cast %13 : vector<1xf32> to vector<1x1x1xf32>
    %15 = vector.extract %14[0, 0, 0] : f32 from vector<1x1x1xf32>
    %16 = arith.mulf %11, %11 : vector<4x256xf32>
    %17 = vector.shape_cast %16 : vector<4x256xf32> to vector<1x4x256xf32>
    %cst_22 = arith.constant dense<0.000000e+00> : vector<1xf32>
    %18 = vector.multi_reduction <add>, %17, %cst_22 [1, 2] : vector<1x4x256xf32> to vector<1xf32>
    %19 = vector.shape_cast %18 : vector<1xf32> to vector<1x1x1xf32>
    %20 = vector.extract %19[0, 0, 0] : f32 from vector<1x1x1xf32>
    %cst_23 = arith.constant 9.765625E-4 : f32
    %21 = arith.mulf %15, %cst_23 : f32
    %cst_24 = arith.constant 9.765625E-4 : f32
    %22 = arith.mulf %20, %cst_24 : f32
    %23 = arith.mulf %21, %21 : f32
    %24 = arith.subf %22, %23 : f32
    %cst_25 = arith.constant 0.000000e+00 : f32
    %25 = arith.maximumf %24, %cst_25 : f32
    %26 = vector.broadcast %21 : f32 to vector<4x256xf32>
    %27 = arith.subf %11, %26 : vector<4x256xf32>
    %cst_26 = arith.constant 9.99999974E-6 : f32
    %28 = arith.addf %25, %cst_26 : f32
    %29 = math.rsqrt %28 : f32
    %30 = vector.broadcast %29 : f32 to vector<4x256xf32>
    %31 = arith.mulf %27, %30 : vector<4x256xf32>
    %32 = vector.broadcast %3 : vector<4x1xf32> to vector<4x256xf32>
    %33 = arith.mulf %31, %32 : vector<4x256xf32>
    %34 = vector.broadcast %4 : vector<4x1xf32> to vector<4x256xf32>
    %35 = arith.addf %33, %34 : vector<4x256xf32>
    %36 = arith.truncf %35 : vector<4x256xf32> to vector<4x256xbf16>
    %cst_27 = arith.constant dense<0.000000e+00> : vector<384x256xf32>
    %37 = tpu.matmul %0, %36, %cst_27 {dimension_numbers = #tpu.dot_dimension_numbers<[1], [0], [0], [1], [0, 0, 1, 1], [], []>} : vector<384x4xbf16>, vector<4x256xbf16>, vector<384x256xf32> -> vector<384x256xf32>
    %38 = vector.extract_strided_slice %37 {offsets = [0, 0], sizes = [128, 256], strides = [1, 1]} : vector<384x256xf32> to vector<128x256xf32>
    %39 = vector.extract_strided_slice %37 {offsets = [128, 0], sizes = [128, 256], strides = [1, 1]} : vector<384x256xf32> to vector<128x256xf32>
    %40 = vector.extract_strided_slice %37 {offsets = [256, 0], sizes = [128, 256], strides = [1, 1]} : vector<384x256xf32> to vector<128x256xf32>
    %41 = vector.extract_strided_slice %38 {offsets = [0, 0], sizes = [32, 256], strides = [1, 1]} : vector<128x256xf32> to vector<32x256xf32>
    %cst_28 = arith.constant dense<0xFF800000> : vector<256xf32>
    %42 = vector.multi_reduction <maximumf>, %41, %cst_28 [0] : vector<32x256xf32> to vector<256xf32>
    %43 = vector.shape_cast %42 : vector<256xf32> to vector<1x256xf32>
    %44 = vector.extract_strided_slice %38 {offsets = [32, 0], sizes = [32, 256], strides = [1, 1]} : vector<128x256xf32> to vector<32x256xf32>
    %cst_29 = arith.constant dense<0xFF800000> : vector<256xf32>
    %45 = vector.multi_reduction <maximumf>, %44, %cst_29 [0] : vector<32x256xf32> to vector<256xf32>
    %46 = vector.shape_cast %45 : vector<256xf32> to vector<1x256xf32>
    %47 = vector.extract_strided_slice %38 {offsets = [64, 0], sizes = [32, 256], strides = [1, 1]} : vector<128x256xf32> to vector<32x256xf32>
    %cst_30 = arith.constant dense<0xFF800000> : vector<256xf32>
    %48 = vector.multi_reduction <maximumf>, %47, %cst_30 [0] : vector<32x256xf32> to vector<256xf32>
    %49 = vector.shape_cast %48 : vector<256xf32> to vector<1x256xf32>
    %50 = vector.extract_strided_slice %38 {offsets = [96, 0], sizes = [32, 256], strides = [1, 1]} : vector<128x256xf32> to vector<32x256xf32>
    %cst_31 = arith.constant dense<0xFF800000> : vector<256xf32>
    %51 = vector.multi_reduction <maximumf>, %50, %cst_31 [0] : vector<32x256xf32> to vector<256xf32>
    %52 = vector.shape_cast %51 : vector<256xf32> to vector<1x256xf32>
    %53 = tpu.concatenate %43, %46, %49, %52 in 0 : vector<1x256xf32>, vector<1x256xf32>, vector<1x256xf32>, vector<1x256xf32> -> vector<4x256xf32>
    %54 = arith.truncf %53 : vector<4x256xf32> to vector<4x256xbf16>
    %cst_32 = arith.constant dense<0.000000e+00> : vector<128x256xf32>
    %55 = tpu.matmul %9, %54, %cst_32 {dimension_numbers = #tpu.dot_dimension_numbers<[1], [0], [0], [1], [0, 0, 1, 1], [], []>} : vector<128x4xbf16>, vector<4x256xbf16>, vector<128x256xf32> -> vector<128x256xf32>
    %56 = arith.subf %38, %55 : vector<128x256xf32>
    %57 = math.exp %56 : vector<128x256xf32>
    %58 = arith.truncf %57 : vector<128x256xf32> to vector<128x256xbf16>
    %cst_33 = arith.constant dense<0.000000e+00> : vector<4x256xf32>
    %59 = tpu.matmul %8, %58, %cst_33 {dimension_numbers = #tpu.dot_dimension_numbers<[1], [0], [0], [1], [0, 0, 1, 1], [], []>} : vector<4x128xbf16>, vector<128x256xbf16>, vector<4x256xf32> -> vector<4x256xf32>
    %60 = tpu.reciprocal %59 {approx = true} : vector<4x256xf32> -> vector<4x256xf32>
    %61 = arith.truncf %60 : vector<4x256xf32> to vector<4x256xbf16>
    %cst_34 = arith.constant dense<0.000000e+00> : vector<128x256xf32>
    %62 = tpu.matmul %9, %61, %cst_34 {dimension_numbers = #tpu.dot_dimension_numbers<[1], [0], [0], [1], [0, 0, 1, 1], [], []>} : vector<128x4xbf16>, vector<4x256xbf16>, vector<128x256xf32> -> vector<128x256xf32>
    %63 = arith.mulf %57, %62 : vector<128x256xf32>
    %64 = arith.truncf %63 : vector<128x256xf32> to vector<128x256xbf16>
    %cst_35 = arith.constant dense<0xFF800000> : vector<128xf32>
    %65 = vector.multi_reduction <maximumf>, %39, %cst_35 [1] : vector<128x256xf32> to vector<128xf32>
    %66 = vector.shape_cast %65 : vector<128xf32> to vector<128x1xf32>
    %67 = vector.broadcast %66 : vector<128x1xf32> to vector<128x256xf32>
    %68 = arith.subf %39, %67 : vector<128x256xf32>
    %69 = math.exp %68 : vector<128x256xf32>
    %cst_36 = arith.constant dense<0.000000e+00> : vector<128xf32>
    %70 = vector.multi_reduction <add>, %69, %cst_36 [1] : vector<128x256xf32> to vector<128xf32>
    %71 = vector.shape_cast %70 : vector<128xf32> to vector<128x1xf32>
    %72 = tpu.reciprocal %71 {approx = true} : vector<128x1xf32> -> vector<128x1xf32>
    %73 = vector.broadcast %72 : vector<128x1xf32> to vector<128x256xf32>
    %74 = arith.mulf %69, %73 : vector<128x256xf32>
    %75 = arith.truncf %74 : vector<128x256xf32> to vector<128x256xbf16>
    %76 = arith.truncf %40 : vector<128x256xf32> to vector<128x256xbf16>
    %cst_37 = arith.constant dense<0.000000e+00> : vector<128x128xf32>
    %77 = tpu.matmul %75, %76, %cst_37 {dimension_numbers = #tpu.dot_dimension_numbers<[1], [1], [0], [0], [0, 0, 1, 0], [], []>} : vector<128x256xbf16>, vector<128x256xbf16>, vector<128x128xf32> -> vector<128x128xf32>
    %78 = arith.mulf %77, %7 : vector<128x128xf32>
    %79 = arith.truncf %78 : vector<128x128xf32> to vector<128x128xbf16>
    %cst_38 = arith.constant dense<0.000000e+00> : vector<128x256xf32>
    %80 = tpu.matmul %79, %64, %cst_38 {dimension_numbers = #tpu.dot_dimension_numbers<[0], [0], [1], [1], [0, 1, 1, 1], [], []>} : vector<128x128xbf16>, vector<128x256xbf16>, vector<128x256xf32> -> vector<128x256xf32>
    %81 = arith.truncf %80 : vector<128x256xf32> to vector<128x256xbf16>
    %cst_39 = arith.constant dense<0.000000e+00> : vector<4x256xf32>
    %82 = tpu.matmul %1, %81, %cst_39 {dimension_numbers = #tpu.dot_dimension_numbers<[1], [0], [0], [1], [0, 0, 1, 1], [], []>} : vector<4x128xbf16>, vector<128x256xbf16>, vector<4x256xf32> -> vector<4x256xf32>
    %83 = vector.broadcast %2 : vector<4x1xf32> to vector<4x256xf32>
    %84 = arith.addf %82, %83 : vector<4x256xf32>
    %85 = vector.shape_cast %84 : vector<4x256xf32> to vector<1x4x256xf32>
    %cst_40 = arith.constant dense<0.000000e+00> : vector<1xf32>
    %86 = vector.multi_reduction <add>, %85, %cst_40 [1, 2] : vector<1x4x256xf32> to vector<1xf32>
    %87 = vector.shape_cast %86 : vector<1xf32> to vector<1x1x1xf32>
    %88 = vector.extract %87[0, 0, 0] : f32 from vector<1x1x1xf32>
    %89 = arith.mulf %84, %84 : vector<4x256xf32>
    %90 = vector.shape_cast %89 : vector<4x256xf32> to vector<1x4x256xf32>
    %cst_41 = arith.constant dense<0.000000e+00> : vector<1xf32>
    %91 = vector.multi_reduction <add>, %90, %cst_41 [1, 2] : vector<1x4x256xf32> to vector<1xf32>
    %92 = vector.shape_cast %91 : vector<1xf32> to vector<1x1x1xf32>
    %93 = vector.extract %92[0, 0, 0] : f32 from vector<1x1x1xf32>
    %cst_42 = arith.constant 9.765625E-4 : f32
    %94 = arith.mulf %88, %cst_42 : f32
    %cst_43 = arith.constant 9.765625E-4 : f32
    %95 = arith.mulf %93, %cst_43 : f32
    %96 = arith.mulf %94, %94 : f32
    %97 = arith.subf %95, %96 : f32
    %cst_44 = arith.constant 0.000000e+00 : f32
    %98 = arith.maximumf %97, %cst_44 : f32
    %99 = vector.broadcast %94 : f32 to vector<4x256xf32>
    %100 = arith.subf %84, %99 : vector<4x256xf32>
    %cst_45 = arith.constant 9.99999974E-6 : f32
    %101 = arith.addf %98, %cst_45 : f32
    %102 = math.rsqrt %101 : f32
    %103 = vector.broadcast %102 : f32 to vector<4x256xf32>
    %104 = arith.mulf %100, %103 : vector<4x256xf32>
    %105 = vector.broadcast %5 : vector<4x1xf32> to vector<4x256xf32>
    %106 = arith.mulf %104, %105 : vector<4x256xf32>
    %107 = vector.broadcast %6 : vector<4x1xf32> to vector<4x256xf32>
    %108 = arith.addf %106, %107 : vector<4x256xf32>
    %c0_46 = arith.constant 0 : index
    %c0_47 = arith.constant 0 : index
    %c0_48 = arith.constant 0 : index
    %109 = vector.load %arg12[%c0_46, %c0_47, %c0_48] : memref<4x4x256xf32, #tpu.memory_space<vmem>>, vector<1x4x256xf32>
    %110 = vector.shape_cast %109 : vector<1x4x256xf32> to vector<4x256xf32>
    %111 = vector.shape_cast %108 : vector<4x256xf32> to vector<1x4x256xf32>
    tpu.vector_store %arg12[%c0_46, %c0_47, %c0_48], %111 {strides = array<i32>} : memref<4x4x256xf32, #tpu.memory_space<vmem>>, vector<1x4x256xf32>,
    %c1 = arith.constant 1 : index
    %c0_49 = arith.constant 0 : index
    %c0_50 = arith.constant 0 : index
    %112 = vector.load %arg1[%c1, %c0_49, %c0_50] : memref<4x4x256xf32, #tpu.memory_space<vmem>>, vector<1x4x256xf32>
    %113 = vector.shape_cast %112 : vector<1x4x256xf32> to vector<4x256xf32>
    %114 = vector.shape_cast %113 : vector<4x256xf32> to vector<1x4x256xf32>
    %cst_51 = arith.constant dense<0.000000e+00> : vector<1xf32>
    %115 = vector.multi_reduction <add>, %114, %cst_51 [1, 2] : vector<1x4x256xf32> to vector<1xf32>
    %116 = vector.shape_cast %115 : vector<1xf32> to vector<1x1x1xf32>
    %117 = vector.extract %116[0, 0, 0] : f32 from vector<1x1x1xf32>
    %118 = arith.mulf %113, %113 : vector<4x256xf32>
    %119 = vector.shape_cast %118 : vector<4x256xf32> to vector<1x4x256xf32>
    %cst_52 = arith.constant dense<0.000000e+00> : vector<1xf32>
    %120 = vector.multi_reduction <add>, %119, %cst_52 [1, 2] : vector<1x4x256xf32> to vector<1xf32>
    %121 = vector.shape_cast %120 : vector<1xf32> to vector<1x1x1xf32>
    %122 = vector.extract %121[0, 0, 0] : f32 from vector<1x1x1xf32>
    %cst_53 = arith.constant 9.765625E-4 : f32
    %123 = arith.mulf %117, %cst_53 : f32
    %cst_54 = arith.constant 9.765625E-4 : f32
    %124 = arith.mulf %122, %cst_54 : f32
    %125 = arith.mulf %123, %123 : f32
    %126 = arith.subf %124, %125 : f32
    %cst_55 = arith.constant 0.000000e+00 : f32
    %127 = arith.maximumf %126, %cst_55 : f32
    %128 = vector.broadcast %123 : f32 to vector<4x256xf32>
    %129 = arith.subf %113, %128 : vector<4x256xf32>
    %cst_56 = arith.constant 9.99999974E-6 : f32
    %130 = arith.addf %127, %cst_56 : f32
    %131 = math.rsqrt %130 : f32
    %132 = vector.broadcast %131 : f32 to vector<4x256xf32>
    %133 = arith.mulf %129, %132 : vector<4x256xf32>
    %134 = vector.broadcast %3 : vector<4x1xf32> to vector<4x256xf32>
    %135 = arith.mulf %133, %134 : vector<4x256xf32>
    %136 = vector.broadcast %4 : vector<4x1xf32> to vector<4x256xf32>
    %137 = arith.addf %135, %136 : vector<4x256xf32>
    %138 = arith.truncf %137 : vector<4x256xf32> to vector<4x256xbf16>
    %cst_57 = arith.constant dense<0.000000e+00> : vector<384x256xf32>
    %139 = tpu.matmul %0, %138, %cst_57 {dimension_numbers = #tpu.dot_dimension_numbers<[1], [0], [0], [1], [0, 0, 1, 1], [], []>} : vector<384x4xbf16>, vector<4x256xbf16>, vector<384x256xf32> -> vector<384x256xf32>
    %140 = vector.extract_strided_slice %139 {offsets = [0, 0], sizes = [128, 256], strides = [1, 1]} : vector<384x256xf32> to vector<128x256xf32>
    %141 = vector.extract_strided_slice %139 {offsets = [128, 0], sizes = [128, 256], strides = [1, 1]} : vector<384x256xf32> to vector<128x256xf32>
    %142 = vector.extract_strided_slice %139 {offsets = [256, 0], sizes = [128, 256], strides = [1, 1]} : vector<384x256xf32> to vector<128x256xf32>
    %143 = vector.extract_strided_slice %140 {offsets = [0, 0], sizes = [32, 256], strides = [1, 1]} : vector<128x256xf32> to vector<32x256xf32>
    %cst_58 = arith.constant dense<0xFF800000> : vector<256xf32>
    %144 = vector.multi_reduction <maximumf>, %143, %cst_58 [0] : vector<32x256xf32> to vector<256xf32>
    %145 = vector.shape_cast %144 : vector<256xf32> to vector<1x256xf32>
    %146 = vector.extract_strided_slice %140 {offsets = [32, 0], sizes = [32, 256], strides = [1, 1]} : vector<128x256xf32> to vector<32x256xf32>
    %cst_59 = arith.constant dense<0xFF800000> : vector<256xf32>
    %147 = vector.multi_reduction <maximumf>, %146, %cst_59 [0] : vector<32x256xf32> to vector<256xf32>
    %148 = vector.shape_cast %147 : vector<256xf32> to vector<1x256xf32>
    %149 = vector.extract_strided_slice %140 {offsets = [64, 0], sizes = [32, 256], strides = [1, 1]} : vector<128x256xf32> to vector<32x256xf32>
    %cst_60 = arith.constant dense<0xFF800000> : vector<256xf32>
    %150 = vector.multi_reduction <maximumf>, %149, %cst_60 [0] : vector<32x256xf32> to vector<256xf32>
    %151 = vector.shape_cast %150 : vector<256xf32> to vector<1x256xf32>
    %152 = vector.extract_strided_slice %140 {offsets = [96, 0], sizes = [32, 256], strides = [1, 1]} : vector<128x256xf32> to vector<32x256xf32>
    %cst_61 = arith.constant dense<0xFF800000> : vector<256xf32>
    %153 = vector.multi_reduction <maximumf>, %152, %cst_61 [0] : vector<32x256xf32> to vector<256xf32>
    %154 = vector.shape_cast %153 : vector<256xf32> to vector<1x256xf32>
    %155 = tpu.concatenate %145, %148, %151, %154 in 0 : vector<1x256xf32>, vector<1x256xf32>, vector<1x256xf32>, vector<1x256xf32> -> vector<4x256xf32>
    %156 = arith.truncf %155 : vector<4x256xf32> to vector<4x256xbf16>
    %cst_62 = arith.constant dense<0.000000e+00> : vector<128x256xf32>
    %157 = tpu.matmul %9, %156, %cst_62 {dimension_numbers = #tpu.dot_dimension_numbers<[1], [0], [0], [1], [0, 0, 1, 1], [], []>} : vector<128x4xbf16>, vector<4x256xbf16>, vector<128x256xf32> -> vector<128x256xf32>
    %158 = arith.subf %140, %157 : vector<128x256xf32>
    %159 = math.exp %158 : vector<128x256xf32>
    %160 = arith.truncf %159 : vector<128x256xf32> to vector<128x256xbf16>
    %cst_63 = arith.constant dense<0.000000e+00> : vector<4x256xf32>
    %161 = tpu.matmul %8, %160, %cst_63 {dimension_numbers = #tpu.dot_dimension_numbers<[1], [0], [0], [1], [0, 0, 1, 1], [], []>} : vector<4x128xbf16>, vector<128x256xbf16>, vector<4x256xf32> -> vector<4x256xf32>
    %162 = tpu.reciprocal %161 {approx = true} : vector<4x256xf32> -> vector<4x256xf32>
    %163 = arith.truncf %162 : vector<4x256xf32> to vector<4x256xbf16>
    %cst_64 = arith.constant dense<0.000000e+00> : vector<128x256xf32>
    %164 = tpu.matmul %9, %163, %cst_64 {dimension_numbers = #tpu.dot_dimension_numbers<[1], [0], [0], [1], [0, 0, 1, 1], [], []>} : vector<128x4xbf16>, vector<4x256xbf16>, vector<128x256xf32> -> vector<128x256xf32>
    %165 = arith.mulf %159, %164 : vector<128x256xf32>
    %166 = arith.truncf %165 : vector<128x256xf32> to vector<128x256xbf16>
    %cst_65 = arith.constant dense<0xFF800000> : vector<128xf32>
    %167 = vector.multi_reduction <maximumf>, %141, %cst_65 [1] : vector<128x256xf32> to vector<128xf32>
    %168 = vector.shape_cast %167 : vector<128xf32> to vector<128x1xf32>
    %169 = vector.broadcast %168 : vector<128x1xf32> to vector<128x256xf32>
    %170 = arith.subf %141, %169 : vector<128x256xf32>
    %171 = math.exp %170 : vector<128x256xf32>
    %cst_66 = arith.constant dense<0.000000e+00> : vector<128xf32>
    %172 = vector.multi_reduction <add>, %171, %cst_66 [1] : vector<128x256xf32> to vector<128xf32>
    %173 = vector.shape_cast %172 : vector<128xf32> to vector<128x1xf32>
    %174 = tpu.reciprocal %173 {approx = true} : vector<128x1xf32> -> vector<128x1xf32>
    %175 = vector.broadcast %174 : vector<128x1xf32> to vector<128x256xf32>
    %176 = arith.mulf %171, %175 : vector<128x256xf32>
    %177 = arith.truncf %176 : vector<128x256xf32> to vector<128x256xbf16>
    %178 = arith.truncf %142 : vector<128x256xf32> to vector<128x256xbf16>
    %cst_67 = arith.constant dense<0.000000e+00> : vector<128x128xf32>
    %179 = tpu.matmul %177, %178, %cst_67 {dimension_numbers = #tpu.dot_dimension_numbers<[1], [1], [0], [0], [0, 0, 1, 0], [], []>} : vector<128x256xbf16>, vector<128x256xbf16>, vector<128x128xf32> -> vector<128x128xf32>
    %180 = arith.mulf %179, %7 : vector<128x128xf32>
    %181 = arith.truncf %180 : vector<128x128xf32> to vector<128x128xbf16>
    %cst_68 = arith.constant dense<0.000000e+00> : vector<128x256xf32>
    %182 = tpu.matmul %181, %166, %cst_68 {dimension_numbers = #tpu.dot_dimension_numbers<[0], [0], [1], [1], [0, 1, 1, 1], [], []>} : vector<128x128xbf16>, vector<128x256xbf16>, vector<128x256xf32> -> vector<128x256xf32>
    %183 = arith.truncf %182 : vector<128x256xf32> to vector<128x256xbf16>
    %cst_69 = arith.constant dense<0.000000e+00> : vector<4x256xf32>
    %184 = tpu.matmul %1, %183, %cst_69 {dimension_numbers = #tpu.dot_dimension_numbers<[1], [0], [0], [1], [0, 0, 1, 1], [], []>} : vector<4x128xbf16>, vector<128x256xbf16>, vector<4x256xf32> -> vector<4x256xf32>
    %185 = vector.broadcast %2 : vector<4x1xf32> to vector<4x256xf32>
    %186 = arith.addf %184, %185 : vector<4x256xf32>
    %187 = vector.shape_cast %186 : vector<4x256xf32> to vector<1x4x256xf32>
    %cst_70 = arith.constant dense<0.000000e+00> : vector<1xf32>
    %188 = vector.multi_reduction <add>, %187, %cst_70 [1, 2] : vector<1x4x256xf32> to vector<1xf32>
    %189 = vector.shape_cast %188 : vector<1xf32> to vector<1x1x1xf32>
    %190 = vector.extract %189[0, 0, 0] : f32 from vector<1x1x1xf32>
    %191 = arith.mulf %186, %186 : vector<4x256xf32>
    %192 = vector.shape_cast %191 : vector<4x256xf32> to vector<1x4x256xf32>
    %cst_71 = arith.constant dense<0.000000e+00> : vector<1xf32>
    %193 = vector.multi_reduction <add>, %192, %cst_71 [1, 2] : vector<1x4x256xf32> to vector<1xf32>
    %194 = vector.shape_cast %193 : vector<1xf32> to vector<1x1x1xf32>
    %195 = vector.extract %194[0, 0, 0] : f32 from vector<1x1x1xf32>
    %cst_72 = arith.constant 9.765625E-4 : f32
    %196 = arith.mulf %190, %cst_72 : f32
    %cst_73 = arith.constant 9.765625E-4 : f32
    %197 = arith.mulf %195, %cst_73 : f32
    %198 = arith.mulf %196, %196 : f32
    %199 = arith.subf %197, %198 : f32
    %cst_74 = arith.constant 0.000000e+00 : f32
    %200 = arith.maximumf %199, %cst_74 : f32
    %201 = vector.broadcast %196 : f32 to vector<4x256xf32>
    %202 = arith.subf %186, %201 : vector<4x256xf32>
    %cst_75 = arith.constant 9.99999974E-6 : f32
    %203 = arith.addf %200, %cst_75 : f32
    %204 = math.rsqrt %203 : f32
    %205 = vector.broadcast %204 : f32 to vector<4x256xf32>
    %206 = arith.mulf %202, %205 : vector<4x256xf32>
    %207 = vector.broadcast %5 : vector<4x1xf32> to vector<4x256xf32>
    %208 = arith.mulf %206, %207 : vector<4x256xf32>
    %209 = vector.broadcast %6 : vector<4x1xf32> to vector<4x256xf32>
    %210 = arith.addf %208, %209 : vector<4x256xf32>
    %c1_76 = arith.constant 1 : index
    %c0_77 = arith.constant 0 : index
    %c0_78 = arith.constant 0 : index
    %211 = vector.load %arg12[%c1_76, %c0_77, %c0_78] : memref<4x4x256xf32, #tpu.memory_space<vmem>>, vector<1x4x256xf32>
    %212 = vector.shape_cast %211 : vector<1x4x256xf32> to vector<4x256xf32>
    %213 = vector.shape_cast %210 : vector<4x256xf32> to vector<1x4x256xf32>
    tpu.vector_store %arg12[%c1_76, %c0_77, %c0_78], %213 {strides = array<i32>} : memref<4x4x256xf32, #tpu.memory_space<vmem>>, vector<1x4x256xf32>,
    %c2 = arith.constant 2 : index
    %c0_79 = arith.constant 0 : index
    %c0_80 = arith.constant 0 : index
    %214 = vector.load %arg1[%c2, %c0_79, %c0_80] : memref<4x4x256xf32, #tpu.memory_space<vmem>>, vector<1x4x256xf32>
    %215 = vector.shape_cast %214 : vector<1x4x256xf32> to vector<4x256xf32>
    %216 = vector.shape_cast %215 : vector<4x256xf32> to vector<1x4x256xf32>
    %cst_81 = arith.constant dense<0.000000e+00> : vector<1xf32>
    %217 = vector.multi_reduction <add>, %216, %cst_81 [1, 2] : vector<1x4x256xf32> to vector<1xf32>
    %218 = vector.shape_cast %217 : vector<1xf32> to vector<1x1x1xf32>
    %219 = vector.extract %218[0, 0, 0] : f32 from vector<1x1x1xf32>
    %220 = arith.mulf %215, %215 : vector<4x256xf32>
    %221 = vector.shape_cast %220 : vector<4x256xf32> to vector<1x4x256xf32>
    %cst_82 = arith.constant dense<0.000000e+00> : vector<1xf32>
    %222 = vector.multi_reduction <add>, %221, %cst_82 [1, 2] : vector<1x4x256xf32> to vector<1xf32>
    %223 = vector.shape_cast %222 : vector<1xf32> to vector<1x1x1xf32>
    %224 = vector.extract %223[0, 0, 0] : f32 from vector<1x1x1xf32>
    %cst_83 = arith.constant 9.765625E-4 : f32
    %225 = arith.mulf %219, %cst_83 : f32
    %cst_84 = arith.constant 9.765625E-4 : f32
    %226 = arith.mulf %224, %cst_84 : f32
    %227 = arith.mulf %225, %225 : f32
    %228 = arith.subf %226, %227 : f32
    %cst_85 = arith.constant 0.000000e+00 : f32
    %229 = arith.maximumf %228, %cst_85 : f32
    %230 = vector.broadcast %225 : f32 to vector<4x256xf32>
    %231 = arith.subf %215, %230 : vector<4x256xf32>
    %cst_86 = arith.constant 9.99999974E-6 : f32
    %232 = arith.addf %229, %cst_86 : f32
    %233 = math.rsqrt %232 : f32
    %234 = vector.broadcast %233 : f32 to vector<4x256xf32>
    %235 = arith.mulf %231, %234 : vector<4x256xf32>
    %236 = vector.broadcast %3 : vector<4x1xf32> to vector<4x256xf32>
    %237 = arith.mulf %235, %236 : vector<4x256xf32>
    %238 = vector.broadcast %4 : vector<4x1xf32> to vector<4x256xf32>
    %239 = arith.addf %237, %238 : vector<4x256xf32>
    %240 = arith.truncf %239 : vector<4x256xf32> to vector<4x256xbf16>
    %cst_87 = arith.constant dense<0.000000e+00> : vector<384x256xf32>
    %241 = tpu.matmul %0, %240, %cst_87 {dimension_numbers = #tpu.dot_dimension_numbers<[1], [0], [0], [1], [0, 0, 1, 1], [], []>} : vector<384x4xbf16>, vector<4x256xbf16>, vector<384x256xf32> -> vector<384x256xf32>
    %242 = vector.extract_strided_slice %241 {offsets = [0, 0], sizes = [128, 256], strides = [1, 1]} : vector<384x256xf32> to vector<128x256xf32>
    %243 = vector.extract_strided_slice %241 {offsets = [128, 0], sizes = [128, 256], strides = [1, 1]} : vector<384x256xf32> to vector<128x256xf32>
    %244 = vector.extract_strided_slice %241 {offsets = [256, 0], sizes = [128, 256], strides = [1, 1]} : vector<384x256xf32> to vector<128x256xf32>
    %245 = vector.extract_strided_slice %242 {offsets = [0, 0], sizes = [32, 256], strides = [1, 1]} : vector<128x256xf32> to vector<32x256xf32>
    %cst_88 = arith.constant dense<0xFF800000> : vector<256xf32>
    %246 = vector.multi_reduction <maximumf>, %245, %cst_88 [0] : vector<32x256xf32> to vector<256xf32>
    %247 = vector.shape_cast %246 : vector<256xf32> to vector<1x256xf32>
    %248 = vector.extract_strided_slice %242 {offsets = [32, 0], sizes = [32, 256], strides = [1, 1]} : vector<128x256xf32> to vector<32x256xf32>
    %cst_89 = arith.constant dense<0xFF800000> : vector<256xf32>
    %249 = vector.multi_reduction <maximumf>, %248, %cst_89 [0] : vector<32x256xf32> to vector<256xf32>
    %250 = vector.shape_cast %249 : vector<256xf32> to vector<1x256xf32>
    %251 = vector.extract_strided_slice %242 {offsets = [64, 0], sizes = [32, 256], strides = [1, 1]} : vector<128x256xf32> to vector<32x256xf32>
    %cst_90 = arith.constant dense<0xFF800000> : vector<256xf32>
    %252 = vector.multi_reduction <maximumf>, %251, %cst_90 [0] : vector<32x256xf32> to vector<256xf32>
    %253 = vector.shape_cast %252 : vector<256xf32> to vector<1x256xf32>
    %254 = vector.extract_strided_slice %242 {offsets = [96, 0], sizes = [32, 256], strides = [1, 1]} : vector<128x256xf32> to vector<32x256xf32>
    %cst_91 = arith.constant dense<0xFF800000> : vector<256xf32>
    %255 = vector.multi_reduction <maximumf>, %254, %cst_91 [0] : vector<32x256xf32> to vector<256xf32>
    %256 = vector.shape_cast %255 : vector<256xf32> to vector<1x256xf32>
    %257 = tpu.concatenate %247, %250, %253, %256 in 0 : vector<1x256xf32>, vector<1x256xf32>, vector<1x256xf32>, vector<1x256xf32> -> vector<4x256xf32>
    %258 = arith.truncf %257 : vector<4x256xf32> to vector<4x256xbf16>
    %cst_92 = arith.constant dense<0.000000e+00> : vector<128x256xf32>
    %259 = tpu.matmul %9, %258, %cst_92 {dimension_numbers = #tpu.dot_dimension_numbers<[1], [0], [0], [1], [0, 0, 1, 1], [], []>} : vector<128x4xbf16>, vector<4x256xbf16>, vector<128x256xf32> -> vector<128x256xf32>
    %260 = arith.subf %242, %259 : vector<128x256xf32>
    %261 = math.exp %260 : vector<128x256xf32>
    %262 = arith.truncf %261 : vector<128x256xf32> to vector<128x256xbf16>
    %cst_93 = arith.constant dense<0.000000e+00> : vector<4x256xf32>
    %263 = tpu.matmul %8, %262, %cst_93 {dimension_numbers = #tpu.dot_dimension_numbers<[1], [0], [0], [1], [0, 0, 1, 1], [], []>} : vector<4x128xbf16>, vector<128x256xbf16>, vector<4x256xf32> -> vector<4x256xf32>
    %264 = tpu.reciprocal %263 {approx = true} : vector<4x256xf32> -> vector<4x256xf32>
    %265 = arith.truncf %264 : vector<4x256xf32> to vector<4x256xbf16>
    %cst_94 = arith.constant dense<0.000000e+00> : vector<128x256xf32>
    %266 = tpu.matmul %9, %265, %cst_94 {dimension_numbers = #tpu.dot_dimension_numbers<[1], [0], [0], [1], [0, 0, 1, 1], [], []>} : vector<128x4xbf16>, vector<4x256xbf16>, vector<128x256xf32> -> vector<128x256xf32>
    %267 = arith.mulf %261, %266 : vector<128x256xf32>
    %268 = arith.truncf %267 : vector<128x256xf32> to vector<128x256xbf16>
    %cst_95 = arith.constant dense<0xFF800000> : vector<128xf32>
    %269 = vector.multi_reduction <maximumf>, %243, %cst_95 [1] : vector<128x256xf32> to vector<128xf32>
    %270 = vector.shape_cast %269 : vector<128xf32> to vector<128x1xf32>
    %271 = vector.broadcast %270 : vector<128x1xf32> to vector<128x256xf32>
    %272 = arith.subf %243, %271 : vector<128x256xf32>
    %273 = math.exp %272 : vector<128x256xf32>
    %cst_96 = arith.constant dense<0.000000e+00> : vector<128xf32>
    %274 = vector.multi_reduction <add>, %273, %cst_96 [1] : vector<128x256xf32> to vector<128xf32>
    %275 = vector.shape_cast %274 : vector<128xf32> to vector<128x1xf32>
    %276 = tpu.reciprocal %275 {approx = true} : vector<128x1xf32> -> vector<128x1xf32>
    %277 = vector.broadcast %276 : vector<128x1xf32> to vector<128x256xf32>
    %278 = arith.mulf %273, %277 : vector<128x256xf32>
    %279 = arith.truncf %278 : vector<128x256xf32> to vector<128x256xbf16>
    %280 = arith.truncf %244 : vector<128x256xf32> to vector<128x256xbf16>
    %cst_97 = arith.constant dense<0.000000e+00> : vector<128x128xf32>
    %281 = tpu.matmul %279, %280, %cst_97 {dimension_numbers = #tpu.dot_dimension_numbers<[1], [1], [0], [0], [0, 0, 1, 0], [], []>} : vector<128x256xbf16>, vector<128x256xbf16>, vector<128x128xf32> -> vector<128x128xf32>
    %282 = arith.mulf %281, %7 : vector<128x128xf32>
    %283 = arith.truncf %282 : vector<128x128xf32> to vector<128x128xbf16>
    %cst_98 = arith.constant dense<0.000000e+00> : vector<128x256xf32>
    %284 = tpu.matmul %283, %268, %cst_98 {dimension_numbers = #tpu.dot_dimension_numbers<[0], [0], [1], [1], [0, 1, 1, 1], [], []>} : vector<128x128xbf16>, vector<128x256xbf16>, vector<128x256xf32> -> vector<128x256xf32>
    %285 = arith.truncf %284 : vector<128x256xf32> to vector<128x256xbf16>
    %cst_99 = arith.constant dense<0.000000e+00> : vector<4x256xf32>
    %286 = tpu.matmul %1, %285, %cst_99 {dimension_numbers = #tpu.dot_dimension_numbers<[1], [0], [0], [1], [0, 0, 1, 1], [], []>} : vector<4x128xbf16>, vector<128x256xbf16>, vector<4x256xf32> -> vector<4x256xf32>
    %287 = vector.broadcast %2 : vector<4x1xf32> to vector<4x256xf32>
    %288 = arith.addf %286, %287 : vector<4x256xf32>
    %289 = vector.shape_cast %288 : vector<4x256xf32> to vector<1x4x256xf32>
    %cst_100 = arith.constant dense<0.000000e+00> : vector<1xf32>
    %290 = vector.multi_reduction <add>, %289, %cst_100 [1, 2] : vector<1x4x256xf32> to vector<1xf32>
    %291 = vector.shape_cast %290 : vector<1xf32> to vector<1x1x1xf32>
    %292 = vector.extract %291[0, 0, 0] : f32 from vector<1x1x1xf32>
    %293 = arith.mulf %288, %288 : vector<4x256xf32>
    %294 = vector.shape_cast %293 : vector<4x256xf32> to vector<1x4x256xf32>
    %cst_101 = arith.constant dense<0.000000e+00> : vector<1xf32>
    %295 = vector.multi_reduction <add>, %294, %cst_101 [1, 2] : vector<1x4x256xf32> to vector<1xf32>
    %296 = vector.shape_cast %295 : vector<1xf32> to vector<1x1x1xf32>
    %297 = vector.extract %296[0, 0, 0] : f32 from vector<1x1x1xf32>
    %cst_102 = arith.constant 9.765625E-4 : f32
    %298 = arith.mulf %292, %cst_102 : f32
    %cst_103 = arith.constant 9.765625E-4 : f32
    %299 = arith.mulf %297, %cst_103 : f32
    %300 = arith.mulf %298, %298 : f32
    %301 = arith.subf %299, %300 : f32
    %cst_104 = arith.constant 0.000000e+00 : f32
    %302 = arith.maximumf %301, %cst_104 : f32
    %303 = vector.broadcast %298 : f32 to vector<4x256xf32>
    %304 = arith.subf %288, %303 : vector<4x256xf32>
    %cst_105 = arith.constant 9.99999974E-6 : f32
    %305 = arith.addf %302, %cst_105 : f32
    %306 = math.rsqrt %305 : f32
    %307 = vector.broadcast %306 : f32 to vector<4x256xf32>
    %308 = arith.mulf %304, %307 : vector<4x256xf32>
    %309 = vector.broadcast %5 : vector<4x1xf32> to vector<4x256xf32>
    %310 = arith.mulf %308, %309 : vector<4x256xf32>
    %311 = vector.broadcast %6 : vector<4x1xf32> to vector<4x256xf32>
    %312 = arith.addf %310, %311 : vector<4x256xf32>
    %c2_106 = arith.constant 2 : index
    %c0_107 = arith.constant 0 : index
    %c0_108 = arith.constant 0 : index
    %313 = vector.load %arg12[%c2_106, %c0_107, %c0_108] : memref<4x4x256xf32, #tpu.memory_space<vmem>>, vector<1x4x256xf32>
    %314 = vector.shape_cast %313 : vector<1x4x256xf32> to vector<4x256xf32>
    %315 = vector.shape_cast %312 : vector<4x256xf32> to vector<1x4x256xf32>
    tpu.vector_store %arg12[%c2_106, %c0_107, %c0_108], %315 {strides = array<i32>} : memref<4x4x256xf32, #tpu.memory_space<vmem>>, vector<1x4x256xf32>,
    %c3 = arith.constant 3 : index
    %c0_109 = arith.constant 0 : index
    %c0_110 = arith.constant 0 : index
    %316 = vector.load %arg1[%c3, %c0_109, %c0_110] : memref<4x4x256xf32, #tpu.memory_space<vmem>>, vector<1x4x256xf32>
    %317 = vector.shape_cast %316 : vector<1x4x256xf32> to vector<4x256xf32>
    %318 = vector.shape_cast %317 : vector<4x256xf32> to vector<1x4x256xf32>
    %cst_111 = arith.constant dense<0.000000e+00> : vector<1xf32>
    %319 = vector.multi_reduction <add>, %318, %cst_111 [1, 2] : vector<1x4x256xf32> to vector<1xf32>
    %320 = vector.shape_cast %319 : vector<1xf32> to vector<1x1x1xf32>
    %321 = vector.extract %320[0, 0, 0] : f32 from vector<1x1x1xf32>
    %322 = arith.mulf %317, %317 : vector<4x256xf32>
    %323 = vector.shape_cast %322 : vector<4x256xf32> to vector<1x4x256xf32>
    %cst_112 = arith.constant dense<0.000000e+00> : vector<1xf32>
    %324 = vector.multi_reduction <add>, %323, %cst_112 [1, 2] : vector<1x4x256xf32> to vector<1xf32>
    %325 = vector.shape_cast %324 : vector<1xf32> to vector<1x1x1xf32>
    %326 = vector.extract %325[0, 0, 0] : f32 from vector<1x1x1xf32>
    %cst_113 = arith.constant 9.765625E-4 : f32
    %327 = arith.mulf %321, %cst_113 : f32
    %cst_114 = arith.constant 9.765625E-4 : f32
    %328 = arith.mulf %326, %cst_114 : f32
    %329 = arith.mulf %327, %327 : f32
    %330 = arith.subf %328, %329 : f32
    %cst_115 = arith.constant 0.000000e+00 : f32
    %331 = arith.maximumf %330, %cst_115 : f32
    %332 = vector.broadcast %327 : f32 to vector<4x256xf32>
    %333 = arith.subf %317, %332 : vector<4x256xf32>
    %cst_116 = arith.constant 9.99999974E-6 : f32
    %334 = arith.addf %331, %cst_116 : f32
    %335 = math.rsqrt %334 : f32
    %336 = vector.broadcast %335 : f32 to vector<4x256xf32>
    %337 = arith.mulf %333, %336 : vector<4x256xf32>
    %338 = vector.broadcast %3 : vector<4x1xf32> to vector<4x256xf32>
    %339 = arith.mulf %337, %338 : vector<4x256xf32>
    %340 = vector.broadcast %4 : vector<4x1xf32> to vector<4x256xf32>
    %341 = arith.addf %339, %340 : vector<4x256xf32>
    %342 = arith.truncf %341 : vector<4x256xf32> to vector<4x256xbf16>
    %cst_117 = arith.constant dense<0.000000e+00> : vector<384x256xf32>
    %343 = tpu.matmul %0, %342, %cst_117 {dimension_numbers = #tpu.dot_dimension_numbers<[1], [0], [0], [1], [0, 0, 1, 1], [], []>} : vector<384x4xbf16>, vector<4x256xbf16>, vector<384x256xf32> -> vector<384x256xf32>
    %344 = vector.extract_strided_slice %343 {offsets = [0, 0], sizes = [128, 256], strides = [1, 1]} : vector<384x256xf32> to vector<128x256xf32>
    %345 = vector.extract_strided_slice %343 {offsets = [128, 0], sizes = [128, 256], strides = [1, 1]} : vector<384x256xf32> to vector<128x256xf32>
    %346 = vector.extract_strided_slice %343 {offsets = [256, 0], sizes = [128, 256], strides = [1, 1]} : vector<384x256xf32> to vector<128x256xf32>
    %347 = vector.extract_strided_slice %344 {offsets = [0, 0], sizes = [32, 256], strides = [1, 1]} : vector<128x256xf32> to vector<32x256xf32>
    %cst_118 = arith.constant dense<0xFF800000> : vector<256xf32>
    %348 = vector.multi_reduction <maximumf>, %347, %cst_118 [0] : vector<32x256xf32> to vector<256xf32>
    %349 = vector.shape_cast %348 : vector<256xf32> to vector<1x256xf32>
    %350 = vector.extract_strided_slice %344 {offsets = [32, 0], sizes = [32, 256], strides = [1, 1]} : vector<128x256xf32> to vector<32x256xf32>
    %cst_119 = arith.constant dense<0xFF800000> : vector<256xf32>
    %351 = vector.multi_reduction <maximumf>, %350, %cst_119 [0] : vector<32x256xf32> to vector<256xf32>
    %352 = vector.shape_cast %351 : vector<256xf32> to vector<1x256xf32>
    %353 = vector.extract_strided_slice %344 {offsets = [64, 0], sizes = [32, 256], strides = [1, 1]} : vector<128x256xf32> to vector<32x256xf32>
    %cst_120 = arith.constant dense<0xFF800000> : vector<256xf32>
    %354 = vector.multi_reduction <maximumf>, %353, %cst_120 [0] : vector<32x256xf32> to vector<256xf32>
    %355 = vector.shape_cast %354 : vector<256xf32> to vector<1x256xf32>
    %356 = vector.extract_strided_slice %344 {offsets = [96, 0], sizes = [32, 256], strides = [1, 1]} : vector<128x256xf32> to vector<32x256xf32>
    %cst_121 = arith.constant dense<0xFF800000> : vector<256xf32>
    %357 = vector.multi_reduction <maximumf>, %356, %cst_121 [0] : vector<32x256xf32> to vector<256xf32>
    %358 = vector.shape_cast %357 : vector<256xf32> to vector<1x256xf32>
    %359 = tpu.concatenate %349, %352, %355, %358 in 0 : vector<1x256xf32>, vector<1x256xf32>, vector<1x256xf32>, vector<1x256xf32> -> vector<4x256xf32>
    %360 = arith.truncf %359 : vector<4x256xf32> to vector<4x256xbf16>
    %cst_122 = arith.constant dense<0.000000e+00> : vector<128x256xf32>
    %361 = tpu.matmul %9, %360, %cst_122 {dimension_numbers = #tpu.dot_dimension_numbers<[1], [0], [0], [1], [0, 0, 1, 1], [], []>} : vector<128x4xbf16>, vector<4x256xbf16>, vector<128x256xf32> -> vector<128x256xf32>
    %362 = arith.subf %344, %361 : vector<128x256xf32>
    %363 = math.exp %362 : vector<128x256xf32>
    %364 = arith.truncf %363 : vector<128x256xf32> to vector<128x256xbf16>
    %cst_123 = arith.constant dense<0.000000e+00> : vector<4x256xf32>
    %365 = tpu.matmul %8, %364, %cst_123 {dimension_numbers = #tpu.dot_dimension_numbers<[1], [0], [0], [1], [0, 0, 1, 1], [], []>} : vector<4x128xbf16>, vector<128x256xbf16>, vector<4x256xf32> -> vector<4x256xf32>
    %366 = tpu.reciprocal %365 {approx = true} : vector<4x256xf32> -> vector<4x256xf32>
    %367 = arith.truncf %366 : vector<4x256xf32> to vector<4x256xbf16>
    %cst_124 = arith.constant dense<0.000000e+00> : vector<128x256xf32>
    %368 = tpu.matmul %9, %367, %cst_124 {dimension_numbers = #tpu.dot_dimension_numbers<[1], [0], [0], [1], [0, 0, 1, 1], [], []>} : vector<128x4xbf16>, vector<4x256xbf16>, vector<128x256xf32> -> vector<128x256xf32>
    %369 = arith.mulf %363, %368 : vector<128x256xf32>
    %370 = arith.truncf %369 : vector<128x256xf32> to vector<128x256xbf16>
    %cst_125 = arith.constant dense<0xFF800000> : vector<128xf32>
    %371 = vector.multi_reduction <maximumf>, %345, %cst_125 [1] : vector<128x256xf32> to vector<128xf32>
    %372 = vector.shape_cast %371 : vector<128xf32> to vector<128x1xf32>
    %373 = vector.broadcast %372 : vector<128x1xf32> to vector<128x256xf32>
    %374 = arith.subf %345, %373 : vector<128x256xf32>
    %375 = math.exp %374 : vector<128x256xf32>
    %cst_126 = arith.constant dense<0.000000e+00> : vector<128xf32>
    %376 = vector.multi_reduction <add>, %375, %cst_126 [1] : vector<128x256xf32> to vector<128xf32>
    %377 = vector.shape_cast %376 : vector<128xf32> to vector<128x1xf32>
    %378 = tpu.reciprocal %377 {approx = true} : vector<128x1xf32> -> vector<128x1xf32>
    %379 = vector.broadcast %378 : vector<128x1xf32> to vector<128x256xf32>
    %380 = arith.mulf %375, %379 : vector<128x256xf32>
    %381 = arith.truncf %380 : vector<128x256xf32> to vector<128x256xbf16>
    %382 = arith.truncf %346 : vector<128x256xf32> to vector<128x256xbf16>
    %cst_127 = arith.constant dense<0.000000e+00> : vector<128x128xf32>
    %383 = tpu.matmul %381, %382, %cst_127 {dimension_numbers = #tpu.dot_dimension_numbers<[1], [1], [0], [0], [0, 0, 1, 0], [], []>} : vector<128x256xbf16>, vector<128x256xbf16>, vector<128x128xf32> -> vector<128x128xf32>
    %384 = arith.mulf %383, %7 : vector<128x128xf32>
    %385 = arith.truncf %384 : vector<128x128xf32> to vector<128x128xbf16>
    %cst_128 = arith.constant dense<0.000000e+00> : vector<128x256xf32>
    %386 = tpu.matmul %385, %370, %cst_128 {dimension_numbers = #tpu.dot_dimension_numbers<[0], [0], [1], [1], [0, 1, 1, 1], [], []>} : vector<128x128xbf16>, vector<128x256xbf16>, vector<128x256xf32> -> vector<128x256xf32>
    %387 = arith.truncf %386 : vector<128x256xf32> to vector<128x256xbf16>
    %cst_129 = arith.constant dense<0.000000e+00> : vector<4x256xf32>
    %388 = tpu.matmul %1, %387, %cst_129 {dimension_numbers = #tpu.dot_dimension_numbers<[1], [0], [0], [1], [0, 0, 1, 1], [], []>} : vector<4x128xbf16>, vector<128x256xbf16>, vector<4x256xf32> -> vector<4x256xf32>
    %389 = vector.broadcast %2 : vector<4x1xf32> to vector<4x256xf32>
    %390 = arith.addf %388, %389 : vector<4x256xf32>
    %391 = vector.shape_cast %390 : vector<4x256xf32> to vector<1x4x256xf32>
    %cst_130 = arith.constant dense<0.000000e+00> : vector<1xf32>
    %392 = vector.multi_reduction <add>, %391, %cst_130 [1, 2] : vector<1x4x256xf32> to vector<1xf32>
    %393 = vector.shape_cast %392 : vector<1xf32> to vector<1x1x1xf32>
    %394 = vector.extract %393[0, 0, 0] : f32 from vector<1x1x1xf32>
    %395 = arith.mulf %390, %390 : vector<4x256xf32>
    %396 = vector.shape_cast %395 : vector<4x256xf32> to vector<1x4x256xf32>
    %cst_131 = arith.constant dense<0.000000e+00> : vector<1xf32>
    %397 = vector.multi_reduction <add>, %396, %cst_131 [1, 2] : vector<1x4x256xf32> to vector<1xf32>
    %398 = vector.shape_cast %397 : vector<1xf32> to vector<1x1x1xf32>
    %399 = vector.extract %398[0, 0, 0] : f32 from vector<1x1x1xf32>
    %cst_132 = arith.constant 9.765625E-4 : f32
    %400 = arith.mulf %394, %cst_132 : f32
    %cst_133 = arith.constant 9.765625E-4 : f32
    %401 = arith.mulf %399, %cst_133 : f32
    %402 = arith.mulf %400, %400 : f32
    %403 = arith.subf %401, %402 : f32
    %cst_134 = arith.constant 0.000000e+00 : f32
    %404 = arith.maximumf %403, %cst_134 : f32
    %405 = vector.broadcast %400 : f32 to vector<4x256xf32>
    %406 = arith.subf %390, %405 : vector<4x256xf32>
    %cst_135 = arith.constant 9.99999974E-6 : f32
    %407 = arith.addf %404, %cst_135 : f32
    %408 = math.rsqrt %407 : f32
    %409 = vector.broadcast %408 : f32 to vector<4x256xf32>
    %410 = arith.mulf %406, %409 : vector<4x256xf32>
    %411 = vector.broadcast %5 : vector<4x1xf32> to vector<4x256xf32>
    %412 = arith.mulf %410, %411 : vector<4x256xf32>
    %413 = vector.broadcast %6 : vector<4x1xf32> to vector<4x256xf32>
    %414 = arith.addf %412, %413 : vector<4x256xf32>
    %c3_136 = arith.constant 3 : index
    %c0_137 = arith.constant 0 : index
    %c0_138 = arith.constant 0 : index
    %415 = vector.load %arg12[%c3_136, %c0_137, %c0_138] : memref<4x4x256xf32, #tpu.memory_space<vmem>>, vector<1x4x256xf32>
    %416 = vector.shape_cast %415 : vector<1x4x256xf32> to vector<4x256xf32>
    %417 = vector.shape_cast %414 : vector<4x256xf32> to vector<1x4x256xf32>
    tpu.vector_store %arg12[%c3_136, %c0_137, %c0_138], %417 {strides = array<i32>} : memref<4x4x256xf32, #tpu.memory_space<vmem>>, vector<1x4x256xf32>,
    return
  }
  func.func @transform_0(%arg0: i32) -> (i32, i32, i32) {
    %c0_i32 = arith.constant 0 : i32
    %c0_i32_0 = arith.constant 0 : i32
    %c0_i32_1 = arith.constant 0 : i32
    return %arg0, %c0_i32, %c0_i32_0 : i32, i32, i32
  }
  func.func @transform_1(%arg0: i32) -> (i32, i32) {
    %c0_i32 = arith.constant 0 : i32
    %c0_i32_0 = arith.constant 0 : i32
    %c0_i32_1 = arith.constant 0 : i32
    return %c0_i32, %c0_i32_0 : i32, i32
  }
  func.func @transform_2(%arg0: i32) -> (i32, i32) {
    %c0_i32 = arith.constant 0 : i32
    %c0_i32_0 = arith.constant 0 : i32
    %c0_i32_1 = arith.constant 0 : i32
    return %c0_i32, %c0_i32_0 : i32, i32
  }
  func.func @transform_3(%arg0: i32) -> (i32, i32) {
    %c0_i32 = arith.constant 0 : i32
    %c0_i32_0 = arith.constant 0 : i32
    %c0_i32_1 = arith.constant 0 : i32
    return %c0_i32, %c0_i32_0 : i32, i32
  }
  func.func @transform_4(%arg0: i32) -> (i32, i32) {
    %c0_i32 = arith.constant 0 : i32
    %c0_i32_0 = arith.constant 0 : i32
    %c0_i32_1 = arith.constant 0 : i32
    return %c0_i32, %c0_i32_0 : i32, i32
  }
  func.func @transform_5(%arg0: i32) -> (i32, i32) {
    %c0_i32 = arith.constant 0 : i32
    %c0_i32_0 = arith.constant 0 : i32
    %c0_i32_1 = arith.constant 0 : i32
    return %c0_i32, %c0_i32_0 : i32, i32
  }
  func.func @transform_6(%arg0: i32) -> (i32, i32) {
    %c0_i32 = arith.constant 0 : i32
    %c0_i32_0 = arith.constant 0 : i32
    %c0_i32_1 = arith.constant 0 : i32
    return %c0_i32, %c0_i32_0 : i32, i32
  }
  func.func @transform_7(%arg0: i32) -> (i32, i32) {
    %c0_i32 = arith.constant 0 : i32
    %c0_i32_0 = arith.constant 0 : i32
    %c0_i32_1 = arith.constant 0 : i32
    return %c0_i32, %c0_i32_0 : i32, i32
  }
  func.func @transform_8(%arg0: i32) -> (i32, i32) {
    %c0_i32 = arith.constant 0 : i32
    %c0_i32_0 = arith.constant 0 : i32
    %c0_i32_1 = arith.constant 0 : i32
    return %c0_i32, %c0_i32_0 : i32, i32
  }
  func.func @transform_9(%arg0: i32) -> (i32, i32) {
    %c0_i32 = arith.constant 0 : i32
    %c0_i32_0 = arith.constant 0 : i32
    %c0_i32_1 = arith.constant 0 : i32
    return %c0_i32, %c0_i32_0 : i32, i32
  }
  func.func @transform_10(%arg0: i32) -> (i32, i32) {
    %c0_i32 = arith.constant 0 : i32
    %c0_i32_0 = arith.constant 0 : i32
    %c0_i32_1 = arith.constant 0 : i32
    return %c0_i32, %c0_i32_0 : i32, i32
  }
  func.func @transform_11(%arg0: i32) -> (i32, i32, i32) {
    %c0_i32 = arith.constant 0 : i32
    %c0_i32_0 = arith.constant 0 : i32
    %c0_i32_1 = arith.constant 0 : i32
    return %arg0, %c0_i32, %c0_i32_0 : i32, i32, i32
  }
}

</mosaic_0001>

<llo_original>
// kernel: tpu_custom_call.1
$region0: #{tpu_custom_call.1}
  #allocation0 [shape = 'u32[]', space=smem, size = 0x4, offset = 0x4, fixed_abs, tag = 'smem constant byte address 0x4 - core index']
  #allocation1 [shape = 'u32[144,128]{1,0:T(1,128)}', space=vmem, size = 0x12000, scoped, tag = 'internal scratch']
  %s0 = inlined_call_operand.vmem [shape: f32[8,4,256], index: 0, kind: input, shape index: {}]
  %s1 = inlined_call_operand.vmem [shape: bf16[384,4], index: 1, kind: input, shape index: {}]
  %s2 = inlined_call_operand.vmem [shape: bf16[4,128], index: 2, kind: input, shape index: {}]
  %s3 = inlined_call_operand.vmem [shape: f32[4,1], index: 3, kind: input, shape index: {}]
  %s4 = inlined_call_operand.vmem [shape: f32[4,1], index: 4, kind: input, shape index: {}]
  %s5 = inlined_call_operand.vmem [shape: f32[4,1], index: 5, kind: input, shape index: {}]
  %s6 = inlined_call_operand.vmem [shape: f32[4,1], index: 6, kind: input, shape index: {}]
  %s7 = inlined_call_operand.vmem [shape: f32[4,1], index: 7, kind: input, shape index: {}]
  %s8 = inlined_call_operand.vmem [shape: f32[128,128], index: 8, kind: input, shape index: {}]
  %s9 = inlined_call_operand.vmem [shape: bf16[4,128], index: 9, kind: input, shape index: {}]
  %s10 = inlined_call_operand.vmem [shape: bf16[128,4], index: 10, kind: input, shape index: {}]
  %s11 = inlined_call_operand.hbm [shape: f32[8,4,256], index: 11, kind: output, shape index: {}]
  %s12 = sld [smem:[#allocation0]]
  $region77: #{tpu_custom_call.1} parent=0
    _
  %s14 = ssub.s32 1, %s12
  %s15 = scalar_select 0, %s14, %s12
  $region1: #{tpu_custom_call.1} parent=0
    #allocation2 [shape = 'u8[32768]{0}', space=vmem, size = 0x8000, scoped, tag = 'output window, operand 0']
    #allocation3 [shape = 's32[2]{0}', space=sflag, size = 0x8, scoped, tag = 'scoped memory for tpu_custom_call.1']
    %16 = vsyncpa [#allocation3], 0
    %s17 = scalar_lea.sflag [#allocation3], 1
    %18 = vsyncpa %s17, 0
    loop: start=0, step=1, limit=4
    $region2: #{tpu_custom_call.1} parent=1 // loop_pre_header
      _
    $region3: #{tpu_custom_call.1} parent=1 // loop_header
      %s20 = sphi 0, %s24
      %p21 = scmp.ge.s32.totalorder %s20, 4
      %s30 = sphi 0, %s32
      %s33 = sphi 0, %s30
      %s34 = sphi 0, %s33
      %s50 = sphi 0, %s34
      %s54 = sphi 0, %s54
      %s56 = sphi 0, %s54
      %s57 = sphi 0, %s56
      %s71 = sphi 0, %s57
      %s75 = sphi 0, %s75
      %s77 = sphi 0, %s75
      %s78 = sphi 0, %s77
      %s92 = sphi 0, %s78
      %s96 = sphi 0, %s96
      %s98 = sphi 0, %s96
      %s99 = sphi 0, %s98
      %s113 = sphi 0, %s99
      %s117 = sphi 0, %s117
      %s119 = sphi 0, %s117
      %s120 = sphi 0, %s119
      %s134 = sphi 0, %s120
      %s138 = sphi 0, %s138
      %s140 = sphi 0, %s138
      %s141 = sphi 0, %s140
      %s155 = sphi 0, %s141
      %s159 = sphi 0, %s159
      %s161 = sphi 0, %s159
      %s162 = sphi 0, %s161
      %s176 = sphi 0, %s162
      %s180 = sphi 0, %s180
      %s182 = sphi 0, %s180
      %s183 = sphi 0, %s182
      %s197 = sphi 0, %s183
      %s201 = sphi 0, %s201
      %s203 = sphi 0, %s201
      %s204 = sphi 0, %s203
      %s218 = sphi 0, %s204
      %s222 = sphi 0, %s222
      %s224 = sphi 0, %s222
      %s225 = sphi 0, %s224
      %s239 = sphi 0, %s225
      %s243 = sphi 0, %s243
      %s245 = sphi 0, %s243
      %s246 = sphi 0, %s245
      %s260 = sphi 0, %s246
      %s266 = sphi 0, %s268
      %s269 = sphi 0, %s266
      %s270 = sphi 0, %s269
      %s286 = sphi 0, %s270
    $region4: #{tpu_custom_call.1} parent=1 // loop_header_branch
      %23 = sbr.rel (%p21) target = $region8
    $region5: #{tpu_custom_call.1} parent=1 // loop_body
      %s25 = ssub.s32 %s20, 1
      %s26 = ssub.s32 %s20, 2
      %s27 = sadd.s32 %s20, 1
      %s28 = ssub.s32 %s20, %s27
      %p29 = scmp.eq.s32.totalorder %s28, 0
      %s31 = sadd.s32 %s30, 1
      %s32 = scalar_select %p29, %s30, %s31
      %p35 = pneg %p29
      %p36 = scmp.eq.s32.totalorder %s20, 1
      %p37 = por %p35, %p36
      %p38 = scmp.ne.s32.totalorder %s30, %s33
      %p39 = scmp.eq.s32.totalorder %s20, 0
      %p40 = por %p38, %p39
      %p41 = scmp.ne.s32.totalorder %s30, %s33
      %p42 = scmp.eq.s32.totalorder %s25, 1
      %p43 = por %p41, %p42
      %p44 = scmp.ne.s32.totalorder %s33, %s34
      %p45 = scmp.eq.s32.totalorder %s25, 0
      %p46 = por %p44, %p45
      %p47 = scmp.ne.s32.totalorder %s33, %s34
      %p48 = scmp.eq.s32.totalorder %s26, 1
      %p49 = por %p47, %p48
      %p51 = scmp.ne.s32.totalorder %s34, %s50
      %p52 = scmp.eq.s32.totalorder %s26, 0
      %p53 = por %p51, %p52
      %s55 = sadd.s32 %s54, 1
      %p58 = scmp.eq.s32.totalorder %s20, 1
      %p59 = scmp.ne.s32.totalorder %s54, %s56
      %p60 = scmp.eq.s32.totalorder %s20, 0
      %p61 = por %p59, %p60
      %p62 = scmp.ne.s32.totalorder %s54, %s56
      %p63 = scmp.eq.s32.totalorder %s25, 1
      %p64 = por %p62, %p63
      %p65 = scmp.ne.s32.totalorder %s56, %s57
      %p66 = scmp.eq.s32.totalorder %s25, 0
      %p67 = por %p65, %p66
      %p68 = scmp.ne.s32.totalorder %s56, %s57
      %p69 = scmp.eq.s32.totalorder %s26, 1
      %p70 = por %p68, %p69
      %p72 = scmp.ne.s32.totalorder %s57, %s71
      %p73 = scmp.eq.s32.totalorder %s26, 0
      %p74 = por %p72, %p73
      %s76 = sadd.s32 %s75, 1
      %p79 = scmp.eq.s32.totalorder %s20, 1
      %p80 = scmp.ne.s32.totalorder %s75, %s77
      %p81 = scmp.eq.s32.totalorder %s20, 0
      %p82 = por %p80, %p81
      %p83 = scmp.ne.s32.totalorder %s75, %s77
      %p84 = scmp.eq.s32.totalorder %s25, 1
      %p85 = por %p83, %p84
      %p86 = scmp.ne.s32.totalorder %s77, %s78
      %p87 = scmp.eq.s32.totalorder %s25, 0
      %p88 = por %p86, %p87
      %p89 = scmp.ne.s32.totalorder %s77, %s78
      %p90 = scmp.eq.s32.totalorder %s26, 1
      %p91 = por %p89, %p90
      %p93 = scmp.ne.s32.totalorder %s78, %s92
      %p94 = scmp.eq.s32.totalorder %s26, 0
      %p95 = por %p93, %p94
      %s97 = sadd.s32 %s96, 1
      %p100 = scmp.eq.s32.totalorder %s20, 1
      %p101 = scmp.ne.s32.totalorder %s96, %s98
      %p102 = scmp.eq.s32.totalorder %s20, 0
      %p103 = por %p101, %p102
      %p104 = scmp.ne.s32.totalorder %s96, %s98
      %p105 = scmp.eq.s32.totalorder %s25, 1
      %p106 = por %p104, %p105
      %p107 = scmp.ne.s32.totalorder %s98, %s99
      %p108 = scmp.eq.s32.totalorder %s25, 0
      %p109 = por %p107, %p108
      %p110 = scmp.ne.s32.totalorder %s98, %s99
      %p111 = scmp.eq.s32.totalorder %s26, 1
      %p112 = por %p110, %p111
      %p114 = scmp.ne.s32.totalorder %s99, %s113
      %p115 = scmp.eq.s32.totalorder %s26, 0
      %p116 = por %p114, %p115
      %s118 = sadd.s32 %s117, 1
      %p121 = scmp.eq.s32.totalorder %s20, 1
      %p122 = scmp.ne.s32.totalorder %s117, %s119
      %p123 = scmp.eq.s32.totalorder %s20, 0
      %p124 = por %p122, %p123
      %p125 = scmp.ne.s32.totalorder %s117, %s119
      %p126 = scmp.eq.s32.totalorder %s25, 1
      %p127 = por %p125, %p126
      %p128 = scmp.ne.s32.totalorder %s119, %s120
      %p129 = scmp.eq.s32.totalorder %s25, 0
      %p130 = por %p128, %p129
      %p131 = scmp.ne.s32.totalorder %s119, %s120
      %p132 = scmp.eq.s32.totalorder %s26, 1
      %p133 = por %p131, %p132
      %p135 = scmp.ne.s32.totalorder %s120, %s134
      %p136 = scmp.eq.s32.totalorder %s26, 0
      %p137 = por %p135, %p136
      %s139 = sadd.s32 %s138, 1
      %p142 = scmp.eq.s32.totalorder %s20, 1
      %p143 = scmp.ne.s32.totalorder %s138, %s140
      %p144 = scmp.eq.s32.totalorder %s20, 0
      %p145 = por %p143, %p144
      %p146 = scmp.ne.s32.totalorder %s138, %s140
      %p147 = scmp.eq.s32.totalorder %s25, 1
      %p148 = por %p146, %p147
      %p149 = scmp.ne.s32.totalorder %s140, %s141
      %p150 = scmp.eq.s32.totalorder %s25, 0
      %p151 = por %p149, %p150
      %p152 = scmp.ne.s32.totalorder %s140, %s141
      %p153 = scmp.eq.s32.totalorder %s26, 1
      %p154 = por %p152, %p153
      %p156 = scmp.ne.s32.totalorder %s141, %s155
      %p157 = scmp.eq.s32.totalorder %s26, 0
      %p158 = por %p156, %p157
      %s160 = sadd.s32 %s159, 1
      %p163 = scmp.eq.s32.totalorder %s20, 1
      %p164 = scmp.ne.s32.totalorder %s159, %s161
      %p165 = scmp.eq.s32.totalorder %s20, 0
      %p166 = por %p164, %p165
      %p167 = scmp.ne.s32.totalorder %s159, %s161
      %p168 = scmp.eq.s32.totalorder %s25, 1
      %p169 = por %p167, %p168
      %p170 = scmp.ne.s32.totalorder %s161, %s162
      %p171 = scmp.eq.s32.totalorder %s25, 0
      %p172 = por %p170, %p171
      %p173 = scmp.ne.s32.totalorder %s161, %s162
      %p174 = scmp.eq.s32.totalorder %s26, 1
      %p175 = por %p173, %p174
      %p177 = scmp.ne.s32.totalorder %s162, %s176
      %p178 = scmp.eq.s32.totalorder %s26, 0
      %p179 = por %p177, %p178
      %s181 = sadd.s32 %s180, 1
      %p184 = scmp.eq.s32.totalorder %s20, 1
      %p185 = scmp.ne.s32.totalorder %s180, %s182
      %p186 = scmp.eq.s32.totalorder %s20, 0
      %p187 = por %p185, %p186
      %p188 = scmp.ne.s32.totalorder %s180, %s182
      %p189 = scmp.eq.s32.totalorder %s25, 1
      %p190 = por %p188, %p189
      %p191 = scmp.ne.s32.totalorder %s182, %s183
      %p192 = scmp.eq.s32.totalorder %s25, 0
      %p193 = por %p191, %p192
      %p194 = scmp.ne.s32.totalorder %s182, %s183
      %p195 = scmp.eq.s32.totalorder %s26, 1
      %p196 = por %p194, %p195
      %p198 = scmp.ne.s32.totalorder %s183, %s197
      %p199 = scmp.eq.s32.totalorder %s26, 0
      %p200 = por %p198, %p199
      %s202 = sadd.s32 %s201, 1
      %p205 = scmp.eq.s32.totalorder %s20, 1
      %p206 = scmp.ne.s32.totalorder %s201, %s203
      %p207 = scmp.eq.s32.totalorder %s20, 0
      %p208 = por %p206, %p207
      %p209 = scmp.ne.s32.totalorder %s201, %s203
      %p210 = scmp.eq.s32.totalorder %s25, 1
      %p211 = por %p209, %p210
      %p212 = scmp.ne.s32.totalorder %s203, %s204
      %p213 = scmp.eq.s32.totalorder %s25, 0
      %p214 = por %p212, %p213
      %p215 = scmp.ne.s32.totalorder %s203, %s204
      %p216 = scmp.eq.s32.totalorder %s26, 1
      %p217 = por %p215, %p216
      %p219 = scmp.ne.s32.totalorder %s204, %s218
      %p220 = scmp.eq.s32.totalorder %s26, 0
      %p221 = por %p219, %p220
      %s223 = sadd.s32 %s222, 1
      %p226 = scmp.eq.s32.totalorder %s20, 1
      %p227 = scmp.ne.s32.totalorder %s222, %s224
      %p228 = scmp.eq.s32.totalorder %s20, 0
      %p229 = por %p227, %p228
      %p230 = scmp.ne.s32.totalorder %s222, %s224
      %p231 = scmp.eq.s32.totalorder %s25, 1
      %p232 = por %p230, %p231
      %p233 = scmp.ne.s32.totalorder %s224, %s225
      %p234 = scmp.eq.s32.totalorder %s25, 0
      %p235 = por %p233, %p234
      %p236 = scmp.ne.s32.totalorder %s224, %s225
      %p237 = scmp.eq.s32.totalorder %s26, 1
      %p238 = por %p236, %p237
      %p240 = scmp.ne.s32.totalorder %s225, %s239
      %p241 = scmp.eq.s32.totalorder %s26, 0
      %p242 = por %p240, %p241
      %s244 = sadd.s32 %s243, 1
      %p247 = scmp.eq.s32.totalorder %s20, 1
      %p248 = scmp.ne.s32.totalorder %s243, %s245
      %p249 = scmp.eq.s32.totalorder %s20, 0
      %p250 = por %p248, %p249
      %p251 = scmp.ne.s32.totalorder %s243, %s245
      %p252 = scmp.eq.s32.totalorder %s25, 1
      %p253 = por %p251, %p252
      %p254 = scmp.ne.s32.totalorder %s245, %s246
      %p255 = scmp.eq.s32.totalorder %s25, 0
      %p256 = por %p254, %p255
      %p257 = scmp.ne.s32.totalorder %s245, %s246
      %p258 = scmp.eq.s32.totalorder %s26, 1
      %p259 = por %p257, %p258
      %p261 = scmp.ne.s32.totalorder %s246, %s260
      %p262 = scmp.eq.s32.totalorder %s26, 0
      %p263 = por %p261, %p262
      %s264 = ssub.s32 %s20, %s27
      %p265 = scmp.eq.s32.totalorder %s264, 0
      %s267 = sadd.s32 %s266, 1
      %s268 = scalar_select %p265, %s266, %s267
      %p271 = pneg %p265
      %p272 = scmp.eq.s32.totalorder %s20, 1
      %p273 = por %p271, %p272
      %p274 = scmp.ne.s32.totalorder %s266, %s269
      %p275 = scmp.eq.s32.totalorder %s20, 0
      %p276 = por %p274, %p275
      %p277 = scmp.ne.s32.totalorder %s266, %s269
      %p278 = scmp.eq.s32.totalorder %s25, 1
      %p279 = por %p277, %p278
      %p280 = scmp.ne.s32.totalorder %s269, %s270
      %p281 = scmp.eq.s32.totalorder %s25, 0
      %p282 = por %p280, %p281
      %p283 = scmp.ne.s32.totalorder %s269, %s270
      %p284 = scmp.eq.s32.totalorder %s26, 1
      %p285 = por %p283, %p284
      %p287 = scmp.ne.s32.totalorder %s270, %s286
      %p288 = scmp.eq.s32.totalorder %s26, 0
      %p289 = por %p287, %p288
      %p290 = scmp.le.s32.totalorder 1, %s20
      %p291 = scmp.lt.s32.totalorder %s20, 3
      %p292 = pnand %p290, %p291
      %p293 = pneg %p292
      // Predicated region
      $region9: #{tpu_custom_call.1} parent=5 // pred_check
        _
      $region10: #{tpu_custom_call.1} parent=5 // pred_check_branch
        %295 = sbr.rel (%p292) target = $region12
      $region11: #{tpu_custom_call.1} parent=5 // pred_region
        %s296 = ssub.s32 %s20, 1
        // Predicated region
        $region13: #{tpu_custom_call.1} parent=11 // pred_check
          %p297 = pneg %p67
        $region14: #{tpu_custom_call.1} parent=11 // pred_check_branch
          %299 = sbr.rel (%p297) target = $region16
        $region15: #{tpu_custom_call.1} parent=11 // pred_region
          _
        $region16: #{tpu_custom_call.1} parent=11 // pred_fallthru
          _
        // Predicated region
        $region17: #{tpu_custom_call.1} parent=11 // pred_check
          %p300 = pneg %p88
        $region18: #{tpu_custom_call.1} parent=11 // pred_check_branch
          %302 = sbr.rel (%p300) target = $region20
        $region19: #{tpu_custom_call.1} parent=11 // pred_region
          _
        $region20: #{tpu_custom_call.1} parent=11 // pred_fallthru
          _
        // Predicated region
        $region21: #{tpu_custom_call.1} parent=11 // pred_check
          %p303 = pneg %p109
        $region22: #{tpu_custom_call.1} parent=11 // pred_check_branch
          %305 = sbr.rel (%p303) target = $region24
        $region23: #{tpu_custom_call.1} parent=11 // pred_region
          _
        $region24: #{tpu_custom_call.1} parent=11 // pred_fallthru
          _
        // Predicated region
        $region25: #{tpu_custom_call.1} parent=11 // pred_check
          %p306 = pneg %p130
        $region26: #{tpu_custom_call.1} parent=11 // pred_check_branch
          %308 = sbr.rel (%p306) target = $region28
        $region27: #{tpu_custom_call.1} parent=11 // pred_region
          _
        $region28: #{tpu_custom_call.1} parent=11 // pred_fallthru
          _
        // Predicated region
        $region29: #{tpu_custom_call.1} parent=11 // pred_check
          %p309 = pneg %p151
        $region30: #{tpu_custom_call.1} parent=11 // pred_check_branch
          %311 = sbr.rel (%p309) target = $region32
        $region31: #{tpu_custom_call.1} parent=11 // pred_region
          _
        $region32: #{tpu_custom_call.1} parent=11 // pred_fallthru
          _
        // Predicated region
        $region33: #{tpu_custom_call.1} parent=11 // pred_check
          %p312 = pneg %p172
        $region34: #{tpu_custom_call.1} parent=11 // pred_check_branch
          %314 = sbr.rel (%p312) target = $region36
        $region35: #{tpu_custom_call.1} parent=11 // pred_region
          _
        $region36: #{tpu_custom_call.1} parent=11 // pred_fallthru
          _
        // Predicated region
        $region37: #{tpu_custom_call.1} parent=11 // pred_check
          %p315 = pneg %p193
        $region38: #{tpu_custom_call.1} parent=11 // pred_check_branch
          %317 = sbr.rel (%p315) target = $region40
        $region39: #{tpu_custom_call.1} parent=11 // pred_region
          _
        $region40: #{tpu_custom_call.1} parent=11 // pred_fallthru
          _
        // Predicated region
        $region41: #{tpu_custom_call.1} parent=11 // pred_check
          %p318 = pneg %p214
        $region42: #{tpu_custom_call.1} parent=11 // pred_check_branch
          %320 = sbr.rel (%p318) target = $region44
        $region43: #{tpu_custom_call.1} parent=11 // pred_region
          _
        $region44: #{tpu_custom_call.1} parent=11 // pred_fallthru
          _
        // Predicated region
        $region45: #{tpu_custom_call.1} parent=11 // pred_check
          %p321 = pneg %p235
        $region46: #{tpu_custom_call.1} parent=11 // pred_check_branch
          %323 = sbr.rel (%p321) target = $region48
        $region47: #{tpu_custom_call.1} parent=11 // pred_region
          _
        $region48: #{tpu_custom_call.1} parent=11 // pred_fallthru
          _
        // Predicated region
        $region49: #{tpu_custom_call.1} parent=11 // pred_check
          %p324 = pneg %p256
        $region50: #{tpu_custom_call.1} parent=11 // pred_check_branch
          %326 = sbr.rel (%p324) target = $region52
        $region51: #{tpu_custom_call.1} parent=11 // pred_region
          _
        $region52: #{tpu_custom_call.1} parent=11 // pred_fallthru
          _
      $region12: #{tpu_custom_call.1} parent=5 // pred_fallthru
        _
      %p327 = scmp.lt.s32.totalorder %s20, 2
      // Predicated region
      $region53: #{tpu_custom_call.1} parent=5 // pred_check
        %p328 = pneg %p327
      $region54: #{tpu_custom_call.1} parent=5 // pred_check_branch
        %330 = sbr.rel (%p328) target = $region56
      $region55: #{tpu_custom_call.1} parent=5 // pred_region
        // Predicated region
        $region57: #{tpu_custom_call.1} parent=55 // pred_check
          %p331 = pneg %p40
        $region58: #{tpu_custom_call.1} parent=55 // pred_check_branch
          %333 = sbr.rel (%p331) target = $region60
        $region59: #{tpu_custom_call.1} parent=55 // pred_region
          %s334 = smul.u32 4, %s20
          %p335 = scmp.lt.s32.totalorder %s334, 7
          %s336 = scalar_select %p335, %s334, 7
          %s337 = smul.addr %s336, 2
          %s338 = smul.addr %s337, 4
          %s339 = scalar_lea.vmem %s0, %s338
          %s340 = smul.u32 4, %s20
        $region60: #{tpu_custom_call.1} parent=55 // pred_fallthru
          _
      $region56: #{tpu_custom_call.1} parent=5 // pred_fallthru
        _
      %p341 = scmp.le.s32.totalorder 1, %s20
      %p342 = scmp.lt.s32.totalorder %s20, 3
      %p343 = pnand %p341, %p342
      %p344 = pneg %p343
      // Predicated region
      $region61: #{tpu_custom_call.1} parent=5 // pred_check
        _
      $region62: #{tpu_custom_call.1} parent=5 // pred_check_branch
        %346 = sbr.rel (%p343) target = $region64
      $region63: #{tpu_custom_call.1} parent=5 // pred_region
        %s347 = ssub.s32 %s20, 1
        %s348 = smul.u32 4, %s25
        %p349 = scmp.lt.s32.totalorder %s348, 7
        %s350 = scalar_select %p349, %s348, 7
        %s351 = smul.addr %s350, 2
        %s352 = smul.addr %s351, 4
        %s353 = scalar_lea.vmem %s0, %s352
        %p354 = pneg %p46
        %p355 = pneg %p43
        %p356 = pneg %p67
        %p357 = pneg %p64
        %p358 = pneg %p88
        %p359 = pneg %p85
        %p360 = pneg %p109
        %p361 = pneg %p106
        %p362 = pneg %p130
        %p363 = pneg %p127
        %p364 = pneg %p151
        %p365 = pneg %p148
        %p366 = pneg %p172
        %p367 = pneg %p169
        %p368 = pneg %p193
        %p369 = pneg %p190
        %p370 = pneg %p214
        %p371 = pneg %p211
        %p372 = pneg %p235
        %p373 = pneg %p232
        %p374 = pneg %p256
        %p375 = pneg %p253
        %p376 = pneg %p282
        %p377 = pneg %p279
        %s378 = sand.u32 %s269, 1
        %s379 = scalar_lea.sflag [#allocation3], %s378
        %s380 = sand.u32 %s269, 1
        %s381 = smul.addr %s380, 32
        %s382 = scalar_lea.vmem [#allocation2], %s381
        %s383 = smul.u32 4, %s25
        %p384 = scmp.lt.s32.totalorder %s383, 7
        %s385 = scalar_select %p384, %s383, 7
        %s386 = smul.addr %s385, 2
        %s387 = smul.addr %s386, 4
        %s388 = scalar_lea.vmem %s0, %s387
        %s389 = smul.u32 4, %s25
        %s390 = smul.u32 4, %s25
        %v392 = vld [vmem:[%s1] sm:$0xf]
        %v393 = vld [vmem:[%s1 + $0x4] sm:$0xf]
        %v394 = vld [vmem:[%s1 + $0x8] sm:$0xf]
        %v395 = vld [vmem:[%s1 + $0xc] sm:$0xf]
        %v396 = vld [vmem:[%s1 + $0x10] sm:$0xf]
        %v397 = vld [vmem:[%s1 + $0x14] sm:$0xf]
        %v398 = vld [vmem:[%s1 + $0x18] sm:$0xf]
        %v399 = vld [vmem:[%s1 + $0x1c] sm:$0xf]
        %v400 = vld [vmem:[%s1 + $0x20] sm:$0xf]
        %v401 = vld [vmem:[%s1 + $0x24] sm:$0xf]
        %v402 = vld [vmem:[%s1 + $0x28] sm:$0xf]
        %v403 = vld [vmem:[%s1 + $0x2c] sm:$0xf]
        %v404 = vld [vmem:[%s1 + $0x30] sm:$0xf]
        %v405 = vld [vmem:[%s1 + $0x34] sm:$0xf]
        %v406 = vld [vmem:[%s1 + $0x38] sm:$0xf]
        %v407 = vld [vmem:[%s1 + $0x3c] sm:$0xf]
        %v408 = vld [vmem:[%s1 + $0x40] sm:$0xf]
        %v409 = vld [vmem:[%s1 + $0x44] sm:$0xf]
        %v410 = vld [vmem:[%s1 + $0x48] sm:$0xf]
        %v411 = vld [vmem:[%s1 + $0x4c] sm:$0xf]
        %v412 = vld [vmem:[%s1 + $0x50] sm:$0xf]
        %v413 = vld [vmem:[%s1 + $0x54] sm:$0xf]
        %v414 = vld [vmem:[%s1 + $0x58] sm:$0xf]
        %v415 = vld [vmem:[%s1 + $0x5c] sm:$0xf]
        %v416 = vld [vmem:[%s1 + $0x60] sm:$0xf]
        %v417 = vld [vmem:[%s1 + $0x64] sm:$0xf]
        %v418 = vld [vmem:[%s1 + $0x68] sm:$0xf]
        %v419 = vld [vmem:[%s1 + $0x6c] sm:$0xf]
        %v420 = vld [vmem:[%s1 + $0x70] sm:$0xf]
        %v421 = vld [vmem:[%s1 + $0x74] sm:$0xf]
        %v422 = vld [vmem:[%s1 + $0x78] sm:$0xf]
        %v423 = vld [vmem:[%s1 + $0x7c] sm:$0xf]
        %v424 = vld [vmem:[%s1 + $0x80] sm:$0xf]
        %v425 = vld [vmem:[%s1 + $0x84] sm:$0xf]
        %v426 = vld [vmem:[%s1 + $0x88] sm:$0xf]
        %v427 = vld [vmem:[%s1 + $0x8c] sm:$0xf]
        %v428 = vld [vmem:[%s1 + $0x90] sm:$0xf]
        %v429 = vld [vmem:[%s1 + $0x94] sm:$0xf]
        %v430 = vld [vmem:[%s1 + $0x98] sm:$0xf]
        %v431 = vld [vmem:[%s1 + $0x9c] sm:$0xf]
        %v432 = vld [vmem:[%s1 + $0xa0] sm:$0xf]
        %v433 = vld [vmem:[%s1 + $0xa4] sm:$0xf]
        %v434 = vld [vmem:[%s1 + $0xa8] sm:$0xf]
        %v435 = vld [vmem:[%s1 + $0xac] sm:$0xf]
        %v436 = vld [vmem:[%s1 + $0xb0] sm:$0xf]
        %v437 = vld [vmem:[%s1 + $0xb4] sm:$0xf]
        %v438 = vld [vmem:[%s1 + $0xb8] sm:$0xf]
        %v439 = vld [vmem:[%s1 + $0xbc] sm:$0xf]
        %v440 = vld [vmem:[%s2] sm:$0x3]
        %v441 = vld [vmem:[%s3] sm:$0xf]
        %v442 = vld [vmem:[%s4] sm:$0xf]
        %v443 = vld [vmem:[%s5] sm:$0xf]
        %v444 = vld [vmem:[%s6] sm:$0xf]
        %v445 = vld [vmem:[%s7] sm:$0xf]
        %v446 = vld [vmem:[%s8] sm:$0xff]
        %v447 = vld [vmem:[%s8 + $0x8] sm:$0xff]
        %v448 = vld [vmem:[%s8 + $0x10] sm:$0xff]
        %v449 = vld [vmem:[%s8 + $0x18] sm:$0xff]
        %v450 = vld [vmem:[%s8 + $0x20] sm:$0xff]
        %v451 = vld [vmem:[%s8 + $0x28] sm:$0xff]
        %v452 = vld [vmem:[%s8 + $0x30] sm:$0xff]
        %v453 = vld [vmem:[%s8 + $0x38] sm:$0xff]
        %v454 = vld [vmem:[%s8 + $0x40] sm:$0xff]
        %v455 = vld [vmem:[%s8 + $0x48] sm:$0xff]
        %v456 = vld [vmem:[%s8 + $0x50] sm:$0xff]
        %v457 = vld [vmem:[%s8 + $0x58] sm:$0xff]
        %v458 = vld [vmem:[%s8 + $0x60] sm:$0xff]
        %v459 = vld [vmem:[%s8 + $0x68] sm:$0xff]
        %v460 = vld [vmem:[%s8 + $0x70] sm:$0xff]
        %v461 = vld [vmem:[%s8 + $0x78] sm:$0xff]
        %v462 = vld [vmem:[%s9] sm:$0x3]
        %v463 = vld [vmem:[%s10] sm:$0xf]
        %v464 = vld [vmem:[%s10 + $0x4] sm:$0xf]
        %v465 = vld [vmem:[%s10 + $0x8] sm:$0xf]
        %v466 = vld [vmem:[%s10 + $0xc] sm:$0xf]
        %v467 = vld [vmem:[%s10 + $0x10] sm:$0xf]
        %v468 = vld [vmem:[%s10 + $0x14] sm:$0xf]
        %v469 = vld [vmem:[%s10 + $0x18] sm:$0xf]
        %v470 = vld [vmem:[%s10 + $0x1c] sm:$0xf]
        %v471 = vld [vmem:[%s10 + $0x20] sm:$0xf]
        %v472 = vld [vmem:[%s10 + $0x24] sm:$0xf]
        %v473 = vld [vmem:[%s10 + $0x28] sm:$0xf]
        %v474 = vld [vmem:[%s10 + $0x2c] sm:$0xf]
        %v475 = vld [vmem:[%s10 + $0x30] sm:$0xf]
        %v476 = vld [vmem:[%s10 + $0x34] sm:$0xf]
        %v477 = vld [vmem:[%s10 + $0x38] sm:$0xf]
        %v478 = vld [vmem:[%s10 + $0x3c] sm:$0xf]
        %v479 = vld [vmem:[%s388] sm:$0xff]
        %v481 = vcombine.high %v479, %v479
        %vm483 = vcmask 1043456
        %v484 = vsel %vm483, %v479, 0.0
        %v485 = vsel %vm483, %v481, 0.0
        %v486 = vadd.f32 %v484, %v485
        %487 = vadd.xlane.f32.xlu0 %v486
        %v488 = vpop.xlane.xlu0 %487
        %v489 = vrot.slane %v488, 4
        %v490 = vadd.f32 %v488, %v489
        %v491 = vrot.slane %v490, 2
        %v492 = vadd.f32 %v490, %v491
        %v493 = vrot.slane %v492, 1
        %v494 = vadd.f32 %v492, %v493
        %s495 = vtos %v494
        %v496 = vmul.f32 %v479, %v479
        %v498 = vcombine.high %v496, %v496
        %v500 = vsel %vm483, %v496, 0.0
        %v501 = vsel %vm483, %v498, 0.0
        %v502 = vadd.f32 %v500, %v501
        %503 = vadd.xlane.f32.xlu0 %v502
        %v504 = vpop.xlane.xlu0 %503
        %v505 = vrot.slane %v504, 4
        %v506 = vadd.f32 %v504, %v505
        %v507 = vrot.slane %v506, 2
        %v508 = vadd.f32 %v506, %v507
        %v509 = vrot.slane %v508, 1
        %v510 = vadd.f32 %v508, %v509
        %s511 = vtos %v510
        %s512 = smul.f32 %s495, 0.0009765625
        %s513 = smul.f32 %s511, 0.0009765625
        %s514 = smul.f32 %s512, %s512
        %s515 = ssub.f32 %s513, %s514
        %s516 = smax.f32 %s515, 0.0
        %v517 = vstv %s512
        %v518 = vsub.f32 %v479, %v517
        %s519 = sadd.f32 %s516, 1e-05
        %v520 = vstv %s519
        %v521 = vrsqrt.pop %v520
        %s522 = vtos %v521
        %v523 = vstv %s522
        %v524 = vmul.f32 %v518, %v523
        %526 = vset.pattern.permute.xlu0 0
        %527 = vperm.xlu0 %526, %v442
        %v528 = vpop.permute.xlu0 %527
        %v530 = vunpack.c.l.s4 839922192
        %v531 = vunpack.c.0.s8 %v530
        %v532 = vlaneseq
        %v533 = vshrl.u32 %v532, 7
        %v534 = vsub.s32 %v531, %v533
        %v535 = vrot.slane %v528, %v534
        %v537 = vmul.f32 %v524, %v535
        %539 = vset.pattern.permute.xlu0 0
        %540 = vperm.xlu0 %539, %v443
        %v541 = vpop.permute.xlu0 %540
        %v543 = vunpack.c.l.s4 839922192
        %v544 = vunpack.c.0.s8 %v543
        %v545 = vlaneseq
        %v546 = vshrl.u32 %v545, 7
        %v547 = vsub.s32 %v544, %v546
        %v548 = vrot.slane %v541, %v547
        %v550 = vadd.f32 %v537, %v548
        %v552 = vcombine.high %v550, %v550
        %v554 = vpack.c.bf16 %v550, %v550
        %v555 = vpack.c.bf16 %v552, %v552
        %v604 = vunpack.c.l.b16 %v392
        %v605 = vunpack.c.l.b16 %v393
        %v606 = vunpack.c.l.b16 %v394
        %v607 = vunpack.c.l.b16 %v395
        %v608 = vunpack.c.l.b16 %v396
        %v609 = vunpack.c.l.b16 %v397
        %v610 = vunpack.c.l.b16 %v398
        %v611 = vunpack.c.l.b16 %v399
        %v612 = vunpack.c.l.b16 %v400
        %v613 = vunpack.c.l.b16 %v401
        %v614 = vunpack.c.l.b16 %v402
        %v615 = vunpack.c.l.b16 %v403
        %v616 = vunpack.c.l.b16 %v404
        %v617 = vunpack.c.l.b16 %v405
        %v618 = vunpack.c.l.b16 %v406
        %v619 = vunpack.c.l.b16 %v407
        %v620 = vunpack.c.l.b16 %v408
        %v621 = vunpack.c.l.b16 %v409
        %v622 = vunpack.c.l.b16 %v410
        %v623 = vunpack.c.l.b16 %v411
        %v624 = vunpack.c.l.b16 %v412
        %v625 = vunpack.c.l.b16 %v413
        %v626 = vunpack.c.l.b16 %v414
        %v627 = vunpack.c.l.b16 %v415
        %v628 = vunpack.c.l.b16 %v416
        %v629 = vunpack.c.l.b16 %v417
        %v630 = vunpack.c.l.b16 %v418
        %v631 = vunpack.c.l.b16 %v419
        %v632 = vunpack.c.l.b16 %v420
        %v633 = vunpack.c.l.b16 %v421
        %v634 = vunpack.c.l.b16 %v422
        %v635 = vunpack.c.l.b16 %v423
        %v636 = vunpack.c.l.b16 %v424
        %v637 = vunpack.c.l.b16 %v425
        %v638 = vunpack.c.l.b16 %v426
        %v639 = vunpack.c.l.b16 %v427
        %v640 = vunpack.c.l.b16 %v428
        %v641 = vunpack.c.l.b16 %v429
        %v642 = vunpack.c.l.b16 %v430
        %v643 = vunpack.c.l.b16 %v431
        %v644 = vunpack.c.l.b16 %v432
        %v645 = vunpack.c.l.b16 %v433
        %v646 = vunpack.c.l.b16 %v434
        %v647 = vunpack.c.l.b16 %v435
        %v648 = vunpack.c.l.b16 %v436
        %v649 = vunpack.c.l.b16 %v437
        %v650 = vunpack.c.l.b16 %v438
        %v651 = vunpack.c.l.b16 %v439
        %v652 = vpack.c.b16 %v605, %v604
        %v653 = vpack.c.b16 %v607, %v606
        %v654 = vpack.c.b16 %v609, %v608
        %v655 = vpack.c.b16 %v611, %v610
        %v656 = vpack.c.b16 %v613, %v612
        %v657 = vpack.c.b16 %v615, %v614
        %v658 = vpack.c.b16 %v617, %v616
        %v659 = vpack.c.b16 %v619, %v618
        %v660 = vpack.c.b16 %v621, %v620
        %v661 = vpack.c.b16 %v623, %v622
        %v662 = vpack.c.b16 %v625, %v624
        %v663 = vpack.c.b16 %v627, %v626
        %v664 = vpack.c.b16 %v629, %v628
        %v665 = vpack.c.b16 %v631, %v630
        %v666 = vpack.c.b16 %v633, %v632
        %v667 = vpack.c.b16 %v635, %v634
        %v668 = vpack.c.b16 %v637, %v636
        %v669 = vpack.c.b16 %v639, %v638
        %v670 = vpack.c.b16 %v641, %v640
        %v671 = vpack.c.b16 %v643, %v642
        %v672 = vpack.c.b16 %v645, %v644
        %v673 = vpack.c.b16 %v647, %v646
        %v674 = vpack.c.b16 %v649, %v648
        %v675 = vpack.c.b16 %v651, %v650
        %vm676 = vcmask 31744
        %v678 = vsel %vm676, %v652, 0
        %v681 = vsel %vm676, %v653, 0
        %v684 = vsel %vm676, %v654, 0
        %v687 = vsel %vm676, %v655, 0
        %v690 = vsel %vm676, %v656, 0
        %v693 = vsel %vm676, %v657, 0
        %v696 = vsel %vm676, %v658, 0
        %v699 = vsel %vm676, %v659, 0
        %v702 = vsel %vm676, %v660, 0
        %v705 = vsel %vm676, %v661, 0
        %v708 = vsel %vm676, %v662, 0
        %v711 = vsel %vm676, %v663, 0
        %v714 = vsel %vm676, %v664, 0
        %v717 = vsel %vm676, %v665, 0
        %v720 = vsel %vm676, %v666, 0
        %v723 = vsel %vm676, %v667, 0
        %v726 = vsel %vm676, %v668, 0
        %v729 = vsel %vm676, %v669, 0
        %v732 = vsel %vm676, %v670, 0
        %v735 = vsel %vm676, %v671, 0
        %v738 = vsel %vm676, %v672, 0
        %v741 = vsel %vm676, %v673, 0
        %v744 = vsel %vm676, %v674, 0
        %v747 = vsel %vm676, %v675, 0
        %vm749 = vcmask 1041408
        %v751 = vsel %vm749, %v554, 0
        %v754 = vsel %vm749, %v555, 0
        %756 = vmatprep.subr.bf16.mxu0 %v754
        %757 = vmatpush1.bf16.msra.mxu0 %v751
        %758 = vmatprep.subr.bf16.mxu0 0
        %759 = vmatpush1.bf16.msra.mxu0 0
        %760 = vmatprep.subr.bf16.mxu0 0
        %761 = vmatpush1.bf16.msra.mxu0 0
        %762 = vmatprep.subr.bf16.mxu0 0
        %763 = vmatpush1.bf16.msra.mxu0 0
        %764 = vmatprep.subr.bf16.mxu0 0
        %765 = vmatpush1.bf16.msra.mxu0 0
        %766 = vmatprep.subr.bf16.mxu0 0
        %767 = vmatpush1.bf16.msra.mxu0 0
        %768 = vmatprep.subr.bf16.mxu0 0
        %769 = vmatpush1.bf16.msra.mxu0 0
        %770 = vmatprep.subr.bf16.mxu0 0
        %771 = vmatpush1.bf16.msra.mxu0 0
        %772 = vmatprep.subr.bf16.mxu0 0
        %773 = vmatpush1.bf16.msra.mxu0 0
        %774 = vmatprep.subr.bf16.mxu0 0
        %775 = vmatpush1.bf16.msra.mxu0 0
        %776 = vmatprep.subr.bf16.mxu0 0
        %777 = vmatpush1.bf16.msra.mxu0 0
        %778 = vmatprep.subr.bf16.mxu0 0
        %779 = vmatpush1.bf16.msra.mxu0 0
        %780 = vmatprep.subr.bf16.mxu0 0
        %781 = vmatpush1.bf16.msra.mxu0 0
        %782 = vmatprep.subr.bf16.mxu0 0
        %783 = vmatpush1.bf16.msra.mxu0 0
        %784 = vmatprep.subr.bf16.mxu0 0
        %785 = vmatpush1.bf16.msra.mxu0 0
        %786 = vmatprep.subr.bf16.mxu0 0
        %787 = vmatpush1.bf16.msra.mxu0 0
        %788 = vmatprep.mubr.bf16.mxu0 0
        %789 = vmatmul.mubr.bf16.gmra.mrb[0].mxu0 %v678
        %v790 = vpop.f32.mrb[0].mxu0
        %v791 = vadd.f32 0.0, %v790
        %v792 = vpop.f32.mrb[0].mxu0
        %v793 = vadd.f32 0.0, %v792
        %v794 = vpop.f32.mrb[0].mxu0
        %v795 = vadd.f32 0.0, %v794
        %v796 = vpop.f32.mrb[0].mxu0
        %v797 = vadd.f32 0.0, %v796
        %798 = vmatprep.mubr.bf16.mxu0 0
        %799 = vmatmul.mubr.bf16.gmra.mrb[0].mxu0 %v681
        %v800 = vpop.f32.mrb[0].mxu0
        %v801 = vadd.f32 0.0, %v800
        %v802 = vpop.f32.mrb[0].mxu0
        %v803 = vadd.f32 0.0, %v802
        %v804 = vpop.f32.mrb[0].mxu0
        %v805 = vadd.f32 0.0, %v804
        %v806 = vpop.f32.mrb[0].mxu0
        %v807 = vadd.f32 0.0, %v806
        %808 = vmatprep.mubr.bf16.mxu0 0
        %809 = vmatmul.mubr.bf16.gmra.mrb[0].mxu0 %v684
        %v810 = vpop.f32.mrb[0].mxu0
        %v811 = vadd.f32 0.0, %v810
        %v812 = vpop.f32.mrb[0].mxu0
        %v813 = vadd.f32 0.0, %v812
        %v814 = vpop.f32.mrb[0].mxu0
        %v815 = vadd.f32 0.0, %v814
        %v816 = vpop.f32.mrb[0].mxu0
        %v817 = vadd.f32 0.0, %v816
        %818 = vmatprep.mubr.bf16.mxu0 0
        %819 = vmatmul.mubr.bf16.gmra.mrb[0].mxu0 %v687
        %v820 = vpop.f32.mrb[0].mxu0
        %v821 = vadd.f32 0.0, %v820
        %v822 = vpop.f32.mrb[0].mxu0
        %v823 = vadd.f32 0.0, %v822
        %v824 = vpop.f32.mrb[0].mxu0
        %v825 = vadd.f32 0.0, %v824
        %v826 = vpop.f32.mrb[0].mxu0
        %v827 = vadd.f32 0.0, %v826
        %828 = vmatprep.mubr.bf16.mxu0 0
        %829 = vmatmul.mubr.bf16.gmra.mrb[0].mxu0 %v690
        %v830 = vpop.f32.mrb[0].mxu0
        %v831 = vadd.f32 0.0, %v830
        %v832 = vpop.f32.mrb[0].mxu0
        %v833 = vadd.f32 0.0, %v832
        %v834 = vpop.f32.mrb[0].mxu0
        %v835 = vadd.f32 0.0, %v834
        %v836 = vpop.f32.mrb[0].mxu0
        %v837 = vadd.f32 0.0, %v836
        %838 = vmatprep.mubr.bf16.mxu0 0
        %839 = vmatmul.mubr.bf16.gmra.mrb[0].mxu0 %v693
        %v840 = vpop.f32.mrb[0].mxu0
        %v841 = vadd.f32 0.0, %v840
        %v842 = vpop.f32.mrb[0].mxu0
        %v843 = vadd.f32 0.0, %v842
        %v844 = vpop.f32.mrb[0].mxu0
        %v845 = vadd.f32 0.0, %v844
        %v846 = vpop.f32.mrb[0].mxu0
        %v847 = vadd.f32 0.0, %v846
        %848 = vmatprep.mubr.bf16.mxu0 0
        %849 = vmatmul.mubr.bf16.gmra.mrb[0].mxu0 %v696
        %v850 = vpop.f32.mrb[0].mxu0
        %v851 = vadd.f32 0.0, %v850
        %v852 = vpop.f32.mrb[0].mxu0
        %v853 = vadd.f32 0.0, %v852
        %v854 = vpop.f32.mrb[0].mxu0
        %v855 = vadd.f32 0.0, %v854
        %v856 = vpop.f32.mrb[0].mxu0
        %v857 = vadd.f32 0.0, %v856
        %858 = vmatprep.mubr.bf16.mxu0 0
        %859 = vmatmul.mubr.bf16.gmra.mrb[0].mxu0 %v699
        %v860 = vpop.f32.mrb[0].mxu0
        %v861 = vadd.f32 0.0, %v860
        %v862 = vpop.f32.mrb[0].mxu0
        %v863 = vadd.f32 0.0, %v862
        %v864 = vpop.f32.mrb[0].mxu0
        %v865 = vadd.f32 0.0, %v864
        %v866 = vpop.f32.mrb[0].mxu0
        %v867 = vadd.f32 0.0, %v866
        %868 = vmatprep.mubr.bf16.mxu0 0
        %869 = vmatmul.mubr.bf16.gmra.mrb[0].mxu0 %v702
        %v870 = vpop.f32.mrb[0].mxu0
        %v871 = vadd.f32 0.0, %v870
        %v872 = vpop.f32.mrb[0].mxu0
        %v873 = vadd.f32 0.0, %v872
        %v874 = vpop.f32.mrb[0].mxu0
        %v875 = vadd.f32 0.0, %v874
        %v876 = vpop.f32.mrb[0].mxu0
        %v877 = vadd.f32 0.0, %v876
        %878 = vmatprep.mubr.bf16.mxu0 0
        %879 = vmatmul.mubr.bf16.gmra.mrb[0].mxu0 %v705
        %v880 = vpop.f32.mrb[0].mxu0
        %v881 = vadd.f32 0.0, %v880
        %v882 = vpop.f32.mrb[0].mxu0
        %v883 = vadd.f32 0.0, %v882
        %v884 = vpop.f32.mrb[0].mxu0
        %v885 = vadd.f32 0.0, %v884
        %v886 = vpop.f32.mrb[0].mxu0
        %v887 = vadd.f32 0.0, %v886
        %888 = vmatprep.mubr.bf16.mxu0 0
        %889 = vmatmul.mubr.bf16.gmra.mrb[0].mxu0 %v708
        %v890 = vpop.f32.mrb[0].mxu0
        %v891 = vadd.f32 0.0, %v890
        %v892 = vpop.f32.mrb[0].mxu0
        %v893 = vadd.f32 0.0, %v892
        %v894 = vpop.f32.mrb[0].mxu0
        %v895 = vadd.f32 0.0, %v894
        %v896 = vpop.f32.mrb[0].mxu0
        %v897 = vadd.f32 0.0, %v896
        %898 = vmatprep.mubr.bf16.mxu0 0
        %899 = vmatmul.mubr.bf16.gmra.mrb[0].mxu0 %v711
        %v900 = vpop.f32.mrb[0].mxu0
        %v901 = vadd.f32 0.0, %v900
        %v902 = vpop.f32.mrb[0].mxu0
        %v903 = vadd.f32 0.0, %v902
        %v904 = vpop.f32.mrb[0].mxu0
        %v905 = vadd.f32 0.0, %v904
        %v906 = vpop.f32.mrb[0].mxu0
        %v907 = vadd.f32 0.0, %v906
        %908 = vmatprep.mubr.bf16.mxu0 0
        %909 = vmatmul.mubr.bf16.gmra.mrb[0].mxu0 %v714
        %v910 = vpop.f32.mrb[0].mxu0
        %v911 = vadd.f32 0.0, %v910
        %v912 = vpop.f32.mrb[0].mxu0
        %v913 = vadd.f32 0.0, %v912
        %v914 = vpop.f32.mrb[0].mxu0
        %v915 = vadd.f32 0.0, %v914
        %v916 = vpop.f32.mrb[0].mxu0
        %v917 = vadd.f32 0.0, %v916
        %918 = vmatprep.mubr.bf16.mxu0 0
        %919 = vmatmul.mubr.bf16.gmra.mrb[0].mxu0 %v717
        %v920 = vpop.f32.mrb[0].mxu0
        %v921 = vadd.f32 0.0, %v920
        %v922 = vpop.f32.mrb[0].mxu0
        %v923 = vadd.f32 0.0, %v922
        %v924 = vpop.f32.mrb[0].mxu0
        %v925 = vadd.f32 0.0, %v924
        %v926 = vpop.f32.mrb[0].mxu0
        %v927 = vadd.f32 0.0, %v926
        %928 = vmatprep.mubr.bf16.mxu0 0
        %929 = vmatmul.mubr.bf16.gmra.mrb[0].mxu0 %v720
        %v930 = vpop.f32.mrb[0].mxu0
        %v931 = vadd.f32 0.0, %v930
        %v932 = vpop.f32.mrb[0].mxu0
        %v933 = vadd.f32 0.0, %v932
        %v934 = vpop.f32.mrb[0].mxu0
        %v935 = vadd.f32 0.0, %v934
        %v936 = vpop.f32.mrb[0].mxu0
        %v937 = vadd.f32 0.0, %v936
        %938 = vmatprep.mubr.bf16.mxu0 0
        %939 = vmatmul.mubr.bf16.gmra.mrb[0].mxu0 %v723
        %v940 = vpop.f32.mrb[0].mxu0
        %v941 = vadd.f32 0.0, %v940
        %v942 = vpop.f32.mrb[0].mxu0
        %v943 = vadd.f32 0.0, %v942
        %v944 = vpop.f32.mrb[0].mxu0
        %v945 = vadd.f32 0.0, %v944
        %v946 = vpop.f32.mrb[0].mxu0
        %v947 = vadd.f32 0.0, %v946
        %948 = vmatprep.mubr.bf16.mxu0 0
        %949 = vmatmul.mubr.bf16.gmra.mrb[0].mxu0 %v726
        %v950 = vpop.f32.mrb[0].mxu0
        %v951 = vadd.f32 0.0, %v950
        %v952 = vpop.f32.mrb[0].mxu0
        %v953 = vadd.f32 0.0, %v952
        %v954 = vpop.f32.mrb[0].mxu0
        %v955 = vadd.f32 0.0, %v954
        %v956 = vpop.f32.mrb[0].mxu0
        %v957 = vadd.f32 0.0, %v956
        %958 = vmatprep.mubr.bf16.mxu0 0
        %959 = vmatmul.mubr.bf16.gmra.mrb[0].mxu0 %v729
        %v960 = vpop.f32.mrb[0].mxu0
        %v961 = vadd.f32 0.0, %v960
        %v962 = vpop.f32.mrb[0].mxu0
        %v963 = vadd.f32 0.0, %v962
        %v964 = vpop.f32.mrb[0].mxu0
        %v965 = vadd.f32 0.0, %v964
        %v966 = vpop.f32.mrb[0].mxu0
        %v967 = vadd.f32 0.0, %v966
        %968 = vmatprep.mubr.bf16.mxu0 0
        %969 = vmatmul.mubr.bf16.gmra.mrb[0].mxu0 %v732
        %v970 = vpop.f32.mrb[0].mxu0
        %v971 = vadd.f32 0.0, %v970
        %v972 = vpop.f32.mrb[0].mxu0
        %v973 = vadd.f32 0.0, %v972
        %v974 = vpop.f32.mrb[0].mxu0
        %v975 = vadd.f32 0.0, %v974
        %v976 = vpop.f32.mrb[0].mxu0
        %v977 = vadd.f32 0.0, %v976
        %978 = vmatprep.mubr.bf16.mxu0 0
        %979 = vmatmul.mubr.bf16.gmra.mrb[0].mxu0 %v735
        %v980 = vpop.f32.mrb[0].mxu0
        %v981 = vadd.f32 0.0, %v980
        %v982 = vpop.f32.mrb[0].mxu0
        %v983 = vadd.f32 0.0, %v982
        %v984 = vpop.f32.mrb[0].mxu0
        %v985 = vadd.f32 0.0, %v984
        %v986 = vpop.f32.mrb[0].mxu0
        %v987 = vadd.f32 0.0, %v986
        %988 = vmatprep.mubr.bf16.mxu0 0
        %989 = vmatmul.mubr.bf16.gmra.mrb[0].mxu0 %v738
        %v990 = vpop.f32.mrb[0].mxu0
        %v991 = vadd.f32 0.0, %v990
        %v992 = vpop.f32.mrb[0].mxu0
        %v993 = vadd.f32 0.0, %v992
        %v994 = vpop.f32.mrb[0].mxu0
        %v995 = vadd.f32 0.0, %v994
        %v996 = vpop.f32.mrb[0].mxu0
        %v997 = vadd.f32 0.0, %v996
        %998 = vmatprep.mubr.bf16.mxu0 0
        %999 = vmatmul.mubr.bf16.gmra.mrb[0].mxu0 %v741
        %v1000 = vpop.f32.mrb[0].mxu0
        %v1001 = vadd.f32 0.0, %v1000
        %v1002 = vpop.f32.mrb[0].mxu0
        %v1003 = vadd.f32 0.0, %v1002
        %v1004 = vpop.f32.mrb[0].mxu0
        %v1005 = vadd.f32 0.0, %v1004
        %v1006 = vpop.f32.mrb[0].mxu0
        %v1007 = vadd.f32 0.0, %v1006
        %1008 = vmatprep.mubr.bf16.mxu0 0
        %1009 = vmatmul.mubr.bf16.gmra.mrb[0].mxu0 %v744
        %v1010 = vpop.f32.mrb[0].mxu0
        %v1011 = vadd.f32 0.0, %v1010
        %v1012 = vpop.f32.mrb[0].mxu0
        %v1013 = vadd.f32 0.0, %v1012
        %v1014 = vpop.f32.mrb[0].mxu0
        %v1015 = vadd.f32 0.0, %v1014
        %v1016 = vpop.f32.mrb[0].mxu0
        %v1017 = vadd.f32 0.0, %v1016
        %1018 = vmatprep.mubr.bf16.mxu0 0
        %1019 = vmatmul.mubr.bf16.gmra.mrb[0].mxu0 %v747
        %v1020 = vpop.f32.mrb[0].mxu0
        %v1021 = vadd.f32 0.0, %v1020
        %v1022 = vpop.f32.mrb[0].mxu0
        %v1023 = vadd.f32 0.0, %v1022
        %v1024 = vpop.f32.mrb[0].mxu0
        %v1025 = vadd.f32 0.0, %v1024
        %v1026 = vpop.f32.mrb[0].mxu0
        %v1027 = vadd.f32 0.0, %v1026
        %1028 = vdwg.mxu0
        %v1029 = vmax.f32 %v791, %v801
        %v1030 = vmax.f32 %v795, %v805
        %v1031 = vmax.f32 %v1029, %v1030
        %v1032 = vrot.slane %v1031, 4
        %v1033 = vmax.f32 %v1031, %v1032
        %v1034 = vrot.slane %v1033, 2
        %v1035 = vmax.f32 %v1033, %v1034
        %v1036 = vrot.slane %v1035, 1
        %v1037 = vmax.f32 %v1035, %v1036
        %v1038 = vmax.f32 %v793, %v803
        %v1039 = vmax.f32 %v797, %v807
        %v1040 = vmax.f32 %v1038, %v1039
        %v1041 = vrot.slane %v1040, 4
        %v1042 = vmax.f32 %v1040, %v1041
        %v1043 = vrot.slane %v1042, 2
        %v1044 = vmax.f32 %v1042, %v1043
        %v1045 = vrot.slane %v1044, 1
        %v1046 = vmax.f32 %v1044, %v1045
        %v1047 = vmax.f32 %v811, %v821
        %v1048 = vmax.f32 %v815, %v825
        %v1049 = vmax.f32 %v1047, %v1048
        %v1050 = vrot.slane %v1049, 4
        %v1051 = vmax.f32 %v1049, %v1050
        %v1052 = vrot.slane %v1051, 2
        %v1053 = vmax.f32 %v1051, %v1052
        %v1054 = vrot.slane %v1053, 1
        %v1055 = vmax.f32 %v1053, %v1054
        %v1056 = vmax.f32 %v813, %v823
        %v1057 = vmax.f32 %v817, %v827
        %v1058 = vmax.f32 %v1056, %v1057
        %v1059 = vrot.slane %v1058, 4
        %v1060 = vmax.f32 %v1058, %v1059
        %v1061 = vrot.slane %v1060, 2
        %v1062 = vmax.f32 %v1060, %v1061
        %v1063 = vrot.slane %v1062, 1
        %v1064 = vmax.f32 %v1062, %v1063
        %v1065 = vmax.f32 %v831, %v841
        %v1066 = vmax.f32 %v835, %v845
        %v1067 = vmax.f32 %v1065, %v1066
        %v1068 = vrot.slane %v1067, 4
        %v1069 = vmax.f32 %v1067, %v1068
        %v1070 = vrot.slane %v1069, 2
        %v1071 = vmax.f32 %v1069, %v1070
        %v1072 = vrot.slane %v1071, 1
        %v1073 = vmax.f32 %v1071, %v1072
        %v1074 = vmax.f32 %v833, %v843
        %v1075 = vmax.f32 %v837, %v847
        %v1076 = vmax.f32 %v1074, %v1075
        %v1077 = vrot.slane %v1076, 4
        %v1078 = vmax.f32 %v1076, %v1077
        %v1079 = vrot.slane %v1078, 2
        %v1080 = vmax.f32 %v1078, %v1079
        %v1081 = vrot.slane %v1080, 1
        %v1082 = vmax.f32 %v1080, %v1081
        %v1083 = vmax.f32 %v851, %v861
        %v1084 = vmax.f32 %v855, %v865
        %v1085 = vmax.f32 %v1083, %v1084
        %v1086 = vrot.slane %v1085, 4
        %v1087 = vmax.f32 %v1085, %v1086
        %v1088 = vrot.slane %v1087, 2
        %v1089 = vmax.f32 %v1087, %v1088
        %v1090 = vrot.slane %v1089, 1
        %v1091 = vmax.f32 %v1089, %v1090
        %v1092 = vmax.f32 %v853, %v863
        %v1093 = vmax.f32 %v857, %v867
        %v1094 = vmax.f32 %v1092, %v1093
        %v1095 = vrot.slane %v1094, 4
        %v1096 = vmax.f32 %v1094, %v1095
        %v1097 = vrot.slane %v1096, 2
        %v1098 = vmax.f32 %v1096, %v1097
        %v1099 = vrot.slane %v1098, 1
        %v1100 = vmax.f32 %v1098, %v1099
        %vm1101 = vcmask 1040384
        %v1102 = vsel %vm1101, %v1037, %v1055
        %v1103 = vsel %vm1101, %v1046, %v1064
        %v1104 = vsel %vm749, %v1102, %v1073
        %v1105 = vsel %vm749, %v1103, %v1082
        %vm1106 = vcmask 1042432
        %v1107 = vsel %vm1106, %v1104, %v1091
        %v1108 = vsel %vm1106, %v1105, %v1100
        %v1109 = vpack.c.bf16 %v1107, %v1107
        %v1110 = vpack.c.bf16 %v1108, %v1108
        %v1127 = vunpack.c.l.b16 %v463
        %v1128 = vunpack.c.l.b16 %v464
        %v1129 = vunpack.c.l.b16 %v465
        %v1130 = vunpack.c.l.b16 %v466
        %v1131 = vunpack.c.l.b16 %v467
        %v1132 = vunpack.c.l.b16 %v468
        %v1133 = vunpack.c.l.b16 %v469
        %v1134 = vunpack.c.l.b16 %v470
        %v1135 = vunpack.c.l.b16 %v471
        %v1136 = vunpack.c.l.b16 %v472
        %v1137 = vunpack.c.l.b16 %v473
        %v1138 = vunpack.c.l.b16 %v474
        %v1139 = vunpack.c.l.b16 %v475
        %v1140 = vunpack.c.l.b16 %v476
        %v1141 = vunpack.c.l.b16 %v477
        %v1142 = vunpack.c.l.b16 %v478
        %v1143 = vpack.c.b16 %v1128, %v1127
        %v1144 = vpack.c.b16 %v1130, %v1129
        %v1145 = vpack.c.b16 %v1132, %v1131
        %v1146 = vpack.c.b16 %v1134, %v1133
        %v1147 = vpack.c.b16 %v1136, %v1135
        %v1148 = vpack.c.b16 %v1138, %v1137
        %v1149 = vpack.c.b16 %v1140, %v1139
        %v1150 = vpack.c.b16 %v1142, %v1141
        %v1152 = vsel %vm676, %v1143, 0
        %v1155 = vsel %vm676, %v1144, 0
        %v1158 = vsel %vm676, %v1145, 0
        %v1161 = vsel %vm676, %v1146, 0
        %v1164 = vsel %vm676, %v1147, 0
        %v1167 = vsel %vm676, %v1148, 0
        %v1170 = vsel %vm676, %v1149, 0
        %v1173 = vsel %vm676, %v1150, 0
        %v1176 = vsel %vm749, %v1109, 0
        %v1179 = vsel %vm749, %v1110, 0
        %1181 = vmatprep.subr.bf16.mxu0 %v1179
        %1182 = vmatpush1.bf16.msra.mxu0 %v1176
        %1183 = vmatprep.subr.bf16.mxu0 0
        %1184 = vmatpush1.bf16.msra.mxu0 0
        %1185 = vmatprep.subr.bf16.mxu0 0
        %1186 = vmatpush1.bf16.msra.mxu0 0
        %1187 = vmatprep.subr.bf16.mxu0 0
        %1188 = vmatpush1.bf16.msra.mxu0 0
        %1189 = vmatprep.subr.bf16.mxu0 0
        %1190 = vmatpush1.bf16.msra.mxu0 0
        %1191 = vmatprep.subr.bf16.mxu0 0
        %1192 = vmatpush1.bf16.msra.mxu0 0
        %1193 = vmatprep.subr.bf16.mxu0 0
        %1194 = vmatpush1.bf16.msra.mxu0 0
        %1195 = vmatprep.subr.bf16.mxu0 0
        %1196 = vmatpush1.bf16.msra.mxu0 0
        %1197 = vmatprep.subr.bf16.mxu0 0
        %1198 = vmatpush1.bf16.msra.mxu0 0
        %1199 = vmatprep.subr.bf16.mxu0 0
        %1200 = vmatpush1.bf16.msra.mxu0 0
        %1201 = vmatprep.subr.bf16.mxu0 0
        %1202 = vmatpush1.bf16.msra.mxu0 0
        %1203 = vmatprep.subr.bf16.mxu0 0
        %1204 = vmatpush1.bf16.msra.mxu0 0
        %1205 = vmatprep.subr.bf16.mxu0 0
        %1206 = vmatpush1.bf16.msra.mxu0 0
        %1207 = vmatprep.subr.bf16.mxu0 0
        %1208 = vmatpush1.bf16.msra.mxu0 0
        %1209 = vmatprep.subr.bf16.mxu0 0
        %1210 = vmatpush1.bf16.msra.mxu0 0
        %1211 = vmatprep.subr.bf16.mxu0 0
        %1212 = vmatpush1.bf16.msra.mxu0 0
        %1213 = vmatprep.mubr.bf16.mxu0 0
        %1214 = vmatmul.mubr.bf16.gmra.mrb[0].mxu0 %v1152
        %v1215 = vpop.f32.mrb[0].mxu0
        %v1216 = vadd.f32 0.0, %v1215
        %v1217 = vpop.f32.mrb[0].mxu0
        %v1218 = vadd.f32 0.0, %v1217
        %v1219 = vpop.f32.mrb[0].mxu0
        %v1220 = vadd.f32 0.0, %v1219
        %v1221 = vpop.f32.mrb[0].mxu0
        %v1222 = vadd.f32 0.0, %v1221
        %1223 = vmatprep.mubr.bf16.mxu0 0
        %1224 = vmatmul.mubr.bf16.gmra.mrb[0].mxu0 %v1155
        %v1225 = vpop.f32.mrb[0].mxu0
        %v1226 = vadd.f32 0.0, %v1225
        %v1227 = vpop.f32.mrb[0].mxu0
        %v1228 = vadd.f32 0.0, %v1227
        %v1229 = vpop.f32.mrb[0].mxu0
        %v1230 = vadd.f32 0.0, %v1229
        %v1231 = vpop.f32.mrb[0].mxu0
        %v1232 = vadd.f32 0.0, %v1231
        %1233 = vmatprep.mubr.bf16.mxu0 0
        %1234 = vmatmul.mubr.bf16.gmra.mrb[0].mxu0 %v1158
        %v1235 = vpop.f32.mrb[0].mxu0
        %v1236 = vadd.f32 0.0, %v1235
        %v1237 = vpop.f32.mrb[0].mxu0
        %v1238 = vadd.f32 0.0, %v1237
        %v1239 = vpop.f32.mrb[0].mxu0
        %v1240 = vadd.f32 0.0, %v1239
        %v1241 = vpop.f32.mrb[0].mxu0
        %v1242 = vadd.f32 0.0, %v1241
        %1243 = vmatprep.mubr.bf16.mxu0 0
        %1244 = vmatmul.mubr.bf16.gmra.mrb[0].mxu0 %v1161
        %v1245 = vpop.f32.mrb[0].mxu0
        %v1246 = vadd.f32 0.0, %v1245
        %v1247 = vpop.f32.mrb[0].mxu0
        %v1248 = vadd.f32 0.0, %v1247
        %v1249 = vpop.f32.mrb[0].mxu0
        %v1250 = vadd.f32 0.0, %v1249
        %v1251 = vpop.f32.mrb[0].mxu0
        %v1252 = vadd.f32 0.0, %v1251
        %1253 = vmatprep.mubr.bf16.mxu0 0
        %1254 = vmatmul.mubr.bf16.gmra.mrb[0].mxu0 %v1164
        %v1255 = vpop.f32.mrb[0].mxu0
        %v1256 = vadd.f32 0.0, %v1255
        %v1257 = vpop.f32.mrb[0].mxu0
        %v1258 = vadd.f32 0.0, %v1257
        %v1259 = vpop.f32.mrb[0].mxu0
        %v1260 = vadd.f32 0.0, %v1259
        %v1261 = vpop.f32.mrb[0].mxu0
        %v1262 = vadd.f32 0.0, %v1261
        %1263 = vmatprep.mubr.bf16.mxu0 0
        %1264 = vmatmul.mubr.bf16.gmra.mrb[0].mxu0 %v1167
        %v1265 = vpop.f32.mrb[0].mxu0
        %v1266 = vadd.f32 0.0, %v1265
        %v1267 = vpop.f32.mrb[0].mxu0
        %v1268 = vadd.f32 0.0, %v1267
        %v1269 = vpop.f32.mrb[0].mxu0
        %v1270 = vadd.f32 0.0, %v1269
        %v1271 = vpop.f32.mrb[0].mxu0
        %v1272 = vadd.f32 0.0, %v1271
        %1273 = vmatprep.mubr.bf16.mxu0 0
        %1274 = vmatmul.mubr.bf16.gmra.mrb[0].mxu0 %v1170
        %v1275 = vpop.f32.mrb[0].mxu0
        %v1276 = vadd.f32 0.0, %v1275
        %v1277 = vpop.f32.mrb[0].mxu0
        %v1278 = vadd.f32 0.0, %v1277
        %v1279 = vpop.f32.mrb[0].mxu0
        %v1280 = vadd.f32 0.0, %v1279
        %v1281 = vpop.f32.mrb[0].mxu0
        %v1282 = vadd.f32 0.0, %v1281
        %1283 = vmatprep.mubr.bf16.mxu0 0
        %1284 = vmatmul.mubr.bf16.gmra.mrb[0].mxu0 %v1173
        %v1285 = vpop.f32.mrb[0].mxu0
        %v1286 = vadd.f32 0.0, %v1285
        %v1287 = vpop.f32.mrb[0].mxu0
        %v1288 = vadd.f32 0.0, %v1287
        %v1289 = vpop.f32.mrb[0].mxu0
        %v1290 = vadd.f32 0.0, %v1289
        %v1291 = vpop.f32.mrb[0].mxu0
        %v1292 = vadd.f32 0.0, %v1291
        %1293 = vdwg.mxu0
        %v1294 = vsub.f32 %v791, %v1216
        %v1295 = vsub.f32 %v793, %v1218
        %v1296 = vsub.f32 %v795, %v1220
        %v1297 = vsub.f32 %v797, %v1222
        %v1298 = vsub.f32 %v801, %v1226
        %v1299 = vsub.f32 %v803, %v1228
        %v1300 = vsub.f32 %v805, %v1230
        %v1301 = vsub.f32 %v807, %v1232
        %v1302 = vsub.f32 %v811, %v1236
        %v1303 = vsub.f32 %v813, %v1238
        %v1304 = vsub.f32 %v815, %v1240
        %v1305 = vsub.f32 %v817, %v1242
        %v1306 = vsub.f32 %v821, %v1246
        %v1307 = vsub.f32 %v823, %v1248
        %v1308 = vsub.f32 %v825, %v1250
        %v1309 = vsub.f32 %v827, %v1252
        %v1310 = vsub.f32 %v831, %v1256
        %v1311 = vsub.f32 %v833, %v1258
        %v1312 = vsub.f32 %v835, %v1260
        %v1313 = vsub.f32 %v837, %v1262
        %v1314 = vsub.f32 %v841, %v1266
        %v1315 = vsub.f32 %v843, %v1268
        %v1316 = vsub.f32 %v845, %v1270
        %v1317 = vsub.f32 %v847, %v1272
        %v1318 = vsub.f32 %v851, %v1276
        %v1319 = vsub.f32 %v853, %v1278
        %v1320 = vsub.f32 %v855, %v1280
        %v1321 = vsub.f32 %v857, %v1282
        %v1322 = vsub.f32 %v861, %v1286
        %v1323 = vsub.f32 %v863, %v1288
        %v1324 = vsub.f32 %v865, %v1290
        %v1325 = vsub.f32 %v867, %v1292
        %v1326 = vmul.f32 %v1294, 1.442695
        %v1327 = vpow.pop %v1326
        %v1328 = vmul.f32 %v1295, 1.442695
        %v1329 = vpow.pop %v1328
        %v1330 = vmul.f32 %v1296, 1.442695
        %v1331 = vpow.pop %v1330
        %v1332 = vmul.f32 %v1297, 1.442695
        %v1333 = vpow.pop %v1332
        %v1334 = vmul.f32 %v1298, 1.442695
        %v1335 = vpow.pop %v1334
        %v1336 = vmul.f32 %v1299, 1.442695
        %v1337 = vpow.pop %v1336
        %v1338 = vmul.f32 %v1300, 1.442695
        %v1339 = vpow.pop %v1338
        %v1340 = vmul.f32 %v1301, 1.442695
        %v1341 = vpow.pop %v1340
        %v1342 = vmul.f32 %v1302, 1.442695
        %v1343 = vpow.pop %v1342
        %v1344 = vmul.f32 %v1303, 1.442695
        %v1345 = vpow.pop %v1344
        %v1346 = vmul.f32 %v1304, 1.442695
        %v1347 = vpow.pop %v1346
        %v1348 = vmul.f32 %v1305, 1.442695
        %v1349 = vpow.pop %v1348
        %v1350 = vmul.f32 %v1306, 1.442695
        %v1351 = vpow.pop %v1350
        %v1352 = vmul.f32 %v1307, 1.442695
        %v1353 = vpow.pop %v1352
        %v1354 = vmul.f32 %v1308, 1.442695
        %v1355 = vpow.pop %v1354
        %v1356 = vmul.f32 %v1309, 1.442695
        %v1357 = vpow.pop %v1356
        %v1358 = vmul.f32 %v1310, 1.442695
        %v1359 = vpow.pop %v1358
        %v1360 = vmul.f32 %v1311, 1.442695
        %v1361 = vpow.pop %v1360
        %v1362 = vmul.f32 %v1312, 1.442695
        %v1363 = vpow.pop %v1362
        %v1364 = vmul.f32 %v1313, 1.442695
        %v1365 = vpow.pop %v1364
        %v1366 = vmul.f32 %v1314, 1.442695
        %v1367 = vpow.pop %v1366
        %v1368 = vmul.f32 %v1315, 1.442695
        %v1369 = vpow.pop %v1368
        %v1370 = vmul.f32 %v1316, 1.442695
        %v1371 = vpow.pop %v1370
        %v1372 = vmul.f32 %v1317, 1.442695
        %v1373 = vpow.pop %v1372
        %v1374 = vmul.f32 %v1318, 1.442695
        %v1375 = vpow.pop %v1374
        %v1376 = vmul.f32 %v1319, 1.442695
        %v1377 = vpow.pop %v1376
        %v1378 = vmul.f32 %v1320, 1.442695
        %v1379 = vpow.pop %v1378
        %v1380 = vmul.f32 %v1321, 1.442695
        %v1381 = vpow.pop %v1380
        %v1382 = vmul.f32 %v1322, 1.442695
        %v1383 = vpow.pop %v1382
        %v1384 = vmul.f32 %v1323, 1.442695
        %v1385 = vpow.pop %v1384
        %v1386 = vmul.f32 %v1324, 1.442695
        %v1387 = vpow.pop %v1386
        %v1388 = vmul.f32 %v1325, 1.442695
        %v1389 = vpow.pop %v1388
        %v1390 = vpack.c.bf16 %v1331, %v1327
        %v1391 = vpack.c.bf16 %v1333, %v1329
        %v1392 = vpack.c.bf16 %v1339, %v1335
        %v1393 = vpack.c.bf16 %v1341, %v1337
        %v1394 = vpack.c.bf16 %v1347, %v1343
        %v1395 = vpack.c.bf16 %v1349, %v1345
        %v1396 = vpack.c.bf16 %v1355, %v1351
        %v1397 = vpack.c.bf16 %v1357, %v1353
        %v1398 = vpack.c.bf16 %v1363, %v1359
        %v1399 = vpack.c.bf16 %v1365, %v1361
        %v1400 = vpack.c.bf16 %v1371, %v1367
        %v1401 = vpack.c.bf16 %v1373, %v1369
        %v1402 = vpack.c.bf16 %v1379, %v1375
        %v1403 = vpack.c.bf16 %v1381, %v1377
        %v1404 = vpack.c.bf16 %v1387, %v1383
        %v1405 = vpack.c.bf16 %v1389, %v1385
        %1406 = vmatprep.subr.bf16.mxu0 %v1391
        %1407 = vmatpush1.bf16.msra.mxu0 %v1390
        %1408 = vmatprep.subr.bf16.mxu0 %v1393
        %1409 = vmatpush1.bf16.msra.mxu0 %v1392
        %1410 = vmatprep.subr.bf16.mxu0 %v1395
        %1411 = vmatpush1.bf16.msra.mxu0 %v1394
        %1412 = vmatprep.subr.bf16.mxu0 %v1397
        %1413 = vmatpush1.bf16.msra.mxu0 %v1396
        %1414 = vmatprep.subr.bf16.mxu0 %v1399
        %1415 = vmatpush1.bf16.msra.mxu0 %v1398
        %1416 = vmatprep.subr.bf16.mxu0 %v1401
        %1417 = vmatpush1.bf16.msra.mxu0 %v1400
        %1418 = vmatprep.subr.bf16.mxu0 %v1403
        %1419 = vmatpush1.bf16.msra.mxu0 %v1402
        %1420 = vmatprep.subr.bf16.mxu0 %v1405
        %1421 = vmatpush1.bf16.msra.mxu0 %v1404
        %1422 = vmatprep.subr.bf16.mxu0 0
        %1423 = vmatpush1.bf16.msra.mxu0 0
        %1424 = vmatprep.subr.bf16.mxu0 0
        %1425 = vmatpush1.bf16.msra.mxu0 0
        %1426 = vmatprep.subr.bf16.mxu0 0
        %1427 = vmatpush1.bf16.msra.mxu0 0
        %1428 = vmatprep.subr.bf16.mxu0 0
        %1429 = vmatpush1.bf16.msra.mxu0 0
        %1430 = vmatprep.subr.bf16.mxu0 0
        %1431 = vmatpush1.bf16.msra.mxu0 0
        %1432 = vmatprep.subr.bf16.mxu0 0
        %1433 = vmatpush1.bf16.msra.mxu0 0
        %1434 = vmatprep.subr.bf16.mxu0 0
        %1435 = vmatpush1.bf16.msra.mxu0 0
        %1436 = vmatprep.subr.bf16.mxu0 0
        %1437 = vmatpush1.bf16.msra.mxu0 0
        %1438 = vmatprep.mubr.bf16.mxu0 0
        %1439 = vmatmul.mubr.bf16.gmra.mrb[0].mxu0 %v462
        %v1440 = vpop.f32.mrb[0].mxu0
        %v1441 = vadd.f32 0.0, %v1440
        %v1442 = vpop.f32.mrb[0].mxu0
        %v1443 = vadd.f32 0.0, %v1442
        %v1444 = vpop.f32.mrb[0].mxu0
        %v1445 = vpop.f32.mrb[0].mxu0
        %1446 = vdwg.mxu0
        %v1447 = vrcp.pop %v1441
        %v1448 = vrcp.pop %v1443
        %v1449 = vpack.c.bf16 %v1447, %v1447
        %v1450 = vpack.c.bf16 %v1448, %v1448
        %v1452 = vsel %vm749, %v1449, 0
        %v1455 = vsel %vm749, %v1450, 0
        %1457 = vmatprep.subr.bf16.mxu0 %v1455
        %1458 = vmatpush1.bf16.msra.mxu0 %v1452
        %1459 = vmatprep.subr.bf16.mxu0 0
        %1460 = vmatpush1.bf16.msra.mxu0 0
        %1461 = vmatprep.subr.bf16.mxu0 0
        %1462 = vmatpush1.bf16.msra.mxu0 0
        %1463 = vmatprep.subr.bf16.mxu0 0
        %1464 = vmatpush1.bf16.msra.mxu0 0
        %1465 = vmatprep.subr.bf16.mxu0 0
        %1466 = vmatpush1.bf16.msra.mxu0 0
        %1467 = vmatprep.subr.bf16.mxu0 0
        %1468 = vmatpush1.bf16.msra.mxu0 0
        %1469 = vmatprep.subr.bf16.mxu0 0
        %1470 = vmatpush1.bf16.msra.mxu0 0
        %1471 = vmatprep.subr.bf16.mxu0 0
        %1472 = vmatpush1.bf16.msra.mxu0 0
        %1473 = vmatprep.subr.bf16.mxu0 0
        %1474 = vmatpush1.bf16.msra.mxu0 0
        %1475 = vmatprep.subr.bf16.mxu0 0
        %1476 = vmatpush1.bf16.msra.mxu0 0
        %1477 = vmatprep.subr.bf16.mxu0 0
        %1478 = vmatpush1.bf16.msra.mxu0 0
        %1479 = vmatprep.subr.bf16.mxu0 0
        %1480 = vmatpush1.bf16.msra.mxu0 0
        %1481 = vmatprep.subr.bf16.mxu0 0
        %1482 = vmatpush1.bf16.msra.mxu0 0
        %1483 = vmatprep.subr.bf16.mxu0 0
        %1484 = vmatpush1.bf16.msra.mxu0 0
        %1485 = vmatprep.subr.bf16.mxu0 0
        %1486 = vmatpush1.bf16.msra.mxu0 0
        %1487 = vmatprep.subr.bf16.mxu0 0
        %1488 = vmatpush1.bf16.msra.mxu0 0
        %1489 = vmatprep.mubr.bf16.mxu0 0
        %1490 = vmatmul.mubr.bf16.gmra.mrb[0].mxu0 %v1152
        %v1491 = vpop.f32.mrb[0].mxu0
        %v1492 = vadd.f32 0.0, %v1491
        %v1493 = vpop.f32.mrb[0].mxu0
        %v1494 = vadd.f32 0.0, %v1493
        %v1495 = vpop.f32.mrb[0].mxu0
        %v1496 = vadd.f32 0.0, %v1495
        %v1497 = vpop.f32.mrb[0].mxu0
        %v1498 = vadd.f32 0.0, %v1497
        %1499 = vmatprep.mubr.bf16.mxu0 0
        %1500 = vmatmul.mubr.bf16.gmra.mrb[0].mxu0 %v1155
        %v1501 = vpop.f32.mrb[0].mxu0
        %v1502 = vadd.f32 0.0, %v1501
        %v1503 = vpop.f32.mrb[0].mxu0
        %v1504 = vadd.f32 0.0, %v1503
        %v1505 = vpop.f32.mrb[0].mxu0
        %v1506 = vadd.f32 0.0, %v1505
        %v1507 = vpop.f32.mrb[0].mxu0
        %v1508 = vadd.f32 0.0, %v1507
        %1509 = vmatprep.mubr.bf16.mxu0 0
        %1510 = vmatmul.mubr.bf16.gmra.mrb[0].mxu0 %v1158
        %v1511 = vpop.f32.mrb[0].mxu0
        %v1512 = vadd.f32 0.0, %v1511
        %v1513 = vpop.f32.mrb[0].mxu0
        %v1514 = vadd.f32 0.0, %v1513
        %v1515 = vpop.f32.mrb[0].mxu0
        %v1516 = vadd.f32 0.0, %v1515
        %v1517 = vpop.f32.mrb[0].mxu0
        %v1518 = vadd.f32 0.0, %v1517
        %1519 = vmatprep.mubr.bf16.mxu0 0
        %1520 = vmatmul.mubr.bf16.gmra.mrb[0].mxu0 %v1161
        %v1521 = vpop.f32.mrb[0].mxu0
        %v1522 = vadd.f32 0.0, %v1521
        %v1523 = vpop.f32.mrb[0].mxu0
        %v1524 = vadd.f32 0.0, %v1523
        %v1525 = vpop.f32.mrb[0].mxu0
        %v1526 = vadd.f32 0.0, %v1525
        %v1527 = vpop.f32.mrb[0].mxu0
        %v1528 = vadd.f32 0.0, %v1527
        %1529 = vmatprep.mubr.bf16.mxu0 0
        %1530 = vmatmul.mubr.bf16.gmra.mrb[0].mxu0 %v1164
        %v1531 = vpop.f32.mrb[0].mxu0
        %v1532 = vadd.f32 0.0, %v1531
        %v1533 = vpop.f32.mrb[0].mxu0
        %v1534 = vadd.f32 0.0, %v1533
        %v1535 = vpop.f32.mrb[0].mxu0
        %v1536 = vadd.f32 0.0, %v1535
        %v1537 = vpop.f32.mrb[0].mxu0
        %v1538 = vadd.f32 0.0, %v1537
        %1539 = vmatprep.mubr.bf16.mxu0 0
        %1540 = vmatmul.mubr.bf16.gmra.mrb[0].mxu0 %v1167
        %v1541 = vpop.f32.mrb[0].mxu0
        %v1542 = vadd.f32 0.0, %v1541
        %v1543 = vpop.f32.mrb[0].mxu0
        %v1544 = vadd.f32 0.0, %v1543
        %v1545 = vpop.f32.mrb[0].mxu0
        %v1546 = vadd.f32 0.0, %v1545
        %v1547 = vpop.f32.mrb[0].mxu0
        %v1548 = vadd.f32 0.0, %v1547
        %1549 = vmatprep.mubr.bf16.mxu0 0
        %1550 = vmatmul.mubr.bf16.gmra.mrb[0].mxu0 %v1170
        %v1551 = vpop.f32.mrb[0].mxu0
        %v1552 = vadd.f32 0.0, %v1551
        %v1553 = vpop.f32.mrb[0].mxu0
        %v1554 = vadd.f32 0.0, %v1553
        %v1555 = vpop.f32.mrb[0].mxu0
        %v1556 = vadd.f32 0.0, %v1555
        %v1557 = vpop.f32.mrb[0].mxu0
        %v1558 = vadd.f32 0.0, %v1557
        %1559 = vmatprep.mubr.bf16.mxu0 0
        %1560 = vmatmul.mubr.bf16.gmra.mrb[0].mxu0 %v1173
        %v1561 = vpop.f32.mrb[0].mxu0
        %v1562 = vadd.f32 0.0, %v1561
        %v1563 = vpop.f32.mrb[0].mxu0
        %v1564 = vadd.f32 0.0, %v1563
        %v1565 = vpop.f32.mrb[0].mxu0
        %v1566 = vadd.f32 0.0, %v1565
        %v1567 = vpop.f32.mrb[0].mxu0
        %v1568 = vadd.f32 0.0, %v1567
        %1569 = vdwg.mxu0
        %v1570 = vmul.f32 %v1327, %v1492
        %v1571 = vmul.f32 %v1329, %v1494
        %v1572 = vmul.f32 %v1331, %v1496
        %v1573 = vmul.f32 %v1333, %v1498
        %v1574 = vmul.f32 %v1335, %v1502
        %v1575 = vmul.f32 %v1337, %v1504
        %v1576 = vmul.f32 %v1339, %v1506
        %v1577 = vmul.f32 %v1341, %v1508
        %v1578 = vmul.f32 %v1343, %v1512
        %v1579 = vmul.f32 %v1345, %v1514
        %v1580 = vmul.f32 %v1347, %v1516
        %v1581 = vmul.f32 %v1349, %v1518
        %v1582 = vmul.f32 %v1351, %v1522
        %v1583 = vmul.f32 %v1353, %v1524
        %v1584 = vmul.f32 %v1355, %v1526
        %v1585 = vmul.f32 %v1357, %v1528
        %v1586 = vmul.f32 %v1359, %v1532
        %v1587 = vmul.f32 %v1361, %v1534
        %v1588 = vmul.f32 %v1363, %v1536
        %v1589 = vmul.f32 %v1365, %v1538
        %v1590 = vmul.f32 %v1367, %v1542
        %v1591 = vmul.f32 %v1369, %v1544
        %v1592 = vmul.f32 %v1371, %v1546
        %v1593 = vmul.f32 %v1373, %v1548
        %v1594 = vmul.f32 %v1375, %v1552
        %v1595 = vmul.f32 %v1377, %v1554
        %v1596 = vmul.f32 %v1379, %v1556
        %v1597 = vmul.f32 %v1381, %v1558
        %v1598 = vmul.f32 %v1383, %v1562
        %v1599 = vmul.f32 %v1385, %v1564
        %v1600 = vmul.f32 %v1387, %v1566
        %v1601 = vmul.f32 %v1389, %v1568
        %v1602 = vpack.c.bf16 %v1572, %v1570
        %v1603 = vpack.c.bf16 %v1573, %v1571
        %v1604 = vpack.c.bf16 %v1576, %v1574
        %v1605 = vpack.c.bf16 %v1577, %v1575
        %v1606 = vpack.c.bf16 %v1580, %v1578
        %v1607 = vpack.c.bf16 %v1581, %v1579
        %v1608 = vpack.c.bf16 %v1584, %v1582
        %v1609 = vpack.c.bf16 %v1585, %v1583
        %v1610 = vpack.c.bf16 %v1588, %v1586
        %v1611 = vpack.c.bf16 %v1589, %v1587
        %v1612 = vpack.c.bf16 %v1592, %v1590
        %v1613 = vpack.c.bf16 %v1593, %v1591
        %v1614 = vpack.c.bf16 %v1596, %v1594
        %v1615 = vpack.c.bf16 %v1597, %v1595
        %v1616 = vpack.c.bf16 %v1600, %v1598
        %v1617 = vpack.c.bf16 %v1601, %v1599
        %v1618 = vmax.f32 %v871, %v873
        %1619 = vmax.xlane.f32.xlu0 %v1618
        %v1620 = vpop.xlane.xlu0 %1619
        %v1621 = vmax.f32 %v875, %v877
        %1622 = vmax.xlane.f32.xlu0 %v1621
        %v1623 = vpop.xlane.xlu0 %1622
        %v1624 = vmax.f32 %v881, %v883
        %1625 = vmax.xlane.f32.xlu0 %v1624
        %v1626 = vpop.xlane.xlu0 %1625
        %v1627 = vmax.f32 %v885, %v887
        %1628 = vmax.xlane.f32.xlu0 %v1627
        %v1629 = vpop.xlane.xlu0 %1628
        %v1630 = vmax.f32 %v891, %v893
        %1631 = vmax.xlane.f32.xlu0 %v1630
        %v1632 = vpop.xlane.xlu0 %1631
        %v1633 = vmax.f32 %v895, %v897
        %1634 = vmax.xlane.f32.xlu0 %v1633
        %v1635 = vpop.xlane.xlu0 %1634
        %v1636 = vmax.f32 %v901, %v903
        %1637 = vmax.xlane.f32.xlu0 %v1636
        %v1638 = vpop.xlane.xlu0 %1637
        %v1639 = vmax.f32 %v905, %v907
        %1640 = vmax.xlane.f32.xlu0 %v1639
        %v1641 = vpop.xlane.xlu0 %1640
        %v1642 = vmax.f32 %v911, %v913
        %1643 = vmax.xlane.f32.xlu0 %v1642
        %v1644 = vpop.xlane.xlu0 %1643
        %v1645 = vmax.f32 %v915, %v917
        %1646 = vmax.xlane.f32.xlu0 %v1645
        %v1647 = vpop.xlane.xlu0 %1646
        %v1648 = vmax.f32 %v921, %v923
        %1649 = vmax.xlane.f32.xlu0 %v1648
        %v1650 = vpop.xlane.xlu0 %1649
        %v1651 = vmax.f32 %v925, %v927
        %1652 = vmax.xlane.f32.xlu0 %v1651
        %v1653 = vpop.xlane.xlu0 %1652
        %v1654 = vmax.f32 %v931, %v933
        %1655 = vmax.xlane.f32.xlu0 %v1654
        %v1656 = vpop.xlane.xlu0 %1655
        %v1657 = vmax.f32 %v935, %v937
        %1658 = vmax.xlane.f32.xlu0 %v1657
        %v1659 = vpop.xlane.xlu0 %1658
        %v1660 = vmax.f32 %v941, %v943
        %1661 = vmax.xlane.f32.xlu0 %v1660
        %v1662 = vpop.xlane.xlu0 %1661
        %v1663 = vmax.f32 %v945, %v947
        %1664 = vmax.xlane.f32.xlu0 %v1663
        %v1665 = vpop.xlane.xlu0 %1664
        %v1666 = vsub.f32 %v871, %v1620
        %v1667 = vsub.f32 %v873, %v1620
        %v1668 = vsub.f32 %v875, %v1623
        %v1669 = vsub.f32 %v877, %v1623
        %v1670 = vsub.f32 %v881, %v1626
        %v1671 = vsub.f32 %v883, %v1626
        %v1672 = vsub.f32 %v885, %v1629
        %v1673 = vsub.f32 %v887, %v1629
        %v1674 = vsub.f32 %v891, %v1632
        %v1675 = vsub.f32 %v893, %v1632
        %v1676 = vsub.f32 %v895, %v1635
        %v1677 = vsub.f32 %v897, %v1635
        %v1678 = vsub.f32 %v901, %v1638
        %v1679 = vsub.f32 %v903, %v1638
        %v1680 = vsub.f32 %v905, %v1641
        %v1681 = vsub.f32 %v907, %v1641
        %v1682 = vsub.f32 %v911, %v1644
        %v1683 = vsub.f32 %v913, %v1644
        %v1684 = vsub.f32 %v915, %v1647
        %v1685 = vsub.f32 %v917, %v1647
        %v1686 = vsub.f32 %v921, %v1650
        %v1687 = vsub.f32 %v923, %v1650
        %v1688 = vsub.f32 %v925, %v1653
        %v1689 = vsub.f32 %v927, %v1653
        %v1690 = vsub.f32 %v931, %v1656
        %v1691 = vsub.f32 %v933, %v1656
        %v1692 = vsub.f32 %v935, %v1659
        %v1693 = vsub.f32 %v937, %v1659
        %v1694 = vsub.f32 %v941, %v1662
        %v1695 = vsub.f32 %v943, %v1662
        %v1696 = vsub.f32 %v945, %v1665
        %v1697 = vsub.f32 %v947, %v1665
        %v1698 = vmul.f32 %v1666, 1.442695
        %v1699 = vpow.pop %v1698
        %v1700 = vmul.f32 %v1667, 1.442695
        %v1701 = vpow.pop %v1700
        %v1702 = vmul.f32 %v1668, 1.442695
        %v1703 = vpow.pop %v1702
        %v1704 = vmul.f32 %v1669, 1.442695
        %v1705 = vpow.pop %v1704
        %v1706 = vmul.f32 %v1670, 1.442695
        %v1707 = vpow.pop %v1706
        %v1708 = vmul.f32 %v1671, 1.442695
        %v1709 = vpow.pop %v1708
        %v1710 = vmul.f32 %v1672, 1.442695
        %v1711 = vpow.pop %v1710
        %v1712 = vmul.f32 %v1673, 1.442695
        %v1713 = vpow.pop %v1712
        %v1714 = vmul.f32 %v1674, 1.442695
        %v1715 = vpow.pop %v1714
        %v1716 = vmul.f32 %v1675, 1.442695
        %v1717 = vpow.pop %v1716
        %v1718 = vmul.f32 %v1676, 1.442695
        %v1719 = vpow.pop %v1718
        %v1720 = vmul.f32 %v1677, 1.442695
        %v1721 = vpow.pop %v1720
        %v1722 = vmul.f32 %v1678, 1.442695
        %v1723 = vpow.pop %v1722
        %v1724 = vmul.f32 %v1679, 1.442695
        %v1725 = vpow.pop %v1724
        %v1726 = vmul.f32 %v1680, 1.442695
        %v1727 = vpow.pop %v1726
        %v1728 = vmul.f32 %v1681, 1.442695
        %v1729 = vpow.pop %v1728
        %v1730 = vmul.f32 %v1682, 1.442695
        %v1731 = vpow.pop %v1730
        %v1732 = vmul.f32 %v1683, 1.442695
        %v1733 = vpow.pop %v1732
        %v1734 = vmul.f32 %v1684, 1.442695
        %v1735 = vpow.pop %v1734
        %v1736 = vmul.f32 %v1685, 1.442695
        %v1737 = vpow.pop %v1736
        %v1738 = vmul.f32 %v1686, 1.442695
        %v1739 = vpow.pop %v1738
        %v1740 = vmul.f32 %v1687, 1.442695
        %v1741 = vpow.pop %v1740
        %v1742 = vmul.f32 %v1688, 1.442695
        %v1743 = vpow.pop %v1742
        %v1744 = vmul.f32 %v1689, 1.442695
        %v1745 = vpow.pop %v1744
        %v1746 = vmul.f32 %v1690, 1.442695
        %v1747 = vpow.pop %v1746
        %v1748 = vmul.f32 %v1691, 1.442695
        %v1749 = vpow.pop %v1748
        %v1750 = vmul.f32 %v1692, 1.442695
        %v1751 = vpow.pop %v1750
        %v1752 = vmul.f32 %v1693, 1.442695
        %v1753 = vpow.pop %v1752
        %v1754 = vmul.f32 %v1694, 1.442695
        %v1755 = vpow.pop %v1754
        %v1756 = vmul.f32 %v1695, 1.442695
        %v1757 = vpow.pop %v1756
        %v1758 = vmul.f32 %v1696, 1.442695
        %v1759 = vpow.pop %v1758
        %v1760 = vmul.f32 %v1697, 1.442695
        %v1761 = vpow.pop %v1760
        %v1762 = vadd.f32 %v1699, %v1701
        %1763 = vadd.xlane.f32.xlu0 %v1762
        %v1764 = vpop.xlane.xlu0 %1763
        %v1765 = vadd.f32 %v1703, %v1705
        %1766 = vadd.xlane.f32.xlu0 %v1765
        %v1767 = vpop.xlane.xlu0 %1766
        %v1768 = vadd.f32 %v1707, %v1709
        %1769 = vadd.xlane.f32.xlu0 %v1768
        %v1770 = vpop.xlane.xlu0 %1769
        %v1771 = vadd.f32 %v1711, %v1713
        %1772 = vadd.xlane.f32.xlu0 %v1771
        %v1773 = vpop.xlane.xlu0 %1772
        %v1774 = vadd.f32 %v1715, %v1717
        %1775 = vadd.xlane.f32.xlu0 %v1774
        %v1776 = vpop.xlane.xlu0 %1775
        %v1777 = vadd.f32 %v1719, %v1721
        %1778 = vadd.xlane.f32.xlu0 %v1777
        %v1779 = vpop.xlane.xlu0 %1778
        %v1780 = vadd.f32 %v1723, %v1725
        %1781 = vadd.xlane.f32.xlu0 %v1780
        %v1782 = vpop.xlane.xlu0 %1781
        %v1783 = vadd.f32 %v1727, %v1729
        %1784 = vadd.xlane.f32.xlu0 %v1783
        %v1785 = vpop.xlane.xlu0 %1784
        %v1786 = vadd.f32 %v1731, %v1733
        %1787 = vadd.xlane.f32.xlu0 %v1786
        %v1788 = vpop.xlane.xlu0 %1787
        %v1789 = vadd.f32 %v1735, %v1737
        %1790 = vadd.xlane.f32.xlu0 %v1789
        %v1791 = vpop.xlane.xlu0 %1790
        %v1792 = vadd.f32 %v1739, %v1741
        %1793 = vadd.xlane.f32.xlu0 %v1792
        %v1794 = vpop.xlane.xlu0 %1793
        %v1795 = vadd.f32 %v1743, %v1745
        %1796 = vadd.xlane.f32.xlu0 %v1795
        %v1797 = vpop.xlane.xlu0 %1796
        %v1798 = vadd.f32 %v1747, %v1749
        %1799 = vadd.xlane.f32.xlu0 %v1798
        %v1800 = vpop.xlane.xlu0 %1799
        %v1801 = vadd.f32 %v1751, %v1753
        %1802 = vadd.xlane.f32.xlu0 %v1801
        %v1803 = vpop.xlane.xlu0 %1802
        %v1804 = vadd.f32 %v1755, %v1757
        %1805 = vadd.xlane.f32.xlu0 %v1804
        %v1806 = vpop.xlane.xlu0 %1805
        %v1807 = vadd.f32 %v1759, %v1761
        %1808 = vadd.xlane.f32.xlu0 %v1807
        %v1809 = vpop.xlane.xlu0 %1808
        %v1810 = vrcp.pop %v1764
        %v1811 = vrcp.pop %v1767
        %v1812 = vrcp.pop %v1770
        %v1813 = vrcp.pop %v1773
        %v1814 = vrcp.pop %v1776
        %v1815 = vrcp.pop %v1779
        %v1816 = vrcp.pop %v1782
        %v1817 = vrcp.pop %v1785
        %v1818 = vrcp.pop %v1788
        %v1819 = vrcp.pop %v1791
        %v1820 = vrcp.pop %v1794
        %v1821 = vrcp.pop %v1797
        %v1822 = vrcp.pop %v1800
        %v1823 = vrcp.pop %v1803
        %v1824 = vrcp.pop %v1806
        %v1825 = vrcp.pop %v1809
        %v1826 = vmul.f32 %v1699, %v1810
        %v1827 = vmul.f32 %v1701, %v1810
        %v1828 = vmul.f32 %v1703, %v1811
        %v1829 = vmul.f32 %v1705, %v1811
        %v1830 = vmul.f32 %v1707, %v1812
        %v1831 = vmul.f32 %v1709, %v1812
        %v1832 = vmul.f32 %v1711, %v1813
        %v1833 = vmul.f32 %v1713, %v1813
        %v1834 = vmul.f32 %v1715, %v1814
        %v1835 = vmul.f32 %v1717, %v1814
        %v1836 = vmul.f32 %v1719, %v1815
        %v1837 = vmul.f32 %v1721, %v1815
        %v1838 = vmul.f32 %v1723, %v1816
        %v1839 = vmul.f32 %v1725, %v1816
        %v1840 = vmul.f32 %v1727, %v1817
        %v1841 = vmul.f32 %v1729, %v1817
        %v1842 = vmul.f32 %v1731, %v1818
        %v1843 = vmul.f32 %v1733, %v1818
        %v1844 = vmul.f32 %v1735, %v1819
        %v1845 = vmul.f32 %v1737, %v1819
        %v1846 = vmul.f32 %v1739, %v1820
        %v1847 = vmul.f32 %v1741, %v1820
        %v1848 = vmul.f32 %v1743, %v1821
        %v1849 = vmul.f32 %v1745, %v1821
        %v1850 = vmul.f32 %v1747, %v1822
        %v1851 = vmul.f32 %v1749, %v1822
        %v1852 = vmul.f32 %v1751, %v1823
        %v1853 = vmul.f32 %v1753, %v1823
        %v1854 = vmul.f32 %v1755, %v1824
        %v1855 = vmul.f32 %v1757, %v1824
        %v1856 = vmul.f32 %v1759, %v1825
        %v1857 = vmul.f32 %v1761, %v1825
        %v1858 = vpack.c.bf16 %v1828, %v1826
        %v1859 = vpack.c.bf16 %v1829, %v1827
        %v1860 = vpack.c.bf16 %v1832, %v1830
        %v1861 = vpack.c.bf16 %v1833, %v1831
        %v1862 = vpack.c.bf16 %v1836, %v1834
        %v1863 = vpack.c.bf16 %v1837, %v1835
        %v1864 = vpack.c.bf16 %v1840, %v1838
        %v1865 = vpack.c.bf16 %v1841, %v1839
        %v1866 = vpack.c.bf16 %v1844, %v1842
        %v1867 = vpack.c.bf16 %v1845, %v1843
        %v1868 = vpack.c.bf16 %v1848, %v1846
        %v1869 = vpack.c.bf16 %v1849, %v1847
        %v1870 = vpack.c.bf16 %v1852, %v1850
        %v1871 = vpack.c.bf16 %v1853, %v1851
        %v1872 = vpack.c.bf16 %v1856, %v1854
        %v1873 = vpack.c.bf16 %v1857, %v1855
        %v1874 = vpack.c.bf16 %v955, %v951
        %v1875 = vpack.c.bf16 %v957, %v953
        %v1876 = vpack.c.bf16 %v965, %v961
        %v1877 = vpack.c.bf16 %v967, %v963
        %v1878 = vpack.c.bf16 %v975, %v971
        %v1879 = vpack.c.bf16 %v977, %v973
        %v1880 = vpack.c.bf16 %v985, %v981
        %v1881 = vpack.c.bf16 %v987, %v983
        %v1882 = vpack.c.bf16 %v995, %v991
        %v1883 = vpack.c.bf16 %v997, %v993
        %v1884 = vpack.c.bf16 %v1005, %v1001
        %v1885 = vpack.c.bf16 %v1007, %v1003
        %v1886 = vpack.c.bf16 %v1015, %v1011
        %v1887 = vpack.c.bf16 %v1017, %v1013
        %v1888 = vpack.c.bf16 %v1025, %v1021
        %v1889 = vpack.c.bf16 %v1027, %v1023
        %1890 = vmatprep.subr.bf16.mxu0 %v1875
        %1891 = vmatpush1.bf16.xpose.msra.mxu0 %v1874
        %1892 = vmatprep.subr.bf16.mxu0 %v1877
        %1893 = vmatpush1.bf16.xpose.msra.mxu0 %v1876
        %1894 = vmatprep.subr.bf16.mxu0 %v1879
        %1895 = vmatpush1.bf16.xpose.msra.mxu0 %v1878
        %1896 = vmatprep.subr.bf16.mxu0 %v1881
        %1897 = vmatpush1.bf16.xpose.msra.mxu0 %v1880
        %1898 = vmatprep.subr.bf16.mxu0 %v1883
        %1899 = vmatpush1.bf16.xpose.msra.mxu0 %v1882
        %1900 = vmatprep.subr.bf16.mxu0 %v1885
        %1901 = vmatpush1.bf16.xpose.msra.mxu0 %v1884
        %1902 = vmatprep.subr.bf16.mxu0 %v1887
        %1903 = vmatpush1.bf16.xpose.msra.mxu0 %v1886
        %1904 = vmatprep.subr.bf16.mxu0 %v1889
        %1905 = vmatpush1.bf16.xpose.msra.mxu0 %v1888
        %1906 = vmatprep.subr.bf16.mxu0 0
        %1907 = vmatpush1.bf16.xpose.msra.mxu0 0
        %1908 = vmatprep.subr.bf16.mxu0 0
        %1909 = vmatpush1.bf16.xpose.msra.mxu0 0
        %1910 = vmatprep.subr.bf16.mxu0 0
        %1911 = vmatpush1.bf16.xpose.msra.mxu0 0
        %1912 = vmatprep.subr.bf16.mxu0 0
        %1913 = vmatpush1.bf16.xpose.msra.mxu0 0
        %1914 = vmatprep.subr.bf16.mxu0 0
        %1915 = vmatpush1.bf16.xpose.msra.mxu0 0
        %1916 = vmatprep.subr.bf16.mxu0 0
        %1917 = vmatpush1.bf16.xpose.msra.mxu0 0
        %1918 = vmatprep.subr.bf16.mxu0 0
        %1919 = vmatpush1.bf16.xpose.msra.mxu0 0
        %1920 = vmatprep.subr.bf16.mxu0 0
        %1921 = vmatpush1.bf16.xpose.msra.mxu0 0
        %1922 = vmatprep.mubr.bf16.mxu0 %v1859
        %1923 = vmatmul.mubr.bf16.gmra.mrb[0].mxu0 %v1858
        %v1924 = vpop.f32.mrb[0].mxu0
        %v1925 = vadd.f32 0.0, %v1924
        %v1926 = vpop.f32.mrb[0].mxu0
        %v1927 = vpop.f32.mrb[0].mxu0
        %v1928 = vadd.f32 0.0, %v1927
        %v1929 = vpop.f32.mrb[0].mxu0
        %1930 = vmatprep.mubr.bf16.mxu0 %v1861
        %1931 = vmatmul.mubr.bf16.gmra.mrb[0].mxu0 %v1860
        %v1932 = vpop.f32.mrb[0].mxu0
        %v1933 = vadd.f32 0.0, %v1932
        %v1934 = vpop.f32.mrb[0].mxu0
        %v1935 = vpop.f32.mrb[0].mxu0
        %v1936 = vadd.f32 0.0, %v1935
        %v1937 = vpop.f32.mrb[0].mxu0
        %1938 = vmatprep.mubr.bf16.mxu0 %v1863
        %1939 = vmatmul.mubr.bf16.gmra.mrb[0].mxu0 %v1862
        %v1940 = vpop.f32.mrb[0].mxu0
        %v1941 = vadd.f32 0.0, %v1940
        %v1942 = vpop.f32.mrb[0].mxu0
        %v1943 = vpop.f32.mrb[0].mxu0
        %v1944 = vadd.f32 0.0, %v1943
        %v1945 = vpop.f32.mrb[0].mxu0
        %1946 = vmatprep.mubr.bf16.mxu0 %v1865
        %1947 = vmatmul.mubr.bf16.gmra.mrb[0].mxu0 %v1864
        %v1948 = vpop.f32.mrb[0].mxu0
        %v1949 = vadd.f32 0.0, %v1948
        %v1950 = vpop.f32.mrb[0].mxu0
        %v1951 = vpop.f32.mrb[0].mxu0
        %v1952 = vadd.f32 0.0, %v1951
        %v1953 = vpop.f32.mrb[0].mxu0
        %1954 = vmatprep.mubr.bf16.mxu0 %v1867
        %1955 = vmatmul.mubr.bf16.gmra.mrb[0].mxu0 %v1866
        %v1956 = vpop.f32.mrb[0].mxu0
        %v1957 = vadd.f32 0.0, %v1956
        %v1958 = vpop.f32.mrb[0].mxu0
        %v1959 = vpop.f32.mrb[0].mxu0
        %v1960 = vadd.f32 0.0, %v1959
        %v1961 = vpop.f32.mrb[0].mxu0
        %1962 = vmatprep.mubr.bf16.mxu0 %v1869
        %1963 = vmatmul.mubr.bf16.gmra.mrb[0].mxu0 %v1868
        %v1964 = vpop.f32.mrb[0].mxu0
        %v1965 = vadd.f32 0.0, %v1964
        %v1966 = vpop.f32.mrb[0].mxu0
        %v1967 = vpop.f32.mrb[0].mxu0
        %v1968 = vadd.f32 0.0, %v1967
        %v1969 = vpop.f32.mrb[0].mxu0
        %1970 = vmatprep.mubr.bf16.mxu0 %v1871
        %1971 = vmatmul.mubr.bf16.gmra.mrb[0].mxu0 %v1870
        %v1972 = vpop.f32.mrb[0].mxu0
        %v1973 = vadd.f32 0.0, %v1972
        %v1974 = vpop.f32.mrb[0].mxu0
        %v1975 = vpop.f32.mrb[0].mxu0
        %v1976 = vadd.f32 0.0, %v1975
        %v1977 = vpop.f32.mrb[0].mxu0
        %1978 = vmatprep.mubr.bf16.mxu0 %v1873
        %1979 = vmatmul.mubr.bf16.gmra.mrb[0].mxu0 %v1872
        %v1980 = vpop.f32.mrb[0].mxu0
        %v1981 = vadd.f32 0.0, %v1980
        %v1982 = vpop.f32.mrb[0].mxu0
        %v1983 = vpop.f32.mrb[0].mxu0
        %v1984 = vadd.f32 0.0, %v1983
        %v1985 = vpop.f32.mrb[0].mxu0
        %1986 = vdwg.mxu0
        %v1987 = vmul.f32 %v1925, %v446
        %v1988 = vmul.f32 %v1928, %v447
        %v1989 = vmul.f32 %v1933, %v448
        %v1990 = vmul.f32 %v1936, %v449
        %v1991 = vmul.f32 %v1941, %v450
        %v1992 = vmul.f32 %v1944, %v451
        %v1993 = vmul.f32 %v1949, %v452
        %v1994 = vmul.f32 %v1952, %v453
        %v1995 = vmul.f32 %v1957, %v454
        %v1996 = vmul.f32 %v1960, %v455
        %v1997 = vmul.f32 %v1965, %v456
        %v1998 = vmul.f32 %v1968, %v457
        %v1999 = vmul.f32 %v1973, %v458
        %v2000 = vmul.f32 %v1976, %v459
        %v2001 = vmul.f32 %v1981, %v460
        %v2002 = vmul.f32 %v1984, %v461
        %v2003 = vpack.c.bf16 %v1988, %v1987
        %v2004 = vpack.c.bf16 %v1990, %v1989
        %v2005 = vpack.c.bf16 %v1992, %v1991
        %v2006 = vpack.c.bf16 %v1994, %v1993
        %v2007 = vpack.c.bf16 %v1996, %v1995
        %v2008 = vpack.c.bf16 %v1998, %v1997
        %v2009 = vpack.c.bf16 %v2000, %v1999
        %v2010 = vpack.c.bf16 %v2002, %v2001
        %2011 = vxpose.xlu0.c.b16.start [1/8] %v2003, 128
        %2012 = vxpose.xlu0.c.b16.cont [2/8] %v2004, 128
        %2013 = vxpose.xlu0.c.b16.cont [3/8] %v2005, 128
        %2014 = vxpose.xlu0.c.b16.cont [4/8] %v2006, 128
        %2015 = vxpose.xlu0.c.b16.cont [5/8] %v2007, 128
        %2016 = vxpose.xlu0.c.b16.cont [6/8] %v2008, 128
        %2017 = vxpose.xlu0.c.b16.cont [7/8] %v2009, 128
        %2018 = vxpose.xlu0.c.b16.end [8/8] %v2010, 128
        %v2019 = vpop.trf.xlu0
        %v2020 = vpop.trf.xlu0
        %v2021 = vpop.trf.xlu0
        %v2022 = vpop.trf.xlu0
        %v2023 = vpop.trf.xlu0
        %v2024 = vpop.trf.xlu0
        %v2025 = vpop.trf.xlu0
        %v2026 = vpop.trf.xlu0
        %2027 = vmatprep.subr.bf16.mxu0 %v1603
        %2028 = vmatpush1.bf16.msra.mxu0 %v1602
        %2029 = vmatprep.subr.bf16.mxu0 %v1605
        %2030 = vmatpush1.bf16.msra.mxu0 %v1604
        %2031 = vmatprep.subr.bf16.mxu0 %v1607
        %2032 = vmatpush1.bf16.msra.mxu0 %v1606
        %2033 = vmatprep.subr.bf16.mxu0 %v1609
        %2034 = vmatpush1.bf16.msra.mxu0 %v1608
        %2035 = vmatprep.subr.bf16.mxu0 %v1611
        %2036 = vmatpush1.bf16.msra.mxu0 %v1610
        %2037 = vmatprep.subr.bf16.mxu0 %v1613
        %2038 = vmatpush1.bf16.msra.mxu0 %v1612
        %2039 = vmatprep.subr.bf16.mxu0 %v1615
        %2040 = vmatpush1.bf16.msra.mxu0 %v1614
        %2041 = vmatprep.subr.bf16.mxu0 %v1617
        %2042 = vmatpush1.bf16.msra.mxu0 %v1616
        %2043 = vmatprep.subr.bf16.mxu0 0
        %2044 = vmatpush1.bf16.msra.mxu0 0
        %2045 = vmatprep.subr.bf16.mxu0 0
        %2046 = vmatpush1.bf16.msra.mxu0 0
        %2047 = vmatprep.subr.bf16.mxu0 0
        %2048 = vmatpush1.bf16.msra.mxu0 0
        %2049 = vmatprep.subr.bf16.mxu0 0
        %2050 = vmatpush1.bf16.msra.mxu0 0
        %2051 = vmatprep.subr.bf16.mxu0 0
        %2052 = vmatpush1.bf16.msra.mxu0 0
        %2053 = vmatprep.subr.bf16.mxu0 0
        %2054 = vmatpush1.bf16.msra.mxu0 0
        %2055 = vmatprep.subr.bf16.mxu0 0
        %2056 = vmatpush1.bf16.msra.mxu0 0
        %2057 = vmatprep.subr.bf16.mxu0 0
        %2058 = vmatpush1.bf16.msra.mxu0 0
        %2059 = vmatprep.mubr.bf16.mxu0 0
        %2060 = vmatmul.mubr.bf16.gmra.mrb[0].mxu0 %v2019
        %v2061 = vpop.f32.mrb[0].mxu0
        %v2062 = vadd.f32 0.0, %v2061
        %v2063 = vpop.f32.mrb[0].mxu0
        %v2064 = vadd.f32 0.0, %v2063
        %v2065 = vpop.f32.mrb[0].mxu0
        %v2066 = vadd.f32 0.0, %v2065
        %v2067 = vpop.f32.mrb[0].mxu0
        %v2068 = vadd.f32 0.0, %v2067
        %2069 = vmatprep.mubr.bf16.mxu0 0
        %2070 = vmatmul.mubr.bf16.gmra.mrb[0].mxu0 %v2020
        %v2071 = vpop.f32.mrb[0].mxu0
        %v2072 = vadd.f32 0.0, %v2071
        %v2073 = vpop.f32.mrb[0].mxu0
        %v2074 = vadd.f32 0.0, %v2073
        %v2075 = vpop.f32.mrb[0].mxu0
        %v2076 = vadd.f32 0.0, %v2075
        %v2077 = vpop.f32.mrb[0].mxu0
        %v2078 = vadd.f32 0.0, %v2077
        %2079 = vmatprep.mubr.bf16.mxu0 0
        %2080 = vmatmul.mubr.bf16.gmra.mrb[0].mxu0 %v2021
        %v2081 = vpop.f32.mrb[0].mxu0
        %v2082 = vadd.f32 0.0, %v2081
        %v2083 = vpop.f32.mrb[0].mxu0
        %v2084 = vadd.f32 0.0, %v2083
        %v2085 = vpop.f32.mrb[0].mxu0
        %v2086 = vadd.f32 0.0, %v2085
        %v2087 = vpop.f32.mrb[0].mxu0
        %v2088 = vadd.f32 0.0, %v2087
        %2089 = vmatprep.mubr.bf16.mxu0 0
        %2090 = vmatmul.mubr.bf16.gmra.mrb[0].mxu0 %v2022
        %v2091 = vpop.f32.mrb[0].mxu0
        %v2092 = vadd.f32 0.0, %v2091
        %v2093 = vpop.f32.mrb[0].mxu0
        %v2094 = vadd.f32 0.0, %v2093
        %v2095 = vpop.f32.mrb[0].mxu0
        %v2096 = vadd.f32 0.0, %v2095
        %v2097 = vpop.f32.mrb[0].mxu0
        %v2098 = vadd.f32 0.0, %v2097
        %2099 = vmatprep.mubr.bf16.mxu0 0
        %2100 = vmatmul.mubr.bf16.gmra.mrb[0].mxu0 %v2023
        %v2101 = vpop.f32.mrb[0].mxu0
        %v2102 = vadd.f32 0.0, %v2101
        %v2103 = vpop.f32.mrb[0].mxu0
        %v2104 = vadd.f32 0.0, %v2103
        %v2105 = vpop.f32.mrb[0].mxu0
        %v2106 = vadd.f32 0.0, %v2105
        %v2107 = vpop.f32.mrb[0].mxu0
        %v2108 = vadd.f32 0.0, %v2107
        %2109 = vmatprep.mubr.bf16.mxu0 0
        %2110 = vmatmul.mubr.bf16.gmra.mrb[0].mxu0 %v2024
        %v2111 = vpop.f32.mrb[0].mxu0
        %v2112 = vadd.f32 0.0, %v2111
        %v2113 = vpop.f32.mrb[0].mxu0
        %v2114 = vadd.f32 0.0, %v2113
        %v2115 = vpop.f32.mrb[0].mxu0
        %v2116 = vadd.f32 0.0, %v2115
        %v2117 = vpop.f32.mrb[0].mxu0
        %v2118 = vadd.f32 0.0, %v2117
        %2119 = vmatprep.mubr.bf16.mxu0 0
        %2120 = vmatmul.mubr.bf16.gmra.mrb[0].mxu0 %v2025
        %v2121 = vpop.f32.mrb[0].mxu0
        %v2122 = vadd.f32 0.0, %v2121
        %v2123 = vpop.f32.mrb[0].mxu0
        %v2124 = vadd.f32 0.0, %v2123
        %v2125 = vpop.f32.mrb[0].mxu0
        %v2126 = vadd.f32 0.0, %v2125
        %v2127 = vpop.f32.mrb[0].mxu0
        %v2128 = vadd.f32 0.0, %v2127
        %2129 = vmatprep.mubr.bf16.mxu0 0
        %2130 = vmatmul.mubr.bf16.gmra.mrb[0].mxu0 %v2026
        %v2131 = vpop.f32.mrb[0].mxu0
        %v2132 = vadd.f32 0.0, %v2131
        %v2133 = vpop.f32.mrb[0].mxu0
        %v2134 = vadd.f32 0.0, %v2133
        %v2135 = vpop.f32.mrb[0].mxu0
        %v2136 = vadd.f32 0.0, %v2135
        %v2137 = vpop.f32.mrb[0].mxu0
        %v2138 = vadd.f32 0.0, %v2137
        %2139 = vdwg.mxu0
        %v2140 = vpack.c.bf16 %v2066, %v2062
        %v2141 = vpack.c.bf16 %v2068, %v2064
        %v2142 = vpack.c.bf16 %v2076, %v2072
        %v2143 = vpack.c.bf16 %v2078, %v2074
        %v2144 = vpack.c.bf16 %v2086, %v2082
        %v2145 = vpack.c.bf16 %v2088, %v2084
        %v2146 = vpack.c.bf16 %v2096, %v2092
        %v2147 = vpack.c.bf16 %v2098, %v2094
        %v2148 = vpack.c.bf16 %v2106, %v2102
        %v2149 = vpack.c.bf16 %v2108, %v2104
        %v2150 = vpack.c.bf16 %v2116, %v2112
        %v2151 = vpack.c.bf16 %v2118, %v2114
        %v2152 = vpack.c.bf16 %v2126, %v2122
        %v2153 = vpack.c.bf16 %v2128, %v2124
        %v2154 = vpack.c.bf16 %v2136, %v2132
        %v2155 = vpack.c.bf16 %v2138, %v2134
        %2157 = vset.pattern.permute.xlu0 0
        %2158 = vperm.xlu0 %2157, %v441
        %v2159 = vpop.permute.xlu0 %2158
        %2161 = vmatprep.subr.bf16.mxu0 %v2141
        %2162 = vmatpush1.bf16.msra.mxu0 %v2140
        %2163 = vmatprep.subr.bf16.mxu0 %v2143
        %2164 = vmatpush1.bf16.msra.mxu0 %v2142
        %2165 = vmatprep.subr.bf16.mxu0 %v2145
        %2166 = vmatpush1.bf16.msra.mxu0 %v2144
        %2167 = vmatprep.subr.bf16.mxu0 %v2147
        %2168 = vmatpush1.bf16.msra.mxu0 %v2146
        %2169 = vmatprep.subr.bf16.mxu0 %v2149
        %2170 = vmatpush1.bf16.msra.mxu0 %v2148
        %2171 = vmatprep.subr.bf16.mxu0 %v2151
        %2172 = vmatpush1.bf16.msra.mxu0 %v2150
        %2173 = vmatprep.subr.bf16.mxu0 %v2153
        %2174 = vmatpush1.bf16.msra.mxu0 %v2152
        %2175 = vmatprep.subr.bf16.mxu0 %v2155
        %2176 = vmatpush1.bf16.msra.mxu0 %v2154
        %2177 = vmatprep.subr.bf16.mxu0 0
        %2178 = vmatpush1.bf16.msra.mxu0 0
        %2179 = vmatprep.subr.bf16.mxu0 0
        %2180 = vmatpush1.bf16.msra.mxu0 0
        %2181 = vmatprep.subr.bf16.mxu0 0
        %2182 = vmatpush1.bf16.msra.mxu0 0
        %2183 = vmatprep.subr.bf16.mxu0 0
        %2184 = vmatpush1.bf16.msra.mxu0 0
        %2185 = vmatprep.subr.bf16.mxu0 0
        %2186 = vmatpush1.bf16.msra.mxu0 0
        %2187 = vmatprep.subr.bf16.mxu0 0
        %2188 = vmatpush1.bf16.msra.mxu0 0
        %2189 = vmatprep.subr.bf16.mxu0 0
        %2190 = vmatpush1.bf16.msra.mxu0 0
        %2191 = vmatprep.subr.bf16.mxu0 0
        %2192 = vmatpush1.bf16.msra.mxu0 0
        %2193 = vmatprep.mubr.bf16.mxu0 0
        %2194 = vmatmul.mubr.bf16.gmra.mrb[0].mxu0 %v440
        %v2195 = vpop.f32.mrb[0].mxu0
        %v2196 = vadd.f32 %v2159, %v2195
        %v2197 = vpop.f32.mrb[0].mxu0
        %v2198 = vadd.f32 %v2159, %v2197
        %v2199 = vpop.f32.mrb[0].mxu0
        %v2200 = vpop.f32.mrb[0].mxu0
        %2201 = vdwg.mxu0
        %v2202 = vsel %vm483, %v2196, 0.0
        %v2203 = vsel %vm483, %v2198, 0.0
        %v2204 = vadd.f32 %v2202, %v2203
        %2205 = vadd.xlane.f32.xlu0 %v2204
        %v2206 = vpop.xlane.xlu0 %2205
        %v2207 = vrot.slane %v2206, 4
        %v2208 = vadd.f32 %v2206, %v2207
        %v2209 = vrot.slane %v2208, 2
        %v2210 = vadd.f32 %v2208, %v2209
        %v2211 = vrot.slane %v2210, 1
        %v2212 = vadd.f32 %v2210, %v2211
        %s2213 = vtos %v2212
        %v2214 = vmul.f32 %v2196, %v2196
        %v2215 = vmul.f32 %v2198, %v2198
        %v2216 = vsel %vm483, %v2214, 0.0
        %v2217 = vsel %vm483, %v2215, 0.0
        %v2218 = vadd.f32 %v2216, %v2217
        %2219 = vadd.xlane.f32.xlu0 %v2218
        %v2220 = vpop.xlane.xlu0 %2219
        %v2221 = vrot.slane %v2220, 4
        %v2222 = vadd.f32 %v2220, %v2221
        %v2223 = vrot.slane %v2222, 2
        %v2224 = vadd.f32 %v2222, %v2223
        %v2225 = vrot.slane %v2224, 1
        %v2226 = vadd.f32 %v2224, %v2225
        %s2227 = vtos %v2226
        %s2228 = smul.f32 %s2213, 0.0009765625
        %s2229 = smul.f32 %s2227, 0.0009765625
        %s2230 = smul.f32 %s2228, %s2228
        %s2231 = ssub.f32 %s2229, %s2230
        %s2232 = smax.f32 %s2231, 0.0
        %v2233 = vstv %s2228
        %v2234 = vsub.f32 %v2196, %v2233
        %v2235 = vsub.f32 %v2198, %v2233
        %s2236 = sadd.f32 %s2232, 1e-05
        %v2237 = vstv %s2236
        %v2238 = vrsqrt.pop %v2237
        %s2239 = vtos %v2238
        %v2240 = vstv %s2239
        %v2241 = vmul.f32 %v2234, %v2240
        %v2242 = vmul.f32 %v2235, %v2240
        %2244 = vset.pattern.permute.xlu0 0
        %2245 = vperm.xlu0 %2244, %v444
        %v2246 = vpop.permute.xlu0 %2245
        %v2248 = vmul.f32 %v2241, %v2246
        %v2249 = vmul.f32 %v2242, %v2246
        %2251 = vset.pattern.permute.xlu0 0
        %2252 = vperm.xlu0 %2251, %v445
        %v2253 = vpop.permute.xlu0 %2252
        %v2255 = vadd.f32 %v2248, %v2253
        %v2256 = vadd.f32 %v2249, %v2253
        %v2259 = vcombine.low %v2255, %v2256
        %2261 = vst [vmem:[%s382] sm:$0xff] %v2259
        %s2262 = scalar_lea.vmem %s388, 8
        %v2263 = vld [vmem:[%s2262] sm:$0xff]
        %v2265 = vcombine.high %v2263, %v2263
        %v2267 = vsel %vm483, %v2263, 0.0
        %v2268 = vsel %vm483, %v2265, 0.0
        %v2269 = vadd.f32 %v2267, %v2268
        %2270 = vadd.xlane.f32.xlu0 %v2269
        %v2271 = vpop.xlane.xlu0 %2270
        %v2272 = vrot.slane %v2271, 4
        %v2273 = vadd.f32 %v2271, %v2272
        %v2274 = vrot.slane %v2273, 2
        %v2275 = vadd.f32 %v2273, %v2274
        %v2276 = vrot.slane %v2275, 1
        %v2277 = vadd.f32 %v2275, %v2276
        %s2278 = vtos %v2277
        %v2279 = vmul.f32 %v2263, %v2263
        %v2281 = vcombine.high %v2279, %v2279
        %v2283 = vsel %vm483, %v2279, 0.0
        %v2284 = vsel %vm483, %v2281, 0.0
        %v2285 = vadd.f32 %v2283, %v2284
        %2286 = vadd.xlane.f32.xlu0 %v2285
        %v2287 = vpop.xlane.xlu0 %2286
        %v2288 = vrot.slane %v2287, 4
        %v2289 = vadd.f32 %v2287, %v2288
        %v2290 = vrot.slane %v2289, 2
        %v2291 = vadd.f32 %v2289, %v2290
        %v2292 = vrot.slane %v2291, 1
        %v2293 = vadd.f32 %v2291, %v2292
        %s2294 = vtos %v2293
        %s2295 = smul.f32 %s2278, 0.0009765625
        %s2296 = smul.f32 %s2294, 0.0009765625
        %s2297 = smul.f32 %s2295, %s2295
        %s2298 = ssub.f32 %s2296, %s2297
        %s2299 = smax.f32 %s2298, 0.0
        %v2300 = vstv %s2295
        %v2301 = vsub.f32 %v2263, %v2300
        %s2302 = sadd.f32 %s2299, 1e-05
        %v2303 = vstv %s2302
        %v2304 = vrsqrt.pop %v2303
        %s2305 = vtos %v2304
        %v2306 = vstv %s2305
        %v2307 = vmul.f32 %v2301, %v2306
        %v2308 = vmul.f32 %v2307, %v535
        %v2309 = vadd.f32 %v2308, %v548
        %v2311 = vcombine.high %v2309, %v2309
        %v2313 = vpack.c.bf16 %v2309, %v2309
        %v2314 = vpack.c.bf16 %v2311, %v2311
        %v2316 = vsel %vm749, %v2313, 0
        %v2319 = vsel %vm749, %v2314, 0
        %2321 = vmatprep.subr.bf16.mxu0 %v2319
        %2322 = vmatpush1.bf16.msra.mxu0 %v2316
        %2323 = vmatprep.subr.bf16.mxu0 0
        %2324 = vmatpush1.bf16.msra.mxu0 0
        %2325 = vmatprep.subr.bf16.mxu0 0
        %2326 = vmatpush1.bf16.msra.mxu0 0
        %2327 = vmatprep.subr.bf16.mxu0 0
        %2328 = vmatpush1.bf16.msra.mxu0 0
        %2329 = vmatprep.subr.bf16.mxu0 0
        %2330 = vmatpush1.bf16.msra.mxu0 0
        %2331 = vmatprep.subr.bf16.mxu0 0
        %2332 = vmatpush1.bf16.msra.mxu0 0
        %2333 = vmatprep.subr.bf16.mxu0 0
        %2334 = vmatpush1.bf16.msra.mxu0 0
        %2335 = vmatprep.subr.bf16.mxu0 0
        %2336 = vmatpush1.bf16.msra.mxu0 0
        %2337 = vmatprep.subr.bf16.mxu0 0
        %2338 = vmatpush1.bf16.msra.mxu0 0
        %2339 = vmatprep.subr.bf16.mxu0 0
        %2340 = vmatpush1.bf16.msra.mxu0 0
        %2341 = vmatprep.subr.bf16.mxu0 0
        %2342 = vmatpush1.bf16.msra.mxu0 0
        %2343 = vmatprep.subr.bf16.mxu0 0
        %2344 = vmatpush1.bf16.msra.mxu0 0
        %2345 = vmatprep.subr.bf16.mxu0 0
        %2346 = vmatpush1.bf16.msra.mxu0 0
        %2347 = vmatprep.subr.bf16.mxu0 0
        %2348 = vmatpush1.bf16.msra.mxu0 0
        %2349 = vmatprep.subr.bf16.mxu0 0
        %2350 = vmatpush1.bf16.msra.mxu0 0
        %2351 = vmatprep.subr.bf16.mxu0 0
        %2352 = vmatpush1.bf16.msra.mxu0 0
        %2353 = vmatprep.mubr.bf16.mxu0 0
        %2354 = vmatmul.mubr.bf16.gmra.mrb[0].mxu0 %v678
        %v2355 = vpop.f32.mrb[0].mxu0
        %v2356 = vadd.f32 0.0, %v2355
        %v2357 = vpop.f32.mrb[0].mxu0
        %v2358 = vadd.f32 0.0, %v2357
        %v2359 = vpop.f32.mrb[0].mxu0
        %v2360 = vadd.f32 0.0, %v2359
        %v2361 = vpop.f32.mrb[0].mxu0
        %v2362 = vadd.f32 0.0, %v2361
        %2363 = vmatprep.mubr.bf16.mxu0 0
        %2364 = vmatmul.mubr.bf16.gmra.mrb[0].mxu0 %v681
        %v2365 = vpop.f32.mrb[0].mxu0
        %v2366 = vadd.f32 0.0, %v2365
        %v2367 = vpop.f32.mrb[0].mxu0
        %v2368 = vadd.f32 0.0, %v2367
        %v2369 = vpop.f32.mrb[0].mxu0
        %v2370 = vadd.f32 0.0, %v2369
        %v2371 = vpop.f32.mrb[0].mxu0
        %v2372 = vadd.f32 0.0, %v2371
        %2373 = vmatprep.mubr.bf16.mxu0 0
        %2374 = vmatmul.mubr.bf16.gmra.mrb[0].mxu0 %v684
        %v2375 = vpop.f32.mrb[0].mxu0
        %v2376 = vadd.f32 0.0, %v2375
        %v2377 = vpop.f32.mrb[0].mxu0
        %v2378 = vadd.f32 0.0, %v2377
        %v2379 = vpop.f32.mrb[0].mxu0
        %v2380 = vadd.f32 0.0, %v2379
        %v2381 = vpop.f32.mrb[0].mxu0
        %v2382 = vadd.f32 0.0, %v2381
        %2383 = vmatprep.mubr.bf16.mxu0 0
        %2384 = vmatmul.mubr.bf16.gmra.mrb[0].mxu0 %v687
        %v2385 = vpop.f32.mrb[0].mxu0
        %v2386 = vadd.f32 0.0, %v2385
        %v2387 = vpop.f32.mrb[0].mxu0
        %v2388 = vadd.f32 0.0, %v2387
        %v2389 = vpop.f32.mrb[0].mxu0
        %v2390 = vadd.f32 0.0, %v2389
        %v2391 = vpop.f32.mrb[0].mxu0
        %v2392 = vadd.f32 0.0, %v2391
        %2393 = vmatprep.mubr.bf16.mxu0 0
        %2394 = vmatmul.mubr.bf16.gmra.mrb[0].mxu0 %v690
        %v2395 = vpop.f32.mrb[0].mxu0
        %v2396 = vadd.f32 0.0, %v2395
        %v2397 = vpop.f32.mrb[0].mxu0
        %v2398 = vadd.f32 0.0, %v2397
        %v2399 = vpop.f32.mrb[0].mxu0
        %v2400 = vadd.f32 0.0, %v2399
        %v2401 = vpop.f32.mrb[0].mxu0
        %v2402 = vadd.f32 0.0, %v2401
        %2403 = vmatprep.mubr.bf16.mxu0 0
        %2404 = vmatmul.mubr.bf16.gmra.mrb[0].mxu0 %v693
        %v2405 = vpop.f32.mrb[0].mxu0
        %v2406 = vadd.f32 0.0, %v2405
        %v2407 = vpop.f32.mrb[0].mxu0
        %v2408 = vadd.f32 0.0, %v2407
        %v2409 = vpop.f32.mrb[0].mxu0
        %v2410 = vadd.f32 0.0, %v2409
        %v2411 = vpop.f32.mrb[0].mxu0
        %v2412 = vadd.f32 0.0, %v2411
        %2413 = vmatprep.mubr.bf16.mxu0 0
        %2414 = vmatmul.mubr.bf16.gmra.mrb[0].mxu0 %v696
        %v2415 = vpop.f32.mrb[0].mxu0
        %v2416 = vadd.f32 0.0, %v2415
        %v2417 = vpop.f32.mrb[0].mxu0
        %v2418 = vadd.f32 0.0, %v2417
        %v2419 = vpop.f32.mrb[0].mxu0
        %v2420 = vadd.f32 0.0, %v2419
        %v2421 = vpop.f32.mrb[0].mxu0
        %v2422 = vadd.f32 0.0, %v2421
        %2423 = vmatprep.mubr.bf16.mxu0 0
        %2424 = vmatmul.mubr.bf16.gmra.mrb[0].mxu0 %v699
        %v2425 = vpop.f32.mrb[0].mxu0
        %v2426 = vadd.f32 0.0, %v2425
        %v2427 = vpop.f32.mrb[0].mxu0
        %v2428 = vadd.f32 0.0, %v2427
        %v2429 = vpop.f32.mrb[0].mxu0
        %v2430 = vadd.f32 0.0, %v2429
        %v2431 = vpop.f32.mrb[0].mxu0
        %v2432 = vadd.f32 0.0, %v2431
        %2433 = vmatprep.mubr.bf16.mxu0 0
        %2434 = vmatmul.mubr.bf16.gmra.mrb[0].mxu0 %v702
        %v2435 = vpop.f32.mrb[0].mxu0
        %v2436 = vadd.f32 0.0, %v2435
        %v2437 = vpop.f32.mrb[0].mxu0
        %v2438 = vadd.f32 0.0, %v2437
        %v2439 = vpop.f32.mrb[0].mxu0
        %v2440 = vadd.f32 0.0, %v2439
        %v2441 = vpop.f32.mrb[0].mxu0
        %v2442 = vadd.f32 0.0, %v2441
        %2443 = vmatprep.mubr.bf16.mxu0 0
        %2444 = vmatmul.mubr.bf16.gmra.mrb[0].mxu0 %v705
        %v2445 = vpop.f32.mrb[0].mxu0
        %v2446 = vadd.f32 0.0, %v2445
        %v2447 = vpop.f32.mrb[0].mxu0
        %v2448 = vadd.f32 0.0, %v2447
        %v2449 = vpop.f32.mrb[0].mxu0
        %v2450 = vadd.f32 0.0, %v2449
        %v2451 = vpop.f32.mrb[0].mxu0
        %v2452 = vadd.f32 0.0, %v2451
        %2453 = vmatprep.mubr.bf16.mxu0 0
        %2454 = vmatmul.mubr.bf16.gmra.mrb[0].mxu0 %v708
        %v2455 = vpop.f32.mrb[0].mxu0
        %v2456 = vadd.f32 0.0, %v2455
        %v2457 = vpop.f32.mrb[0].mxu0
        %v2458 = vadd.f32 0.0, %v2457
        %v2459 = vpop.f32.mrb[0].mxu0
        %v2460 = vadd.f32 0.0, %v2459
        %v2461 = vpop.f32.mrb[0].mxu0
        %v2462 = vadd.f32 0.0, %v2461
        %2463 = vmatprep.mubr.bf16.mxu0 0
        %2464 = vmatmul.mubr.bf16.gmra.mrb[0].mxu0 %v711
        %v2465 = vpop.f32.mrb[0].mxu0
        %v2466 = vadd.f32 0.0, %v2465
        %v2467 = vpop.f32.mrb[0].mxu0
        %v2468 = vadd.f32 0.0, %v2467
        %v2469 = vpop.f32.mrb[0].mxu0
        %v2470 = vadd.f32 0.0, %v2469
        %v2471 = vpop.f32.mrb[0].mxu0
        %v2472 = vadd.f32 0.0, %v2471
        %2473 = vmatprep.mubr.bf16.mxu0 0
        %2474 = vmatmul.mubr.bf16.gmra.mrb[0].mxu0 %v714
        %v2475 = vpop.f32.mrb[0].mxu0
        %v2476 = vadd.f32 0.0, %v2475
        %v2477 = vpop.f32.mrb[0].mxu0
        %v2478 = vadd.f32 0.0, %v2477
        %v2479 = vpop.f32.mrb[0].mxu0
        %v2480 = vadd.f32 0.0, %v2479
        %v2481 = vpop.f32.mrb[0].mxu0
        %v2482 = vadd.f32 0.0, %v2481
        %2483 = vmatprep.mubr.bf16.mxu0 0
        %2484 = vmatmul.mubr.bf16.gmra.mrb[0].mxu0 %v717
        %v2485 = vpop.f32.mrb[0].mxu0
        %v2486 = vadd.f32 0.0, %v2485
        %v2487 = vpop.f32.mrb[0].mxu0
        %v2488 = vadd.f32 0.0, %v2487
        %v2489 = vpop.f32.mrb[0].mxu0
        %v2490 = vadd.f32 0.0, %v2489
        %v2491 = vpop.f32.mrb[0].mxu0
        %v2492 = vadd.f32 0.0, %v2491
        %2493 = vmatprep.mubr.bf16.mxu0 0
        %2494 = vmatmul.mubr.bf16.gmra.mrb[0].mxu0 %v720
        %v2495 = vpop.f32.mrb[0].mxu0
        %v2496 = vadd.f32 0.0, %v2495
        %v2497 = vpop.f32.mrb[0].mxu0
        %v2498 = vadd.f32 0.0, %v2497
        %v2499 = vpop.f32.mrb[0].mxu0
        %v2500 = vadd.f32 0.0, %v2499
        %v2501 = vpop.f32.mrb[0].mxu0
        %v2502 = vadd.f32 0.0, %v2501
        %2503 = vmatprep.mubr.bf16.mxu0 0
        %2504 = vmatmul.mubr.bf16.gmra.mrb[0].mxu0 %v723
        %v2505 = vpop.f32.mrb[0].mxu0
        %v2506 = vadd.f32 0.0, %v2505
        %v2507 = vpop.f32.mrb[0].mxu0
        %v2508 = vadd.f32 0.0, %v2507
        %v2509 = vpop.f32.mrb[0].mxu0
        %v2510 = vadd.f32 0.0, %v2509
        %v2511 = vpop.f32.mrb[0].mxu0
        %v2512 = vadd.f32 0.0, %v2511
        %2513 = vmatprep.mubr.bf16.mxu0 0
        %2514 = vmatmul.mubr.bf16.gmra.mrb[0].mxu0 %v726
        %v2515 = vpop.f32.mrb[0].mxu0
        %v2516 = vadd.f32 0.0, %v2515
        %v2517 = vpop.f32.mrb[0].mxu0
        %v2518 = vadd.f32 0.0, %v2517
        %v2519 = vpop.f32.mrb[0].mxu0
        %v2520 = vadd.f32 0.0, %v2519
        %v2521 = vpop.f32.mrb[0].mxu0
        %v2522 = vadd.f32 0.0, %v2521
        %2523 = vmatprep.mubr.bf16.mxu0 0
        %2524 = vmatmul.mubr.bf16.gmra.mrb[0].mxu0 %v729
        %v2525 = vpop.f32.mrb[0].mxu0
        %v2526 = vadd.f32 0.0, %v2525
        %v2527 = vpop.f32.mrb[0].mxu0
        %v2528 = vadd.f32 0.0, %v2527
        %v2529 = vpop.f32.mrb[0].mxu0
        %v2530 = vadd.f32 0.0, %v2529
        %v2531 = vpop.f32.mrb[0].mxu0
        %v2532 = vadd.f32 0.0, %v2531
        %2533 = vmatprep.mubr.bf16.mxu0 0
        %2534 = vmatmul.mubr.bf16.gmra.mrb[0].mxu0 %v732
        %v2535 = vpop.f32.mrb[0].mxu0
        %v2536 = vadd.f32 0.0, %v2535
        %v2537 = vpop.f32.mrb[0].mxu0
        %v2538 = vadd.f32 0.0, %v2537
        %v2539 = vpop.f32.mrb[0].mxu0
        %v2540 = vadd.f32 0.0, %v2539
        %v2541 = vpop.f32.mrb[0].mxu0
        %v2542 = vadd.f32 0.0, %v2541
        %2543 = vmatprep.mubr.bf16.mxu0 0
        %2544 = vmatmul.mubr.bf16.gmra.mrb[0].mxu0 %v735
        %v2545 = vpop.f32.mrb[0].mxu0
        %v2546 = vadd.f32 0.0, %v2545
        %v2547 = vpop.f32.mrb[0].mxu0
        %v2548 = vadd.f32 0.0, %v2547
        %v2549 = vpop.f32.mrb[0].mxu0
        %v2550 = vadd.f32 0.0, %v2549
        %v2551 = vpop.f32.mrb[0].mxu0
        %v2552 = vadd.f32 0.0, %v2551
        %2553 = vmatprep.mubr.bf16.mxu0 0
        %2554 = vmatmul.mubr.bf16.gmra.mrb[0].mxu0 %v738
        %v2555 = vpop.f32.mrb[0].mxu0
        %v2556 = vadd.f32 0.0, %v2555
        %v2557 = vpop.f32.mrb[0].mxu0
        %v2558 = vadd.f32 0.0, %v2557
        %v2559 = vpop.f32.mrb[0].mxu0
        %v2560 = vadd.f32 0.0, %v2559
        %v2561 = vpop.f32.mrb[0].mxu0
        %v2562 = vadd.f32 0.0, %v2561
        %2563 = vmatprep.mubr.bf16.mxu0 0
        %2564 = vmatmul.mubr.bf16.gmra.mrb[0].mxu0 %v741
        %v2565 = vpop.f32.mrb[0].mxu0
        %v2566 = vadd.f32 0.0, %v2565
        %v2567 = vpop.f32.mrb[0].mxu0
        %v2568 = vadd.f32 0.0, %v2567
        %v2569 = vpop.f32.mrb[0].mxu0
        %v2570 = vadd.f32 0.0, %v2569
        %v2571 = vpop.f32.mrb[0].mxu0
        %v2572 = vadd.f32 0.0, %v2571
        %2573 = vmatprep.mubr.bf16.mxu0 0
        %2574 = vmatmul.mubr.bf16.gmra.mrb[0].mxu0 %v744
        %v2575 = vpop.f32.mrb[0].mxu0
        %v2576 = vadd.f32 0.0, %v2575
        %v2577 = vpop.f32.mrb[0].mxu0
        %v2578 = vadd.f32 0.0, %v2577
        %v2579 = vpop.f32.mrb[0].mxu0
        %v2580 = vadd.f32 0.0, %v2579
        %v2581 = vpop.f32.mrb[0].mxu0
        %v2582 = vadd.f32 0.0, %v2581
        %2583 = vmatprep.mubr.bf16.mxu0 0
        %2584 = vmatmul.mubr.bf16.gmra.mrb[0].mxu0 %v747
        %v2585 = vpop.f32.mrb[0].mxu0
        %v2586 = vadd.f32 0.0, %v2585
        %v2587 = vpop.f32.mrb[0].mxu0
        %v2588 = vadd.f32 0.0, %v2587
        %v2589 = vpop.f32.mrb[0].mxu0
        %v2590 = vadd.f32 0.0, %v2589
        %v2591 = vpop.f32.mrb[0].mxu0
        %v2592 = vadd.f32 0.0, %v2591
        %2593 = vdwg.mxu0
        %v2594 = vmax.f32 %v2356, %v2366
        %v2595 = vmax.f32 %v2360, %v2370
        %v2596 = vmax.f32 %v2594, %v2595
        %v2597 = vrot.slane %v2596, 4
        %v2598 = vmax.f32 %v2596, %v2597
        %v2599 = vrot.slane %v2598, 2
        %v2600 = vmax.f32 %v2598, %v2599
        %v2601 = vrot.slane %v2600, 1
        %v2602 = vmax.f32 %v2600, %v2601
        %v2603 = vmax.f32 %v2358, %v2368
        %v2604 = vmax.f32 %v2362, %v2372
        %v2605 = vmax.f32 %v2603, %v2604
        %v2606 = vrot.slane %v2605, 4
        %v2607 = vmax.f32 %v2605, %v2606
        %v2608 = vrot.slane %v2607, 2
        %v2609 = vmax.f32 %v2607, %v2608
        %v2610 = vrot.slane %v2609, 1
        %v2611 = vmax.f32 %v2609, %v2610
        %v2612 = vmax.f32 %v2376, %v2386
        %v2613 = vmax.f32 %v2380, %v2390
        %v2614 = vmax.f32 %v2612, %v2613
        %v2615 = vrot.slane %v2614, 4
        %v2616 = vmax.f32 %v2614, %v2615
        %v2617 = vrot.slane %v2616, 2
        %v2618 = vmax.f32 %v2616, %v2617
        %v2619 = vrot.slane %v2618, 1
        %v2620 = vmax.f32 %v2618, %v2619
        %v2621 = vmax.f32 %v2378, %v2388
        %v2622 = vmax.f32 %v2382, %v2392
        %v2623 = vmax.f32 %v2621, %v2622
        %v2624 = vrot.slane %v2623, 4
        %v2625 = vmax.f32 %v2623, %v2624
        %v2626 = vrot.slane %v2625, 2
        %v2627 = vmax.f32 %v2625, %v2626
        %v2628 = vrot.slane %v2627, 1
        %v2629 = vmax.f32 %v2627, %v2628
        %v2630 = vmax.f32 %v2396, %v2406
        %v2631 = vmax.f32 %v2400, %v2410
        %v2632 = vmax.f32 %v2630, %v2631
        %v2633 = vrot.slane %v2632, 4
        %v2634 = vmax.f32 %v2632, %v2633
        %v2635 = vrot.slane %v2634, 2
        %v2636 = vmax.f32 %v2634, %v2635
        %v2637 = vrot.slane %v2636, 1
        %v2638 = vmax.f32 %v2636, %v2637
        %v2639 = vmax.f32 %v2398, %v2408
        %v2640 = vmax.f32 %v2402, %v2412
        %v2641 = vmax.f32 %v2639, %v2640
        %v2642 = vrot.slane %v2641, 4
        %v2643 = vmax.f32 %v2641, %v2642
        %v2644 = vrot.slane %v2643, 2
        %v2645 = vmax.f32 %v2643, %v2644
        %v2646 = vrot.slane %v2645, 1
        %v2647 = vmax.f32 %v2645, %v2646
        %v2648 = vmax.f32 %v2416, %v2426
        %v2649 = vmax.f32 %v2420, %v2430
        %v2650 = vmax.f32 %v2648, %v2649
        %v2651 = vrot.slane %v2650, 4
        %v2652 = vmax.f32 %v2650, %v2651
        %v2653 = vrot.slane %v2652, 2
        %v2654 = vmax.f32 %v2652, %v2653
        %v2655 = vrot.slane %v2654, 1
        %v2656 = vmax.f32 %v2654, %v2655
        %v2657 = vmax.f32 %v2418, %v2428
        %v2658 = vmax.f32 %v2422, %v2432
        %v2659 = vmax.f32 %v2657, %v2658
        %v2660 = vrot.slane %v2659, 4
        %v2661 = vmax.f32 %v2659, %v2660
        %v2662 = vrot.slane %v2661, 2
        %v2663 = vmax.f32 %v2661, %v2662
        %v2664 = vrot.slane %v2663, 1
        %v2665 = vmax.f32 %v2663, %v2664
        %v2666 = vsel %vm1101, %v2602, %v2620
        %v2667 = vsel %vm1101, %v2611, %v2629
        %v2668 = vsel %vm749, %v2666, %v2638
        %v2669 = vsel %vm749, %v2667, %v2647
        %v2670 = vsel %vm1106, %v2668, %v2656
        %v2671 = vsel %vm1106, %v2669, %v2665
        %v2672 = vpack.c.bf16 %v2670, %v2670
        %v2673 = vpack.c.bf16 %v2671, %v2671
        %v2675 = vsel %vm749, %v2672, 0
        %v2678 = vsel %vm749, %v2673, 0
        %2680 = vmatprep.subr.bf16.mxu0 %v2678
        %2681 = vmatpush1.bf16.msra.mxu0 %v2675
        %2682 = vmatprep.subr.bf16.mxu0 0
        %2683 = vmatpush1.bf16.msra.mxu0 0
        %2684 = vmatprep.subr.bf16.mxu0 0
        %2685 = vmatpush1.bf16.msra.mxu0 0
        %2686 = vmatprep.subr.bf16.mxu0 0
        %2687 = vmatpush1.bf16.msra.mxu0 0
        %2688 = vmatprep.subr.bf16.mxu0 0
        %2689 = vmatpush1.bf16.msra.mxu0 0
        %2690 = vmatprep.subr.bf16.mxu0 0
        %2691 = vmatpush1.bf16.msra.mxu0 0
        %2692 = vmatprep.subr.bf16.mxu0 0
        %2693 = vmatpush1.bf16.msra.mxu0 0
        %2694 = vmatprep.subr.bf16.mxu0 0
        %2695 = vmatpush1.bf16.msra.mxu0 0
        %2696 = vmatprep.subr.bf16.mxu0 0
        %2697 = vmatpush1.bf16.msra.mxu0 0
        %2698 = vmatprep.subr.bf16.mxu0 0
        %2699 = vmatpush1.bf16.msra.mxu0 0
        %2700 = vmatprep.subr.bf16.mxu0 0
        %2701 = vmatpush1.bf16.msra.mxu0 0
        %2702 = vmatprep.subr.bf16.mxu0 0
        %2703 = vmatpush1.bf16.msra.mxu0 0
        %2704 = vmatprep.subr.bf16.mxu0 0
        %2705 = vmatpush1.bf16.msra.mxu0 0
        %2706 = vmatprep.subr.bf16.mxu0 0
        %2707 = vmatpush1.bf16.msra.mxu0 0
        %2708 = vmatprep.subr.bf16.mxu0 0
        %2709 = vmatpush1.bf16.msra.mxu0 0
        %2710 = vmatprep.subr.bf16.mxu0 0
        %2711 = vmatpush1.bf16.msra.mxu0 0
        %2712 = vmatprep.mubr.bf16.mxu0 0
        %2713 = vmatmul.mubr.bf16.gmra.mrb[0].mxu0 %v1152
        %v2714 = vpop.f32.mrb[0].mxu0
        %v2715 = vadd.f32 0.0, %v2714
        %v2716 = vpop.f32.mrb[0].mxu0
        %v2717 = vadd.f32 0.0, %v2716
        %v2718 = vpop.f32.mrb[0].mxu0
        %v2719 = vadd.f32 0.0, %v2718
        %v2720 = vpop.f32.mrb[0].mxu0
        %v2721 = vadd.f32 0.0, %v2720
        %2722 = vmatprep.mubr.bf16.mxu0 0
        %2723 = vmatmul.mubr.bf16.gmra.mrb[0].mxu0 %v1155
        %v2724 = vpop.f32.mrb[0].mxu0
        %v2725 = vadd.f32 0.0, %v2724
        %v2726 = vpop.f32.mrb[0].mxu0
        %v2727 = vadd.f32 0.0, %v2726
        %v2728 = vpop.f32.mrb[0].mxu0
        %v2729 = vadd.f32 0.0, %v2728
        %v2730 = vpop.f32.mrb[0].mxu0
        %v2731 = vadd.f32 0.0, %v2730
        %2732 = vmatprep.mubr.bf16.mxu0 0
        %2733 = vmatmul.mubr.bf16.gmra.mrb[0].mxu0 %v1158
        %v2734 = vpop.f32.mrb[0].mxu0
        %v2735 = vadd.f32 0.0, %v2734
        %v2736 = vpop.f32.mrb[0].mxu0
        %v2737 = vadd.f32 0.0, %v2736
        %v2738 = vpop.f32.mrb[0].mxu0
        %v2739 = vadd.f32 0.0, %v2738
        %v2740 = vpop.f32.mrb[0].mxu0
        %v2741 = vadd.f32 0.0, %v2740
        %2742 = vmatprep.mubr.bf16.mxu0 0
        %2743 = vmatmul.mubr.bf16.gmra.mrb[0].mxu0 %v1161
        %v2744 = vpop.f32.mrb[0].mxu0
        %v2745 = vadd.f32 0.0, %v2744
        %v2746 = vpop.f32.mrb[0].mxu0
        %v2747 = vadd.f32 0.0, %v2746
        %v2748 = vpop.f32.mrb[0].mxu0
        %v2749 = vadd.f32 0.0, %v2748
        %v2750 = vpop.f32.mrb[0].mxu0
        %v2751 = vadd.f32 0.0, %v2750
        %2752 = vmatprep.mubr.bf16.mxu0 0
        %2753 = vmatmul.mubr.bf16.gmra.mrb[0].mxu0 %v1164
        %v2754 = vpop.f32.mrb[0].mxu0
        %v2755 = vadd.f32 0.0, %v2754
        %v2756 = vpop.f32.mrb[0].mxu0
        %v2757 = vadd.f32 0.0, %v2756
        %v2758 = vpop.f32.mrb[0].mxu0
        %v2759 = vadd.f32 0.0, %v2758
        %v2760 = vpop.f32.mrb[0].mxu0
        %v2761 = vadd.f32 0.0, %v2760
        %2762 = vmatprep.mubr.bf16.mxu0 0
        %2763 = vmatmul.mubr.bf16.gmra.mrb[0].mxu0 %v1167
        %v2764 = vpop.f32.mrb[0].mxu0
        %v2765 = vadd.f32 0.0, %v2764
        %v2766 = vpop.f32.mrb[0].mxu0
        %v2767 = vadd.f32 0.0, %v2766
        %v2768 = vpop.f32.mrb[0].mxu0
        %v2769 = vadd.f32 0.0, %v2768
        %v2770 = vpop.f32.mrb[0].mxu0
        %v2771 = vadd.f32 0.0, %v2770
        %2772 = vmatprep.mubr.bf16.mxu0 0
        %2773 = vmatmul.mubr.bf16.gmra.mrb[0].mxu0 %v1170
        %v2774 = vpop.f32.mrb[0].mxu0
        %v2775 = vadd.f32 0.0, %v2774
        %v2776 = vpop.f32.mrb[0].mxu0
        %v2777 = vadd.f32 0.0, %v2776
        %v2778 = vpop.f32.mrb[0].mxu0
        %v2779 = vadd.f32 0.0, %v2778
        %v2780 = vpop.f32.mrb[0].mxu0
        %v2781 = vadd.f32 0.0, %v2780
        %2782 = vmatprep.mubr.bf16.mxu0 0
        %2783 = vmatmul.mubr.bf16.gmra.mrb[0].mxu0 %v1173
        %v2784 = vpop.f32.mrb[0].mxu0
        %v2785 = vadd.f32 0.0, %v2784
        %v2786 = vpop.f32.mrb[0].mxu0
        %v2787 = vadd.f32 0.0, %v2786
        %v2788 = vpop.f32.mrb[0].mxu0
        %v2789 = vadd.f32 0.0, %v2788
        %v2790 = vpop.f32.mrb[0].mxu0
        %v2791 = vadd.f32 0.0, %v2790
        %2792 = vdwg.mxu0
        %v2793 = vsub.f32 %v2356, %v2715
        %v2794 = vsub.f32 %v2358, %v2717
        %v2795 = vsub.f32 %v2360, %v2719
        %v2796 = vsub.f32 %v2362, %v2721
        %v2797 = vsub.f32 %v2366, %v2725
        %v2798 = vsub.f32 %v2368, %v2727
        %v2799 = vsub.f32 %v2370, %v2729
        %v2800 = vsub.f32 %v2372, %v2731
        %v2801 = vsub.f32 %v2376, %v2735
        %v2802 = vsub.f32 %v2378, %v2737
        %v2803 = vsub.f32 %v2380, %v2739
        %v2804 = vsub.f32 %v2382, %v2741
        %v2805 = vsub.f32 %v2386, %v2745
        %v2806 = vsub.f32 %v2388, %v2747
        %v2807 = vsub.f32 %v2390, %v2749
        %v2808 = vsub.f32 %v2392, %v2751
        %v2809 = vsub.f32 %v2396, %v2755
        %v2810 = vsub.f32 %v2398, %v2757
        %v2811 = vsub.f32 %v2400, %v2759
        %v2812 = vsub.f32 %v2402, %v2761
        %v2813 = vsub.f32 %v2406, %v2765
        %v2814 = vsub.f32 %v2408, %v2767
        %v2815 = vsub.f32 %v2410, %v2769
        %v2816 = vsub.f32 %v2412, %v2771
        %v2817 = vsub.f32 %v2416, %v2775
        %v2818 = vsub.f32 %v2418, %v2777
        %v2819 = vsub.f32 %v2420, %v2779
        %v2820 = vsub.f32 %v2422, %v2781
        %v2821 = vsub.f32 %v2426, %v2785
        %v2822 = vsub.f32 %v2428, %v2787
        %v2823 = vsub.f32 %v2430, %v2789
        %v2824 = vsub.f32 %v2432, %v2791
        %v2825 = vmul.f32 %v2793, 1.442695
        %v2826 = vpow.pop %v2825
        %v2827 = vmul.f32 %v2794, 1.442695
        %v2828 = vpow.pop %v2827
        %v2829 = vmul.f32 %v2795, 1.442695
        %v2830 = vpow.pop %v2829
        %v2831 = vmul.f32 %v2796, 1.442695
        %v2832 = vpow.pop %v2831
        %v2833 = vmul.f32 %v2797, 1.442695
        %v2834 = vpow.pop %v2833
        %v2835 = vmul.f32 %v2798, 1.442695
        %v2836 = vpow.pop %v2835
        %v2837 = vmul.f32 %v2799, 1.442695
        %v2838 = vpow.pop %v2837
        %v2839 = vmul.f32 %v2800, 1.442695
        %v2840 = vpow.pop %v2839
        %v2841 = vmul.f32 %v2801, 1.442695
        %v2842 = vpow.pop %v2841
        %v2843 = vmul.f32 %v2802, 1.442695
        %v2844 = vpow.pop %v2843
        %v2845 = vmul.f32 %v2803, 1.442695
        %v2846 = vpow.pop %v2845
        %v2847 = vmul.f32 %v2804, 1.442695
        %v2848 = vpow.pop %v2847
        %v2849 = vmul.f32 %v2805, 1.442695
        %v2850 = vpow.pop %v2849
        %v2851 = vmul.f32 %v2806, 1.442695
        %v2852 = vpow.pop %v2851
        %v2853 = vmul.f32 %v2807, 1.442695
        %v2854 = vpow.pop %v2853
        %v2855 = vmul.f32 %v2808, 1.442695
        %v2856 = vpow.pop %v2855
        %v2857 = vmul.f32 %v2809, 1.442695
        %v2858 = vpow.pop %v2857
        %v2859 = vmul.f32 %v2810, 1.442695
        %v2860 = vpow.pop %v2859
        %v2861 = vmul.f32 %v2811, 1.442695
        %v2862 = vpow.pop %v2861
        %v2863 = vmul.f32 %v2812, 1.442695
        %v2864 = vpow.pop %v2863
        %v2865 = vmul.f32 %v2813, 1.442695
        %v2866 = vpow.pop %v2865
        %v2867 = vmul.f32 %v2814, 1.442695
        %v2868 = vpow.pop %v2867
        %v2869 = vmul.f32 %v2815, 1.442695
        %v2870 = vpow.pop %v2869
        %v2871 = vmul.f32 %v2816, 1.442695
        %v2872 = vpow.pop %v2871
        %v2873 = vmul.f32 %v2817, 1.442695
        %v2874 = vpow.pop %v2873
        %v2875 = vmul.f32 %v2818, 1.442695
        %v2876 = vpow.pop %v2875
        %v2877 = vmul.f32 %v2819, 1.442695
        %v2878 = vpow.pop %v2877
        %v2879 = vmul.f32 %v2820, 1.442695
        %v2880 = vpow.pop %v2879
        %v2881 = vmul.f32 %v2821, 1.442695
        %v2882 = vpow.pop %v2881
        %v2883 = vmul.f32 %v2822, 1.442695
        %v2884 = vpow.pop %v2883
        %v2885 = vmul.f32 %v2823, 1.442695
        %v2886 = vpow.pop %v2885
        %v2887 = vmul.f32 %v2824, 1.442695
        %v2888 = vpow.pop %v2887
        %v2889 = vpack.c.bf16 %v2830, %v2826
        %v2890 = vpack.c.bf16 %v2832, %v2828
        %v2891 = vpack.c.bf16 %v2838, %v2834
        %v2892 = vpack.c.bf16 %v2840, %v2836
        %v2893 = vpack.c.bf16 %v2846, %v2842
        %v2894 = vpack.c.bf16 %v2848, %v2844
        %v2895 = vpack.c.bf16 %v2854, %v2850
        %v2896 = vpack.c.bf16 %v2856, %v2852
        %v2897 = vpack.c.bf16 %v2862, %v2858
        %v2898 = vpack.c.bf16 %v2864, %v2860
        %v2899 = vpack.c.bf16 %v2870, %v2866
        %v2900 = vpack.c.bf16 %v2872, %v2868
        %v2901 = vpack.c.bf16 %v2878, %v2874
        %v2902 = vpack.c.bf16 %v2880, %v2876
        %v2903 = vpack.c.bf16 %v2886, %v2882
        %v2904 = vpack.c.bf16 %v2888, %v2884
        %2905 = vmatprep.subr.bf16.mxu0 %v2890
        %2906 = vmatpush1.bf16.msra.mxu0 %v2889
        %2907 = vmatprep.subr.bf16.mxu0 %v2892
        %2908 = vmatpush1.bf16.msra.mxu0 %v2891
        %2909 = vmatprep.subr.bf16.mxu0 %v2894
        %2910 = vmatpush1.bf16.msra.mxu0 %v2893
        %2911 = vmatprep.subr.bf16.mxu0 %v2896
        %2912 = vmatpush1.bf16.msra.mxu0 %v2895
        %2913 = vmatprep.subr.bf16.mxu0 %v2898
        %2914 = vmatpush1.bf16.msra.mxu0 %v2897
        %2915 = vmatprep.subr.bf16.mxu0 %v2900
        %2916 = vmatpush1.bf16.msra.mxu0 %v2899
        %2917 = vmatprep.subr.bf16.mxu0 %v2902
        %2918 = vmatpush1.bf16.msra.mxu0 %v2901
        %2919 = vmatprep.subr.bf16.mxu0 %v2904
        %2920 = vmatpush1.bf16.msra.mxu0 %v2903
        %2921 = vmatprep.subr.bf16.mxu0 0
        %2922 = vmatpush1.bf16.msra.mxu0 0
        %2923 = vmatprep.subr.bf16.mxu0 0
        %2924 = vmatpush1.bf16.msra.mxu0 0
        %2925 = vmatprep.subr.bf16.mxu0 0
        %2926 = vmatpush1.bf16.msra.mxu0 0
        %2927 = vmatprep.subr.bf16.mxu0 0
        %2928 = vmatpush1.bf16.msra.mxu0 0
        %2929 = vmatprep.subr.bf16.mxu0 0
        %2930 = vmatpush1.bf16.msra.mxu0 0
        %2931 = vmatprep.subr.bf16.mxu0 0
        %2932 = vmatpush1.bf16.msra.mxu0 0
        %2933 = vmatprep.subr.bf16.mxu0 0
        %2934 = vmatpush1.bf16.msra.mxu0 0
        %2935 = vmatprep.subr.bf16.mxu0 0
        %2936 = vmatpush1.bf16.msra.mxu0 0
        %2937 = vmatprep.mubr.bf16.mxu0 0
        %2938 = vmatmul.mubr.bf16.gmra.mrb[0].mxu0 %v462
        %v2939 = vpop.f32.mrb[0].mxu0
        %v2940 = vadd.f32 0.0, %v2939
        %v2941 = vpop.f32.mrb[0].mxu0
        %v2942 = vadd.f32 0.0, %v2941
        %v2943 = vpop.f32.mrb[0].mxu0
        %v2944 = vpop.f32.mrb[0].mxu0
        %2945 = vdwg.mxu0
        %v2946 = vrcp.pop %v2940
        %v2947 = vrcp.pop %v2942
        %v2948 = vpack.c.bf16 %v2946, %v2946
        %v2949 = vpack.c.bf16 %v2947, %v2947
        %v2951 = vsel %vm749, %v2948, 0
        %v2954 = vsel %vm749, %v2949, 0
        %2956 = vmatprep.subr.bf16.mxu0 %v2954
        %2957 = vmatpush1.bf16.msra.mxu0 %v2951
        %2958 = vmatprep.subr.bf16.mxu0 0
        %2959 = vmatpush1.bf16.msra.mxu0 0
        %2960 = vmatprep.subr.bf16.mxu0 0
        %2961 = vmatpush1.bf16.msra.mxu0 0
        %2962 = vmatprep.subr.bf16.mxu0 0
        %2963 = vmatpush1.bf16.msra.mxu0 0
        %2964 = vmatprep.subr.bf16.mxu0 0
        %2965 = vmatpush1.bf16.msra.mxu0 0
        %2966 = vmatprep.subr.bf16.mxu0 0
        %2967 = vmatpush1.bf16.msra.mxu0 0
        %2968 = vmatprep.subr.bf16.mxu0 0
        %2969 = vmatpush1.bf16.msra.mxu0 0
        %2970 = vmatprep.subr.bf16.mxu0 0
        %2971 = vmatpush1.bf16.msra.mxu0 0
        %2972 = vmatprep.subr.bf16.mxu0 0
        %2973 = vmatpush1.bf16.msra.mxu0 0
        %2974 = vmatprep.subr.bf16.mxu0 0
        %2975 = vmatpush1.bf16.msra.mxu0 0
        %2976 = vmatprep.subr.bf16.mxu0 0
        %2977 = vmatpush1.bf16.msra.mxu0 0
        %2978 = vmatprep.subr.bf16.mxu0 0
        %2979 = vmatpush1.bf16.msra.mxu0 0
        %2980 = vmatprep.subr.bf16.mxu0 0
        %2981 = vmatpush1.bf16.msra.mxu0 0
        %2982 = vmatprep.subr.bf16.mxu0 0
        %2983 = vmatpush1.bf16.msra.mxu0 0
        %2984 = vmatprep.subr.bf16.mxu0 0
        %2985 = vmatpush1.bf16.msra.mxu0 0
        %2986 = vmatprep.subr.bf16.mxu0 0
        %2987 = vmatpush1.bf16.msra.mxu0 0
        %2988 = vmatprep.mubr.bf16.mxu0 0
        %2989 = vmatmul.mubr.bf16.gmra.mrb[0].mxu0 %v1152
        %v2990 = vpop.f32.mrb[0].mxu0
        %v2991 = vadd.f32 0.0, %v2990
        %v2992 = vpop.f32.mrb[0].mxu0
        %v2993 = vadd.f32 0.0, %v2992
        %v2994 = vpop.f32.mrb[0].mxu0
        %v2995 = vadd.f32 0.0, %v2994
        %v2996 = vpop.f32.mrb[0].mxu0
        %v2997 = vadd.f32 0.0, %v2996
        %2998 = vmatprep.mubr.bf16.mxu0 0
        %2999 = vmatmul.mubr.bf16.gmra.mrb[0].mxu0 %v1155
        %v3000 = vpop.f32.mrb[0].mxu0
        %v3001 = vadd.f32 0.0, %v3000
        %v3002 = vpop.f32.mrb[0].mxu0
        %v3003 = vadd.f32 0.0, %v3002
        %v3004 = vpop.f32.mrb[0].mxu0
        %v3005 = vadd.f32 0.0, %v3004
        %v3006 = vpop.f32.mrb[0].mxu0
        %v3007 = vadd.f32 0.0, %v3006
        %3008 = vmatprep.mubr.bf16.mxu0 0
        %3009 = vmatmul.mubr.bf16.gmra.mrb[0].mxu0 %v1158
        %v3010 = vpop.f32.mrb[0].mxu0
        %v3011 = vadd.f32 0.0, %v3010
        %v3012 = vpop.f32.mrb[0].mxu0
        %v3013 = vadd.f32 0.0, %v3012
        %v3014 = vpop.f32.mrb[0].mxu0
        %v3015 = vadd.f32 0.0, %v3014
        %v3016 = vpop.f32.mrb[0].mxu0
        %v3017 = vadd.f32 0.0, %v3016
        %3018 = vmatprep.mubr.bf16.mxu0 0
        %3019 = vmatmul.mubr.bf16.gmra.mrb[0].mxu0 %v1161
        %v3020 = vpop.f32.mrb[0].mxu0
        %v3021 = vadd.f32 0.0, %v3020
        %v3022 = vpop.f32.mrb[0].mxu0
        %v3023 = vadd.f32 0.0, %v3022
        %v3024 = vpop.f32.mrb[0].mxu0
        %v3025 = vadd.f32 0.0, %v3024
        %v3026 = vpop.f32.mrb[0].mxu0
        %v3027 = vadd.f32 0.0, %v3026
        %3028 = vmatprep.mubr.bf16.mxu0 0
        %3029 = vmatmul.mubr.bf16.gmra.mrb[0].mxu0 %v1164
        %v3030 = vpop.f32.mrb[0].mxu0
        %v3031 = vadd.f32 0.0, %v3030
        %v3032 = vpop.f32.mrb[0].mxu0
        %v3033 = vadd.f32 0.0, %v3032
        %v3034 = vpop.f32.mrb[0].mxu0
        %v3035 = vadd.f32 0.0, %v3034
        %v3036 = vpop.f32.mrb[0].mxu0
        %v3037 = vadd.f32 0.0, %v3036
        %3038 = vmatprep.mubr.bf16.mxu0 0
        %3039 = vmatmul.mubr.bf16.gmra.mrb[0].mxu0 %v1167
        %v3040 = vpop.f32.mrb[0].mxu0
        %v3041 = vadd.f32 0.0, %v3040
        %v3042 = vpop.f32.mrb[0].mxu0
        %v3043 = vadd.f32 0.0, %v3042
        %v3044 = vpop.f32.mrb[0].mxu0
        %v3045 = vadd.f32 0.0, %v3044
        %v3046 = vpop.f32.mrb[0].mxu0
        %v3047 = vadd.f32 0.0, %v3046
        %3048 = vmatprep.mubr.bf16.mxu0 0
        %3049 = vmatmul.mubr.bf16.gmra.mrb[0].mxu0 %v1170
        %v3050 = vpop.f32.mrb[0].mxu0
        %v3051 = vadd.f32 0.0, %v3050
        %v3052 = vpop.f32.mrb[0].mxu0
        %v3053 = vadd.f32 0.0, %v3052
        %v3054 = vpop.f32.mrb[0].mxu0
        %v3055 = vadd.f32 0.0, %v3054
        %v3056 = vpop.f32.mrb[0].mxu0
        %v3057 = vadd.f32 0.0, %v3056
        %3058 = vmatprep.mubr.bf16.mxu0 0
        %3059 = vmatmul.mubr.bf16.gmra.mrb[0].mxu0 %v1173
        %v3060 = vpop.f32.mrb[0].mxu0
        %v3061 = vadd.f32 0.0, %v3060
        %v3062 = vpop.f32.mrb[0].mxu0
        %v3063 = vadd.f32 0.0, %v3062
        %v3064 = vpop.f32.mrb[0].mxu0
        %v3065 = vadd.f32 0.0, %v3064
        %v3066 = vpop.f32.mrb[0].mxu0
        %v3067 = vadd.f32 0.0, %v3066
        %3068 = vdwg.mxu0
        %v3069 = vmul.f32 %v2826, %v2991
        %v3070 = vmul.f32 %v2828, %v2993
        %v3071 = vmul.f32 %v2830, %v2995
        %v3072 = vmul.f32 %v2832, %v2997
        %v3073 = vmul.f32 %v2834, %v3001
        %v3074 = vmul.f32 %v2836, %v3003
        %v3075 = vmul.f32 %v2838, %v3005
        %v3076 = vmul.f32 %v2840, %v3007
        %v3077 = vmul.f32 %v2842, %v3011
        %v3078 = vmul.f32 %v2844, %v3013
        %v3079 = vmul.f32 %v2846, %v3015
        %v3080 = vmul.f32 %v2848, %v3017
        %v3081 = vmul.f32 %v2850, %v3021
        %v3082 = vmul.f32 %v2852, %v3023
        %v3083 = vmul.f32 %v2854, %v3025
        %v3084 = vmul.f32 %v2856, %v3027
        %v3085 = vmul.f32 %v2858, %v3031
        %v3086 = vmul.f32 %v2860, %v3033
        %v3087 = vmul.f32 %v2862, %v3035
        %v3088 = vmul.f32 %v2864, %v3037
        %v3089 = vmul.f32 %v2866, %v3041
        %v3090 = vmul.f32 %v2868, %v3043
        %v3091 = vmul.f32 %v2870, %v3045
        %v3092 = vmul.f32 %v2872, %v3047
        %v3093 = vmul.f32 %v2874, %v3051
        %v3094 = vmul.f32 %v2876, %v3053
        %v3095 = vmul.f32 %v2878, %v3055
        %v3096 = vmul.f32 %v2880, %v3057
        %v3097 = vmul.f32 %v2882, %v3061
        %v3098 = vmul.f32 %v2884, %v3063
        %v3099 = vmul.f32 %v2886, %v3065
        %v3100 = vmul.f32 %v2888, %v3067
        %v3101 = vpack.c.bf16 %v3071, %v3069
        %v3102 = vpack.c.bf16 %v3072, %v3070
        %v3103 = vpack.c.bf16 %v3075, %v3073
        %v3104 = vpack.c.bf16 %v3076, %v3074
        %v3105 = vpack.c.bf16 %v3079, %v3077
        %v3106 = vpack.c.bf16 %v3080, %v3078
        %v3107 = vpack.c.bf16 %v3083, %v3081
        %v3108 = vpack.c.bf16 %v3084, %v3082
        %v3109 = vpack.c.bf16 %v3087, %v3085
        %v3110 = vpack.c.bf16 %v3088, %v3086
        %v3111 = vpack.c.bf16 %v3091, %v3089
        %v3112 = vpack.c.bf16 %v3092, %v3090
        %v3113 = vpack.c.bf16 %v3095, %v3093
        %v3114 = vpack.c.bf16 %v3096, %v3094
        %v3115 = vpack.c.bf16 %v3099, %v3097
        %v3116 = vpack.c.bf16 %v3100, %v3098
        %v3117 = vmax.f32 %v2436, %v2438
        %3118 = vmax.xlane.f32.xlu0 %v3117
        %v3119 = vpop.xlane.xlu0 %3118
        %v3120 = vmax.f32 %v2440, %v2442
        %3121 = vmax.xlane.f32.xlu0 %v3120
        %v3122 = vpop.xlane.xlu0 %3121
        %v3123 = vmax.f32 %v2446, %v2448
        %3124 = vmax.xlane.f32.xlu0 %v3123
        %v3125 = vpop.xlane.xlu0 %3124
        %v3126 = vmax.f32 %v2450, %v2452
        %3127 = vmax.xlane.f32.xlu0 %v3126
        %v3128 = vpop.xlane.xlu0 %3127
        %v3129 = vmax.f32 %v2456, %v2458
        %3130 = vmax.xlane.f32.xlu0 %v3129
        %v3131 = vpop.xlane.xlu0 %3130
        %v3132 = vmax.f32 %v2460, %v2462
        %3133 = vmax.xlane.f32.xlu0 %v3132
        %v3134 = vpop.xlane.xlu0 %3133
        %v3135 = vmax.f32 %v2466, %v2468
        %3136 = vmax.xlane.f32.xlu0 %v3135
        %v3137 = vpop.xlane.xlu0 %3136
        %v3138 = vmax.f32 %v2470, %v2472
        %3139 = vmax.xlane.f32.xlu0 %v3138
        %v3140 = vpop.xlane.xlu0 %3139
        %v3141 = vmax.f32 %v2476, %v2478
        %3142 = vmax.xlane.f32.xlu0 %v3141
        %v3143 = vpop.xlane.xlu0 %3142
        %v3144 = vmax.f32 %v2480, %v2482
        %3145 = vmax.xlane.f32.xlu0 %v3144
        %v3146 = vpop.xlane.xlu0 %3145
        %v3147 = vmax.f32 %v2486, %v2488
        %3148 = vmax.xlane.f32.xlu0 %v3147
        %v3149 = vpop.xlane.xlu0 %3148
        %v3150 = vmax.f32 %v2490, %v2492
        %3151 = vmax.xlane.f32.xlu0 %v3150
        %v3152 = vpop.xlane.xlu0 %3151
        %v3153 = vmax.f32 %v2496, %v2498
        %3154 = vmax.xlane.f32.xlu0 %v3153
        %v3155 = vpop.xlane.xlu0 %3154
        %v3156 = vmax.f32 %v2500, %v2502
        %3157 = vmax.xlane.f32.xlu0 %v3156
        %v3158 = vpop.xlane.xlu0 %3157
        %v3159 = vmax.f32 %v2506, %v2508
        %3160 = vmax.xlane.f32.xlu0 %v3159
        %v3161 = vpop.xlane.xlu0 %3160
        %v3162 = vmax.f32 %v2510, %v2512
        %3163 = vmax.xlane.f32.xlu0 %v3162
        %v3164 = vpop.xlane.xlu0 %3163
        %v3165 = vsub.f32 %v2436, %v3119
        %v3166 = vsub.f32 %v2438, %v3119
        %v3167 = vsub.f32 %v2440, %v3122
        %v3168 = vsub.f32 %v2442, %v3122
        %v3169 = vsub.f32 %v2446, %v3125
        %v3170 = vsub.f32 %v2448, %v3125
        %v3171 = vsub.f32 %v2450, %v3128
        %v3172 = vsub.f32 %v2452, %v3128
        %v3173 = vsub.f32 %v2456, %v3131
        %v3174 = vsub.f32 %v2458, %v3131
        %v3175 = vsub.f32 %v2460, %v3134
        %v3176 = vsub.f32 %v2462, %v3134
        %v3177 = vsub.f32 %v2466, %v3137
        %v3178 = vsub.f32 %v2468, %v3137
        %v3179 = vsub.f32 %v2470, %v3140
        %v3180 = vsub.f32 %v2472, %v3140
        %v3181 = vsub.f32 %v2476, %v3143
        %v3182 = vsub.f32 %v2478, %v3143
        %v3183 = vsub.f32 %v2480, %v3146
        %v3184 = vsub.f32 %v2482, %v3146
        %v3185 = vsub.f32 %v2486, %v3149
        %v3186 = vsub.f32 %v2488, %v3149
        %v3187 = vsub.f32 %v2490, %v3152
        %v3188 = vsub.f32 %v2492, %v3152
        %v3189 = vsub.f32 %v2496, %v3155
        %v3190 = vsub.f32 %v2498, %v3155
        %v3191 = vsub.f32 %v2500, %v3158
        %v3192 = vsub.f32 %v2502, %v3158
        %v3193 = vsub.f32 %v2506, %v3161
        %v3194 = vsub.f32 %v2508, %v3161
        %v3195 = vsub.f32 %v2510, %v3164
        %v3196 = vsub.f32 %v2512, %v3164
        %v3197 = vmul.f32 %v3165, 1.442695
        %v3198 = vpow.pop %v3197
        %v3199 = vmul.f32 %v3166, 1.442695
        %v3200 = vpow.pop %v3199
        %v3201 = vmul.f32 %v3167, 1.442695
        %v3202 = vpow.pop %v3201
        %v3203 = vmul.f32 %v3168, 1.442695
        %v3204 = vpow.pop %v3203
        %v3205 = vmul.f32 %v3169, 1.442695
        %v3206 = vpow.pop %v3205
        %v3207 = vmul.f32 %v3170, 1.442695
        %v3208 = vpow.pop %v3207
        %v3209 = vmul.f32 %v3171, 1.442695
        %v3210 = vpow.pop %v3209
        %v3211 = vmul.f32 %v3172, 1.442695
        %v3212 = vpow.pop %v3211
        %v3213 = vmul.f32 %v3173, 1.442695
        %v3214 = vpow.pop %v3213
        %v3215 = vmul.f32 %v3174, 1.442695
        %v3216 = vpow.pop %v3215
        %v3217 = vmul.f32 %v3175, 1.442695
        %v3218 = vpow.pop %v3217
        %v3219 = vmul.f32 %v3176, 1.442695
        %v3220 = vpow.pop %v3219
        %v3221 = vmul.f32 %v3177, 1.442695
        %v3222 = vpow.pop %v3221
        %v3223 = vmul.f32 %v3178, 1.442695
        %v3224 = vpow.pop %v3223
        %v3225 = vmul.f32 %v3179, 1.442695
        %v3226 = vpow.pop %v3225
        %v3227 = vmul.f32 %v3180, 1.442695
        %v3228 = vpow.pop %v3227
        %v3229 = vmul.f32 %v3181, 1.442695
        %v3230 = vpow.pop %v3229
        %v3231 = vmul.f32 %v3182, 1.442695
        %v3232 = vpow.pop %v3231
        %v3233 = vmul.f32 %v3183, 1.442695
        %v3234 = vpow.pop %v3233
        %v3235 = vmul.f32 %v3184, 1.442695
        %v3236 = vpow.pop %v3235
        %v3237 = vmul.f32 %v3185, 1.442695
        %v3238 = vpow.pop %v3237
        %v3239 = vmul.f32 %v3186, 1.442695
        %v3240 = vpow.pop %v3239
        %v3241 = vmul.f32 %v3187, 1.442695
        %v3242 = vpow.pop %v3241
        %v3243 = vmul.f32 %v3188, 1.442695
        %v3244 = vpow.pop %v3243
        %v3245 = vmul.f32 %v3189, 1.442695
        %v3246 = vpow.pop %v3245
        %v3247 = vmul.f32 %v3190, 1.442695
        %v3248 = vpow.pop %v3247
        %v3249 = vmul.f32 %v3191, 1.442695
        %v3250 = vpow.pop %v3249
        %v3251 = vmul.f32 %v3192, 1.442695
        %v3252 = vpow.pop %v3251
        %v3253 = vmul.f32 %v3193, 1.442695
        %v3254 = vpow.pop %v3253
        %v3255 = vmul.f32 %v3194, 1.442695
        %v3256 = vpow.pop %v3255
        %v3257 = vmul.f32 %v3195, 1.442695
        %v3258 = vpow.pop %v3257
        %v3259 = vmul.f32 %v3196, 1.442695
        %v3260 = vpow.pop %v3259
        %v3261 = vadd.f32 %v3198, %v3200
        %3262 = vadd.xlane.f32.xlu0 %v3261
        %v3263 = vpop.xlane.xlu0 %3262
        %v3264 = vadd.f32 %v3202, %v3204
        %3265 = vadd.xlane.f32.xlu0 %v3264
        %v3266 = vpop.xlane.xlu0 %3265
        %v3267 = vadd.f32 %v3206, %v3208
        %3268 = vadd.xlane.f32.xlu0 %v3267
        %v3269 = vpop.xlane.xlu0 %3268
        %v3270 = vadd.f32 %v3210, %v3212
        %3271 = vadd.xlane.f32.xlu0 %v3270
        %v3272 = vpop.xlane.xlu0 %3271
        %v3273 = vadd.f32 %v3214, %v3216
        %3274 = vadd.xlane.f32.xlu0 %v3273
        %v3275 = vpop.xlane.xlu0 %3274
        %v3276 = vadd.f32 %v3218, %v3220
        %3277 = vadd.xlane.f32.xlu0 %v3276
        %v3278 = vpop.xlane.xlu0 %3277
        %v3279 = vadd.f32 %v3222, %v3224
        %3280 = vadd.xlane.f32.xlu0 %v3279
        %v3281 = vpop.xlane.xlu0 %3280
        %v3282 = vadd.f32 %v3226, %v3228
        %3283 = vadd.xlane.f32.xlu0 %v3282
        %v3284 = vpop.xlane.xlu0 %3283
        %v3285 = vadd.f32 %v3230, %v3232
        %3286 = vadd.xlane.f32.xlu0 %v3285
        %v3287 = vpop.xlane.xlu0 %3286
        %v3288 = vadd.f32 %v3234, %v3236
        %3289 = vadd.xlane.f32.xlu0 %v3288
        %v3290 = vpop.xlane.xlu0 %3289
        %v3291 = vadd.f32 %v3238, %v3240
        %3292 = vadd.xlane.f32.xlu0 %v3291
        %v3293 = vpop.xlane.xlu0 %3292
        %v3294 = vadd.f32 %v3242, %v3244
        %3295 = vadd.xlane.f32.xlu0 %v3294
        %v3296 = vpop.xlane.xlu0 %3295
        %v3297 = vadd.f32 %v3246, %v3248
        %3298 = vadd.xlane.f32.xlu0 %v3297
        %v3299 = vpop.xlane.xlu0 %3298
        %v3300 = vadd.f32 %v3250, %v3252
        %3301 = vadd.xlane.f32.xlu0 %v3300
        %v3302 = vpop.xlane.xlu0 %3301
        %v3303 = vadd.f32 %v3254, %v3256
        %3304 = vadd.xlane.f32.xlu0 %v3303
        %v3305 = vpop.xlane.xlu0 %3304
        %v3306 = vadd.f32 %v3258, %v3260
        %3307 = vadd.xlane.f32.xlu0 %v3306
        %v3308 = vpop.xlane.xlu0 %3307
        %v3309 = vrcp.pop %v3263
        %v3310 = vrcp.pop %v3266
        %v3311 = vrcp.pop %v3269
        %v3312 = vrcp.pop %v3272
        %v3313 = vrcp.pop %v3275
        %v3314 = vrcp.pop %v3278
        %v3315 = vrcp.pop %v3281
        %v3316 = vrcp.pop %v3284
        %v3317 = vrcp.pop %v3287
        %v3318 = vrcp.pop %v3290
        %v3319 = vrcp.pop %v3293
        %v3320 = vrcp.pop %v3296
        %v3321 = vrcp.pop %v3299
        %v3322 = vrcp.pop %v3302
        %v3323 = vrcp.pop %v3305
        %v3324 = vrcp.pop %v3308
        %v3325 = vmul.f32 %v3198, %v3309
        %v3326 = vmul.f32 %v3200, %v3309
        %v3327 = vmul.f32 %v3202, %v3310
        %v3328 = vmul.f32 %v3204, %v3310
        %v3329 = vmul.f32 %v3206, %v3311
        %v3330 = vmul.f32 %v3208, %v3311
        %v3331 = vmul.f32 %v3210, %v3312
        %v3332 = vmul.f32 %v3212, %v3312
        %v3333 = vmul.f32 %v3214, %v3313
        %v3334 = vmul.f32 %v3216, %v3313
        %v3335 = vmul.f32 %v3218, %v3314
        %v3336 = vmul.f32 %v3220, %v3314
        %v3337 = vmul.f32 %v3222, %v3315
        %v3338 = vmul.f32 %v3224, %v3315
        %v3339 = vmul.f32 %v3226, %v3316
        %v3340 = vmul.f32 %v3228, %v3316
        %v3341 = vmul.f32 %v3230, %v3317
        %v3342 = vmul.f32 %v3232, %v3317
        %v3343 = vmul.f32 %v3234, %v3318
        %v3344 = vmul.f32 %v3236, %v3318
        %v3345 = vmul.f32 %v3238, %v3319
        %v3346 = vmul.f32 %v3240, %v3319
        %v3347 = vmul.f32 %v3242, %v3320
        %v3348 = vmul.f32 %v3244, %v3320
        %v3349 = vmul.f32 %v3246, %v3321
        %v3350 = vmul.f32 %v3248, %v3321
        %v3351 = vmul.f32 %v3250, %v3322
        %v3352 = vmul.f32 %v3252, %v3322
        %v3353 = vmul.f32 %v3254, %v3323
        %v3354 = vmul.f32 %v3256, %v3323
        %v3355 = vmul.f32 %v3258, %v3324
        %v3356 = vmul.f32 %v3260, %v3324
        %v3357 = vpack.c.bf16 %v3327, %v3325
        %v3358 = vpack.c.bf16 %v3328, %v3326
        %v3359 = vpack.c.bf16 %v3331, %v3329
        %v3360 = vpack.c.bf16 %v3332, %v3330
        %v3361 = vpack.c.bf16 %v3335, %v3333
        %v3362 = vpack.c.bf16 %v3336, %v3334
        %v3363 = vpack.c.bf16 %v3339, %v3337
        %v3364 = vpack.c.bf16 %v3340, %v3338
        %v3365 = vpack.c.bf16 %v3343, %v3341
        %v3366 = vpack.c.bf16 %v3344, %v3342
        %v3367 = vpack.c.bf16 %v3347, %v3345
        %v3368 = vpack.c.bf16 %v3348, %v3346
        %v3369 = vpack.c.bf16 %v3351, %v3349
        %v3370 = vpack.c.bf16 %v3352, %v3350
        %v3371 = vpack.c.bf16 %v3355, %v3353
        %v3372 = vpack.c.bf16 %v3356, %v3354
        %v3373 = vpack.c.bf16 %v2520, %v2516
        %v3374 = vpack.c.bf16 %v2522, %v2518
        %v3375 = vpack.c.bf16 %v2530, %v2526
        %v3376 = vpack.c.bf16 %v2532, %v2528
        %v3377 = vpack.c.bf16 %v2540, %v2536
        %v3378 = vpack.c.bf16 %v2542, %v2538
        %v3379 = vpack.c.bf16 %v2550, %v2546
        %v3380 = vpack.c.bf16 %v2552, %v2548
        %v3381 = vpack.c.bf16 %v2560, %v2556
        %v3382 = vpack.c.bf16 %v2562, %v2558
        %v3383 = vpack.c.bf16 %v2570, %v2566
        %v3384 = vpack.c.bf16 %v2572, %v2568
        %v3385 = vpack.c.bf16 %v2580, %v2576
        %v3386 = vpack.c.bf16 %v2582, %v2578
        %v3387 = vpack.c.bf16 %v2590, %v2586
        %v3388 = vpack.c.bf16 %v2592, %v2588
        %3389 = vmatprep.subr.bf16.mxu0 %v3374
        %3390 = vmatpush1.bf16.xpose.msra.mxu0 %v3373
        %3391 = vmatprep.subr.bf16.mxu0 %v3376
        %3392 = vmatpush1.bf16.xpose.msra.mxu0 %v3375
        %3393 = vmatprep.subr.bf16.mxu0 %v3378
        %3394 = vmatpush1.bf16.xpose.msra.mxu0 %v3377
        %3395 = vmatprep.subr.bf16.mxu0 %v3380
        %3396 = vmatpush1.bf16.xpose.msra.mxu0 %v3379
        %3397 = vmatprep.subr.bf16.mxu0 %v3382
        %3398 = vmatpush1.bf16.xpose.msra.mxu0 %v3381
        %3399 = vmatprep.subr.bf16.mxu0 %v3384
        %3400 = vmatpush1.bf16.xpose.msra.mxu0 %v3383
        %3401 = vmatprep.subr.bf16.mxu0 %v3386
        %3402 = vmatpush1.bf16.xpose.msra.mxu0 %v3385
        %3403 = vmatprep.subr.bf16.mxu0 %v3388
        %3404 = vmatpush1.bf16.xpose.msra.mxu0 %v3387
        %3405 = vmatprep.subr.bf16.mxu0 0
        %3406 = vmatpush1.bf16.xpose.msra.mxu0 0
        %3407 = vmatprep.subr.bf16.mxu0 0
        %3408 = vmatpush1.bf16.xpose.msra.mxu0 0
        %3409 = vmatprep.subr.bf16.mxu0 0
        %3410 = vmatpush1.bf16.xpose.msra.mxu0 0
        %3411 = vmatprep.subr.bf16.mxu0 0
        %3412 = vmatpush1.bf16.xpose.msra.mxu0 0
        %3413 = vmatprep.subr.bf16.mxu0 0
        %3414 = vmatpush1.bf16.xpose.msra.mxu0 0
        %3415 = vmatprep.subr.bf16.mxu0 0
        %3416 = vmatpush1.bf16.xpose.msra.mxu0 0
        %3417 = vmatprep.subr.bf16.mxu0 0
        %3418 = vmatpush1.bf16.xpose.msra.mxu0 0
        %3419 = vmatprep.subr.bf16.mxu0 0
        %3420 = vmatpush1.bf16.xpose.msra.mxu0 0
        %3421 = vmatprep.mubr.bf16.mxu0 %v3358
        %3422 = vmatmul.mubr.bf16.gmra.mrb[0].mxu0 %v3357
        %v3423 = vpop.f32.mrb[0].mxu0
        %v3424 = vadd.f32 0.0, %v3423
        %v3425 = vpop.f32.mrb[0].mxu0
        %v3426 = vpop.f32.mrb[0].mxu0
        %v3427 = vadd.f32 0.0, %v3426
        %v3428 = vpop.f32.mrb[0].mxu0
        %3429 = vmatprep.mubr.bf16.mxu0 %v3360
        %3430 = vmatmul.mubr.bf16.gmra.mrb[0].mxu0 %v3359
        %v3431 = vpop.f32.mrb[0].mxu0
        %v3432 = vadd.f32 0.0, %v3431
        %v3433 = vpop.f32.mrb[0].mxu0
        %v3434 = vpop.f32.mrb[0].mxu0
        %v3435 = vadd.f32 0.0, %v3434
        %v3436 = vpop.f32.mrb[0].mxu0
        %3437 = vmatprep.mubr.bf16.mxu0 %v3362
        %3438 = vmatmul.mubr.bf16.gmra.mrb[0].mxu0 %v3361
        %v3439 = vpop.f32.mrb[0].mxu0
        %v3440 = vadd.f32 0.0, %v3439
        %v3441 = vpop.f32.mrb[0].mxu0
        %v3442 = vpop.f32.mrb[0].mxu0
        %v3443 = vadd.f32 0.0, %v3442
        %v3444 = vpop.f32.mrb[0].mxu0
        %3445 = vmatprep.mubr.bf16.mxu0 %v3364
        %3446 = vmatmul.mubr.bf16.gmra.mrb[0].mxu0 %v3363
        %v3447 = vpop.f32.mrb[0].mxu0
        %v3448 = vadd.f32 0.0, %v3447
        %v3449 = vpop.f32.mrb[0].mxu0
        %v3450 = vpop.f32.mrb[0].mxu0
        %v3451 = vadd.f32 0.0, %v3450
        %v3452 = vpop.f32.mrb[0].mxu0
        %3453 = vmatprep.mubr.bf16.mxu0 %v3366
        %3454 = vmatmul.mubr.bf16.gmra.mrb[0].mxu0 %v3365
        %v3455 = vpop.f32.mrb[0].mxu0
        %v3456 = vadd.f32 0.0, %v3455
        %v3457 = vpop.f32.mrb[0].mxu0
        %v3458 = vpop.f32.mrb[0].mxu0
        %v3459 = vadd.f32 0.0, %v3458
        %v3460 = vpop.f32.mrb[0].mxu0
        %3461 = vmatprep.mubr.bf16.mxu0 %v3368
        %3462 = vmatmul.mubr.bf16.gmra.mrb[0].mxu0 %v3367
        %v3463 = vpop.f32.mrb[0].mxu0
        %v3464 = vadd.f32 0.0, %v3463
        %v3465 = vpop.f32.mrb[0].mxu0
        %v3466 = vpop.f32.mrb[0].mxu0
        %v3467 = vadd.f32 0.0, %v3466
        %v3468 = vpop.f32.mrb[0].mxu0
        %3469 = vmatprep.mubr.bf16.mxu0 %v3370
        %3470 = vmatmul.mubr.bf16.gmra.mrb[0].mxu0 %v3369
        %v3471 = vpop.f32.mrb[0].mxu0
        %v3472 = vadd.f32 0.0, %v3471
        %v3473 = vpop.f32.mrb[0].mxu0
        %v3474 = vpop.f32.mrb[0].mxu0
        %v3475 = vadd.f32 0.0, %v3474
        %v3476 = vpop.f32.mrb[0].mxu0
        %3477 = vmatprep.mubr.bf16.mxu0 %v3372
        %3478 = vmatmul.mubr.bf16.gmra.mrb[0].mxu0 %v3371
        %v3479 = vpop.f32.mrb[0].mxu0
        %v3480 = vadd.f32 0.0, %v3479
        %v3481 = vpop.f32.mrb[0].mxu0
        %v3482 = vpop.f32.mrb[0].mxu0
        %v3483 = vadd.f32 0.0, %v3482
        %v3484 = vpop.f32.mrb[0].mxu0
        %3485 = vdwg.mxu0
        %v3486 = vmul.f32 %v3424, %v446
        %v3487 = vmul.f32 %v3427, %v447
        %v3488 = vmul.f32 %v3432, %v448
        %v3489 = vmul.f32 %v3435, %v449
        %v3490 = vmul.f32 %v3440, %v450
        %v3491 = vmul.f32 %v3443, %v451
        %v3492 = vmul.f32 %v3448, %v452
        %v3493 = vmul.f32 %v3451, %v453
        %v3494 = vmul.f32 %v3456, %v454
        %v3495 = vmul.f32 %v3459, %v455
        %v3496 = vmul.f32 %v3464, %v456
        %v3497 = vmul.f32 %v3467, %v457
        %v3498 = vmul.f32 %v3472, %v458
        %v3499 = vmul.f32 %v3475, %v459
        %v3500 = vmul.f32 %v3480, %v460
        %v3501 = vmul.f32 %v3483, %v461
        %v3502 = vpack.c.bf16 %v3487, %v3486
        %v3503 = vpack.c.bf16 %v3489, %v3488
        %v3504 = vpack.c.bf16 %v3491, %v3490
        %v3505 = vpack.c.bf16 %v3493, %v3492
        %v3506 = vpack.c.bf16 %v3495, %v3494
        %v3507 = vpack.c.bf16 %v3497, %v3496
        %v3508 = vpack.c.bf16 %v3499, %v3498
        %v3509 = vpack.c.bf16 %v3501, %v3500
        %3510 = vxpose.xlu0.c.b16.start [1/8] %v3502, 128
        %3511 = vxpose.xlu0.c.b16.cont [2/8] %v3503, 128
        %3512 = vxpose.xlu0.c.b16.cont [3/8] %v3504, 128
        %3513 = vxpose.xlu0.c.b16.cont [4/8] %v3505, 128
        %3514 = vxpose.xlu0.c.b16.cont [5/8] %v3506, 128
        %3515 = vxpose.xlu0.c.b16.cont [6/8] %v3507, 128
        %3516 = vxpose.xlu0.c.b16.cont [7/8] %v3508, 128
        %3517 = vxpose.xlu0.c.b16.end [8/8] %v3509, 128
        %v3518 = vpop.trf.xlu0
        %v3519 = vpop.trf.xlu0
        %v3520 = vpop.trf.xlu0
        %v3521 = vpop.trf.xlu0
        %v3522 = vpop.trf.xlu0
        %v3523 = vpop.trf.xlu0
        %v3524 = vpop.trf.xlu0
        %v3525 = vpop.trf.xlu0
        %3526 = vmatprep.subr.bf16.mxu0 %v3102
        %3527 = vmatpush1.bf16.msra.mxu0 %v3101
        %3528 = vmatprep.subr.bf16.mxu0 %v3104
        %3529 = vmatpush1.bf16.msra.mxu0 %v3103
        %3530 = vmatprep.subr.bf16.mxu0 %v3106
        %3531 = vmatpush1.bf16.msra.mxu0 %v3105
        %3532 = vmatprep.subr.bf16.mxu0 %v3108
        %3533 = vmatpush1.bf16.msra.mxu0 %v3107
        %3534 = vmatprep.subr.bf16.mxu0 %v3110
        %3535 = vmatpush1.bf16.msra.mxu0 %v3109
        %3536 = vmatprep.subr.bf16.mxu0 %v3112
        %3537 = vmatpush1.bf16.msra.mxu0 %v3111
        %3538 = vmatprep.subr.bf16.mxu0 %v3114
        %3539 = vmatpush1.bf16.msra.mxu0 %v3113
        %3540 = vmatprep.subr.bf16.mxu0 %v3116
        %3541 = vmatpush1.bf16.msra.mxu0 %v3115
        %3542 = vmatprep.subr.bf16.mxu0 0
        %3543 = vmatpush1.bf16.msra.mxu0 0
        %3544 = vmatprep.subr.bf16.mxu0 0
        %3545 = vmatpush1.bf16.msra.mxu0 0
        %3546 = vmatprep.subr.bf16.mxu0 0
        %3547 = vmatpush1.bf16.msra.mxu0 0
        %3548 = vmatprep.subr.bf16.mxu0 0
        %3549 = vmatpush1.bf16.msra.mxu0 0
        %3550 = vmatprep.subr.bf16.mxu0 0
        %3551 = vmatpush1.bf16.msra.mxu0 0
        %3552 = vmatprep.subr.bf16.mxu0 0
        %3553 = vmatpush1.bf16.msra.mxu0 0
        %3554 = vmatprep.subr.bf16.mxu0 0
        %3555 = vmatpush1.bf16.msra.mxu0 0
        %3556 = vmatprep.subr.bf16.mxu0 0
        %3557 = vmatpush1.bf16.msra.mxu0 0
        %3558 = vmatprep.mubr.bf16.mxu0 0
        %3559 = vmatmul.mubr.bf16.gmra.mrb[0].mxu0 %v3518
        %v3560 = vpop.f32.mrb[0].mxu0
        %v3561 = vadd.f32 0.0, %v3560
        %v3562 = vpop.f32.mrb[0].mxu0
        %v3563 = vadd.f32 0.0, %v3562
        %v3564 = vpop.f32.mrb[0].mxu0
        %v3565 = vadd.f32 0.0, %v3564
        %v3566 = vpop.f32.mrb[0].mxu0
        %v3567 = vadd.f32 0.0, %v3566
        %3568 = vmatprep.mubr.bf16.mxu0 0
        %3569 = vmatmul.mubr.bf16.gmra.mrb[0].mxu0 %v3519
        %v3570 = vpop.f32.mrb[0].mxu0
        %v3571 = vadd.f32 0.0, %v3570
        %v3572 = vpop.f32.mrb[0].mxu0
        %v3573 = vadd.f32 0.0, %v3572
        %v3574 = vpop.f32.mrb[0].mxu0
        %v3575 = vadd.f32 0.0, %v3574
        %v3576 = vpop.f32.mrb[0].mxu0
        %v3577 = vadd.f32 0.0, %v3576
        %3578 = vmatprep.mubr.bf16.mxu0 0
        %3579 = vmatmul.mubr.bf16.gmra.mrb[0].mxu0 %v3520
        %v3580 = vpop.f32.mrb[0].mxu0
        %v3581 = vadd.f32 0.0, %v3580
        %v3582 = vpop.f32.mrb[0].mxu0
        %v3583 = vadd.f32 0.0, %v3582
        %v3584 = vpop.f32.mrb[0].mxu0
        %v3585 = vadd.f32 0.0, %v3584
        %v3586 = vpop.f32.mrb[0].mxu0
        %v3587 = vadd.f32 0.0, %v3586
        %3588 = vmatprep.mubr.bf16.mxu0 0
        %3589 = vmatmul.mubr.bf16.gmra.mrb[0].mxu0 %v3521
        %v3590 = vpop.f32.mrb[0].mxu0
        %v3591 = vadd.f32 0.0, %v3590
        %v3592 = vpop.f32.mrb[0].mxu0
        %v3593 = vadd.f32 0.0, %v3592
        %v3594 = vpop.f32.mrb[0].mxu0
        %v3595 = vadd.f32 0.0, %v3594
        %v3596 = vpop.f32.mrb[0].mxu0
        %v3597 = vadd.f32 0.0, %v3596
        %3598 = vmatprep.mubr.bf16.mxu0 0
        %3599 = vmatmul.mubr.bf16.gmra.mrb[0].mxu0 %v3522
        %v3600 = vpop.f32.mrb[0].mxu0
        %v3601 = vadd.f32 0.0, %v3600
        %v3602 = vpop.f32.mrb[0].mxu0
        %v3603 = vadd.f32 0.0, %v3602
        %v3604 = vpop.f32.mrb[0].mxu0
        %v3605 = vadd.f32 0.0, %v3604
        %v3606 = vpop.f32.mrb[0].mxu0
        %v3607 = vadd.f32 0.0, %v3606
        %3608 = vmatprep.mubr.bf16.mxu0 0
        %3609 = vmatmul.mubr.bf16.gmra.mrb[0].mxu0 %v3523
        %v3610 = vpop.f32.mrb[0].mxu0
        %v3611 = vadd.f32 0.0, %v3610
        %v3612 = vpop.f32.mrb[0].mxu0
        %v3613 = vadd.f32 0.0, %v3612
        %v3614 = vpop.f32.mrb[0].mxu0
        %v3615 = vadd.f32 0.0, %v3614
        %v3616 = vpop.f32.mrb[0].mxu0
        %v3617 = vadd.f32 0.0, %v3616
        %3618 = vmatprep.mubr.bf16.mxu0 0
        %3619 = vmatmul.mubr.bf16.gmra.mrb[0].mxu0 %v3524
        %v3620 = vpop.f32.mrb[0].mxu0
        %v3621 = vadd.f32 0.0, %v3620
        %v3622 = vpop.f32.mrb[0].mxu0
        %v3623 = vadd.f32 0.0, %v3622
        %v3624 = vpop.f32.mrb[0].mxu0
        %v3625 = vadd.f32 0.0, %v3624
        %v3626 = vpop.f32.mrb[0].mxu0
        %v3627 = vadd.f32 0.0, %v3626
        %3628 = vmatprep.mubr.bf16.mxu0 0
        %3629 = vmatmul.mubr.bf16.gmra.mrb[0].mxu0 %v3525
        %v3630 = vpop.f32.mrb[0].mxu0
        %v3631 = vadd.f32 0.0, %v3630
        %v3632 = vpop.f32.mrb[0].mxu0
        %v3633 = vadd.f32 0.0, %v3632
        %v3634 = vpop.f32.mrb[0].mxu0
        %v3635 = vadd.f32 0.0, %v3634
        %v3636 = vpop.f32.mrb[0].mxu0
        %v3637 = vadd.f32 0.0, %v3636
        %3638 = vdwg.mxu0
        %v3639 = vpack.c.bf16 %v3565, %v3561
        %v3640 = vpack.c.bf16 %v3567, %v3563
        %v3641 = vpack.c.bf16 %v3575, %v3571
        %v3642 = vpack.c.bf16 %v3577, %v3573
        %v3643 = vpack.c.bf16 %v3585, %v3581
        %v3644 = vpack.c.bf16 %v3587, %v3583
        %v3645 = vpack.c.bf16 %v3595, %v3591
        %v3646 = vpack.c.bf16 %v3597, %v3593
        %v3647 = vpack.c.bf16 %v3605, %v3601
        %v3648 = vpack.c.bf16 %v3607, %v3603
        %v3649 = vpack.c.bf16 %v3615, %v3611
        %v3650 = vpack.c.bf16 %v3617, %v3613
        %v3651 = vpack.c.bf16 %v3625, %v3621
        %v3652 = vpack.c.bf16 %v3627, %v3623
        %v3653 = vpack.c.bf16 %v3635, %v3631
        %v3654 = vpack.c.bf16 %v3637, %v3633
        %3655 = vmatprep.subr.bf16.mxu0 %v3640
        %3656 = vmatpush1.bf16.msra.mxu0 %v3639
        %3657 = vmatprep.subr.bf16.mxu0 %v3642
        %3658 = vmatpush1.bf16.msra.mxu0 %v3641
        %3659 = vmatprep.subr.bf16.mxu0 %v3644
        %3660 = vmatpush1.bf16.msra.mxu0 %v3643
        %3661 = vmatprep.subr.bf16.mxu0 %v3646
        %3662 = vmatpush1.bf16.msra.mxu0 %v3645
        %3663 = vmatprep.subr.bf16.mxu0 %v3648
        %3664 = vmatpush1.bf16.msra.mxu0 %v3647
        %3665 = vmatprep.subr.bf16.mxu0 %v3650
        %3666 = vmatpush1.bf16.msra.mxu0 %v3649
        %3667 = vmatprep.subr.bf16.mxu0 %v3652
        %3668 = vmatpush1.bf16.msra.mxu0 %v3651
        %3669 = vmatprep.subr.bf16.mxu0 %v3654
        %3670 = vmatpush1.bf16.msra.mxu0 %v3653
        %3671 = vmatprep.subr.bf16.mxu0 0
        %3672 = vmatpush1.bf16.msra.mxu0 0
        %3673 = vmatprep.subr.bf16.mxu0 0
        %3674 = vmatpush1.bf16.msra.mxu0 0
        %3675 = vmatprep.subr.bf16.mxu0 0
        %3676 = vmatpush1.bf16.msra.mxu0 0
        %3677 = vmatprep.subr.bf16.mxu0 0
        %3678 = vmatpush1.bf16.msra.mxu0 0
        %3679 = vmatprep.subr.bf16.mxu0 0
        %3680 = vmatpush1.bf16.msra.mxu0 0
        %3681 = vmatprep.subr.bf16.mxu0 0
        %3682 = vmatpush1.bf16.msra.mxu0 0
        %3683 = vmatprep.subr.bf16.mxu0 0
        %3684 = vmatpush1.bf16.msra.mxu0 0
        %3685 = vmatprep.subr.bf16.mxu0 0
        %3686 = vmatpush1.bf16.msra.mxu0 0
        %3687 = vmatprep.mubr.bf16.mxu0 0
        %3688 = vmatmul.mubr.bf16.gmra.mrb[0].mxu0 %v440
        %v3689 = vpop.f32.mrb[0].mxu0
        %v3690 = vadd.f32 %v2159, %v3689
        %v3691 = vpop.f32.mrb[0].mxu0
        %v3692 = vadd.f32 %v2159, %v3691
        %v3693 = vpop.f32.mrb[0].mxu0
        %v3694 = vpop.f32.mrb[0].mxu0
        %3695 = vdwg.mxu0
        %v3696 = vsel %vm483, %v3690, 0.0
        %v3697 = vsel %vm483, %v3692, 0.0
        %v3698 = vadd.f32 %v3696, %v3697
        %3699 = vadd.xlane.f32.xlu0 %v3698
        %v3700 = vpop.xlane.xlu0 %3699
        %v3701 = vrot.slane %v3700, 4
        %v3702 = vadd.f32 %v3700, %v3701
        %v3703 = vrot.slane %v3702, 2
        %v3704 = vadd.f32 %v3702, %v3703
        %v3705 = vrot.slane %v3704, 1
        %v3706 = vadd.f32 %v3704, %v3705
        %s3707 = vtos %v3706
        %v3708 = vmul.f32 %v3690, %v3690
        %v3709 = vmul.f32 %v3692, %v3692
        %v3710 = vsel %vm483, %v3708, 0.0
        %v3711 = vsel %vm483, %v3709, 0.0
        %v3712 = vadd.f32 %v3710, %v3711
        %3713 = vadd.xlane.f32.xlu0 %v3712
        %v3714 = vpop.xlane.xlu0 %3713
        %v3715 = vrot.slane %v3714, 4
        %v3716 = vadd.f32 %v3714, %v3715
        %v3717 = vrot.slane %v3716, 2
        %v3718 = vadd.f32 %v3716, %v3717
        %v3719 = vrot.slane %v3718, 1
        %v3720 = vadd.f32 %v3718, %v3719
        %s3721 = vtos %v3720
        %s3722 = smul.f32 %s3707, 0.0009765625
        %s3723 = smul.f32 %s3721, 0.0009765625
        %s3724 = smul.f32 %s3722, %s3722
        %s3725 = ssub.f32 %s3723, %s3724
        %s3726 = smax.f32 %s3725, 0.0
        %v3727 = vstv %s3722
        %v3728 = vsub.f32 %v3690, %v3727
        %v3729 = vsub.f32 %v3692, %v3727
        %s3730 = sadd.f32 %s3726, 1e-05
        %v3731 = vstv %s3730
        %v3732 = vrsqrt.pop %v3731
        %s3733 = vtos %v3732
        %v3734 = vstv %s3733
        %v3735 = vmul.f32 %v3728, %v3734
        %v3736 = vmul.f32 %v3729, %v3734
        %v3737 = vmul.f32 %v3735, %v2246
        %v3738 = vmul.f32 %v3736, %v2246
        %v3739 = vadd.f32 %v3737, %v2253
        %v3740 = vadd.f32 %v3738, %v2253
        %v3743 = vcombine.low %v3739, %v3740
        %s3745 = scalar_lea.vmem %s382, 8 [#allocation2]
        %3746 = vst [vmem:[%s3745] sm:$0xff] %v3743
        %s3747 = scalar_lea.vmem %s388, 16
        %v3748 = vld [vmem:[%s3747] sm:$0xff]
        %v3750 = vcombine.high %v3748, %v3748
        %v3752 = vsel %vm483, %v3748, 0.0
        %v3753 = vsel %vm483, %v3750, 0.0
        %v3754 = vadd.f32 %v3752, %v3753
        %3755 = vadd.xlane.f32.xlu0 %v3754
        %v3756 = vpop.xlane.xlu0 %3755
        %v3757 = vrot.slane %v3756, 4
        %v3758 = vadd.f32 %v3756, %v3757
        %v3759 = vrot.slane %v3758, 2
        %v3760 = vadd.f32 %v3758, %v3759
        %v3761 = vrot.slane %v3760, 1
        %v3762 = vadd.f32 %v3760, %v3761
        %s3763 = vtos %v3762
        %v3764 = vmul.f32 %v3748, %v3748
        %v3766 = vcombine.high %v3764, %v3764
        %v3768 = vsel %vm483, %v3764, 0.0
        %v3769 = vsel %vm483, %v3766, 0.0
        %v3770 = vadd.f32 %v3768, %v3769
        %3771 = vadd.xlane.f32.xlu0 %v3770
        %v3772 = vpop.xlane.xlu0 %3771
        %v3773 = vrot.slane %v3772, 4
        %v3774 = vadd.f32 %v3772, %v3773
        %v3775 = vrot.slane %v3774, 2
        %v3776 = vadd.f32 %v3774, %v3775
        %v3777 = vrot.slane %v3776, 1
        %v3778 = vadd.f32 %v3776, %v3777
        %s3779 = vtos %v3778
        %s3780 = smul.f32 %s3763, 0.0009765625
        %s3781 = smul.f32 %s3779, 0.0009765625
        %s3782 = smul.f32 %s3780, %s3780
        %s3783 = ssub.f32 %s3781, %s3782
        %s3784 = smax.f32 %s3783, 0.0
        %v3785 = vstv %s3780
        %v3786 = vsub.f32 %v3748, %v3785
        %s3787 = sadd.f32 %s3784, 1e-05
        %v3788 = vstv %s3787
        %v3789 = vrsqrt.pop %v3788
        %s3790 = vtos %v3789
        %v3791 = vstv %s3790
        %v3792 = vmul.f32 %v3786, %v3791
        %v3793 = vmul.f32 %v3792, %v535
        %v3794 = vadd.f32 %v3793, %v548
        %v3796 = vcombine.high %v3794, %v3794
        %v3798 = vpack.c.bf16 %v3794, %v3794
        %v3799 = vpack.c.bf16 %v3796, %v3796
        %v3801 = vsel %vm749, %v3798, 0
        %v3804 = vsel %vm749, %v3799, 0
        %3806 = vmatprep.subr.bf16.mxu0 %v3804
        %3807 = vmatpush1.bf16.msra.mxu0 %v3801
        %3808 = vmatprep.subr.bf16.mxu0 0
        %3809 = vmatpush1.bf16.msra.mxu0 0
        %3810 = vmatprep.subr.bf16.mxu0 0
        %3811 = vmatpush1.bf16.msra.mxu0 0
        %3812 = vmatprep.subr.bf16.mxu0 0
        %3813 = vmatpush1.bf16.msra.mxu0 0
        %3814 = vmatprep.subr.bf16.mxu0 0
        %3815 = vmatpush1.bf16.msra.mxu0 0
        %3816 = vmatprep.subr.bf16.mxu0 0
        %3817 = vmatpush1.bf16.msra.mxu0 0
        %3818 = vmatprep.subr.bf16.mxu0 0
        %3819 = vmatpush1.bf16.msra.mxu0 0
        %3820 = vmatprep.subr.bf16.mxu0 0
        %3821 = vmatpush1.bf16.msra.mxu0 0
        %3822 = vmatprep.subr.bf16.mxu0 0
        %3823 = vmatpush1.bf16.msra.mxu0 0
        %3824 = vmatprep.subr.bf16.mxu0 0
        %3825 = vmatpush1.bf16.msra.mxu0 0
        %3826 = vmatprep.subr.bf16.mxu0 0
        %3827 = vmatpush1.bf16.msra.mxu0 0
        %3828 = vmatprep.subr.bf16.mxu0 0
        %3829 = vmatpush1.bf16.msra.mxu0 0
        %3830 = vmatprep.subr.bf16.mxu0 0
        %3831 = vmatpush1.bf16.msra.mxu0 0
        %3832 = vmatprep.subr.bf16.mxu0 0
        %3833 = vmatpush1.bf16.msra.mxu0 0
        %3834 = vmatprep.subr.bf16.mxu0 0
        %3835 = vmatpush1.bf16.msra.mxu0 0
        %3836 = vmatprep.subr.bf16.mxu0 0
        %3837 = vmatpush1.bf16.msra.mxu0 0
        %3838 = vmatprep.mubr.bf16.mxu0 0
        %3839 = vmatmul.mubr.bf16.gmra.mrb[0].mxu0 %v678
        %v3840 = vpop.f32.mrb[0].mxu0
        %v3841 = vadd.f32 0.0, %v3840
        %v3842 = vpop.f32.mrb[0].mxu0
        %v3843 = vadd.f32 0.0, %v3842
        %v3844 = vpop.f32.mrb[0].mxu0
        %v3845 = vadd.f32 0.0, %v3844
        %v3846 = vpop.f32.mrb[0].mxu0
        %v3847 = vadd.f32 0.0, %v3846
        %3848 = vmatprep.mubr.bf16.mxu0 0
        %3849 = vmatmul.mubr.bf16.gmra.mrb[0].mxu0 %v681
        %v3850 = vpop.f32.mrb[0].mxu0
        %v3851 = vadd.f32 0.0, %v3850
        %v3852 = vpop.f32.mrb[0].mxu0
        %v3853 = vadd.f32 0.0, %v3852
        %v3854 = vpop.f32.mrb[0].mxu0
        %v3855 = vadd.f32 0.0, %v3854
        %v3856 = vpop.f32.mrb[0].mxu0
        %v3857 = vadd.f32 0.0, %v3856
        %3858 = vmatprep.mubr.bf16.mxu0 0
        %3859 = vmatmul.mubr.bf16.gmra.mrb[0].mxu0 %v684
        %v3860 = vpop.f32.mrb[0].mxu0
        %v3861 = vadd.f32 0.0, %v3860
        %v3862 = vpop.f32.mrb[0].mxu0
        %v3863 = vadd.f32 0.0, %v3862
        %v3864 = vpop.f32.mrb[0].mxu0
        %v3865 = vadd.f32 0.0, %v3864
        %v3866 = vpop.f32.mrb[0].mxu0
        %v3867 = vadd.f32 0.0, %v3866
        %3868 = vmatprep.mubr.bf16.mxu0 0
        %3869 = vmatmul.mubr.bf16.gmra.mrb[0].mxu0 %v687
        %v3870 = vpop.f32.mrb[0].mxu0
        %v3871 = vadd.f32 0.0, %v3870
        %v3872 = vpop.f32.mrb[0].mxu0
        %v3873 = vadd.f32 0.0, %v3872
        %v3874 = vpop.f32.mrb[0].mxu0
        %v3875 = vadd.f32 0.0, %v3874
        %v3876 = vpop.f32.mrb[0].mxu0
        %v3877 = vadd.f32 0.0, %v3876
        %3878 = vmatprep.mubr.bf16.mxu0 0
        %3879 = vmatmul.mubr.bf16.gmra.mrb[0].mxu0 %v690
        %v3880 = vpop.f32.mrb[0].mxu0
        %v3881 = vadd.f32 0.0, %v3880
        %v3882 = vpop.f32.mrb[0].mxu0
        %v3883 = vadd.f32 0.0, %v3882
        %v3884 = vpop.f32.mrb[0].mxu0
        %v3885 = vadd.f32 0.0, %v3884
        %v3886 = vpop.f32.mrb[0].mxu0
        %v3887 = vadd.f32 0.0, %v3886
        %3888 = vmatprep.mubr.bf16.mxu0 0
        %3889 = vmatmul.mubr.bf16.gmra.mrb[0].mxu0 %v693
        %v3890 = vpop.f32.mrb[0].mxu0
        %v3891 = vadd.f32 0.0, %v3890
        %v3892 = vpop.f32.mrb[0].mxu0
        %v3893 = vadd.f32 0.0, %v3892
        %v3894 = vpop.f32.mrb[0].mxu0
        %v3895 = vadd.f32 0.0, %v3894
        %v3896 = vpop.f32.mrb[0].mxu0
        %v3897 = vadd.f32 0.0, %v3896
        %3898 = vmatprep.mubr.bf16.mxu0 0
        %3899 = vmatmul.mubr.bf16.gmra.mrb[0].mxu0 %v696
        %v3900 = vpop.f32.mrb[0].mxu0
        %v3901 = vadd.f32 0.0, %v3900
        %v3902 = vpop.f32.mrb[0].mxu0
        %v3903 = vadd.f32 0.0, %v3902
        %v3904 = vpop.f32.mrb[0].mxu0
        %v3905 = vadd.f32 0.0, %v3904
        %v3906 = vpop.f32.mrb[0].mxu0
        %v3907 = vadd.f32 0.0, %v3906
        %3908 = vmatprep.mubr.bf16.mxu0 0
        %3909 = vmatmul.mubr.bf16.gmra.mrb[0].mxu0 %v699
        %v3910 = vpop.f32.mrb[0].mxu0
        %v3911 = vadd.f32 0.0, %v3910
        %v3912 = vpop.f32.mrb[0].mxu0
        %v3913 = vadd.f32 0.0, %v3912
        %v3914 = vpop.f32.mrb[0].mxu0
        %v3915 = vadd.f32 0.0, %v3914
        %v3916 = vpop.f32.mrb[0].mxu0
        %v3917 = vadd.f32 0.0, %v3916
        %3918 = vmatprep.mubr.bf16.mxu0 0
        %3919 = vmatmul.mubr.bf16.gmra.mrb[0].mxu0 %v702
        %v3920 = vpop.f32.mrb[0].mxu0
        %v3921 = vadd.f32 0.0, %v3920
        %v3922 = vpop.f32.mrb[0].mxu0
        %v3923 = vadd.f32 0.0, %v3922
        %v3924 = vpop.f32.mrb[0].mxu0
        %v3925 = vadd.f32 0.0, %v3924
        %v3926 = vpop.f32.mrb[0].mxu0
        %v3927 = vadd.f32 0.0, %v3926
        %3928 = vmatprep.mubr.bf16.mxu0 0
        %3929 = vmatmul.mubr.bf16.gmra.mrb[0].mxu0 %v705
        %v3930 = vpop.f32.mrb[0].mxu0
        %v3931 = vadd.f32 0.0, %v3930
        %v3932 = vpop.f32.mrb[0].mxu0
        %v3933 = vadd.f32 0.0, %v3932
        %v3934 = vpop.f32.mrb[0].mxu0
        %v3935 = vadd.f32 0.0, %v3934
        %v3936 = vpop.f32.mrb[0].mxu0
        %v3937 = vadd.f32 0.0, %v3936
        %3938 = vmatprep.mubr.bf16.mxu0 0
        %3939 = vmatmul.mubr.bf16.gmra.mrb[0].mxu0 %v708
        %v3940 = vpop.f32.mrb[0].mxu0
        %v3941 = vadd.f32 0.0, %v3940
        %v3942 = vpop.f32.mrb[0].mxu0
        %v3943 = vadd.f32 0.0, %v3942
        %v3944 = vpop.f32.mrb[0].mxu0
        %v3945 = vadd.f32 0.0, %v3944
        %v3946 = vpop.f32.mrb[0].mxu0
        %v3947 = vadd.f32 0.0, %v3946
        %3948 = vmatprep.mubr.bf16.mxu0 0
        %3949 = vmatmul.mubr.bf16.gmra.mrb[0].mxu0 %v711
        %v3950 = vpop.f32.mrb[0].mxu0
        %v3951 = vadd.f32 0.0, %v3950
        %v3952 = vpop.f32.mrb[0].mxu0
        %v3953 = vadd.f32 0.0, %v3952
        %v3954 = vpop.f32.mrb[0].mxu0
        %v3955 = vadd.f32 0.0, %v3954
        %v3956 = vpop.f32.mrb[0].mxu0
        %v3957 = vadd.f32 0.0, %v3956
        %3958 = vmatprep.mubr.bf16.mxu0 0
        %3959 = vmatmul.mubr.bf16.gmra.mrb[0].mxu0 %v714
        %v3960 = vpop.f32.mrb[0].mxu0
        %v3961 = vadd.f32 0.0, %v3960
        %v3962 = vpop.f32.mrb[0].mxu0
        %v3963 = vadd.f32 0.0, %v3962
        %v3964 = vpop.f32.mrb[0].mxu0
        %v3965 = vadd.f32 0.0, %v3964
        %v3966 = vpop.f32.mrb[0].mxu0
        %v3967 = vadd.f32 0.0, %v3966
        %3968 = vmatprep.mubr.bf16.mxu0 0
        %3969 = vmatmul.mubr.bf16.gmra.mrb[0].mxu0 %v717
        %v3970 = vpop.f32.mrb[0].mxu0
        %v3971 = vadd.f32 0.0, %v3970
        %v3972 = vpop.f32.mrb[0].mxu0
        %v3973 = vadd.f32 0.0, %v3972
        %v3974 = vpop.f32.mrb[0].mxu0
        %v3975 = vadd.f32 0.0, %v3974
        %v3976 = vpop.f32.mrb[0].mxu0
        %v3977 = vadd.f32 0.0, %v3976
        %3978 = vmatprep.mubr.bf16.mxu0 0
        %3979 = vmatmul.mubr.bf16.gmra.mrb[0].mxu0 %v720
        %v3980 = vpop.f32.mrb[0].mxu0
        %v3981 = vadd.f32 0.0, %v3980
        %v3982 = vpop.f32.mrb[0].mxu0
        %v3983 = vadd.f32 0.0, %v3982
        %v3984 = vpop.f32.mrb[0].mxu0
        %v3985 = vadd.f32 0.0, %v3984
        %v3986 = vpop.f32.mrb[0].mxu0
        %v3987 = vadd.f32 0.0, %v3986
        %3988 = vmatprep.mubr.bf16.mxu0 0
        %3989 = vmatmul.mubr.bf16.gmra.mrb[0].mxu0 %v723
        %v3990 = vpop.f32.mrb[0].mxu0
        %v3991 = vadd.f32 0.0, %v3990
        %v3992 = vpop.f32.mrb[0].mxu0
        %v3993 = vadd.f32 0.0, %v3992
        %v3994 = vpop.f32.mrb[0].mxu0
        %v3995 = vadd.f32 0.0, %v3994
        %v3996 = vpop.f32.mrb[0].mxu0
        %v3997 = vadd.f32 0.0, %v3996
        %3998 = vmatprep.mubr.bf16.mxu0 0
        %3999 = vmatmul.mubr.bf16.gmra.mrb[0].mxu0 %v726
        %v4000 = vpop.f32.mrb[0].mxu0
        %v4001 = vadd.f32 0.0, %v4000
        %v4002 = vpop.f32.mrb[0].mxu0
        %v4003 = vadd.f32 0.0, %v4002
        %v4004 = vpop.f32.mrb[0].mxu0
        %v4005 = vadd.f32 0.0, %v4004
        %v4006 = vpop.f32.mrb[0].mxu0
        %v4007 = vadd.f32 0.0, %v4006
        %4008 = vmatprep.mubr.bf16.mxu0 0
        %4009 = vmatmul.mubr.bf16.gmra.mrb[0].mxu0 %v729
        %v4010 = vpop.f32.mrb[0].mxu0
        %v4011 = vadd.f32 0.0, %v4010
        %v4012 = vpop.f32.mrb[0].mxu0
        %v4013 = vadd.f32 0.0, %v4012
        %v4014 = vpop.f32.mrb[0].mxu0
        %v4015 = vadd.f32 0.0, %v4014
        %v4016 = vpop.f32.mrb[0].mxu0
        %v4017 = vadd.f32 0.0, %v4016
        %4018 = vmatprep.mubr.bf16.mxu0 0
        %4019 = vmatmul.mubr.bf16.gmra.mrb[0].mxu0 %v732
        %v4020 = vpop.f32.mrb[0].mxu0
        %v4021 = vadd.f32 0.0, %v4020
        %v4022 = vpop.f32.mrb[0].mxu0
        %v4023 = vadd.f32 0.0, %v4022
        %v4024 = vpop.f32.mrb[0].mxu0
        %v4025 = vadd.f32 0.0, %v4024
        %v4026 = vpop.f32.mrb[0].mxu0
        %v4027 = vadd.f32 0.0, %v4026
        %4028 = vmatprep.mubr.bf16.mxu0 0
        %4029 = vmatmul.mubr.bf16.gmra.mrb[0].mxu0 %v735
        %v4030 = vpop.f32.mrb[0].mxu0
        %v4031 = vadd.f32 0.0, %v4030
        %v4032 = vpop.f32.mrb[0].mxu0
        %v4033 = vadd.f32 0.0, %v4032
        %v4034 = vpop.f32.mrb[0].mxu0
        %v4035 = vadd.f32 0.0, %v4034
        %v4036 = vpop.f32.mrb[0].mxu0
        %v4037 = vadd.f32 0.0, %v4036
        %4038 = vmatprep.mubr.bf16.mxu0 0
        %4039 = vmatmul.mubr.bf16.gmra.mrb[0].mxu0 %v738
        %v4040 = vpop.f32.mrb[0].mxu0
        %v4041 = vadd.f32 0.0, %v4040
        %v4042 = vpop.f32.mrb[0].mxu0
        %v4043 = vadd.f32 0.0, %v4042
        %v4044 = vpop.f32.mrb[0].mxu0
        %v4045 = vadd.f32 0.0, %v4044
        %v4046 = vpop.f32.mrb[0].mxu0
        %v4047 = vadd.f32 0.0, %v4046
        %4048 = vmatprep.mubr.bf16.mxu0 0
        %4049 = vmatmul.mubr.bf16.gmra.mrb[0].mxu0 %v741
        %v4050 = vpop.f32.mrb[0].mxu0
        %v4051 = vadd.f32 0.0, %v4050
        %v4052 = vpop.f32.mrb[0].mxu0
        %v4053 = vadd.f32 0.0, %v4052
        %v4054 = vpop.f32.mrb[0].mxu0
        %v4055 = vadd.f32 0.0, %v4054
        %v4056 = vpop.f32.mrb[0].mxu0
        %v4057 = vadd.f32 0.0, %v4056
        %4058 = vmatprep.mubr.bf16.mxu0 0
        %4059 = vmatmul.mubr.bf16.gmra.mrb[0].mxu0 %v744
        %v4060 = vpop.f32.mrb[0].mxu0
        %v4061 = vadd.f32 0.0, %v4060
        %v4062 = vpop.f32.mrb[0].mxu0
        %v4063 = vadd.f32 0.0, %v4062
        %v4064 = vpop.f32.mrb[0].mxu0
        %v4065 = vadd.f32 0.0, %v4064
        %v4066 = vpop.f32.mrb[0].mxu0
        %v4067 = vadd.f32 0.0, %v4066
        %4068 = vmatprep.mubr.bf16.mxu0 0
        %4069 = vmatmul.mubr.bf16.gmra.mrb[0].mxu0 %v747
        %v4070 = vpop.f32.mrb[0].mxu0
        %v4071 = vadd.f32 0.0, %v4070
        %v4072 = vpop.f32.mrb[0].mxu0
        %v4073 = vadd.f32 0.0, %v4072
        %v4074 = vpop.f32.mrb[0].mxu0
        %v4075 = vadd.f32 0.0, %v4074
        %v4076 = vpop.f32.mrb[0].mxu0
        %v4077 = vadd.f32 0.0, %v4076
        %4078 = vdwg.mxu0
        %v4079 = vmax.f32 %v3841, %v3851
        %v4080 = vmax.f32 %v3845, %v3855
        %v4081 = vmax.f32 %v4079, %v4080
        %v4082 = vrot.slane %v4081, 4
        %v4083 = vmax.f32 %v4081, %v4082
        %v4084 = vrot.slane %v4083, 2
        %v4085 = vmax.f32 %v4083, %v4084
        %v4086 = vrot.slane %v4085, 1
        %v4087 = vmax.f32 %v4085, %v4086
        %v4088 = vmax.f32 %v3843, %v3853
        %v4089 = vmax.f32 %v3847, %v3857
        %v4090 = vmax.f32 %v4088, %v4089
        %v4091 = vrot.slane %v4090, 4
        %v4092 = vmax.f32 %v4090, %v4091
        %v4093 = vrot.slane %v4092, 2
        %v4094 = vmax.f32 %v4092, %v4093
        %v4095 = vrot.slane %v4094, 1
        %v4096 = vmax.f32 %v4094, %v4095
        %v4097 = vmax.f32 %v3861, %v3871
        %v4098 = vmax.f32 %v3865, %v3875
        %v4099 = vmax.f32 %v4097, %v4098
        %v4100 = vrot.slane %v4099, 4
        %v4101 = vmax.f32 %v4099, %v4100
        %v4102 = vrot.slane %v4101, 2
        %v4103 = vmax.f32 %v4101, %v4102
        %v4104 = vrot.slane %v4103, 1
        %v4105 = vmax.f32 %v4103, %v4104
        %v4106 = vmax.f32 %v3863, %v3873
        %v4107 = vmax.f32 %v3867, %v3877
        %v4108 = vmax.f32 %v4106, %v4107
        %v4109 = vrot.slane %v4108, 4
        %v4110 = vmax.f32 %v4108, %v4109
        %v4111 = vrot.slane %v4110, 2
        %v4112 = vmax.f32 %v4110, %v4111
        %v4113 = vrot.slane %v4112, 1
        %v4114 = vmax.f32 %v4112, %v4113
        %v4115 = vmax.f32 %v3881, %v3891
        %v4116 = vmax.f32 %v3885, %v3895
        %v4117 = vmax.f32 %v4115, %v4116
        %v4118 = vrot.slane %v4117, 4
        %v4119 = vmax.f32 %v4117, %v4118
        %v4120 = vrot.slane %v4119, 2
        %v4121 = vmax.f32 %v4119, %v4120
        %v4122 = vrot.slane %v4121, 1
        %v4123 = vmax.f32 %v4121, %v4122
        %v4124 = vmax.f32 %v3883, %v3893
        %v4125 = vmax.f32 %v3887, %v3897
        %v4126 = vmax.f32 %v4124, %v4125
        %v4127 = vrot.slane %v4126, 4
        %v4128 = vmax.f32 %v4126, %v4127
        %v4129 = vrot.slane %v4128, 2
        %v4130 = vmax.f32 %v4128, %v4129
        %v4131 = vrot.slane %v4130, 1
        %v4132 = vmax.f32 %v4130, %v4131
        %v4133 = vmax.f32 %v3901, %v3911
        %v4134 = vmax.f32 %v3905, %v3915
        %v4135 = vmax.f32 %v4133, %v4134
        %v4136 = vrot.slane %v4135, 4
        %v4137 = vmax.f32 %v4135, %v4136
        %v4138 = vrot.slane %v4137, 2
        %v4139 = vmax.f32 %v4137, %v4138
        %v4140 = vrot.slane %v4139, 1
        %v4141 = vmax.f32 %v4139, %v4140
        %v4142 = vmax.f32 %v3903, %v3913
        %v4143 = vmax.f32 %v3907, %v3917
        %v4144 = vmax.f32 %v4142, %v4143
        %v4145 = vrot.slane %v4144, 4
        %v4146 = vmax.f32 %v4144, %v4145
        %v4147 = vrot.slane %v4146, 2
        %v4148 = vmax.f32 %v4146, %v4147
        %v4149 = vrot.slane %v4148, 1
        %v4150 = vmax.f32 %v4148, %v4149
        %v4151 = vsel %vm1101, %v4087, %v4105
        %v4152 = vsel %vm1101, %v4096, %v4114
        %v4153 = vsel %vm749, %v4151, %v4123
        %v4154 = vsel %vm749, %v4152, %v4132
        %v4155 = vsel %vm1106, %v4153, %v4141
        %v4156 = vsel %vm1106, %v4154, %v4150
        %v4157 = vpack.c.bf16 %v4155, %v4155
        %v4158 = vpack.c.bf16 %v4156, %v4156
        %v4160 = vsel %vm749, %v4157, 0
        %v4163 = vsel %vm749, %v4158, 0
        %4165 = vmatprep.subr.bf16.mxu0 %v4163
        %4166 = vmatpush1.bf16.msra.mxu0 %v4160
        %4167 = vmatprep.subr.bf16.mxu0 0
        %4168 = vmatpush1.bf16.msra.mxu0 0
        %4169 = vmatprep.subr.bf16.mxu0 0
        %4170 = vmatpush1.bf16.msra.mxu0 0
        %4171 = vmatprep.subr.bf16.mxu0 0
        %4172 = vmatpush1.bf16.msra.mxu0 0
        %4173 = vmatprep.subr.bf16.mxu0 0
        %4174 = vmatpush1.bf16.msra.mxu0 0
        %4175 = vmatprep.subr.bf16.mxu0 0
        %4176 = vmatpush1.bf16.msra.mxu0 0
        %4177 = vmatprep.subr.bf16.mxu0 0
        %4178 = vmatpush1.bf16.msra.mxu0 0
        %4179 = vmatprep.subr.bf16.mxu0 0
        %4180 = vmatpush1.bf16.msra.mxu0 0
        %4181 = vmatprep.subr.bf16.mxu0 0
        %4182 = vmatpush1.bf16.msra.mxu0 0
        %4183 = vmatprep.subr.bf16.mxu0 0
        %4184 = vmatpush1.bf16.msra.mxu0 0
        %4185 = vmatprep.subr.bf16.mxu0 0
        %4186 = vmatpush1.bf16.msra.mxu0 0
        %4187 = vmatprep.subr.bf16.mxu0 0
        %4188 = vmatpush1.bf16.msra.mxu0 0
        %4189 = vmatprep.subr.bf16.mxu0 0
        %4190 = vmatpush1.bf16.msra.mxu0 0
        %4191 = vmatprep.subr.bf16.mxu0 0
        %4192 = vmatpush1.bf16.msra.mxu0 0
        %4193 = vmatprep.subr.bf16.mxu0 0
        %4194 = vmatpush1.bf16.msra.mxu0 0
        %4195 = vmatprep.subr.bf16.mxu0 0
        %4196 = vmatpush1.bf16.msra.mxu0 0
        %4197 = vmatprep.mubr.bf16.mxu0 0
        %4198 = vmatmul.mubr.bf16.gmra.mrb[0].mxu0 %v1152
        %v4199 = vpop.f32.mrb[0].mxu0
        %v4200 = vadd.f32 0.0, %v4199
        %v4201 = vpop.f32.mrb[0].mxu0
        %v4202 = vadd.f32 0.0, %v4201
        %v4203 = vpop.f32.mrb[0].mxu0
        %v4204 = vadd.f32 0.0, %v4203
        %v4205 = vpop.f32.mrb[0].mxu0
        %v4206 = vadd.f32 0.0, %v4205
        %4207 = vmatprep.mubr.bf16.mxu0 0
        %4208 = vmatmul.mubr.bf16.gmra.mrb[0].mxu0 %v1155
        %v4209 = vpop.f32.mrb[0].mxu0
        %v4210 = vadd.f32 0.0, %v4209
        %v4211 = vpop.f32.mrb[0].mxu0
        %v4212 = vadd.f32 0.0, %v4211
        %v4213 = vpop.f32.mrb[0].mxu0
        %v4214 = vadd.f32 0.0, %v4213
        %v4215 = vpop.f32.mrb[0].mxu0
        %v4216 = vadd.f32 0.0, %v4215
        %4217 = vmatprep.mubr.bf16.mxu0 0
        %4218 = vmatmul.mubr.bf16.gmra.mrb[0].mxu0 %v1158
        %v4219 = vpop.f32.mrb[0].mxu0
        %v4220 = vadd.f32 0.0, %v4219
        %v4221 = vpop.f32.mrb[0].mxu0
        %v4222 = vadd.f32 0.0, %v4221
        %v4223 = vpop.f32.mrb[0].mxu0
        %v4224 = vadd.f32 0.0, %v4223
        %v4225 = vpop.f32.mrb[0].mxu0
        %v4226 = vadd.f32 0.0, %v4225
        %4227 = vmatprep.mubr.bf16.mxu0 0
        %4228 = vmatmul.mubr.bf16.gmra.mrb[0].mxu0 %v1161
        %v4229 = vpop.f32.mrb[0].mxu0
        %v4230 = vadd.f32 0.0, %v4229
        %v4231 = vpop.f32.mrb[0].mxu0
        %v4232 = vadd.f32 0.0, %v4231
        %v4233 = vpop.f32.mrb[0].mxu0
        %v4234 = vadd.f32 0.0, %v4233
        %v4235 = vpop.f32.mrb[0].mxu0
        %v4236 = vadd.f32 0.0, %v4235
        %4237 = vmatprep.mubr.bf16.mxu0 0
        %4238 = vmatmul.mubr.bf16.gmra.mrb[0].mxu0 %v1164
        %v4239 = vpop.f32.mrb[0].mxu0
        %v4240 = vadd.f32 0.0, %v4239
        %v4241 = vpop.f32.mrb[0].mxu0
        %v4242 = vadd.f32 0.0, %v4241
        %v4243 = vpop.f32.mrb[0].mxu0
        %v4244 = vadd.f32 0.0, %v4243
        %v4245 = vpop.f32.mrb[0].mxu0
        %v4246 = vadd.f32 0.0, %v4245
        %4247 = vmatprep.mubr.bf16.mxu0 0
        %4248 = vmatmul.mubr.bf16.gmra.mrb[0].mxu0 %v1167
        %v4249 = vpop.f32.mrb[0].mxu0
        %v4250 = vadd.f32 0.0, %v4249
        %v4251 = vpop.f32.mrb[0].mxu0
        %v4252 = vadd.f32 0.0, %v4251
        %v4253 = vpop.f32.mrb[0].mxu0
        %v4254 = vadd.f32 0.0, %v4253
        %v4255 = vpop.f32.mrb[0].mxu0
        %v4256 = vadd.f32 0.0, %v4255
        %4257 = vmatprep.mubr.bf16.mxu0 0
        %4258 = vmatmul.mubr.bf16.gmra.mrb[0].mxu0 %v1170
        %v4259 = vpop.f32.mrb[0].mxu0
        %v4260 = vadd.f32 0.0, %v4259
        %v4261 = vpop.f32.mrb[0].mxu0
        %v4262 = vadd.f32 0.0, %v4261
        %v4263 = vpop.f32.mrb[0].mxu0
        %v4264 = vadd.f32 0.0, %v4263
        %v4265 = vpop.f32.mrb[0].mxu0
        %v4266 = vadd.f32 0.0, %v4265
        %4267 = vmatprep.mubr.bf16.mxu0 0
        %4268 = vmatmul.mubr.bf16.gmra.mrb[0].mxu0 %v1173
        %v4269 = vpop.f32.mrb[0].mxu0
        %v4270 = vadd.f32 0.0, %v4269
        %v4271 = vpop.f32.mrb[0].mxu0
        %v4272 = vadd.f32 0.0, %v4271
        %v4273 = vpop.f32.mrb[0].mxu0
        %v4274 = vadd.f32 0.0, %v4273
        %v4275 = vpop.f32.mrb[0].mxu0
        %v4276 = vadd.f32 0.0, %v4275
        %4277 = vdwg.mxu0
        %v4278 = vsub.f32 %v3841, %v4200
        %v4279 = vsub.f32 %v3843, %v4202
        %v4280 = vsub.f32 %v3845, %v4204
        %v4281 = vsub.f32 %v3847, %v4206
        %v4282 = vsub.f32 %v3851, %v4210
        %v4283 = vsub.f32 %v3853, %v4212
        %v4284 = vsub.f32 %v3855, %v4214
        %v4285 = vsub.f32 %v3857, %v4216
        %v4286 = vsub.f32 %v3861, %v4220
        %v4287 = vsub.f32 %v3863, %v4222
        %v4288 = vsub.f32 %v3865, %v4224
        %v4289 = vsub.f32 %v3867, %v4226
        %v4290 = vsub.f32 %v3871, %v4230
        %v4291 = vsub.f32 %v3873, %v4232
        %v4292 = vsub.f32 %v3875, %v4234
        %v4293 = vsub.f32 %v3877, %v4236
        %v4294 = vsub.f32 %v3881, %v4240
        %v4295 = vsub.f32 %v3883, %v4242
        %v4296 = vsub.f32 %v3885, %v4244
        %v4297 = vsub.f32 %v3887, %v4246
        %v4298 = vsub.f32 %v3891, %v4250
        %v4299 = vsub.f32 %v3893, %v4252
        %v4300 = vsub.f32 %v3895, %v4254
        %v4301 = vsub.f32 %v3897, %v4256
        %v4302 = vsub.f32 %v3901, %v4260
        %v4303 = vsub.f32 %v3903, %v4262
        %v4304 = vsub.f32 %v3905, %v4264
        %v4305 = vsub.f32 %v3907, %v4266
        %v4306 = vsub.f32 %v3911, %v4270
        %v4307 = vsub.f32 %v3913, %v4272
        %v4308 = vsub.f32 %v3915, %v4274
        %v4309 = vsub.f32 %v3917, %v4276
        %v4310 = vmul.f32 %v4278, 1.442695
        %v4311 = vpow.pop %v4310
        %v4312 = vmul.f32 %v4279, 1.442695
        %v4313 = vpow.pop %v4312
        %v4314 = vmul.f32 %v4280, 1.442695
        %v4315 = vpow.pop %v4314
        %v4316 = vmul.f32 %v4281, 1.442695
        %v4317 = vpow.pop %v4316
        %v4318 = vmul.f32 %v4282, 1.442695
        %v4319 = vpow.pop %v4318
        %v4320 = vmul.f32 %v4283, 1.442695
        %v4321 = vpow.pop %v4320
        %v4322 = vmul.f32 %v4284, 1.442695
        %v4323 = vpow.pop %v4322
        %v4324 = vmul.f32 %v4285, 1.442695
        %v4325 = vpow.pop %v4324
        %v4326 = vmul.f32 %v4286, 1.442695
        %v4327 = vpow.pop %v4326
        %v4328 = vmul.f32 %v4287, 1.442695
        %v4329 = vpow.pop %v4328
        %v4330 = vmul.f32 %v4288, 1.442695
        %v4331 = vpow.pop %v4330
        %v4332 = vmul.f32 %v4289, 1.442695
        %v4333 = vpow.pop %v4332
        %v4334 = vmul.f32 %v4290, 1.442695
        %v4335 = vpow.pop %v4334
        %v4336 = vmul.f32 %v4291, 1.442695
        %v4337 = vpow.pop %v4336
        %v4338 = vmul.f32 %v4292, 1.442695
        %v4339 = vpow.pop %v4338
        %v4340 = vmul.f32 %v4293, 1.442695
        %v4341 = vpow.pop %v4340
        %v4342 = vmul.f32 %v4294, 1.442695
        %v4343 = vpow.pop %v4342
        %v4344 = vmul.f32 %v4295, 1.442695
        %v4345 = vpow.pop %v4344
        %v4346 = vmul.f32 %v4296, 1.442695
        %v4347 = vpow.pop %v4346
        %v4348 = vmul.f32 %v4297, 1.442695
        %v4349 = vpow.pop %v4348
        %v4350 = vmul.f32 %v4298, 1.442695
        %v4351 = vpow.pop %v4350
        %v4352 = vmul.f32 %v4299, 1.442695
        %v4353 = vpow.pop %v4352
        %v4354 = vmul.f32 %v4300, 1.442695
        %v4355 = vpow.pop %v4354
        %v4356 = vmul.f32 %v4301, 1.442695
        %v4357 = vpow.pop %v4356
        %v4358 = vmul.f32 %v4302, 1.442695
        %v4359 = vpow.pop %v4358
        %v4360 = vmul.f32 %v4303, 1.442695
        %v4361 = vpow.pop %v4360
        %v4362 = vmul.f32 %v4304, 1.442695
        %v4363 = vpow.pop %v4362
        %v4364 = vmul.f32 %v4305, 1.442695
        %v4365 = vpow.pop %v4364
        %v4366 = vmul.f32 %v4306, 1.442695
        %v4367 = vpow.pop %v4366
        %v4368 = vmul.f32 %v4307, 1.442695
        %v4369 = vpow.pop %v4368
        %v4370 = vmul.f32 %v4308, 1.442695
        %v4371 = vpow.pop %v4370
        %v4372 = vmul.f32 %v4309, 1.442695
        %v4373 = vpow.pop %v4372
        %v4374 = vpack.c.bf16 %v4315, %v4311
        %v4375 = vpack.c.bf16 %v4317, %v4313
        %v4376 = vpack.c.bf16 %v4323, %v4319
        %v4377 = vpack.c.bf16 %v4325, %v4321
        %v4378 = vpack.c.bf16 %v4331, %v4327
        %v4379 = vpack.c.bf16 %v4333, %v4329
        %v4380 = vpack.c.bf16 %v4339, %v4335
        %v4381 = vpack.c.bf16 %v4341, %v4337
        %v4382 = vpack.c.bf16 %v4347, %v4343
        %v4383 = vpack.c.bf16 %v4349, %v4345
        %v4384 = vpack.c.bf16 %v4355, %v4351
        %v4385 = vpack.c.bf16 %v4357, %v4353
        %v4386 = vpack.c.bf16 %v4363, %v4359
        %v4387 = vpack.c.bf16 %v4365, %v4361
        %v4388 = vpack.c.bf16 %v4371, %v4367
        %v4389 = vpack.c.bf16 %v4373, %v4369
        %4390 = vmatprep.subr.bf16.mxu0 %v4375
        %4391 = vmatpush1.bf16.msra.mxu0 %v4374
        %4392 = vmatprep.subr.bf16.mxu0 %v4377
        %4393 = vmatpush1.bf16.msra.mxu0 %v4376
        %4394 = vmatprep.subr.bf16.mxu0 %v4379
        %4395 = vmatpush1.bf16.msra.mxu0 %v4378
        %4396 = vmatprep.subr.bf16.mxu0 %v4381
        %4397 = vmatpush1.bf16.msra.mxu0 %v4380
        %4398 = vmatprep.subr.bf16.mxu0 %v4383
        %4399 = vmatpush1.bf16.msra.mxu0 %v4382
        %4400 = vmatprep.subr.bf16.mxu0 %v4385
        %4401 = vmatpush1.bf16.msra.mxu0 %v4384
        %4402 = vmatprep.subr.bf16.mxu0 %v4387
        %4403 = vmatpush1.bf16.msra.mxu0 %v4386
        %4404 = vmatprep.subr.bf16.mxu0 %v4389
        %4405 = vmatpush1.bf16.msra.mxu0 %v4388
        %4406 = vmatprep.subr.bf16.mxu0 0
        %4407 = vmatpush1.bf16.msra.mxu0 0
        %4408 = vmatprep.subr.bf16.mxu0 0
        %4409 = vmatpush1.bf16.msra.mxu0 0
        %4410 = vmatprep.subr.bf16.mxu0 0
        %4411 = vmatpush1.bf16.msra.mxu0 0
        %4412 = vmatprep.subr.bf16.mxu0 0
        %4413 = vmatpush1.bf16.msra.mxu0 0
        %4414 = vmatprep.subr.bf16.mxu0 0
        %4415 = vmatpush1.bf16.msra.mxu0 0
        %4416 = vmatprep.subr.bf16.mxu0 0
        %4417 = vmatpush1.bf16.msra.mxu0 0
        %4418 = vmatprep.subr.bf16.mxu0 0
        %4419 = vmatpush1.bf16.msra.mxu0 0
        %4420 = vmatprep.subr.bf16.mxu0 0
        %4421 = vmatpush1.bf16.msra.mxu0 0
        %4422 = vmatprep.mubr.bf16.mxu0 0
        %4423 = vmatmul.mubr.bf16.gmra.mrb[0].mxu0 %v462
        %v4424 = vpop.f32.mrb[0].mxu0
        %v4425 = vadd.f32 0.0, %v4424
        %v4426 = vpop.f32.mrb[0].mxu0
        %v4427 = vadd.f32 0.0, %v4426
        %v4428 = vpop.f32.mrb[0].mxu0
        %v4429 = vpop.f32.mrb[0].mxu0
        %4430 = vdwg.mxu0
        %v4431 = vrcp.pop %v4425
        %v4432 = vrcp.pop %v4427
        %v4433 = vpack.c.bf16 %v4431, %v4431
        %v4434 = vpack.c.bf16 %v4432, %v4432
        %v4436 = vsel %vm749, %v4433, 0
        %v4439 = vsel %vm749, %v4434, 0
        %4441 = vmatprep.subr.bf16.mxu0 %v4439
        %4442 = vmatpush1.bf16.msra.mxu0 %v4436
        %4443 = vmatprep.subr.bf16.mxu0 0
        %4444 = vmatpush1.bf16.msra.mxu0 0
        %4445 = vmatprep.subr.bf16.mxu0 0
        %4446 = vmatpush1.bf16.msra.mxu0 0
        %4447 = vmatprep.subr.bf16.mxu0 0
        %4448 = vmatpush1.bf16.msra.mxu0 0
        %4449 = vmatprep.subr.bf16.mxu0 0
        %4450 = vmatpush1.bf16.msra.mxu0 0
        %4451 = vmatprep.subr.bf16.mxu0 0
        %4452 = vmatpush1.bf16.msra.mxu0 0
        %4453 = vmatprep.subr.bf16.mxu0 0
        %4454 = vmatpush1.bf16.msra.mxu0 0
        %4455 = vmatprep.subr.bf16.mxu0 0
        %4456 = vmatpush1.bf16.msra.mxu0 0
        %4457 = vmatprep.subr.bf16.mxu0 0
        %4458 = vmatpush1.bf16.msra.mxu0 0
        %4459 = vmatprep.subr.bf16.mxu0 0
        %4460 = vmatpush1.bf16.msra.mxu0 0
        %4461 = vmatprep.subr.bf16.mxu0 0
        %4462 = vmatpush1.bf16.msra.mxu0 0
        %4463 = vmatprep.subr.bf16.mxu0 0
        %4464 = vmatpush1.bf16.msra.mxu0 0
        %4465 = vmatprep.subr.bf16.mxu0 0
        %4466 = vmatpush1.bf16.msra.mxu0 0
        %4467 = vmatprep.subr.bf16.mxu0 0
        %4468 = vmatpush1.bf16.msra.mxu0 0
        %4469 = vmatprep.subr.bf16.mxu0 0
        %4470 = vmatpush1.bf16.msra.mxu0 0
        %4471 = vmatprep.subr.bf16.mxu0 0
        %4472 = vmatpush1.bf16.msra.mxu0 0
        %4473 = vmatprep.mubr.bf16.mxu0 0
        %4474 = vmatmul.mubr.bf16.gmra.mrb[0].mxu0 %v1152
        %v4475 = vpop.f32.mrb[0].mxu0
        %v4476 = vadd.f32 0.0, %v4475
        %v4477 = vpop.f32.mrb[0].mxu0
        %v4478 = vadd.f32 0.0, %v4477
        %v4479 = vpop.f32.mrb[0].mxu0
        %v4480 = vadd.f32 0.0, %v4479
        %v4481 = vpop.f32.mrb[0].mxu0
        %v4482 = vadd.f32 0.0, %v4481
        %4483 = vmatprep.mubr.bf16.mxu0 0
        %4484 = vmatmul.mubr.bf16.gmra.mrb[0].mxu0 %v1155
        %v4485 = vpop.f32.mrb[0].mxu0
        %v4486 = vadd.f32 0.0, %v4485
        %v4487 = vpop.f32.mrb[0].mxu0
        %v4488 = vadd.f32 0.0, %v4487
        %v4489 = vpop.f32.mrb[0].mxu0
        %v4490 = vadd.f32 0.0, %v4489
        %v4491 = vpop.f32.mrb[0].mxu0
        %v4492 = vadd.f32 0.0, %v4491
        %4493 = vmatprep.mubr.bf16.mxu0 0
        %4494 = vmatmul.mubr.bf16.gmra.mrb[0].mxu0 %v1158
        %v4495 = vpop.f32.mrb[0].mxu0
        %v4496 = vadd.f32 0.0, %v4495
        %v4497 = vpop.f32.mrb[0].mxu0
        %v4498 = vadd.f32 0.0, %v4497
        %v4499 = vpop.f32.mrb[0].mxu0
        %v4500 = vadd.f32 0.0, %v4499
        %v4501 = vpop.f32.mrb[0].mxu0
        %v4502 = vadd.f32 0.0, %v4501
        %4503 = vmatprep.mubr.bf16.mxu0 0
        %4504 = vmatmul.mubr.bf16.gmra.mrb[0].mxu0 %v1161
        %v4505 = vpop.f32.mrb[0].mxu0
        %v4506 = vadd.f32 0.0, %v4505
        %v4507 = vpop.f32.mrb[0].mxu0
        %v4508 = vadd.f32 0.0, %v4507
        %v4509 = vpop.f32.mrb[0].mxu0
        %v4510 = vadd.f32 0.0, %v4509
        %v4511 = vpop.f32.mrb[0].mxu0
        %v4512 = vadd.f32 0.0, %v4511
        %4513 = vmatprep.mubr.bf16.mxu0 0
        %4514 = vmatmul.mubr.bf16.gmra.mrb[0].mxu0 %v1164
        %v4515 = vpop.f32.mrb[0].mxu0
        %v4516 = vadd.f32 0.0, %v4515
        %v4517 = vpop.f32.mrb[0].mxu0
        %v4518 = vadd.f32 0.0, %v4517
        %v4519 = vpop.f32.mrb[0].mxu0
        %v4520 = vadd.f32 0.0, %v4519
        %v4521 = vpop.f32.mrb[0].mxu0
        %v4522 = vadd.f32 0.0, %v4521
        %4523 = vmatprep.mubr.bf16.mxu0 0
        %4524 = vmatmul.mubr.bf16.gmra.mrb[0].mxu0 %v1167
        %v4525 = vpop.f32.mrb[0].mxu0
        %v4526 = vadd.f32 0.0, %v4525
        %v4527 = vpop.f32.mrb[0].mxu0
        %v4528 = vadd.f32 0.0, %v4527
        %v4529 = vpop.f32.mrb[0].mxu0
        %v4530 = vadd.f32 0.0, %v4529
        %v4531 = vpop.f32.mrb[0].mxu0
        %v4532 = vadd.f32 0.0, %v4531
        %4533 = vmatprep.mubr.bf16.mxu0 0
        %4534 = vmatmul.mubr.bf16.gmra.mrb[0].mxu0 %v1170
        %v4535 = vpop.f32.mrb[0].mxu0
        %v4536 = vadd.f32 0.0, %v4535
        %v4537 = vpop.f32.mrb[0].mxu0
        %v4538 = vadd.f32 0.0, %v4537
        %v4539 = vpop.f32.mrb[0].mxu0
        %v4540 = vadd.f32 0.0, %v4539
        %v4541 = vpop.f32.mrb[0].mxu0
        %v4542 = vadd.f32 0.0, %v4541
        %4543 = vmatprep.mubr.bf16.mxu0 0
        %4544 = vmatmul.mubr.bf16.gmra.mrb[0].mxu0 %v1173
        %v4545 = vpop.f32.mrb[0].mxu0
        %v4546 = vadd.f32 0.0, %v4545
        %v4547 = vpop.f32.mrb[0].mxu0
        %v4548 = vadd.f32 0.0, %v4547
        %v4549 = vpop.f32.mrb[0].mxu0
        %v4550 = vadd.f32 0.0, %v4549
        %v4551 = vpop.f32.mrb[0].mxu0
        %v4552 = vadd.f32 0.0, %v4551
        %4553 = vdwg.mxu0
        %v4554 = vmul.f32 %v4311, %v4476
        %v4555 = vmul.f32 %v4313, %v4478
        %v4556 = vmul.f32 %v4315, %v4480
        %v4557 = vmul.f32 %v4317, %v4482
        %v4558 = vmul.f32 %v4319, %v4486
        %v4559 = vmul.f32 %v4321, %v4488
        %v4560 = vmul.f32 %v4323, %v4490
        %v4561 = vmul.f32 %v4325, %v4492
        %v4562 = vmul.f32 %v4327, %v4496
        %v4563 = vmul.f32 %v4329, %v4498
        %v4564 = vmul.f32 %v4331, %v4500
        %v4565 = vmul.f32 %v4333, %v4502
        %v4566 = vmul.f32 %v4335, %v4506
        %v4567 = vmul.f32 %v4337, %v4508
        %v4568 = vmul.f32 %v4339, %v4510
        %v4569 = vmul.f32 %v4341, %v4512
        %v4570 = vmul.f32 %v4343, %v4516
        %v4571 = vmul.f32 %v4345, %v4518
        %v4572 = vmul.f32 %v4347, %v4520
        %v4573 = vmul.f32 %v4349, %v4522
        %v4574 = vmul.f32 %v4351, %v4526
        %v4575 = vmul.f32 %v4353, %v4528
        %v4576 = vmul.f32 %v4355, %v4530
        %v4577 = vmul.f32 %v4357, %v4532
        %v4578 = vmul.f32 %v4359, %v4536
        %v4579 = vmul.f32 %v4361, %v4538
        %v4580 = vmul.f32 %v4363, %v4540
        %v4581 = vmul.f32 %v4365, %v4542
        %v4582 = vmul.f32 %v4367, %v4546
        %v4583 = vmul.f32 %v4369, %v4548
        %v4584 = vmul.f32 %v4371, %v4550
        %v4585 = vmul.f32 %v4373, %v4552
        %v4586 = vpack.c.bf16 %v4556, %v4554
        %v4587 = vpack.c.bf16 %v4557, %v4555
        %v4588 = vpack.c.bf16 %v4560, %v4558
        %v4589 = vpack.c.bf16 %v4561, %v4559
        %v4590 = vpack.c.bf16 %v4564, %v4562
        %v4591 = vpack.c.bf16 %v4565, %v4563
        %v4592 = vpack.c.bf16 %v4568, %v4566
        %v4593 = vpack.c.bf16 %v4569, %v4567
        %v4594 = vpack.c.bf16 %v4572, %v4570
        %v4595 = vpack.c.bf16 %v4573, %v4571
        %v4596 = vpack.c.bf16 %v4576, %v4574
        %v4597 = vpack.c.bf16 %v4577, %v4575
        %v4598 = vpack.c.bf16 %v4580, %v4578
        %v4599 = vpack.c.bf16 %v4581, %v4579
        %v4600 = vpack.c.bf16 %v4584, %v4582
        %v4601 = vpack.c.bf16 %v4585, %v4583
        %v4602 = vmax.f32 %v3921, %v3923
        %4603 = vmax.xlane.f32.xlu0 %v4602
        %v4604 = vpop.xlane.xlu0 %4603
        %v4605 = vmax.f32 %v3925, %v3927
        %4606 = vmax.xlane.f32.xlu0 %v4605
        %v4607 = vpop.xlane.xlu0 %4606
        %v4608 = vmax.f32 %v3931, %v3933
        %4609 = vmax.xlane.f32.xlu0 %v4608
        %v4610 = vpop.xlane.xlu0 %4609
        %v4611 = vmax.f32 %v3935, %v3937
        %4612 = vmax.xlane.f32.xlu0 %v4611
        %v4613 = vpop.xlane.xlu0 %4612
        %v4614 = vmax.f32 %v3941, %v3943
        %4615 = vmax.xlane.f32.xlu0 %v4614
        %v4616 = vpop.xlane.xlu0 %4615
        %v4617 = vmax.f32 %v3945, %v3947
        %4618 = vmax.xlane.f32.xlu0 %v4617
        %v4619 = vpop.xlane.xlu0 %4618
        %v4620 = vmax.f32 %v3951, %v3953
        %4621 = vmax.xlane.f32.xlu0 %v4620
        %v4622 = vpop.xlane.xlu0 %4621
        %v4623 = vmax.f32 %v3955, %v3957
        %4624 = vmax.xlane.f32.xlu0 %v4623
        %v4625 = vpop.xlane.xlu0 %4624
        %v4626 = vmax.f32 %v3961, %v3963
        %4627 = vmax.xlane.f32.xlu0 %v4626
        %v4628 = vpop.xlane.xlu0 %4627
        %v4629 = vmax.f32 %v3965, %v3967
        %4630 = vmax.xlane.f32.xlu0 %v4629
        %v4631 = vpop.xlane.xlu0 %4630
        %v4632 = vmax.f32 %v3971, %v3973
        %4633 = vmax.xlane.f32.xlu0 %v4632
        %v4634 = vpop.xlane.xlu0 %4633
        %v4635 = vmax.f32 %v3975, %v3977
        %4636 = vmax.xlane.f32.xlu0 %v4635
        %v4637 = vpop.xlane.xlu0 %4636
        %v4638 = vmax.f32 %v3981, %v3983
        %4639 = vmax.xlane.f32.xlu0 %v4638
        %v4640 = vpop.xlane.xlu0 %4639
        %v4641 = vmax.f32 %v3985, %v3987
        %4642 = vmax.xlane.f32.xlu0 %v4641
        %v4643 = vpop.xlane.xlu0 %4642
        %v4644 = vmax.f32 %v3991, %v3993
        %4645 = vmax.xlane.f32.xlu0 %v4644
        %v4646 = vpop.xlane.xlu0 %4645
        %v4647 = vmax.f32 %v3995, %v3997
        %4648 = vmax.xlane.f32.xlu0 %v4647
        %v4649 = vpop.xlane.xlu0 %4648
        %v4650 = vsub.f32 %v3921, %v4604
        %v4651 = vsub.f32 %v3923, %v4604
        %v4652 = vsub.f32 %v3925, %v4607
        %v4653 = vsub.f32 %v3927, %v4607
        %v4654 = vsub.f32 %v3931, %v4610
        %v4655 = vsub.f32 %v3933, %v4610
        %v4656 = vsub.f32 %v3935, %v4613
        %v4657 = vsub.f32 %v3937, %v4613
        %v4658 = vsub.f32 %v3941, %v4616
        %v4659 = vsub.f32 %v3943, %v4616
        %v4660 = vsub.f32 %v3945, %v4619
        %v4661 = vsub.f32 %v3947, %v4619
        %v4662 = vsub.f32 %v3951, %v4622
        %v4663 = vsub.f32 %v3953, %v4622
        %v4664 = vsub.f32 %v3955, %v4625
        %v4665 = vsub.f32 %v3957, %v4625
        %v4666 = vsub.f32 %v3961, %v4628
        %v4667 = vsub.f32 %v3963, %v4628
        %v4668 = vsub.f32 %v3965, %v4631
        %v4669 = vsub.f32 %v3967, %v4631
        %v4670 = vsub.f32 %v3971, %v4634
        %v4671 = vsub.f32 %v3973, %v4634
        %v4672 = vsub.f32 %v3975, %v4637
        %v4673 = vsub.f32 %v3977, %v4637
        %v4674 = vsub.f32 %v3981, %v4640
        %v4675 = vsub.f32 %v3983, %v4640
        %v4676 = vsub.f32 %v3985, %v4643
        %v4677 = vsub.f32 %v3987, %v4643
        %v4678 = vsub.f32 %v3991, %v4646
        %v4679 = vsub.f32 %v3993, %v4646
        %v4680 = vsub.f32 %v3995, %v4649
        %v4681 = vsub.f32 %v3997, %v4649
        %v4682 = vmul.f32 %v4650, 1.442695
        %v4683 = vpow.pop %v4682
        %v4684 = vmul.f32 %v4651, 1.442695
        %v4685 = vpow.pop %v4684
        %v4686 = vmul.f32 %v4652, 1.442695
        %v4687 = vpow.pop %v4686
        %v4688 = vmul.f32 %v4653, 1.442695
        %v4689 = vpow.pop %v4688
        %v4690 = vmul.f32 %v4654, 1.442695
        %v4691 = vpow.pop %v4690
        %v4692 = vmul.f32 %v4655, 1.442695
        %v4693 = vpow.pop %v4692
        %v4694 = vmul.f32 %v4656, 1.442695
        %v4695 = vpow.pop %v4694
        %v4696 = vmul.f32 %v4657, 1.442695
        %v4697 = vpow.pop %v4696
        %v4698 = vmul.f32 %v4658, 1.442695
        %v4699 = vpow.pop %v4698
        %v4700 = vmul.f32 %v4659, 1.442695
        %v4701 = vpow.pop %v4700
        %v4702 = vmul.f32 %v4660, 1.442695
        %v4703 = vpow.pop %v4702
        %v4704 = vmul.f32 %v4661, 1.442695
        %v4705 = vpow.pop %v4704
        %v4706 = vmul.f32 %v4662, 1.442695
        %v4707 = vpow.pop %v4706
        %v4708 = vmul.f32 %v4663, 1.442695
        %v4709 = vpow.pop %v4708
        %v4710 = vmul.f32 %v4664, 1.442695
        %v4711 = vpow.pop %v4710
        %v4712 = vmul.f32 %v4665, 1.442695
        %v4713 = vpow.pop %v4712
        %v4714 = vmul.f32 %v4666, 1.442695
        %v4715 = vpow.pop %v4714
        %v4716 = vmul.f32 %v4667, 1.442695
        %v4717 = vpow.pop %v4716
        %v4718 = vmul.f32 %v4668, 1.442695
        %v4719 = vpow.pop %v4718
        %v4720 = vmul.f32 %v4669, 1.442695
        %v4721 = vpow.pop %v4720
        %v4722 = vmul.f32 %v4670, 1.442695
        %v4723 = vpow.pop %v4722
        %v4724 = vmul.f32 %v4671, 1.442695
        %v4725 = vpow.pop %v4724
        %v4726 = vmul.f32 %v4672, 1.442695
        %v4727 = vpow.pop %v4726
        %v4728 = vmul.f32 %v4673, 1.442695
        %v4729 = vpow.pop %v4728
        %v4730 = vmul.f32 %v4674, 1.442695
        %v4731 = vpow.pop %v4730
        %v4732 = vmul.f32 %v4675, 1.442695
        %v4733 = vpow.pop %v4732
        %v4734 = vmul.f32 %v4676, 1.442695
        %v4735 = vpow.pop %v4734
        %v4736 = vmul.f32 %v4677, 1.442695
        %v4737 = vpow.pop %v4736
        %v4738 = vmul.f32 %v4678, 1.442695
        %v4739 = vpow.pop %v4738
        %v4740 = vmul.f32 %v4679, 1.442695
        %v4741 = vpow.pop %v4740
        %v4742 = vmul.f32 %v4680, 1.442695
        %v4743 = vpow.pop %v4742
        %v4744 = vmul.f32 %v4681, 1.442695
        %v4745 = vpow.pop %v4744
        %v4746 = vadd.f32 %v4683, %v4685
        %4747 = vadd.xlane.f32.xlu0 %v4746
        %v4748 = vpop.xlane.xlu0 %4747
        %v4749 = vadd.f32 %v4687, %v4689
        %4750 = vadd.xlane.f32.xlu0 %v4749
        %v4751 = vpop.xlane.xlu0 %4750
        %v4752 = vadd.f32 %v4691, %v4693
        %4753 = vadd.xlane.f32.xlu0 %v4752
        %v4754 = vpop.xlane.xlu0 %4753
        %v4755 = vadd.f32 %v4695, %v4697
        %4756 = vadd.xlane.f32.xlu0 %v4755
        %v4757 = vpop.xlane.xlu0 %4756
        %v4758 = vadd.f32 %v4699, %v4701
        %4759 = vadd.xlane.f32.xlu0 %v4758
        %v4760 = vpop.xlane.xlu0 %4759
        %v4761 = vadd.f32 %v4703, %v4705
        %4762 = vadd.xlane.f32.xlu0 %v4761
        %v4763 = vpop.xlane.xlu0 %4762
        %v4764 = vadd.f32 %v4707, %v4709
        %4765 = vadd.xlane.f32.xlu0 %v4764
        %v4766 = vpop.xlane.xlu0 %4765
        %v4767 = vadd.f32 %v4711, %v4713
        %4768 = vadd.xlane.f32.xlu0 %v4767
        %v4769 = vpop.xlane.xlu0 %4768
        %v4770 = vadd.f32 %v4715, %v4717
        %4771 = vadd.xlane.f32.xlu0 %v4770
        %v4772 = vpop.xlane.xlu0 %4771
        %v4773 = vadd.f32 %v4719, %v4721
        %4774 = vadd.xlane.f32.xlu0 %v4773
        %v4775 = vpop.xlane.xlu0 %4774
        %v4776 = vadd.f32 %v4723, %v4725
        %4777 = vadd.xlane.f32.xlu0 %v4776
        %v4778 = vpop.xlane.xlu0 %4777
        %v4779 = vadd.f32 %v4727, %v4729
        %4780 = vadd.xlane.f32.xlu0 %v4779
        %v4781 = vpop.xlane.xlu0 %4780
        %v4782 = vadd.f32 %v4731, %v4733
        %4783 = vadd.xlane.f32.xlu0 %v4782
        %v4784 = vpop.xlane.xlu0 %4783
        %v4785 = vadd.f32 %v4735, %v4737
        %4786 = vadd.xlane.f32.xlu0 %v4785
        %v4787 = vpop.xlane.xlu0 %4786
        %v4788 = vadd.f32 %v4739, %v4741
        %4789 = vadd.xlane.f32.xlu0 %v4788
        %v4790 = vpop.xlane.xlu0 %4789
        %v4791 = vadd.f32 %v4743, %v4745
        %4792 = vadd.xlane.f32.xlu0 %v4791
        %v4793 = vpop.xlane.xlu0 %4792
        %v4794 = vrcp.pop %v4748
        %v4795 = vrcp.pop %v4751
        %v4796 = vrcp.pop %v4754
        %v4797 = vrcp.pop %v4757
        %v4798 = vrcp.pop %v4760
        %v4799 = vrcp.pop %v4763
        %v4800 = vrcp.pop %v4766
        %v4801 = vrcp.pop %v4769
        %v4802 = vrcp.pop %v4772
        %v4803 = vrcp.pop %v4775
        %v4804 = vrcp.pop %v4778
        %v4805 = vrcp.pop %v4781
        %v4806 = vrcp.pop %v4784
        %v4807 = vrcp.pop %v4787
        %v4808 = vrcp.pop %v4790
        %v4809 = vrcp.pop %v4793
        %v4810 = vmul.f32 %v4683, %v4794
        %v4811 = vmul.f32 %v4685, %v4794
        %v4812 = vmul.f32 %v4687, %v4795
        %v4813 = vmul.f32 %v4689, %v4795
        %v4814 = vmul.f32 %v4691, %v4796
        %v4815 = vmul.f32 %v4693, %v4796
        %v4816 = vmul.f32 %v4695, %v4797
        %v4817 = vmul.f32 %v4697, %v4797
        %v4818 = vmul.f32 %v4699, %v4798
        %v4819 = vmul.f32 %v4701, %v4798
        %v4820 = vmul.f32 %v4703, %v4799
        %v4821 = vmul.f32 %v4705, %v4799
        %v4822 = vmul.f32 %v4707, %v4800
        %v4823 = vmul.f32 %v4709, %v4800
        %v4824 = vmul.f32 %v4711, %v4801
        %v4825 = vmul.f32 %v4713, %v4801
        %v4826 = vmul.f32 %v4715, %v4802
        %v4827 = vmul.f32 %v4717, %v4802
        %v4828 = vmul.f32 %v4719, %v4803
        %v4829 = vmul.f32 %v4721, %v4803
        %v4830 = vmul.f32 %v4723, %v4804
        %v4831 = vmul.f32 %v4725, %v4804
        %v4832 = vmul.f32 %v4727, %v4805
        %v4833 = vmul.f32 %v4729, %v4805
        %v4834 = vmul.f32 %v4731, %v4806
        %v4835 = vmul.f32 %v4733, %v4806
        %v4836 = vmul.f32 %v4735, %v4807
        %v4837 = vmul.f32 %v4737, %v4807
        %v4838 = vmul.f32 %v4739, %v4808
        %v4839 = vmul.f32 %v4741, %v4808
        %v4840 = vmul.f32 %v4743, %v4809
        %v4841 = vmul.f32 %v4745, %v4809
        %v4842 = vpack.c.bf16 %v4812, %v4810
        %v4843 = vpack.c.bf16 %v4813, %v4811
        %v4844 = vpack.c.bf16 %v4816, %v4814
        %v4845 = vpack.c.bf16 %v4817, %v4815
        %v4846 = vpack.c.bf16 %v4820, %v4818
        %v4847 = vpack.c.bf16 %v4821, %v4819
        %v4848 = vpack.c.bf16 %v4824, %v4822
        %v4849 = vpack.c.bf16 %v4825, %v4823
        %v4850 = vpack.c.bf16 %v4828, %v4826
        %v4851 = vpack.c.bf16 %v4829, %v4827
        %v4852 = vpack.c.bf16 %v4832, %v4830
        %v4853 = vpack.c.bf16 %v4833, %v4831
        %v4854 = vpack.c.bf16 %v4836, %v4834
        %v4855 = vpack.c.bf16 %v4837, %v4835
        %v4856 = vpack.c.bf16 %v4840, %v4838
        %v4857 = vpack.c.bf16 %v4841, %v4839
        %v4858 = vpack.c.bf16 %v4005, %v4001
        %v4859 = vpack.c.bf16 %v4007, %v4003
        %v4860 = vpack.c.bf16 %v4015, %v4011
        %v4861 = vpack.c.bf16 %v4017, %v4013
        %v4862 = vpack.c.bf16 %v4025, %v4021
        %v4863 = vpack.c.bf16 %v4027, %v4023
        %v4864 = vpack.c.bf16 %v4035, %v4031
        %v4865 = vpack.c.bf16 %v4037, %v4033
        %v4866 = vpack.c.bf16 %v4045, %v4041
        %v4867 = vpack.c.bf16 %v4047, %v4043
        %v4868 = vpack.c.bf16 %v4055, %v4051
        %v4869 = vpack.c.bf16 %v4057, %v4053
        %v4870 = vpack.c.bf16 %v4065, %v4061
        %v4871 = vpack.c.bf16 %v4067, %v4063
        %v4872 = vpack.c.bf16 %v4075, %v4071
        %v4873 = vpack.c.bf16 %v4077, %v4073
        %4874 = vmatprep.subr.bf16.mxu0 %v4859
        %4875 = vmatpush1.bf16.xpose.msra.mxu0 %v4858
        %4876 = vmatprep.subr.bf16.mxu0 %v4861
        %4877 = vmatpush1.bf16.xpose.msra.mxu0 %v4860
        %4878 = vmatprep.subr.bf16.mxu0 %v4863
        %4879 = vmatpush1.bf16.xpose.msra.mxu0 %v4862
        %4880 = vmatprep.subr.bf16.mxu0 %v4865
        %4881 = vmatpush1.bf16.xpose.msra.mxu0 %v4864
        %4882 = vmatprep.subr.bf16.mxu0 %v4867
        %4883 = vmatpush1.bf16.xpose.msra.mxu0 %v4866
        %4884 = vmatprep.subr.bf16.mxu0 %v4869
        %4885 = vmatpush1.bf16.xpose.msra.mxu0 %v4868
        %4886 = vmatprep.subr.bf16.mxu0 %v4871
        %4887 = vmatpush1.bf16.xpose.msra.mxu0 %v4870
        %4888 = vmatprep.subr.bf16.mxu0 %v4873
        %4889 = vmatpush1.bf16.xpose.msra.mxu0 %v4872
        %4890 = vmatprep.subr.bf16.mxu0 0
        %4891 = vmatpush1.bf16.xpose.msra.mxu0 0
        %4892 = vmatprep.subr.bf16.mxu0 0
        %4893 = vmatpush1.bf16.xpose.msra.mxu0 0
        %4894 = vmatprep.subr.bf16.mxu0 0
        %4895 = vmatpush1.bf16.xpose.msra.mxu0 0
        %4896 = vmatprep.subr.bf16.mxu0 0
        %4897 = vmatpush1.bf16.xpose.msra.mxu0 0
        %4898 = vmatprep.subr.bf16.mxu0 0
        %4899 = vmatpush1.bf16.xpose.msra.mxu0 0
        %4900 = vmatprep.subr.bf16.mxu0 0
        %4901 = vmatpush1.bf16.xpose.msra.mxu0 0
        %4902 = vmatprep.subr.bf16.mxu0 0
        %4903 = vmatpush1.bf16.xpose.msra.mxu0 0
        %4904 = vmatprep.subr.bf16.mxu0 0
        %4905 = vmatpush1.bf16.xpose.msra.mxu0 0
        %4906 = vmatprep.mubr.bf16.mxu0 %v4843
        %4907 = vmatmul.mubr.bf16.gmra.mrb[0].mxu0 %v4842
        %v4908 = vpop.f32.mrb[0].mxu0
        %v4909 = vadd.f32 0.0, %v4908
        %v4910 = vpop.f32.mrb[0].mxu0
        %v4911 = vpop.f32.mrb[0].mxu0
        %v4912 = vadd.f32 0.0, %v4911
        %v4913 = vpop.f32.mrb[0].mxu0
        %4914 = vmatprep.mubr.bf16.mxu0 %v4845
        %4915 = vmatmul.mubr.bf16.gmra.mrb[0].mxu0 %v4844
        %v4916 = vpop.f32.mrb[0].mxu0
        %v4917 = vadd.f32 0.0, %v4916
        %v4918 = vpop.f32.mrb[0].mxu0
        %v4919 = vpop.f32.mrb[0].mxu0
        %v4920 = vadd.f32 0.0, %v4919
        %v4921 = vpop.f32.mrb[0].mxu0
        %4922 = vmatprep.mubr.bf16.mxu0 %v4847
        %4923 = vmatmul.mubr.bf16.gmra.mrb[0].mxu0 %v4846
        %v4924 = vpop.f32.mrb[0].mxu0
        %v4925 = vadd.f32 0.0, %v4924
        %v4926 = vpop.f32.mrb[0].mxu0
        %v4927 = vpop.f32.mrb[0].mxu0
        %v4928 = vadd.f32 0.0, %v4927
        %v4929 = vpop.f32.mrb[0].mxu0
        %4930 = vmatprep.mubr.bf16.mxu0 %v4849
        %4931 = vmatmul.mubr.bf16.gmra.mrb[0].mxu0 %v4848
        %v4932 = vpop.f32.mrb[0].mxu0
        %v4933 = vadd.f32 0.0, %v4932
        %v4934 = vpop.f32.mrb[0].mxu0
        %v4935 = vpop.f32.mrb[0].mxu0
        %v4936 = vadd.f32 0.0, %v4935
        %v4937 = vpop.f32.mrb[0].mxu0
        %4938 = vmatprep.mubr.bf16.mxu0 %v4851
        %4939 = vmatmul.mubr.bf16.gmra.mrb[0].mxu0 %v4850
        %v4940 = vpop.f32.mrb[0].mxu0
        %v4941 = vadd.f32 0.0, %v4940
        %v4942 = vpop.f32.mrb[0].mxu0
        %v4943 = vpop.f32.mrb[0].mxu0
        %v4944 = vadd.f32 0.0, %v4943
        %v4945 = vpop.f32.mrb[0].mxu0
        %4946 = vmatprep.mubr.bf16.mxu0 %v4853
        %4947 = vmatmul.mubr.bf16.gmra.mrb[0].mxu0 %v4852
        %v4948 = vpop.f32.mrb[0].mxu0
        %v4949 = vadd.f32 0.0, %v4948
        %v4950 = vpop.f32.mrb[0].mxu0
        %v4951 = vpop.f32.mrb[0].mxu0
        %v4952 = vadd.f32 0.0, %v4951
        %v4953 = vpop.f32.mrb[0].mxu0
        %4954 = vmatprep.mubr.bf16.mxu0 %v4855
        %4955 = vmatmul.mubr.bf16.gmra.mrb[0].mxu0 %v4854
        %v4956 = vpop.f32.mrb[0].mxu0
        %v4957 = vadd.f32 0.0, %v4956
        %v4958 = vpop.f32.mrb[0].mxu0
        %v4959 = vpop.f32.mrb[0].mxu0
        %v4960 = vadd.f32 0.0, %v4959
        %v4961 = vpop.f32.mrb[0].mxu0
        %4962 = vmatprep.mubr.bf16.mxu0 %v4857
        %4963 = vmatmul.mubr.bf16.gmra.mrb[0].mxu0 %v4856
        %v4964 = vpop.f32.mrb[0].mxu0
        %v4965 = vadd.f32 0.0, %v4964
        %v4966 = vpop.f32.mrb[0].mxu0
        %v4967 = vpop.f32.mrb[0].mxu0
        %v4968 = vadd.f32 0.0, %v4967
        %v4969 = vpop.f32.mrb[0].mxu0
        %4970 = vdwg.mxu0
        %v4971 = vmul.f32 %v4909, %v446
        %v4972 = vmul.f32 %v4912, %v447
        %v4973 = vmul.f32 %v4917, %v448
        %v4974 = vmul.f32 %v4920, %v449
        %v4975 = vmul.f32 %v4925, %v450
        %v4976 = vmul.f32 %v4928, %v451
        %v4977 = vmul.f32 %v4933, %v452
        %v4978 = vmul.f32 %v4936, %v453
        %v4979 = vmul.f32 %v4941, %v454
        %v4980 = vmul.f32 %v4944, %v455
        %v4981 = vmul.f32 %v4949, %v456
        %v4982 = vmul.f32 %v4952, %v457
        %v4983 = vmul.f32 %v4957, %v458
        %v4984 = vmul.f32 %v4960, %v459
        %v4985 = vmul.f32 %v4965, %v460
        %v4986 = vmul.f32 %v4968, %v461
        %v4987 = vpack.c.bf16 %v4972, %v4971
        %v4988 = vpack.c.bf16 %v4974, %v4973
        %v4989 = vpack.c.bf16 %v4976, %v4975
        %v4990 = vpack.c.bf16 %v4978, %v4977
        %v4991 = vpack.c.bf16 %v4980, %v4979
        %v4992 = vpack.c.bf16 %v4982, %v4981
        %v4993 = vpack.c.bf16 %v4984, %v4983
        %v4994 = vpack.c.bf16 %v4986, %v4985
        %4995 = vxpose.xlu0.c.b16.start [1/8] %v4987, 128
        %4996 = vxpose.xlu0.c.b16.cont [2/8] %v4988, 128
        %4997 = vxpose.xlu0.c.b16.cont [3/8] %v4989, 128
        %4998 = vxpose.xlu0.c.b16.cont [4/8] %v4990, 128
        %4999 = vxpose.xlu0.c.b16.cont [5/8] %v4991, 128
        %5000 = vxpose.xlu0.c.b16.cont [6/8] %v4992, 128
        %5001 = vxpose.xlu0.c.b16.cont [7/8] %v4993, 128
        %5002 = vxpose.xlu0.c.b16.end [8/8] %v4994, 128
        %v5003 = vpop.trf.xlu0
        %v5004 = vpop.trf.xlu0
        %v5005 = vpop.trf.xlu0
        %v5006 = vpop.trf.xlu0
        %v5007 = vpop.trf.xlu0
        %v5008 = vpop.trf.xlu0
        %v5009 = vpop.trf.xlu0
        %v5010 = vpop.trf.xlu0
        %5011 = vmatprep.subr.bf16.mxu0 %v4587
        %5012 = vmatpush1.bf16.msra.mxu0 %v4586
        %5013 = vmatprep.subr.bf16.mxu0 %v4589
        %5014 = vmatpush1.bf16.msra.mxu0 %v4588
        %5015 = vmatprep.subr.bf16.mxu0 %v4591
        %5016 = vmatpush1.bf16.msra.mxu0 %v4590
        %5017 = vmatprep.subr.bf16.mxu0 %v4593
        %5018 = vmatpush1.bf16.msra.mxu0 %v4592
        %5019 = vmatprep.subr.bf16.mxu0 %v4595
        %5020 = vmatpush1.bf16.msra.mxu0 %v4594
        %5021 = vmatprep.subr.bf16.mxu0 %v4597
        %5022 = vmatpush1.bf16.msra.mxu0 %v4596
        %5023 = vmatprep.subr.bf16.mxu0 %v4599
        %5024 = vmatpush1.bf16.msra.mxu0 %v4598
        %5025 = vmatprep.subr.bf16.mxu0 %v4601
        %5026 = vmatpush1.bf16.msra.mxu0 %v4600
        %5027 = vmatprep.subr.bf16.mxu0 0
        %5028 = vmatpush1.bf16.msra.mxu0 0
        %5029 = vmatprep.subr.bf16.mxu0 0
        %5030 = vmatpush1.bf16.msra.mxu0 0
        %5031 = vmatprep.subr.bf16.mxu0 0
        %5032 = vmatpush1.bf16.msra.mxu0 0
        %5033 = vmatprep.subr.bf16.mxu0 0
        %5034 = vmatpush1.bf16.msra.mxu0 0
        %5035 = vmatprep.subr.bf16.mxu0 0
        %5036 = vmatpush1.bf16.msra.mxu0 0
        %5037 = vmatprep.subr.bf16.mxu0 0
        %5038 = vmatpush1.bf16.msra.mxu0 0
        %5039 = vmatprep.subr.bf16.mxu0 0
        %5040 = vmatpush1.bf16.msra.mxu0 0
        %5041 = vmatprep.subr.bf16.mxu0 0
        %5042 = vmatpush1.bf16.msra.mxu0 0
        %5043 = vmatprep.mubr.bf16.mxu0 0
        %5044 = vmatmul.mubr.bf16.gmra.mrb[0].mxu0 %v5003
        %v5045 = vpop.f32.mrb[0].mxu0
        %v5046 = vadd.f32 0.0, %v5045
        %v5047 = vpop.f32.mrb[0].mxu0
        %v5048 = vadd.f32 0.0, %v5047
        %v5049 = vpop.f32.mrb[0].mxu0
        %v5050 = vadd.f32 0.0, %v5049
        %v5051 = vpop.f32.mrb[0].mxu0
        %v5052 = vadd.f32 0.0, %v5051
        %5053 = vmatprep.mubr.bf16.mxu0 0
        %5054 = vmatmul.mubr.bf16.gmra.mrb[0].mxu0 %v5004
        %v5055 = vpop.f32.mrb[0].mxu0
        %v5056 = vadd.f32 0.0, %v5055
        %v5057 = vpop.f32.mrb[0].mxu0
        %v5058 = vadd.f32 0.0, %v5057
        %v5059 = vpop.f32.mrb[0].mxu0
        %v5060 = vadd.f32 0.0, %v5059
        %v5061 = vpop.f32.mrb[0].mxu0
        %v5062 = vadd.f32 0.0, %v5061
        %5063 = vmatprep.mubr.bf16.mxu0 0
        %5064 = vmatmul.mubr.bf16.gmra.mrb[0].mxu0 %v5005
        %v5065 = vpop.f32.mrb[0].mxu0
        %v5066 = vadd.f32 0.0, %v5065
        %v5067 = vpop.f32.mrb[0].mxu0
        %v5068 = vadd.f32 0.0, %v5067
        %v5069 = vpop.f32.mrb[0].mxu0
        %v5070 = vadd.f32 0.0, %v5069
        %v5071 = vpop.f32.mrb[0].mxu0
        %v5072 = vadd.f32 0.0, %v5071
        %5073 = vmatprep.mubr.bf16.mxu0 0
        %5074 = vmatmul.mubr.bf16.gmra.mrb[0].mxu0 %v5006
        %v5075 = vpop.f32.mrb[0].mxu0
        %v5076 = vadd.f32 0.0, %v5075
        %v5077 = vpop.f32.mrb[0].mxu0
        %v5078 = vadd.f32 0.0, %v5077
        %v5079 = vpop.f32.mrb[0].mxu0
        %v5080 = vadd.f32 0.0, %v5079
        %v5081 = vpop.f32.mrb[0].mxu0
        %v5082 = vadd.f32 0.0, %v5081
        %5083 = vmatprep.mubr.bf16.mxu0 0
        %5084 = vmatmul.mubr.bf16.gmra.mrb[0].mxu0 %v5007
        %v5085 = vpop.f32.mrb[0].mxu0
        %v5086 = vadd.f32 0.0, %v5085
        %v5087 = vpop.f32.mrb[0].mxu0
        %v5088 = vadd.f32 0.0, %v5087
        %v5089 = vpop.f32.mrb[0].mxu0
        %v5090 = vadd.f32 0.0, %v5089
        %v5091 = vpop.f32.mrb[0].mxu0
        %v5092 = vadd.f32 0.0, %v5091
        %5093 = vmatprep.mubr.bf16.mxu0 0
        %5094 = vmatmul.mubr.bf16.gmra.mrb[0].mxu0 %v5008
        %v5095 = vpop.f32.mrb[0].mxu0
        %v5096 = vadd.f32 0.0, %v5095
        %v5097 = vpop.f32.mrb[0].mxu0
        %v5098 = vadd.f32 0.0, %v5097
        %v5099 = vpop.f32.mrb[0].mxu0
        %v5100 = vadd.f32 0.0, %v5099
        %v5101 = vpop.f32.mrb[0].mxu0
        %v5102 = vadd.f32 0.0, %v5101
        %5103 = vmatprep.mubr.bf16.mxu0 0
        %5104 = vmatmul.mubr.bf16.gmra.mrb[0].mxu0 %v5009
        %v5105 = vpop.f32.mrb[0].mxu0
        %v5106 = vadd.f32 0.0, %v5105
        %v5107 = vpop.f32.mrb[0].mxu0
        %v5108 = vadd.f32 0.0, %v5107
        %v5109 = vpop.f32.mrb[0].mxu0
        %v5110 = vadd.f32 0.0, %v5109
        %v5111 = vpop.f32.mrb[0].mxu0
        %v5112 = vadd.f32 0.0, %v5111
        %5113 = vmatprep.mubr.bf16.mxu0 0
        %5114 = vmatmul.mubr.bf16.gmra.mrb[0].mxu0 %v5010
        %v5115 = vpop.f32.mrb[0].mxu0
        %v5116 = vadd.f32 0.0, %v5115
        %v5117 = vpop.f32.mrb[0].mxu0
        %v5118 = vadd.f32 0.0, %v5117
        %v5119 = vpop.f32.mrb[0].mxu0
        %v5120 = vadd.f32 0.0, %v5119
        %v5121 = vpop.f32.mrb[0].mxu0
        %v5122 = vadd.f32 0.0, %v5121
        %5123 = vdwg.mxu0
        %v5124 = vpack.c.bf16 %v5050, %v5046
        %v5125 = vpack.c.bf16 %v5052, %v5048
        %v5126 = vpack.c.bf16 %v5060, %v5056
        %v5127 = vpack.c.bf16 %v5062, %v5058
        %v5128 = vpack.c.bf16 %v5070, %v5066
        %v5129 = vpack.c.bf16 %v5072, %v5068
        %v5130 = vpack.c.bf16 %v5080, %v5076
        %v5131 = vpack.c.bf16 %v5082, %v5078
        %v5132 = vpack.c.bf16 %v5090, %v5086
        %v5133 = vpack.c.bf16 %v5092, %v5088
        %v5134 = vpack.c.bf16 %v5100, %v5096
        %v5135 = vpack.c.bf16 %v5102, %v5098
        %v5136 = vpack.c.bf16 %v5110, %v5106
        %v5137 = vpack.c.bf16 %v5112, %v5108
        %v5138 = vpack.c.bf16 %v5120, %v5116
        %v5139 = vpack.c.bf16 %v5122, %v5118
        %5140 = vmatprep.subr.bf16.mxu0 %v5125
        %5141 = vmatpush1.bf16.msra.mxu0 %v5124
        %5142 = vmatprep.subr.bf16.mxu0 %v5127
        %5143 = vmatpush1.bf16.msra.mxu0 %v5126
        %5144 = vmatprep.subr.bf16.mxu0 %v5129
        %5145 = vmatpush1.bf16.msra.mxu0 %v5128
        %5146 = vmatprep.subr.bf16.mxu0 %v5131
        %5147 = vmatpush1.bf16.msra.mxu0 %v5130
        %5148 = vmatprep.subr.bf16.mxu0 %v5133
        %5149 = vmatpush1.bf16.msra.mxu0 %v5132
        %5150 = vmatprep.subr.bf16.mxu0 %v5135
        %5151 = vmatpush1.bf16.msra.mxu0 %v5134
        %5152 = vmatprep.subr.bf16.mxu0 %v5137
        %5153 = vmatpush1.bf16.msra.mxu0 %v5136
        %5154 = vmatprep.subr.bf16.mxu0 %v5139
        %5155 = vmatpush1.bf16.msra.mxu0 %v5138
        %5156 = vmatprep.subr.bf16.mxu0 0
        %5157 = vmatpush1.bf16.msra.mxu0 0
        %5158 = vmatprep.subr.bf16.mxu0 0
        %5159 = vmatpush1.bf16.msra.mxu0 0
        %5160 = vmatprep.subr.bf16.mxu0 0
        %5161 = vmatpush1.bf16.msra.mxu0 0
        %5162 = vmatprep.subr.bf16.mxu0 0
        %5163 = vmatpush1.bf16.msra.mxu0 0
        %5164 = vmatprep.subr.bf16.mxu0 0
        %5165 = vmatpush1.bf16.msra.mxu0 0
        %5166 = vmatprep.subr.bf16.mxu0 0
        %5167 = vmatpush1.bf16.msra.mxu0 0
        %5168 = vmatprep.subr.bf16.mxu0 0
        %5169 = vmatpush1.bf16.msra.mxu0 0
        %5170 = vmatprep.subr.bf16.mxu0 0
        %5171 = vmatpush1.bf16.msra.mxu0 0
        %5172 = vmatprep.mubr.bf16.mxu0 0
        %5173 = vmatmul.mubr.bf16.gmra.mrb[0].mxu0 %v440
        %v5174 = vpop.f32.mrb[0].mxu0
        %v5175 = vadd.f32 %v2159, %v5174
        %v5176 = vpop.f32.mrb[0].mxu0
        %v5177 = vadd.f32 %v2159, %v5176
        %v5178 = vpop.f32.mrb[0].mxu0
        %v5179 = vpop.f32.mrb[0].mxu0
        %5180 = vdwg.mxu0
        %v5181 = vsel %vm483, %v5175, 0.0
        %v5182 = vsel %vm483, %v5177, 0.0
        %v5183 = vadd.f32 %v5181, %v5182
        %5184 = vadd.xlane.f32.xlu0 %v5183
        %v5185 = vpop.xlane.xlu0 %5184
        %v5186 = vrot.slane %v5185, 4
        %v5187 = vadd.f32 %v5185, %v5186
        %v5188 = vrot.slane %v5187, 2
        %v5189 = vadd.f32 %v5187, %v5188
        %v5190 = vrot.slane %v5189, 1
        %v5191 = vadd.f32 %v5189, %v5190
        %s5192 = vtos %v5191
        %v5193 = vmul.f32 %v5175, %v5175
        %v5194 = vmul.f32 %v5177, %v5177
        %v5195 = vsel %vm483, %v5193, 0.0
        %v5196 = vsel %vm483, %v5194, 0.0
        %v5197 = vadd.f32 %v5195, %v5196
        %5198 = vadd.xlane.f32.xlu0 %v5197
        %v5199 = vpop.xlane.xlu0 %5198
        %v5200 = vrot.slane %v5199, 4
        %v5201 = vadd.f32 %v5199, %v5200
        %v5202 = vrot.slane %v5201, 2
        %v5203 = vadd.f32 %v5201, %v5202
        %v5204 = vrot.slane %v5203, 1
        %v5205 = vadd.f32 %v5203, %v5204
        %s5206 = vtos %v5205
        %s5207 = smul.f32 %s5192, 0.0009765625
        %s5208 = smul.f32 %s5206, 0.0009765625
        %s5209 = smul.f32 %s5207, %s5207
        %s5210 = ssub.f32 %s5208, %s5209
        %s5211 = smax.f32 %s5210, 0.0
        %v5212 = vstv %s5207
        %v5213 = vsub.f32 %v5175, %v5212
        %v5214 = vsub.f32 %v5177, %v5212
        %s5215 = sadd.f32 %s5211, 1e-05
        %v5216 = vstv %s5215
        %v5217 = vrsqrt.pop %v5216
        %s5218 = vtos %v5217
        %v5219 = vstv %s5218
        %v5220 = vmul.f32 %v5213, %v5219
        %v5221 = vmul.f32 %v5214, %v5219
        %v5222 = vmul.f32 %v5220, %v2246
        %v5223 = vmul.f32 %v5221, %v2246
        %v5224 = vadd.f32 %v5222, %v2253
        %v5225 = vadd.f32 %v5223, %v2253
        %v5228 = vcombine.low %v5224, %v5225
        %s5230 = scalar_lea.vmem %s382, 16 [#allocation2]
        %5231 = vst [vmem:[%s5230] sm:$0xff] %v5228
        %s5232 = scalar_lea.vmem %s388, 24
        %v5233 = vld [vmem:[%s5232] sm:$0xff]
        %v5235 = vcombine.high %v5233, %v5233
        %v5237 = vsel %vm483, %v5233, 0.0
        %v5238 = vsel %vm483, %v5235, 0.0
        %v5239 = vadd.f32 %v5237, %v5238
        %5240 = vadd.xlane.f32.xlu0 %v5239
        %v5241 = vpop.xlane.xlu0 %5240
        %v5242 = vrot.slane %v5241, 4
        %v5243 = vadd.f32 %v5241, %v5242
        %v5244 = vrot.slane %v5243, 2
        %v5245 = vadd.f32 %v5243, %v5244
        %v5246 = vrot.slane %v5245, 1
        %v5247 = vadd.f32 %v5245, %v5246
        %s5248 = vtos %v5247
        %v5249 = vmul.f32 %v5233, %v5233
        %v5251 = vcombine.high %v5249, %v5249
        %v5253 = vsel %vm483, %v5249, 0.0
        %v5254 = vsel %vm483, %v5251, 0.0
        %v5255 = vadd.f32 %v5253, %v5254
        %5256 = vadd.xlane.f32.xlu0 %v5255
        %v5257 = vpop.xlane.xlu0 %5256
        %v5258 = vrot.slane %v5257, 4
        %v5259 = vadd.f32 %v5257, %v5258
        %v5260 = vrot.slane %v5259, 2
        %v5261 = vadd.f32 %v5259, %v5260
        %v5262 = vrot.slane %v5261, 1
        %v5263 = vadd.f32 %v5261, %v5262
        %s5264 = vtos %v5263
        %s5265 = smul.f32 %s5248, 0.0009765625
        %s5266 = smul.f32 %s5264, 0.0009765625
        %s5267 = smul.f32 %s5265, %s5265
        %s5268 = ssub.f32 %s5266, %s5267
        %s5269 = smax.f32 %s5268, 0.0
        %v5270 = vstv %s5265
        %v5271 = vsub.f32 %v5233, %v5270
        %s5272 = sadd.f32 %s5269, 1e-05
        %v5273 = vstv %s5272
        %v5274 = vrsqrt.pop %v5273
        %s5275 = vtos %v5274
        %v5276 = vstv %s5275
        %v5277 = vmul.f32 %v5271, %v5276
        %v5278 = vmul.f32 %v5277, %v535
        %v5279 = vadd.f32 %v5278, %v548
        %v5281 = vcombine.high %v5279, %v5279
        %v5283 = vpack.c.bf16 %v5279, %v5279
        %v5284 = vpack.c.bf16 %v5281, %v5281
        %v5286 = vsel %vm749, %v5283, 0
        %v5289 = vsel %vm749, %v5284, 0
        %5291 = vmatprep.subr.bf16.mxu0 %v5289
        %5292 = vmatpush1.bf16.msra.mxu0 %v5286
        %5293 = vmatprep.subr.bf16.mxu0 0
        %5294 = vmatpush1.bf16.msra.mxu0 0
        %5295 = vmatprep.subr.bf16.mxu0 0
        %5296 = vmatpush1.bf16.msra.mxu0 0
        %5297 = vmatprep.subr.bf16.mxu0 0
        %5298 = vmatpush1.bf16.msra.mxu0 0
        %5299 = vmatprep.subr.bf16.mxu0 0
        %5300 = vmatpush1.bf16.msra.mxu0 0
        %5301 = vmatprep.subr.bf16.mxu0 0
        %5302 = vmatpush1.bf16.msra.mxu0 0
        %5303 = vmatprep.subr.bf16.mxu0 0
        %5304 = vmatpush1.bf16.msra.mxu0 0
        %5305 = vmatprep.subr.bf16.mxu0 0
        %5306 = vmatpush1.bf16.msra.mxu0 0
        %5307 = vmatprep.subr.bf16.mxu0 0
        %5308 = vmatpush1.bf16.msra.mxu0 0
        %5309 = vmatprep.subr.bf16.mxu0 0
        %5310 = vmatpush1.bf16.msra.mxu0 0
        %5311 = vmatprep.subr.bf16.mxu0 0
        %5312 = vmatpush1.bf16.msra.mxu0 0
        %5313 = vmatprep.subr.bf16.mxu0 0
        %5314 = vmatpush1.bf16.msra.mxu0 0
        %5315 = vmatprep.subr.bf16.mxu0 0
        %5316 = vmatpush1.bf16.msra.mxu0 0
        %5317 = vmatprep.subr.bf16.mxu0 0
        %5318 = vmatpush1.bf16.msra.mxu0 0
        %5319 = vmatprep.subr.bf16.mxu0 0
        %5320 = vmatpush1.bf16.msra.mxu0 0
        %5321 = vmatprep.subr.bf16.mxu0 0
        %5322 = vmatpush1.bf16.msra.mxu0 0
        %5323 = vmatprep.mubr.bf16.mxu0 0
        %5324 = vmatmul.mubr.bf16.gmra.mrb[0].mxu0 %v678
        %v5325 = vpop.f32.mrb[0].mxu0
        %v5326 = vadd.f32 0.0, %v5325
        %v5327 = vpop.f32.mrb[0].mxu0
        %v5328 = vadd.f32 0.0, %v5327
        %v5329 = vpop.f32.mrb[0].mxu0
        %v5330 = vadd.f32 0.0, %v5329
        %v5331 = vpop.f32.mrb[0].mxu0
        %v5332 = vadd.f32 0.0, %v5331
        %5333 = vmatprep.mubr.bf16.mxu0 0
        %5334 = vmatmul.mubr.bf16.gmra.mrb[0].mxu0 %v681
        %v5335 = vpop.f32.mrb[0].mxu0
        %v5336 = vadd.f32 0.0, %v5335
        %v5337 = vpop.f32.mrb[0].mxu0
        %v5338 = vadd.f32 0.0, %v5337
        %v5339 = vpop.f32.mrb[0].mxu0
        %v5340 = vadd.f32 0.0, %v5339
        %v5341 = vpop.f32.mrb[0].mxu0
        %v5342 = vadd.f32 0.0, %v5341
        %5343 = vmatprep.mubr.bf16.mxu0 0
        %5344 = vmatmul.mubr.bf16.gmra.mrb[0].mxu0 %v684
        %v5345 = vpop.f32.mrb[0].mxu0
        %v5346 = vadd.f32 0.0, %v5345
        %v5347 = vpop.f32.mrb[0].mxu0
        %v5348 = vadd.f32 0.0, %v5347
        %v5349 = vpop.f32.mrb[0].mxu0
        %v5350 = vadd.f32 0.0, %v5349
        %v5351 = vpop.f32.mrb[0].mxu0
        %v5352 = vadd.f32 0.0, %v5351
        %5353 = vmatprep.mubr.bf16.mxu0 0
        %5354 = vmatmul.mubr.bf16.gmra.mrb[0].mxu0 %v687
        %v5355 = vpop.f32.mrb[0].mxu0
        %v5356 = vadd.f32 0.0, %v5355
        %v5357 = vpop.f32.mrb[0].mxu0
        %v5358 = vadd.f32 0.0, %v5357
        %v5359 = vpop.f32.mrb[0].mxu0
        %v5360 = vadd.f32 0.0, %v5359
        %v5361 = vpop.f32.mrb[0].mxu0
        %v5362 = vadd.f32 0.0, %v5361
        %5363 = vmatprep.mubr.bf16.mxu0 0
        %5364 = vmatmul.mubr.bf16.gmra.mrb[0].mxu0 %v690
        %v5365 = vpop.f32.mrb[0].mxu0
        %v5366 = vadd.f32 0.0, %v5365
        %v5367 = vpop.f32.mrb[0].mxu0
        %v5368 = vadd.f32 0.0, %v5367
        %v5369 = vpop.f32.mrb[0].mxu0
        %v5370 = vadd.f32 0.0, %v5369
        %v5371 = vpop.f32.mrb[0].mxu0
        %v5372 = vadd.f32 0.0, %v5371
        %5373 = vmatprep.mubr.bf16.mxu0 0
        %5374 = vmatmul.mubr.bf16.gmra.mrb[0].mxu0 %v693
        %v5375 = vpop.f32.mrb[0].mxu0
        %v5376 = vadd.f32 0.0, %v5375
        %v5377 = vpop.f32.mrb[0].mxu0
        %v5378 = vadd.f32 0.0, %v5377
        %v5379 = vpop.f32.mrb[0].mxu0
        %v5380 = vadd.f32 0.0, %v5379
        %v5381 = vpop.f32.mrb[0].mxu0
        %v5382 = vadd.f32 0.0, %v5381
        %5383 = vmatprep.mubr.bf16.mxu0 0
        %5384 = vmatmul.mubr.bf16.gmra.mrb[0].mxu0 %v696
        %v5385 = vpop.f32.mrb[0].mxu0
        %v5386 = vadd.f32 0.0, %v5385
        %v5387 = vpop.f32.mrb[0].mxu0
        %v5388 = vadd.f32 0.0, %v5387
        %v5389 = vpop.f32.mrb[0].mxu0
        %v5390 = vadd.f32 0.0, %v5389
        %v5391 = vpop.f32.mrb[0].mxu0
        %v5392 = vadd.f32 0.0, %v5391
        %5393 = vmatprep.mubr.bf16.mxu0 0
        %5394 = vmatmul.mubr.bf16.gmra.mrb[0].mxu0 %v699
        %v5395 = vpop.f32.mrb[0].mxu0
        %v5396 = vadd.f32 0.0, %v5395
        %v5397 = vpop.f32.mrb[0].mxu0
        %v5398 = vadd.f32 0.0, %v5397
        %v5399 = vpop.f32.mrb[0].mxu0
        %v5400 = vadd.f32 0.0, %v5399
        %v5401 = vpop.f32.mrb[0].mxu0
        %v5402 = vadd.f32 0.0, %v5401
        %5403 = vmatprep.mubr.bf16.mxu0 0
        %5404 = vmatmul.mubr.bf16.gmra.mrb[0].mxu0 %v702
        %v5405 = vpop.f32.mrb[0].mxu0
        %v5406 = vadd.f32 0.0, %v5405
        %v5407 = vpop.f32.mrb[0].mxu0
        %v5408 = vadd.f32 0.0, %v5407
        %v5409 = vpop.f32.mrb[0].mxu0
        %v5410 = vadd.f32 0.0, %v5409
        %v5411 = vpop.f32.mrb[0].mxu0
        %v5412 = vadd.f32 0.0, %v5411
        %5413 = vmatprep.mubr.bf16.mxu0 0
        %5414 = vmatmul.mubr.bf16.gmra.mrb[0].mxu0 %v705
        %v5415 = vpop.f32.mrb[0].mxu0
        %v5416 = vadd.f32 0.0, %v5415
        %v5417 = vpop.f32.mrb[0].mxu0
        %v5418 = vadd.f32 0.0, %v5417
        %v5419 = vpop.f32.mrb[0].mxu0
        %v5420 = vadd.f32 0.0, %v5419
        %v5421 = vpop.f32.mrb[0].mxu0
        %v5422 = vadd.f32 0.0, %v5421
        %5423 = vmatprep.mubr.bf16.mxu0 0
        %5424 = vmatmul.mubr.bf16.gmra.mrb[0].mxu0 %v708
        %v5425 = vpop.f32.mrb[0].mxu0
        %v5426 = vadd.f32 0.0, %v5425
        %v5427 = vpop.f32.mrb[0].mxu0
        %v5428 = vadd.f32 0.0, %v5427
        %v5429 = vpop.f32.mrb[0].mxu0
        %v5430 = vadd.f32 0.0, %v5429
        %v5431 = vpop.f32.mrb[0].mxu0
        %v5432 = vadd.f32 0.0, %v5431
        %5433 = vmatprep.mubr.bf16.mxu0 0
        %5434 = vmatmul.mubr.bf16.gmra.mrb[0].mxu0 %v711
        %v5435 = vpop.f32.mrb[0].mxu0
        %v5436 = vadd.f32 0.0, %v5435
        %v5437 = vpop.f32.mrb[0].mxu0
        %v5438 = vadd.f32 0.0, %v5437
        %v5439 = vpop.f32.mrb[0].mxu0
        %v5440 = vadd.f32 0.0, %v5439
        %v5441 = vpop.f32.mrb[0].mxu0
        %v5442 = vadd.f32 0.0, %v5441
        %5443 = vmatprep.mubr.bf16.mxu0 0
        %5444 = vmatmul.mubr.bf16.gmra.mrb[0].mxu0 %v714
        %v5445 = vpop.f32.mrb[0].mxu0
        %v5446 = vadd.f32 0.0, %v5445
        %v5447 = vpop.f32.mrb[0].mxu0
        %v5448 = vadd.f32 0.0, %v5447
        %v5449 = vpop.f32.mrb[0].mxu0
        %v5450 = vadd.f32 0.0, %v5449
        %v5451 = vpop.f32.mrb[0].mxu0
        %v5452 = vadd.f32 0.0, %v5451
        %5453 = vmatprep.mubr.bf16.mxu0 0
        %5454 = vmatmul.mubr.bf16.gmra.mrb[0].mxu0 %v717
        %v5455 = vpop.f32.mrb[0].mxu0
        %v5456 = vadd.f32 0.0, %v5455
        %v5457 = vpop.f32.mrb[0].mxu0
        %v5458 = vadd.f32 0.0, %v5457
        %v5459 = vpop.f32.mrb[0].mxu0
        %v5460 = vadd.f32 0.0, %v5459
        %v5461 = vpop.f32.mrb[0].mxu0
        %v5462 = vadd.f32 0.0, %v5461
        %5463 = vmatprep.mubr.bf16.mxu0 0
        %5464 = vmatmul.mubr.bf16.gmra.mrb[0].mxu0 %v720
        %v5465 = vpop.f32.mrb[0].mxu0
        %v5466 = vadd.f32 0.0, %v5465
        %v5467 = vpop.f32.mrb[0].mxu0
        %v5468 = vadd.f32 0.0, %v5467
        %v5469 = vpop.f32.mrb[0].mxu0
        %v5470 = vadd.f32 0.0, %v5469
        %v5471 = vpop.f32.mrb[0].mxu0
        %v5472 = vadd.f32 0.0, %v5471
        %5473 = vmatprep.mubr.bf16.mxu0 0
        %5474 = vmatmul.mubr.bf16.gmra.mrb[0].mxu0 %v723
        %v5475 = vpop.f32.mrb[0].mxu0
        %v5476 = vadd.f32 0.0, %v5475
        %v5477 = vpop.f32.mrb[0].mxu0
        %v5478 = vadd.f32 0.0, %v5477
        %v5479 = vpop.f32.mrb[0].mxu0
        %v5480 = vadd.f32 0.0, %v5479
        %v5481 = vpop.f32.mrb[0].mxu0
        %v5482 = vadd.f32 0.0, %v5481
        %5483 = vmatprep.mubr.bf16.mxu0 0
        %5484 = vmatmul.mubr.bf16.gmra.mrb[0].mxu0 %v726
        %v5485 = vpop.f32.mrb[0].mxu0
        %v5486 = vadd.f32 0.0, %v5485
        %v5487 = vpop.f32.mrb[0].mxu0
        %v5488 = vadd.f32 0.0, %v5487
        %v5489 = vpop.f32.mrb[0].mxu0
        %v5490 = vadd.f32 0.0, %v5489
        %v5491 = vpop.f32.mrb[0].mxu0
        %v5492 = vadd.f32 0.0, %v5491
        %5493 = vmatprep.mubr.bf16.mxu0 0
        %5494 = vmatmul.mubr.bf16.gmra.mrb[0].mxu0 %v729
        %v5495 = vpop.f32.mrb[0].mxu0
        %v5496 = vadd.f32 0.0, %v5495
        %v5497 = vpop.f32.mrb[0].mxu0
        %v5498 = vadd.f32 0.0, %v5497
        %v5499 = vpop.f32.mrb[0].mxu0
        %v5500 = vadd.f32 0.0, %v5499
        %v5501 = vpop.f32.mrb[0].mxu0
        %v5502 = vadd.f32 0.0, %v5501
        %5503 = vmatprep.mubr.bf16.mxu0 0
        %5504 = vmatmul.mubr.bf16.gmra.mrb[0].mxu0 %v732
        %v5505 = vpop.f32.mrb[0].mxu0
        %v5506 = vadd.f32 0.0, %v5505
        %v5507 = vpop.f32.mrb[0].mxu0
        %v5508 = vadd.f32 0.0, %v5507
        %v5509 = vpop.f32.mrb[0].mxu0
        %v5510 = vadd.f32 0.0, %v5509
        %v5511 = vpop.f32.mrb[0].mxu0
        %v5512 = vadd.f32 0.0, %v5511
        %5513 = vmatprep.mubr.bf16.mxu0 0
        %5514 = vmatmul.mubr.bf16.gmra.mrb[0].mxu0 %v735
        %v5515 = vpop.f32.mrb[0].mxu0
        %v5516 = vadd.f32 0.0, %v5515
        %v5517 = vpop.f32.mrb[0].mxu0
        %v5518 = vadd.f32 0.0, %v5517
        %v5519 = vpop.f32.mrb[0].mxu0
        %v5520 = vadd.f32 0.0, %v5519
        %v5521 = vpop.f32.mrb[0].mxu0
        %v5522 = vadd.f32 0.0, %v5521
        %5523 = vmatprep.mubr.bf16.mxu0 0
        %5524 = vmatmul.mubr.bf16.gmra.mrb[0].mxu0 %v738
        %v5525 = vpop.f32.mrb[0].mxu0
        %v5526 = vadd.f32 0.0, %v5525
        %v5527 = vpop.f32.mrb[0].mxu0
        %v5528 = vadd.f32 0.0, %v5527
        %v5529 = vpop.f32.mrb[0].mxu0
        %v5530 = vadd.f32 0.0, %v5529
        %v5531 = vpop.f32.mrb[0].mxu0
        %v5532 = vadd.f32 0.0, %v5531
        %5533 = vmatprep.mubr.bf16.mxu0 0
        %5534 = vmatmul.mubr.bf16.gmra.mrb[0].mxu0 %v741
        %v5535 = vpop.f32.mrb[0].mxu0
        %v5536 = vadd.f32 0.0, %v5535
        %v5537 = vpop.f32.mrb[0].mxu0
        %v5538 = vadd.f32 0.0, %v5537
        %v5539 = vpop.f32.mrb[0].mxu0
        %v5540 = vadd.f32 0.0, %v5539
        %v5541 = vpop.f32.mrb[0].mxu0
        %v5542 = vadd.f32 0.0, %v5541
        %5543 = vmatprep.mubr.bf16.mxu0 0
        %5544 = vmatmul.mubr.bf16.gmra.mrb[0].mxu0 %v744
        %v5545 = vpop.f32.mrb[0].mxu0
        %v5546 = vadd.f32 0.0, %v5545
        %v5547 = vpop.f32.mrb[0].mxu0
        %v5548 = vadd.f32 0.0, %v5547
        %v5549 = vpop.f32.mrb[0].mxu0
        %v5550 = vadd.f32 0.0, %v5549
        %v5551 = vpop.f32.mrb[0].mxu0
        %v5552 = vadd.f32 0.0, %v5551
        %5553 = vmatprep.mubr.bf16.mxu0 0
        %5554 = vmatmul.mubr.bf16.gmra.mrb[0].mxu0 %v747
        %v5555 = vpop.f32.mrb[0].mxu0
        %v5556 = vadd.f32 0.0, %v5555
        %v5557 = vpop.f32.mrb[0].mxu0
        %v5558 = vadd.f32 0.0, %v5557
        %v5559 = vpop.f32.mrb[0].mxu0
        %v5560 = vadd.f32 0.0, %v5559
        %v5561 = vpop.f32.mrb[0].mxu0
        %v5562 = vadd.f32 0.0, %v5561
        %5563 = vdwg.mxu0
        %v5564 = vmax.f32 %v5326, %v5336
        %v5565 = vmax.f32 %v5330, %v5340
        %v5566 = vmax.f32 %v5564, %v5565
        %v5567 = vrot.slane %v5566, 4
        %v5568 = vmax.f32 %v5566, %v5567
        %v5569 = vrot.slane %v5568, 2
        %v5570 = vmax.f32 %v5568, %v5569
        %v5571 = vrot.slane %v5570, 1
        %v5572 = vmax.f32 %v5570, %v5571
        %v5573 = vmax.f32 %v5328, %v5338
        %v5574 = vmax.f32 %v5332, %v5342
        %v5575 = vmax.f32 %v5573, %v5574
        %v5576 = vrot.slane %v5575, 4
        %v5577 = vmax.f32 %v5575, %v5576
        %v5578 = vrot.slane %v5577, 2
        %v5579 = vmax.f32 %v5577, %v5578
        %v5580 = vrot.slane %v5579, 1
        %v5581 = vmax.f32 %v5579, %v5580
        %v5582 = vmax.f32 %v5346, %v5356
        %v5583 = vmax.f32 %v5350, %v5360
        %v5584 = vmax.f32 %v5582, %v5583
        %v5585 = vrot.slane %v5584, 4
        %v5586 = vmax.f32 %v5584, %v5585
        %v5587 = vrot.slane %v5586, 2
        %v5588 = vmax.f32 %v5586, %v5587
        %v5589 = vrot.slane %v5588, 1
        %v5590 = vmax.f32 %v5588, %v5589
        %v5591 = vmax.f32 %v5348, %v5358
        %v5592 = vmax.f32 %v5352, %v5362
        %v5593 = vmax.f32 %v5591, %v5592
        %v5594 = vrot.slane %v5593, 4
        %v5595 = vmax.f32 %v5593, %v5594
        %v5596 = vrot.slane %v5595, 2
        %v5597 = vmax.f32 %v5595, %v5596
        %v5598 = vrot.slane %v5597, 1
        %v5599 = vmax.f32 %v5597, %v5598
        %v5600 = vmax.f32 %v5366, %v5376
        %v5601 = vmax.f32 %v5370, %v5380
        %v5602 = vmax.f32 %v5600, %v5601
        %v5603 = vrot.slane %v5602, 4
        %v5604 = vmax.f32 %v5602, %v5603
        %v5605 = vrot.slane %v5604, 2
        %v5606 = vmax.f32 %v5604, %v5605
        %v5607 = vrot.slane %v5606, 1
        %v5608 = vmax.f32 %v5606, %v5607
        %v5609 = vmax.f32 %v5368, %v5378
        %v5610 = vmax.f32 %v5372, %v5382
        %v5611 = vmax.f32 %v5609, %v5610
        %v5612 = vrot.slane %v5611, 4
        %v5613 = vmax.f32 %v5611, %v5612
        %v5614 = vrot.slane %v5613, 2
        %v5615 = vmax.f32 %v5613, %v5614
        %v5616 = vrot.slane %v5615, 1
        %v5617 = vmax.f32 %v5615, %v5616
        %v5618 = vmax.f32 %v5386, %v5396
        %v5619 = vmax.f32 %v5390, %v5400
        %v5620 = vmax.f32 %v5618, %v5619
        %v5621 = vrot.slane %v5620, 4
        %v5622 = vmax.f32 %v5620, %v5621
        %v5623 = vrot.slane %v5622, 2
        %v5624 = vmax.f32 %v5622, %v5623
        %v5625 = vrot.slane %v5624, 1
        %v5626 = vmax.f32 %v5624, %v5625
        %v5627 = vmax.f32 %v5388, %v5398
        %v5628 = vmax.f32 %v5392, %v5402
        %v5629 = vmax.f32 %v5627, %v5628
        %v5630 = vrot.slane %v5629, 4
        %v5631 = vmax.f32 %v5629, %v5630
        %v5632 = vrot.slane %v5631, 2
        %v5633 = vmax.f32 %v5631, %v5632
        %v5634 = vrot.slane %v5633, 1
        %v5635 = vmax.f32 %v5633, %v5634
        %v5636 = vsel %vm1101, %v5572, %v5590
        %v5637 = vsel %vm1101, %v5581, %v5599
        %v5638 = vsel %vm749, %v5636, %v5608
        %v5639 = vsel %vm749, %v5637, %v5617
        %v5640 = vsel %vm1106, %v5638, %v5626
        %v5641 = vsel %vm1106, %v5639, %v5635
        %v5642 = vpack.c.bf16 %v5640, %v5640
        %v5643 = vpack.c.bf16 %v5641, %v5641
        %v5645 = vsel %vm749, %v5642, 0
        %v5648 = vsel %vm749, %v5643, 0
        %5650 = vmatprep.subr.bf16.mxu0 %v5648
        %5651 = vmatpush1.bf16.msra.mxu0 %v5645
        %5652 = vmatprep.subr.bf16.mxu0 0
        %5653 = vmatpush1.bf16.msra.mxu0 0
        %5654 = vmatprep.subr.bf16.mxu0 0
        %5655 = vmatpush1.bf16.msra.mxu0 0
        %5656 = vmatprep.subr.bf16.mxu0 0
        %5657 = vmatpush1.bf16.msra.mxu0 0
        %5658 = vmatprep.subr.bf16.mxu0 0
        %5659 = vmatpush1.bf16.msra.mxu0 0
        %5660 = vmatprep.subr.bf16.mxu0 0
        %5661 = vmatpush1.bf16.msra.mxu0 0
        %5662 = vmatprep.subr.bf16.mxu0 0
        %5663 = vmatpush1.bf16.msra.mxu0 0
        %5664 = vmatprep.subr.bf16.mxu0 0
        %5665 = vmatpush1.bf16.msra.mxu0 0
        %5666 = vmatprep.subr.bf16.mxu0 0
        %5667 = vmatpush1.bf16.msra.mxu0 0
        %5668 = vmatprep.subr.bf16.mxu0 0
        %5669 = vmatpush1.bf16.msra.mxu0 0
        %5670 = vmatprep.subr.bf16.mxu0 0
        %5671 = vmatpush1.bf16.msra.mxu0 0
        %5672 = vmatprep.subr.bf16.mxu0 0
        %5673 = vmatpush1.bf16.msra.mxu0 0
        %5674 = vmatprep.subr.bf16.mxu0 0
        %5675 = vmatpush1.bf16.msra.mxu0 0
        %5676 = vmatprep.subr.bf16.mxu0 0
        %5677 = vmatpush1.bf16.msra.mxu0 0
        %5678 = vmatprep.subr.bf16.mxu0 0
        %5679 = vmatpush1.bf16.msra.mxu0 0
        %5680 = vmatprep.subr.bf16.mxu0 0
        %5681 = vmatpush1.bf16.msra.mxu0 0
        %5682 = vmatprep.mubr.bf16.mxu0 0
        %5683 = vmatmul.mubr.bf16.gmra.mrb[0].mxu0 %v1152
        %v5684 = vpop.f32.mrb[0].mxu0
        %v5685 = vadd.f32 0.0, %v5684
        %v5686 = vpop.f32.mrb[0].mxu0
        %v5687 = vadd.f32 0.0, %v5686
        %v5688 = vpop.f32.mrb[0].mxu0
        %v5689 = vadd.f32 0.0, %v5688
        %v5690 = vpop.f32.mrb[0].mxu0
        %v5691 = vadd.f32 0.0, %v5690
        %5692 = vmatprep.mubr.bf16.mxu0 0
        %5693 = vmatmul.mubr.bf16.gmra.mrb[0].mxu0 %v1155
        %v5694 = vpop.f32.mrb[0].mxu0
        %v5695 = vadd.f32 0.0, %v5694
        %v5696 = vpop.f32.mrb[0].mxu0
        %v5697 = vadd.f32 0.0, %v5696
        %v5698 = vpop.f32.mrb[0].mxu0
        %v5699 = vadd.f32 0.0, %v5698
        %v5700 = vpop.f32.mrb[0].mxu0
        %v5701 = vadd.f32 0.0, %v5700
        %5702 = vmatprep.mubr.bf16.mxu0 0
        %5703 = vmatmul.mubr.bf16.gmra.mrb[0].mxu0 %v1158
        %v5704 = vpop.f32.mrb[0].mxu0
        %v5705 = vadd.f32 0.0, %v5704
        %v5706 = vpop.f32.mrb[0].mxu0
        %v5707 = vadd.f32 0.0, %v5706
        %v5708 = vpop.f32.mrb[0].mxu0
        %v5709 = vadd.f32 0.0, %v5708
        %v5710 = vpop.f32.mrb[0].mxu0
        %v5711 = vadd.f32 0.0, %v5710
        %5712 = vmatprep.mubr.bf16.mxu0 0
        %5713 = vmatmul.mubr.bf16.gmra.mrb[0].mxu0 %v1161
        %v5714 = vpop.f32.mrb[0].mxu0
        %v5715 = vadd.f32 0.0, %v5714
        %v5716 = vpop.f32.mrb[0].mxu0
        %v5717 = vadd.f32 0.0, %v5716
        %v5718 = vpop.f32.mrb[0].mxu0
        %v5719 = vadd.f32 0.0, %v5718
        %v5720 = vpop.f32.mrb[0].mxu0
        %v5721 = vadd.f32 0.0, %v5720
        %5722 = vmatprep.mubr.bf16.mxu0 0
        %5723 = vmatmul.mubr.bf16.gmra.mrb[0].mxu0 %v1164
        %v5724 = vpop.f32.mrb[0].mxu0
        %v5725 = vadd.f32 0.0, %v5724
        %v5726 = vpop.f32.mrb[0].mxu0
        %v5727 = vadd.f32 0.0, %v5726
        %v5728 = vpop.f32.mrb[0].mxu0
        %v5729 = vadd.f32 0.0, %v5728
        %v5730 = vpop.f32.mrb[0].mxu0
        %v5731 = vadd.f32 0.0, %v5730
        %5732 = vmatprep.mubr.bf16.mxu0 0
        %5733 = vmatmul.mubr.bf16.gmra.mrb[0].mxu0 %v1167
        %v5734 = vpop.f32.mrb[0].mxu0
        %v5735 = vadd.f32 0.0, %v5734
        %v5736 = vpop.f32.mrb[0].mxu0
        %v5737 = vadd.f32 0.0, %v5736
        %v5738 = vpop.f32.mrb[0].mxu0
        %v5739 = vadd.f32 0.0, %v5738
        %v5740 = vpop.f32.mrb[0].mxu0
        %v5741 = vadd.f32 0.0, %v5740
        %5742 = vmatprep.mubr.bf16.mxu0 0
        %5743 = vmatmul.mubr.bf16.gmra.mrb[0].mxu0 %v1170
        %v5744 = vpop.f32.mrb[0].mxu0
        %v5745 = vadd.f32 0.0, %v5744
        %v5746 = vpop.f32.mrb[0].mxu0
        %v5747 = vadd.f32 0.0, %v5746
        %v5748 = vpop.f32.mrb[0].mxu0
        %v5749 = vadd.f32 0.0, %v5748
        %v5750 = vpop.f32.mrb[0].mxu0
        %v5751 = vadd.f32 0.0, %v5750
        %5752 = vmatprep.mubr.bf16.mxu0 0
        %5753 = vmatmul.mubr.bf16.gmra.mrb[0].mxu0 %v1173
        %v5754 = vpop.f32.mrb[0].mxu0
        %v5755 = vadd.f32 0.0, %v5754
        %v5756 = vpop.f32.mrb[0].mxu0
        %v5757 = vadd.f32 0.0, %v5756
        %v5758 = vpop.f32.mrb[0].mxu0
        %v5759 = vadd.f32 0.0, %v5758
        %v5760 = vpop.f32.mrb[0].mxu0
        %v5761 = vadd.f32 0.0, %v5760
        %5762 = vdwg.mxu0
        %v5763 = vsub.f32 %v5326, %v5685
        %v5764 = vsub.f32 %v5328, %v5687
        %v5765 = vsub.f32 %v5330, %v5689
        %v5766 = vsub.f32 %v5332, %v5691
        %v5767 = vsub.f32 %v5336, %v5695
        %v5768 = vsub.f32 %v5338, %v5697
        %v5769 = vsub.f32 %v5340, %v5699
        %v5770 = vsub.f32 %v5342, %v5701
        %v5771 = vsub.f32 %v5346, %v5705
        %v5772 = vsub.f32 %v5348, %v5707
        %v5773 = vsub.f32 %v5350, %v5709
        %v5774 = vsub.f32 %v5352, %v5711
        %v5775 = vsub.f32 %v5356, %v5715
        %v5776 = vsub.f32 %v5358, %v5717
        %v5777 = vsub.f32 %v5360, %v5719
        %v5778 = vsub.f32 %v5362, %v5721
        %v5779 = vsub.f32 %v5366, %v5725
        %v5780 = vsub.f32 %v5368, %v5727
        %v5781 = vsub.f32 %v5370, %v5729
        %v5782 = vsub.f32 %v5372, %v5731
        %v5783 = vsub.f32 %v5376, %v5735
        %v5784 = vsub.f32 %v5378, %v5737
        %v5785 = vsub.f32 %v5380, %v5739
        %v5786 = vsub.f32 %v5382, %v5741
        %v5787 = vsub.f32 %v5386, %v5745
        %v5788 = vsub.f32 %v5388, %v5747
        %v5789 = vsub.f32 %v5390, %v5749
        %v5790 = vsub.f32 %v5392, %v5751
        %v5791 = vsub.f32 %v5396, %v5755
        %v5792 = vsub.f32 %v5398, %v5757
        %v5793 = vsub.f32 %v5400, %v5759
        %v5794 = vsub.f32 %v5402, %v5761
        %v5795 = vmul.f32 %v5763, 1.442695
        %v5796 = vpow.pop %v5795
        %v5797 = vmul.f32 %v5764, 1.442695
        %v5798 = vpow.pop %v5797
        %v5799 = vmul.f32 %v5765, 1.442695
        %v5800 = vpow.pop %v5799
        %v5801 = vmul.f32 %v5766, 1.442695
        %v5802 = vpow.pop %v5801
        %v5803 = vmul.f32 %v5767, 1.442695
        %v5804 = vpow.pop %v5803
        %v5805 = vmul.f32 %v5768, 1.442695
        %v5806 = vpow.pop %v5805
        %v5807 = vmul.f32 %v5769, 1.442695
        %v5808 = vpow.pop %v5807
        %v5809 = vmul.f32 %v5770, 1.442695
        %v5810 = vpow.pop %v5809
        %v5811 = vmul.f32 %v5771, 1.442695
        %v5812 = vpow.pop %v5811
        %v5813 = vmul.f32 %v5772, 1.442695
        %v5814 = vpow.pop %v5813
        %v5815 = vmul.f32 %v5773, 1.442695
        %v5816 = vpow.pop %v5815
        %v5817 = vmul.f32 %v5774, 1.442695
        %v5818 = vpow.pop %v5817
        %v5819 = vmul.f32 %v5775, 1.442695
        %v5820 = vpow.pop %v5819
        %v5821 = vmul.f32 %v5776, 1.442695
        %v5822 = vpow.pop %v5821
        %v5823 = vmul.f32 %v5777, 1.442695
        %v5824 = vpow.pop %v5823
        %v5825 = vmul.f32 %v5778, 1.442695
        %v5826 = vpow.pop %v5825
        %v5827 = vmul.f32 %v5779, 1.442695
        %v5828 = vpow.pop %v5827
        %v5829 = vmul.f32 %v5780, 1.442695
        %v5830 = vpow.pop %v5829
        %v5831 = vmul.f32 %v5781, 1.442695
        %v5832 = vpow.pop %v5831
        %v5833 = vmul.f32 %v5782, 1.442695
        %v5834 = vpow.pop %v5833
        %v5835 = vmul.f32 %v5783, 1.442695
        %v5836 = vpow.pop %v5835
        %v5837 = vmul.f32 %v5784, 1.442695
        %v5838 = vpow.pop %v5837
        %v5839 = vmul.f32 %v5785, 1.442695
        %v5840 = vpow.pop %v5839
        %v5841 = vmul.f32 %v5786, 1.442695
        %v5842 = vpow.pop %v5841
        %v5843 = vmul.f32 %v5787, 1.442695
        %v5844 = vpow.pop %v5843
        %v5845 = vmul.f32 %v5788, 1.442695
        %v5846 = vpow.pop %v5845
        %v5847 = vmul.f32 %v5789, 1.442695
        %v5848 = vpow.pop %v5847
        %v5849 = vmul.f32 %v5790, 1.442695
        %v5850 = vpow.pop %v5849
        %v5851 = vmul.f32 %v5791, 1.442695
        %v5852 = vpow.pop %v5851
        %v5853 = vmul.f32 %v5792, 1.442695
        %v5854 = vpow.pop %v5853
        %v5855 = vmul.f32 %v5793, 1.442695
        %v5856 = vpow.pop %v5855
        %v5857 = vmul.f32 %v5794, 1.442695
        %v5858 = vpow.pop %v5857
        %v5859 = vpack.c.bf16 %v5800, %v5796
        %v5860 = vpack.c.bf16 %v5802, %v5798
        %v5861 = vpack.c.bf16 %v5808, %v5804
        %v5862 = vpack.c.bf16 %v5810, %v5806
        %v5863 = vpack.c.bf16 %v5816, %v5812
        %v5864 = vpack.c.bf16 %v5818, %v5814
        %v5865 = vpack.c.bf16 %v5824, %v5820
        %v5866 = vpack.c.bf16 %v5826, %v5822
        %v5867 = vpack.c.bf16 %v5832, %v5828
        %v5868 = vpack.c.bf16 %v5834, %v5830
        %v5869 = vpack.c.bf16 %v5840, %v5836
        %v5870 = vpack.c.bf16 %v5842, %v5838
        %v5871 = vpack.c.bf16 %v5848, %v5844
        %v5872 = vpack.c.bf16 %v5850, %v5846
        %v5873 = vpack.c.bf16 %v5856, %v5852
        %v5874 = vpack.c.bf16 %v5858, %v5854
        %5875 = vmatprep.subr.bf16.mxu0 %v5860
        %5876 = vmatpush1.bf16.msra.mxu0 %v5859
        %5877 = vmatprep.subr.bf16.mxu0 %v5862
        %5878 = vmatpush1.bf16.msra.mxu0 %v5861
        %5879 = vmatprep.subr.bf16.mxu0 %v5864
        %5880 = vmatpush1.bf16.msra.mxu0 %v5863
        %5881 = vmatprep.subr.bf16.mxu0 %v5866
        %5882 = vmatpush1.bf16.msra.mxu0 %v5865
        %5883 = vmatprep.subr.bf16.mxu0 %v5868
        %5884 = vmatpush1.bf16.msra.mxu0 %v5867
        %5885 = vmatprep.subr.bf16.mxu0 %v5870
        %5886 = vmatpush1.bf16.msra.mxu0 %v5869
        %5887 = vmatprep.subr.bf16.mxu0 %v5872
        %5888 = vmatpush1.bf16.msra.mxu0 %v5871
        %5889 = vmatprep.subr.bf16.mxu0 %v5874
        %5890 = vmatpush1.bf16.msra.mxu0 %v5873
        %5891 = vmatprep.subr.bf16.mxu0 0
        %5892 = vmatpush1.bf16.msra.mxu0 0
        %5893 = vmatprep.subr.bf16.mxu0 0
        %5894 = vmatpush1.bf16.msra.mxu0 0
        %5895 = vmatprep.subr.bf16.mxu0 0
        %5896 = vmatpush1.bf16.msra.mxu0 0
        %5897 = vmatprep.subr.bf16.mxu0 0
        %5898 = vmatpush1.bf16.msra.mxu0 0
        %5899 = vmatprep.subr.bf16.mxu0 0
        %5900 = vmatpush1.bf16.msra.mxu0 0
        %5901 = vmatprep.subr.bf16.mxu0 0
        %5902 = vmatpush1.bf16.msra.mxu0 0
        %5903 = vmatprep.subr.bf16.mxu0 0
        %5904 = vmatpush1.bf16.msra.mxu0 0
        %5905 = vmatprep.subr.bf16.mxu0 0
        %5906 = vmatpush1.bf16.msra.mxu0 0
        %5907 = vmatprep.mubr.bf16.mxu0 0
        %5908 = vmatmul.mubr.bf16.gmra.mrb[0].mxu0 %v462
        %v5909 = vpop.f32.mrb[0].mxu0
        %v5910 = vadd.f32 0.0, %v5909
        %v5911 = vpop.f32.mrb[0].mxu0
        %v5912 = vadd.f32 0.0, %v5911
        %v5913 = vpop.f32.mrb[0].mxu0
        %v5914 = vpop.f32.mrb[0].mxu0
        %5915 = vdwg.mxu0
        %v5916 = vrcp.pop %v5910
        %v5917 = vrcp.pop %v5912
        %v5918 = vpack.c.bf16 %v5916, %v5916
        %v5919 = vpack.c.bf16 %v5917, %v5917
        %v5921 = vsel %vm749, %v5918, 0
        %v5924 = vsel %vm749, %v5919, 0
        %5926 = vmatprep.subr.bf16.mxu0 %v5924
        %5927 = vmatpush1.bf16.msra.mxu0 %v5921
        %5928 = vmatprep.subr.bf16.mxu0 0
        %5929 = vmatpush1.bf16.msra.mxu0 0
        %5930 = vmatprep.subr.bf16.mxu0 0
        %5931 = vmatpush1.bf16.msra.mxu0 0
        %5932 = vmatprep.subr.bf16.mxu0 0
        %5933 = vmatpush1.bf16.msra.mxu0 0
        %5934 = vmatprep.subr.bf16.mxu0 0
        %5935 = vmatpush1.bf16.msra.mxu0 0
        %5936 = vmatprep.subr.bf16.mxu0 0
        %5937 = vmatpush1.bf16.msra.mxu0 0
        %5938 = vmatprep.subr.bf16.mxu0 0
        %5939 = vmatpush1.bf16.msra.mxu0 0
        %5940 = vmatprep.subr.bf16.mxu0 0
        %5941 = vmatpush1.bf16.msra.mxu0 0
        %5942 = vmatprep.subr.bf16.mxu0 0
        %5943 = vmatpush1.bf16.msra.mxu0 0
        %5944 = vmatprep.subr.bf16.mxu0 0
        %5945 = vmatpush1.bf16.msra.mxu0 0
        %5946 = vmatprep.subr.bf16.mxu0 0
        %5947 = vmatpush1.bf16.msra.mxu0 0
        %5948 = vmatprep.subr.bf16.mxu0 0
        %5949 = vmatpush1.bf16.msra.mxu0 0
        %5950 = vmatprep.subr.bf16.mxu0 0
        %5951 = vmatpush1.bf16.msra.mxu0 0
        %5952 = vmatprep.subr.bf16.mxu0 0
        %5953 = vmatpush1.bf16.msra.mxu0 0
        %5954 = vmatprep.subr.bf16.mxu0 0
        %5955 = vmatpush1.bf16.msra.mxu0 0
        %5956 = vmatprep.subr.bf16.mxu0 0
        %5957 = vmatpush1.bf16.msra.mxu0 0
        %5958 = vmatprep.mubr.bf16.mxu0 0
        %5959 = vmatmul.mubr.bf16.gmra.mrb[0].mxu0 %v1152
        %v5960 = vpop.f32.mrb[0].mxu0
        %v5961 = vadd.f32 0.0, %v5960
        %v5962 = vpop.f32.mrb[0].mxu0
        %v5963 = vadd.f32 0.0, %v5962
        %v5964 = vpop.f32.mrb[0].mxu0
        %v5965 = vadd.f32 0.0, %v5964
        %v5966 = vpop.f32.mrb[0].mxu0
        %v5967 = vadd.f32 0.0, %v5966
        %5968 = vmatprep.mubr.bf16.mxu0 0
        %5969 = vmatmul.mubr.bf16.gmra.mrb[0].mxu0 %v1155
        %v5970 = vpop.f32.mrb[0].mxu0
        %v5971 = vadd.f32 0.0, %v5970
        %v5972 = vpop.f32.mrb[0].mxu0
        %v5973 = vadd.f32 0.0, %v5972
        %v5974 = vpop.f32.mrb[0].mxu0
        %v5975 = vadd.f32 0.0, %v5974
        %v5976 = vpop.f32.mrb[0].mxu0
        %v5977 = vadd.f32 0.0, %v5976
        %5978 = vmatprep.mubr.bf16.mxu0 0
        %5979 = vmatmul.mubr.bf16.gmra.mrb[0].mxu0 %v1158
        %v5980 = vpop.f32.mrb[0].mxu0
        %v5981 = vadd.f32 0.0, %v5980
        %v5982 = vpop.f32.mrb[0].mxu0
        %v5983 = vadd.f32 0.0, %v5982
        %v5984 = vpop.f32.mrb[0].mxu0
        %v5985 = vadd.f32 0.0, %v5984
        %v5986 = vpop.f32.mrb[0].mxu0
        %v5987 = vadd.f32 0.0, %v5986
        %5988 = vmatprep.mubr.bf16.mxu0 0
        %5989 = vmatmul.mubr.bf16.gmra.mrb[0].mxu0 %v1161
        %v5990 = vpop.f32.mrb[0].mxu0
        %v5991 = vadd.f32 0.0, %v5990
        %v5992 = vpop.f32.mrb[0].mxu0
        %v5993 = vadd.f32 0.0, %v5992
        %v5994 = vpop.f32.mrb[0].mxu0
        %v5995 = vadd.f32 0.0, %v5994
        %v5996 = vpop.f32.mrb[0].mxu0
        %v5997 = vadd.f32 0.0, %v5996
        %5998 = vmatprep.mubr.bf16.mxu0 0
        %5999 = vmatmul.mubr.bf16.gmra.mrb[0].mxu0 %v1164
        %v6000 = vpop.f32.mrb[0].mxu0
        %v6001 = vadd.f32 0.0, %v6000
        %v6002 = vpop.f32.mrb[0].mxu0
        %v6003 = vadd.f32 0.0, %v6002
        %v6004 = vpop.f32.mrb[0].mxu0
        %v6005 = vadd.f32 0.0, %v6004
        %v6006 = vpop.f32.mrb[0].mxu0
        %v6007 = vadd.f32 0.0, %v6006
        %6008 = vmatprep.mubr.bf16.mxu0 0
        %6009 = vmatmul.mubr.bf16.gmra.mrb[0].mxu0 %v1167
        %v6010 = vpop.f32.mrb[0].mxu0
        %v6011 = vadd.f32 0.0, %v6010
        %v6012 = vpop.f32.mrb[0].mxu0
        %v6013 = vadd.f32 0.0, %v6012
        %v6014 = vpop.f32.mrb[0].mxu0
        %v6015 = vadd.f32 0.0, %v6014
        %v6016 = vpop.f32.mrb[0].mxu0
        %v6017 = vadd.f32 0.0, %v6016
        %6018 = vmatprep.mubr.bf16.mxu0 0
        %6019 = vmatmul.mubr.bf16.gmra.mrb[0].mxu0 %v1170
        %v6020 = vpop.f32.mrb[0].mxu0
        %v6021 = vadd.f32 0.0, %v6020
        %v6022 = vpop.f32.mrb[0].mxu0
        %v6023 = vadd.f32 0.0, %v6022
        %v6024 = vpop.f32.mrb[0].mxu0
        %v6025 = vadd.f32 0.0, %v6024
        %v6026 = vpop.f32.mrb[0].mxu0
        %v6027 = vadd.f32 0.0, %v6026
        %6028 = vmatprep.mubr.bf16.mxu0 0
        %6029 = vmatmul.mubr.bf16.gmra.mrb[0].mxu0 %v1173
        %v6030 = vpop.f32.mrb[0].mxu0
        %v6031 = vadd.f32 0.0, %v6030
        %v6032 = vpop.f32.mrb[0].mxu0
        %v6033 = vadd.f32 0.0, %v6032
        %v6034 = vpop.f32.mrb[0].mxu0
        %v6035 = vadd.f32 0.0, %v6034
        %v6036 = vpop.f32.mrb[0].mxu0
        %v6037 = vadd.f32 0.0, %v6036
        %6038 = vdwg.mxu0
        %v6039 = vmul.f32 %v5796, %v5961
        %v6040 = vmul.f32 %v5798, %v5963
        %v6041 = vmul.f32 %v5800, %v5965
        %v6042 = vmul.f32 %v5802, %v5967
        %v6043 = vmul.f32 %v5804, %v5971
        %v6044 = vmul.f32 %v5806, %v5973
        %v6045 = vmul.f32 %v5808, %v5975
        %v6046 = vmul.f32 %v5810, %v5977
        %v6047 = vmul.f32 %v5812, %v5981
        %v6048 = vmul.f32 %v5814, %v5983
        %v6049 = vmul.f32 %v5816, %v5985
        %v6050 = vmul.f32 %v5818, %v5987
        %v6051 = vmul.f32 %v5820, %v5991
        %v6052 = vmul.f32 %v5822, %v5993
        %v6053 = vmul.f32 %v5824, %v5995
        %v6054 = vmul.f32 %v5826, %v5997
        %v6055 = vmul.f32 %v5828, %v6001
        %v6056 = vmul.f32 %v5830, %v6003
        %v6057 = vmul.f32 %v5832, %v6005
        %v6058 = vmul.f32 %v5834, %v6007
        %v6059 = vmul.f32 %v5836, %v6011
        %v6060 = vmul.f32 %v5838, %v6013
        %v6061 = vmul.f32 %v5840, %v6015
        %v6062 = vmul.f32 %v5842, %v6017
        %v6063 = vmul.f32 %v5844, %v6021
        %v6064 = vmul.f32 %v5846, %v6023
        %v6065 = vmul.f32 %v5848, %v6025
        %v6066 = vmul.f32 %v5850, %v6027
        %v6067 = vmul.f32 %v5852, %v6031
        %v6068 = vmul.f32 %v5854, %v6033
        %v6069 = vmul.f32 %v5856, %v6035
        %v6070 = vmul.f32 %v5858, %v6037
        %v6071 = vpack.c.bf16 %v6041, %v6039
        %v6072 = vpack.c.bf16 %v6042, %v6040
        %v6073 = vpack.c.bf16 %v6045, %v6043
        %v6074 = vpack.c.bf16 %v6046, %v6044
        %v6075 = vpack.c.bf16 %v6049, %v6047
        %v6076 = vpack.c.bf16 %v6050, %v6048
        %v6077 = vpack.c.bf16 %v6053, %v6051
        %v6078 = vpack.c.bf16 %v6054, %v6052
        %v6079 = vpack.c.bf16 %v6057, %v6055
        %v6080 = vpack.c.bf16 %v6058, %v6056
        %v6081 = vpack.c.bf16 %v6061, %v6059
        %v6082 = vpack.c.bf16 %v6062, %v6060
        %v6083 = vpack.c.bf16 %v6065, %v6063
        %v6084 = vpack.c.bf16 %v6066, %v6064
        %v6085 = vpack.c.bf16 %v6069, %v6067
        %v6086 = vpack.c.bf16 %v6070, %v6068
        %v6087 = vmax.f32 %v5406, %v5408
        %6088 = vmax.xlane.f32.xlu0 %v6087
        %v6089 = vpop.xlane.xlu0 %6088
        %v6090 = vmax.f32 %v5410, %v5412
        %6091 = vmax.xlane.f32.xlu0 %v6090
        %v6092 = vpop.xlane.xlu0 %6091
        %v6093 = vmax.f32 %v5416, %v5418
        %6094 = vmax.xlane.f32.xlu0 %v6093
        %v6095 = vpop.xlane.xlu0 %6094
        %v6096 = vmax.f32 %v5420, %v5422
        %6097 = vmax.xlane.f32.xlu0 %v6096
        %v6098 = vpop.xlane.xlu0 %6097
        %v6099 = vmax.f32 %v5426, %v5428
        %6100 = vmax.xlane.f32.xlu0 %v6099
        %v6101 = vpop.xlane.xlu0 %6100
        %v6102 = vmax.f32 %v5430, %v5432
        %6103 = vmax.xlane.f32.xlu0 %v6102
        %v6104 = vpop.xlane.xlu0 %6103
        %v6105 = vmax.f32 %v5436, %v5438
        %6106 = vmax.xlane.f32.xlu0 %v6105
        %v6107 = vpop.xlane.xlu0 %6106
        %v6108 = vmax.f32 %v5440, %v5442
        %6109 = vmax.xlane.f32.xlu0 %v6108
        %v6110 = vpop.xlane.xlu0 %6109
        %v6111 = vmax.f32 %v5446, %v5448
        %6112 = vmax.xlane.f32.xlu0 %v6111
        %v6113 = vpop.xlane.xlu0 %6112
        %v6114 = vmax.f32 %v5450, %v5452
        %6115 = vmax.xlane.f32.xlu0 %v6114
        %v6116 = vpop.xlane.xlu0 %6115
        %v6117 = vmax.f32 %v5456, %v5458
        %6118 = vmax.xlane.f32.xlu0 %v6117
        %v6119 = vpop.xlane.xlu0 %6118
        %v6120 = vmax.f32 %v5460, %v5462
        %6121 = vmax.xlane.f32.xlu0 %v6120
        %v6122 = vpop.xlane.xlu0 %6121
        %v6123 = vmax.f32 %v5466, %v5468
        %6124 = vmax.xlane.f32.xlu0 %v6123
        %v6125 = vpop.xlane.xlu0 %6124
        %v6126 = vmax.f32 %v5470, %v5472
        %6127 = vmax.xlane.f32.xlu0 %v6126
        %v6128 = vpop.xlane.xlu0 %6127
        %v6129 = vmax.f32 %v5476, %v5478
        %6130 = vmax.xlane.f32.xlu0 %v6129
        %v6131 = vpop.xlane.xlu0 %6130
        %v6132 = vmax.f32 %v5480, %v5482
        %6133 = vmax.xlane.f32.xlu0 %v6132
        %v6134 = vpop.xlane.xlu0 %6133
        %v6135 = vsub.f32 %v5406, %v6089
        %v6136 = vsub.f32 %v5408, %v6089
        %v6137 = vsub.f32 %v5410, %v6092
        %v6138 = vsub.f32 %v5412, %v6092
        %v6139 = vsub.f32 %v5416, %v6095
        %v6140 = vsub.f32 %v5418, %v6095
        %v6141 = vsub.f32 %v5420, %v6098
        %v6142 = vsub.f32 %v5422, %v6098
        %v6143 = vsub.f32 %v5426, %v6101
        %v6144 = vsub.f32 %v5428, %v6101
        %v6145 = vsub.f32 %v5430, %v6104
        %v6146 = vsub.f32 %v5432, %v6104
        %v6147 = vsub.f32 %v5436, %v6107
        %v6148 = vsub.f32 %v5438, %v6107
        %v6149 = vsub.f32 %v5440, %v6110
        %v6150 = vsub.f32 %v5442, %v6110
        %v6151 = vsub.f32 %v5446, %v6113
        %v6152 = vsub.f32 %v5448, %v6113
        %v6153 = vsub.f32 %v5450, %v6116
        %v6154 = vsub.f32 %v5452, %v6116
        %v6155 = vsub.f32 %v5456, %v6119
        %v6156 = vsub.f32 %v5458, %v6119
        %v6157 = vsub.f32 %v5460, %v6122
        %v6158 = vsub.f32 %v5462, %v6122
        %v6159 = vsub.f32 %v5466, %v6125
        %v6160 = vsub.f32 %v5468, %v6125
        %v6161 = vsub.f32 %v5470, %v6128
        %v6162 = vsub.f32 %v5472, %v6128
        %v6163 = vsub.f32 %v5476, %v6131
        %v6164 = vsub.f32 %v5478, %v6131
        %v6165 = vsub.f32 %v5480, %v6134
        %v6166 = vsub.f32 %v5482, %v6134
        %v6167 = vmul.f32 %v6135, 1.442695
        %v6168 = vpow.pop %v6167
        %v6169 = vmul.f32 %v6136, 1.442695
        %v6170 = vpow.pop %v6169
        %v6171 = vmul.f32 %v6137, 1.442695
        %v6172 = vpow.pop %v6171
        %v6173 = vmul.f32 %v6138, 1.442695
        %v6174 = vpow.pop %v6173
        %v6175 = vmul.f32 %v6139, 1.442695
        %v6176 = vpow.pop %v6175
        %v6177 = vmul.f32 %v6140, 1.442695
        %v6178 = vpow.pop %v6177
        %v6179 = vmul.f32 %v6141, 1.442695
        %v6180 = vpow.pop %v6179
        %v6181 = vmul.f32 %v6142, 1.442695
        %v6182 = vpow.pop %v6181
        %v6183 = vmul.f32 %v6143, 1.442695
        %v6184 = vpow.pop %v6183
        %v6185 = vmul.f32 %v6144, 1.442695
        %v6186 = vpow.pop %v6185
        %v6187 = vmul.f32 %v6145, 1.442695
        %v6188 = vpow.pop %v6187
        %v6189 = vmul.f32 %v6146, 1.442695
        %v6190 = vpow.pop %v6189
        %v6191 = vmul.f32 %v6147, 1.442695
        %v6192 = vpow.pop %v6191
        %v6193 = vmul.f32 %v6148, 1.442695
        %v6194 = vpow.pop %v6193
        %v6195 = vmul.f32 %v6149, 1.442695
        %v6196 = vpow.pop %v6195
        %v6197 = vmul.f32 %v6150, 1.442695
        %v6198 = vpow.pop %v6197
        %v6199 = vmul.f32 %v6151, 1.442695
        %v6200 = vpow.pop %v6199
        %v6201 = vmul.f32 %v6152, 1.442695
        %v6202 = vpow.pop %v6201
        %v6203 = vmul.f32 %v6153, 1.442695
        %v6204 = vpow.pop %v6203
        %v6205 = vmul.f32 %v6154, 1.442695
        %v6206 = vpow.pop %v6205
        %v6207 = vmul.f32 %v6155, 1.442695
        %v6208 = vpow.pop %v6207
        %v6209 = vmul.f32 %v6156, 1.442695
        %v6210 = vpow.pop %v6209
        %v6211 = vmul.f32 %v6157, 1.442695
        %v6212 = vpow.pop %v6211
        %v6213 = vmul.f32 %v6158, 1.442695
        %v6214 = vpow.pop %v6213
        %v6215 = vmul.f32 %v6159, 1.442695
        %v6216 = vpow.pop %v6215
        %v6217 = vmul.f32 %v6160, 1.442695
        %v6218 = vpow.pop %v6217
        %v6219 = vmul.f32 %v6161, 1.442695
        %v6220 = vpow.pop %v6219
        %v6221 = vmul.f32 %v6162, 1.442695
        %v6222 = vpow.pop %v6221
        %v6223 = vmul.f32 %v6163, 1.442695
        %v6224 = vpow.pop %v6223
        %v6225 = vmul.f32 %v6164, 1.442695
        %v6226 = vpow.pop %v6225
        %v6227 = vmul.f32 %v6165, 1.442695
        %v6228 = vpow.pop %v6227
        %v6229 = vmul.f32 %v6166, 1.442695
        %v6230 = vpow.pop %v6229
        %v6231 = vadd.f32 %v6168, %v6170
        %6232 = vadd.xlane.f32.xlu0 %v6231
        %v6233 = vpop.xlane.xlu0 %6232
        %v6234 = vadd.f32 %v6172, %v6174
        %6235 = vadd.xlane.f32.xlu0 %v6234
        %v6236 = vpop.xlane.xlu0 %6235
        %v6237 = vadd.f32 %v6176, %v6178
        %6238 = vadd.xlane.f32.xlu0 %v6237
        %v6239 = vpop.xlane.xlu0 %6238
        %v6240 = vadd.f32 %v6180, %v6182
        %6241 = vadd.xlane.f32.xlu0 %v6240
        %v6242 = vpop.xlane.xlu0 %6241
        %v6243 = vadd.f32 %v6184, %v6186
        %6244 = vadd.xlane.f32.xlu0 %v6243
        %v6245 = vpop.xlane.xlu0 %6244
        %v6246 = vadd.f32 %v6188, %v6190
        %6247 = vadd.xlane.f32.xlu0 %v6246
        %v6248 = vpop.xlane.xlu0 %6247
        %v6249 = vadd.f32 %v6192, %v6194
        %6250 = vadd.xlane.f32.xlu0 %v6249
        %v6251 = vpop.xlane.xlu0 %6250
        %v6252 = vadd.f32 %v6196, %v6198
        %6253 = vadd.xlane.f32.xlu0 %v6252
        %v6254 = vpop.xlane.xlu0 %6253
        %v6255 = vadd.f32 %v6200, %v6202
        %6256 = vadd.xlane.f32.xlu0 %v6255
        %v6257 = vpop.xlane.xlu0 %6256
        %v6258 = vadd.f32 %v6204, %v6206
        %6259 = vadd.xlane.f32.xlu0 %v6258
        %v6260 = vpop.xlane.xlu0 %6259
        %v6261 = vadd.f32 %v6208, %v6210
        %6262 = vadd.xlane.f32.xlu0 %v6261
        %v6263 = vpop.xlane.xlu0 %6262
        %v6264 = vadd.f32 %v6212, %v6214
        %6265 = vadd.xlane.f32.xlu0 %v6264
        %v6266 = vpop.xlane.xlu0 %6265
        %v6267 = vadd.f32 %v6216, %v6218
        %6268 = vadd.xlane.f32.xlu0 %v6267
        %v6269 = vpop.xlane.xlu0 %6268
        %v6270 = vadd.f32 %v6220, %v6222
        %6271 = vadd.xlane.f32.xlu0 %v6270
        %v6272 = vpop.xlane.xlu0 %6271
        %v6273 = vadd.f32 %v6224, %v6226
        %6274 = vadd.xlane.f32.xlu0 %v6273
        %v6275 = vpop.xlane.xlu0 %6274
        %v6276 = vadd.f32 %v6228, %v6230
        %6277 = vadd.xlane.f32.xlu0 %v6276
        %v6278 = vpop.xlane.xlu0 %6277
        %v6279 = vrcp.pop %v6233
        %v6280 = vrcp.pop %v6236
        %v6281 = vrcp.pop %v6239
        %v6282 = vrcp.pop %v6242
        %v6283 = vrcp.pop %v6245
        %v6284 = vrcp.pop %v6248
        %v6285 = vrcp.pop %v6251
        %v6286 = vrcp.pop %v6254
        %v6287 = vrcp.pop %v6257
        %v6288 = vrcp.pop %v6260
        %v6289 = vrcp.pop %v6263
        %v6290 = vrcp.pop %v6266
        %v6291 = vrcp.pop %v6269
        %v6292 = vrcp.pop %v6272
        %v6293 = vrcp.pop %v6275
        %v6294 = vrcp.pop %v6278
        %v6295 = vmul.f32 %v6168, %v6279
        %v6296 = vmul.f32 %v6170, %v6279
        %v6297 = vmul.f32 %v6172, %v6280
        %v6298 = vmul.f32 %v6174, %v6280
        %v6299 = vmul.f32 %v6176, %v6281
        %v6300 = vmul.f32 %v6178, %v6281
        %v6301 = vmul.f32 %v6180, %v6282
        %v6302 = vmul.f32 %v6182, %v6282
        %v6303 = vmul.f32 %v6184, %v6283
        %v6304 = vmul.f32 %v6186, %v6283
        %v6305 = vmul.f32 %v6188, %v6284
        %v6306 = vmul.f32 %v6190, %v6284
        %v6307 = vmul.f32 %v6192, %v6285
        %v6308 = vmul.f32 %v6194, %v6285
        %v6309 = vmul.f32 %v6196, %v6286
        %v6310 = vmul.f32 %v6198, %v6286
        %v6311 = vmul.f32 %v6200, %v6287
        %v6312 = vmul.f32 %v6202, %v6287
        %v6313 = vmul.f32 %v6204, %v6288
        %v6314 = vmul.f32 %v6206, %v6288
        %v6315 = vmul.f32 %v6208, %v6289
        %v6316 = vmul.f32 %v6210, %v6289
        %v6317 = vmul.f32 %v6212, %v6290
        %v6318 = vmul.f32 %v6214, %v6290
        %v6319 = vmul.f32 %v6216, %v6291
        %v6320 = vmul.f32 %v6218, %v6291
        %v6321 = vmul.f32 %v6220, %v6292
        %v6322 = vmul.f32 %v6222, %v6292
        %v6323 = vmul.f32 %v6224, %v6293
        %v6324 = vmul.f32 %v6226, %v6293
        %v6325 = vmul.f32 %v6228, %v6294
        %v6326 = vmul.f32 %v6230, %v6294
        %v6327 = vpack.c.bf16 %v6297, %v6295
        %v6328 = vpack.c.bf16 %v6298, %v6296
        %v6329 = vpack.c.bf16 %v6301, %v6299
        %v6330 = vpack.c.bf16 %v6302, %v6300
        %v6331 = vpack.c.bf16 %v6305, %v6303
        %v6332 = vpack.c.bf16 %v6306, %v6304
        %v6333 = vpack.c.bf16 %v6309, %v6307
        %v6334 = vpack.c.bf16 %v6310, %v6308
        %v6335 = vpack.c.bf16 %v6313, %v6311
        %v6336 = vpack.c.bf16 %v6314, %v6312
        %v6337 = vpack.c.bf16 %v6317, %v6315
        %v6338 = vpack.c.bf16 %v6318, %v6316
        %v6339 = vpack.c.bf16 %v6321, %v6319
        %v6340 = vpack.c.bf16 %v6322, %v6320
        %v6341 = vpack.c.bf16 %v6325, %v6323
        %v6342 = vpack.c.bf16 %v6326, %v6324
        %v6343 = vpack.c.bf16 %v5490, %v5486
        %v6344 = vpack.c.bf16 %v5492, %v5488
        %v6345 = vpack.c.bf16 %v5500, %v5496
        %v6346 = vpack.c.bf16 %v5502, %v5498
        %v6347 = vpack.c.bf16 %v5510, %v5506
        %v6348 = vpack.c.bf16 %v5512, %v5508
        %v6349 = vpack.c.bf16 %v5520, %v5516
        %v6350 = vpack.c.bf16 %v5522, %v5518
        %v6351 = vpack.c.bf16 %v5530, %v5526
        %v6352 = vpack.c.bf16 %v5532, %v5528
        %v6353 = vpack.c.bf16 %v5540, %v5536
        %v6354 = vpack.c.bf16 %v5542, %v5538
        %v6355 = vpack.c.bf16 %v5550, %v5546
        %v6356 = vpack.c.bf16 %v5552, %v5548
        %v6357 = vpack.c.bf16 %v5560, %v5556
        %v6358 = vpack.c.bf16 %v5562, %v5558
        %6359 = vmatprep.subr.bf16.mxu0 %v6344
        %6360 = vmatpush1.bf16.xpose.msra.mxu0 %v6343
        %6361 = vmatprep.subr.bf16.mxu0 %v6346
        %6362 = vmatpush1.bf16.xpose.msra.mxu0 %v6345
        %6363 = vmatprep.subr.bf16.mxu0 %v6348
        %6364 = vmatpush1.bf16.xpose.msra.mxu0 %v6347
        %6365 = vmatprep.subr.bf16.mxu0 %v6350
        %6366 = vmatpush1.bf16.xpose.msra.mxu0 %v6349
        %6367 = vmatprep.subr.bf16.mxu0 %v6352
        %6368 = vmatpush1.bf16.xpose.msra.mxu0 %v6351
        %6369 = vmatprep.subr.bf16.mxu0 %v6354
        %6370 = vmatpush1.bf16.xpose.msra.mxu0 %v6353
        %6371 = vmatprep.subr.bf16.mxu0 %v6356
        %6372 = vmatpush1.bf16.xpose.msra.mxu0 %v6355
        %6373 = vmatprep.subr.bf16.mxu0 %v6358
        %6374 = vmatpush1.bf16.xpose.msra.mxu0 %v6357
        %6375 = vmatprep.subr.bf16.mxu0 0
        %6376 = vmatpush1.bf16.xpose.msra.mxu0 0
        %6377 = vmatprep.subr.bf16.mxu0 0
        %6378 = vmatpush1.bf16.xpose.msra.mxu0 0
        %6379 = vmatprep.subr.bf16.mxu0 0
        %6380 = vmatpush1.bf16.xpose.msra.mxu0 0
        %6381 = vmatprep.subr.bf16.mxu0 0
        %6382 = vmatpush1.bf16.xpose.msra.mxu0 0
        %6383 = vmatprep.subr.bf16.mxu0 0
        %6384 = vmatpush1.bf16.xpose.msra.mxu0 0
        %6385 = vmatprep.subr.bf16.mxu0 0
        %6386 = vmatpush1.bf16.xpose.msra.mxu0 0
        %6387 = vmatprep.subr.bf16.mxu0 0
        %6388 = vmatpush1.bf16.xpose.msra.mxu0 0
        %6389 = vmatprep.subr.bf16.mxu0 0
        %6390 = vmatpush1.bf16.xpose.msra.mxu0 0
        %6391 = vmatprep.mubr.bf16.mxu0 %v6328
        %6392 = vmatmul.mubr.bf16.gmra.mrb[0].mxu0 %v6327
        %v6393 = vpop.f32.mrb[0].mxu0
        %v6394 = vadd.f32 0.0, %v6393
        %v6395 = vpop.f32.mrb[0].mxu0
        %v6396 = vpop.f32.mrb[0].mxu0
        %v6397 = vadd.f32 0.0, %v6396
        %v6398 = vpop.f32.mrb[0].mxu0
        %6399 = vmatprep.mubr.bf16.mxu0 %v6330
        %6400 = vmatmul.mubr.bf16.gmra.mrb[0].mxu0 %v6329
        %v6401 = vpop.f32.mrb[0].mxu0
        %v6402 = vadd.f32 0.0, %v6401
        %v6403 = vpop.f32.mrb[0].mxu0
        %v6404 = vpop.f32.mrb[0].mxu0
        %v6405 = vadd.f32 0.0, %v6404
        %v6406 = vpop.f32.mrb[0].mxu0
        %6407 = vmatprep.mubr.bf16.mxu0 %v6332
        %6408 = vmatmul.mubr.bf16.gmra.mrb[0].mxu0 %v6331
        %v6409 = vpop.f32.mrb[0].mxu0
        %v6410 = vadd.f32 0.0, %v6409
        %v6411 = vpop.f32.mrb[0].mxu0
        %v6412 = vpop.f32.mrb[0].mxu0
        %v6413 = vadd.f32 0.0, %v6412
        %v6414 = vpop.f32.mrb[0].mxu0
        %6415 = vmatprep.mubr.bf16.mxu0 %v6334
        %6416 = vmatmul.mubr.bf16.gmra.mrb[0].mxu0 %v6333
        %v6417 = vpop.f32.mrb[0].mxu0
        %v6418 = vadd.f32 0.0, %v6417
        %v6419 = vpop.f32.mrb[0].mxu0
        %v6420 = vpop.f32.mrb[0].mxu0
        %v6421 = vadd.f32 0.0, %v6420
        %v6422 = vpop.f32.mrb[0].mxu0
        %6423 = vmatprep.mubr.bf16.mxu0 %v6336
        %6424 = vmatmul.mubr.bf16.gmra.mrb[0].mxu0 %v6335
        %v6425 = vpop.f32.mrb[0].mxu0
        %v6426 = vadd.f32 0.0, %v6425
        %v6427 = vpop.f32.mrb[0].mxu0
        %v6428 = vpop.f32.mrb[0].mxu0
        %v6429 = vadd.f32 0.0, %v6428
        %v6430 = vpop.f32.mrb[0].mxu0
        %6431 = vmatprep.mubr.bf16.mxu0 %v6338
        %6432 = vmatmul.mubr.bf16.gmra.mrb[0].mxu0 %v6337
        %v6433 = vpop.f32.mrb[0].mxu0
        %v6434 = vadd.f32 0.0, %v6433
        %v6435 = vpop.f32.mrb[0].mxu0
        %v6436 = vpop.f32.mrb[0].mxu0
        %v6437 = vadd.f32 0.0, %v6436
        %v6438 = vpop.f32.mrb[0].mxu0
        %6439 = vmatprep.mubr.bf16.mxu0 %v6340
        %6440 = vmatmul.mubr.bf16.gmra.mrb[0].mxu0 %v6339
        %v6441 = vpop.f32.mrb[0].mxu0
        %v6442 = vadd.f32 0.0, %v6441
        %v6443 = vpop.f32.mrb[0].mxu0
        %v6444 = vpop.f32.mrb[0].mxu0
        %v6445 = vadd.f32 0.0, %v6444
        %v6446 = vpop.f32.mrb[0].mxu0
        %6447 = vmatprep.mubr.bf16.mxu0 %v6342
        %6448 = vmatmul.mubr.bf16.gmra.mrb[0].mxu0 %v6341
        %v6449 = vpop.f32.mrb[0].mxu0
        %v6450 = vadd.f32 0.0, %v6449
        %v6451 = vpop.f32.mrb[0].mxu0
        %v6452 = vpop.f32.mrb[0].mxu0
        %v6453 = vadd.f32 0.0, %v6452
        %v6454 = vpop.f32.mrb[0].mxu0
        %6455 = vdwg.mxu0
        %v6456 = vmul.f32 %v6394, %v446
        %v6457 = vmul.f32 %v6397, %v447
        %v6458 = vmul.f32 %v6402, %v448
        %v6459 = vmul.f32 %v6405, %v449
        %v6460 = vmul.f32 %v6410, %v450
        %v6461 = vmul.f32 %v6413, %v451
        %v6462 = vmul.f32 %v6418, %v452
        %v6463 = vmul.f32 %v6421, %v453
        %v6464 = vmul.f32 %v6426, %v454
        %v6465 = vmul.f32 %v6429, %v455
        %v6466 = vmul.f32 %v6434, %v456
        %v6467 = vmul.f32 %v6437, %v457
        %v6468 = vmul.f32 %v6442, %v458
        %v6469 = vmul.f32 %v6445, %v459
        %v6470 = vmul.f32 %v6450, %v460
        %v6471 = vmul.f32 %v6453, %v461
        %v6472 = vpack.c.bf16 %v6457, %v6456
        %v6473 = vpack.c.bf16 %v6459, %v6458
        %v6474 = vpack.c.bf16 %v6461, %v6460
        %v6475 = vpack.c.bf16 %v6463, %v6462
        %v6476 = vpack.c.bf16 %v6465, %v6464
        %v6477 = vpack.c.bf16 %v6467, %v6466
        %v6478 = vpack.c.bf16 %v6469, %v6468
        %v6479 = vpack.c.bf16 %v6471, %v6470
        %6480 = vxpose.xlu0.c.b16.start [1/8] %v6472, 128
        %6481 = vxpose.xlu0.c.b16.cont [2/8] %v6473, 128
        %6482 = vxpose.xlu0.c.b16.cont [3/8] %v6474, 128
        %6483 = vxpose.xlu0.c.b16.cont [4/8] %v6475, 128
        %6484 = vxpose.xlu0.c.b16.cont [5/8] %v6476, 128
        %6485 = vxpose.xlu0.c.b16.cont [6/8] %v6477, 128
        %6486 = vxpose.xlu0.c.b16.cont [7/8] %v6478, 128
        %6487 = vxpose.xlu0.c.b16.end [8/8] %v6479, 128
        %v6488 = vpop.trf.xlu0
        %v6489 = vpop.trf.xlu0
        %v6490 = vpop.trf.xlu0
        %v6491 = vpop.trf.xlu0
        %v6492 = vpop.trf.xlu0
        %v6493 = vpop.trf.xlu0
        %v6494 = vpop.trf.xlu0
        %v6495 = vpop.trf.xlu0
        %6496 = vmatprep.subr.bf16.mxu0 %v6072
        %6497 = vmatpush1.bf16.msra.mxu0 %v6071
        %6498 = vmatprep.subr.bf16.mxu0 %v6074
        %6499 = vmatpush1.bf16.msra.mxu0 %v6073
        %6500 = vmatprep.subr.bf16.mxu0 %v6076
        %6501 = vmatpush1.bf16.msra.mxu0 %v6075
        %6502 = vmatprep.subr.bf16.mxu0 %v6078
        %6503 = vmatpush1.bf16.msra.mxu0 %v6077
        %6504 = vmatprep.subr.bf16.mxu0 %v6080
        %6505 = vmatpush1.bf16.msra.mxu0 %v6079
        %6506 = vmatprep.subr.bf16.mxu0 %v6082
        %6507 = vmatpush1.bf16.msra.mxu0 %v6081
        %6508 = vmatprep.subr.bf16.mxu0 %v6084
        %6509 = vmatpush1.bf16.msra.mxu0 %v6083
        %6510 = vmatprep.subr.bf16.mxu0 %v6086
        %6511 = vmatpush1.bf16.msra.mxu0 %v6085
        %6512 = vmatprep.subr.bf16.mxu0 0
        %6513 = vmatpush1.bf16.msra.mxu0 0
        %6514 = vmatprep.subr.bf16.mxu0 0
        %6515 = vmatpush1.bf16.msra.mxu0 0
        %6516 = vmatprep.subr.bf16.mxu0 0
        %6517 = vmatpush1.bf16.msra.mxu0 0
        %6518 = vmatprep.subr.bf16.mxu0 0
        %6519 = vmatpush1.bf16.msra.mxu0 0
        %6520 = vmatprep.subr.bf16.mxu0 0
        %6521 = vmatpush1.bf16.msra.mxu0 0
        %6522 = vmatprep.subr.bf16.mxu0 0
        %6523 = vmatpush1.bf16.msra.mxu0 0
        %6524 = vmatprep.subr.bf16.mxu0 0
        %6525 = vmatpush1.bf16.msra.mxu0 0
        %6526 = vmatprep.subr.bf16.mxu0 0
        %6527 = vmatpush1.bf16.msra.mxu0 0
        %6528 = vmatprep.mubr.bf16.mxu0 0
        %6529 = vmatmul.mubr.bf16.gmra.mrb[0].mxu0 %v6488
        %v6530 = vpop.f32.mrb[0].mxu0
        %v6531 = vadd.f32 0.0, %v6530
        %v6532 = vpop.f32.mrb[0].mxu0
        %v6533 = vadd.f32 0.0, %v6532
        %v6534 = vpop.f32.mrb[0].mxu0
        %v6535 = vadd.f32 0.0, %v6534
        %v6536 = vpop.f32.mrb[0].mxu0
        %v6537 = vadd.f32 0.0, %v6536
        %6538 = vmatprep.mubr.bf16.mxu0 0
        %6539 = vmatmul.mubr.bf16.gmra.mrb[0].mxu0 %v6489
        %v6540 = vpop.f32.mrb[0].mxu0
        %v6541 = vadd.f32 0.0, %v6540
        %v6542 = vpop.f32.mrb[0].mxu0
        %v6543 = vadd.f32 0.0, %v6542
        %v6544 = vpop.f32.mrb[0].mxu0
        %v6545 = vadd.f32 0.0, %v6544
        %v6546 = vpop.f32.mrb[0].mxu0
        %v6547 = vadd.f32 0.0, %v6546
        %6548 = vmatprep.mubr.bf16.mxu0 0
        %6549 = vmatmul.mubr.bf16.gmra.mrb[0].mxu0 %v6490
        %v6550 = vpop.f32.mrb[0].mxu0
        %v6551 = vadd.f32 0.0, %v6550
        %v6552 = vpop.f32.mrb[0].mxu0
        %v6553 = vadd.f32 0.0, %v6552
        %v6554 = vpop.f32.mrb[0].mxu0
        %v6555 = vadd.f32 0.0, %v6554
        %v6556 = vpop.f32.mrb[0].mxu0
        %v6557 = vadd.f32 0.0, %v6556
        %6558 = vmatprep.mubr.bf16.mxu0 0
        %6559 = vmatmul.mubr.bf16.gmra.mrb[0].mxu0 %v6491
        %v6560 = vpop.f32.mrb[0].mxu0
        %v6561 = vadd.f32 0.0, %v6560
        %v6562 = vpop.f32.mrb[0].mxu0
        %v6563 = vadd.f32 0.0, %v6562
        %v6564 = vpop.f32.mrb[0].mxu0
        %v6565 = vadd.f32 0.0, %v6564
        %v6566 = vpop.f32.mrb[0].mxu0
        %v6567 = vadd.f32 0.0, %v6566
        %6568 = vmatprep.mubr.bf16.mxu0 0
        %6569 = vmatmul.mubr.bf16.gmra.mrb[0].mxu0 %v6492
        %v6570 = vpop.f32.mrb[0].mxu0
        %v6571 = vadd.f32 0.0, %v6570
        %v6572 = vpop.f32.mrb[0].mxu0
        %v6573 = vadd.f32 0.0, %v6572
        %v6574 = vpop.f32.mrb[0].mxu0
        %v6575 = vadd.f32 0.0, %v6574
        %v6576 = vpop.f32.mrb[0].mxu0
        %v6577 = vadd.f32 0.0, %v6576
        %6578 = vmatprep.mubr.bf16.mxu0 0
        %6579 = vmatmul.mubr.bf16.gmra.mrb[0].mxu0 %v6493
        %v6580 = vpop.f32.mrb[0].mxu0
        %v6581 = vadd.f32 0.0, %v6580
        %v6582 = vpop.f32.mrb[0].mxu0
        %v6583 = vadd.f32 0.0, %v6582
        %v6584 = vpop.f32.mrb[0].mxu0
        %v6585 = vadd.f32 0.0, %v6584
        %v6586 = vpop.f32.mrb[0].mxu0
        %v6587 = vadd.f32 0.0, %v6586
        %6588 = vmatprep.mubr.bf16.mxu0 0
        %6589 = vmatmul.mubr.bf16.gmra.mrb[0].mxu0 %v6494
        %v6590 = vpop.f32.mrb[0].mxu0
        %v6591 = vadd.f32 0.0, %v6590
        %v6592 = vpop.f32.mrb[0].mxu0
        %v6593 = vadd.f32 0.0, %v6592
        %v6594 = vpop.f32.mrb[0].mxu0
        %v6595 = vadd.f32 0.0, %v6594
        %v6596 = vpop.f32.mrb[0].mxu0
        %v6597 = vadd.f32 0.0, %v6596
        %6598 = vmatprep.mubr.bf16.mxu0 0
        %6599 = vmatmul.mubr.bf16.gmra.mrb[0].mxu0 %v6495
        %v6600 = vpop.f32.mrb[0].mxu0
        %v6601 = vadd.f32 0.0, %v6600
        %v6602 = vpop.f32.mrb[0].mxu0
        %v6603 = vadd.f32 0.0, %v6602
        %v6604 = vpop.f32.mrb[0].mxu0
        %v6605 = vadd.f32 0.0, %v6604
        %v6606 = vpop.f32.mrb[0].mxu0
        %v6607 = vadd.f32 0.0, %v6606
        %6608 = vdwg.mxu0
        %v6609 = vpack.c.bf16 %v6535, %v6531
        %v6610 = vpack.c.bf16 %v6537, %v6533
        %v6611 = vpack.c.bf16 %v6545, %v6541
        %v6612 = vpack.c.bf16 %v6547, %v6543
        %v6613 = vpack.c.bf16 %v6555, %v6551
        %v6614 = vpack.c.bf16 %v6557, %v6553
        %v6615 = vpack.c.bf16 %v6565, %v6561
        %v6616 = vpack.c.bf16 %v6567, %v6563
        %v6617 = vpack.c.bf16 %v6575, %v6571
        %v6618 = vpack.c.bf16 %v6577, %v6573
        %v6619 = vpack.c.bf16 %v6585, %v6581
        %v6620 = vpack.c.bf16 %v6587, %v6583
        %v6621 = vpack.c.bf16 %v6595, %v6591
        %v6622 = vpack.c.bf16 %v6597, %v6593
        %v6623 = vpack.c.bf16 %v6605, %v6601
        %v6624 = vpack.c.bf16 %v6607, %v6603
        %6625 = vmatprep.subr.bf16.mxu0 %v6610
        %6626 = vmatpush1.bf16.msra.mxu0 %v6609
        %6627 = vmatprep.subr.bf16.mxu0 %v6612
        %6628 = vmatpush1.bf16.msra.mxu0 %v6611
        %6629 = vmatprep.subr.bf16.mxu0 %v6614
        %6630 = vmatpush1.bf16.msra.mxu0 %v6613
        %6631 = vmatprep.subr.bf16.mxu0 %v6616
        %6632 = vmatpush1.bf16.msra.mxu0 %v6615
        %6633 = vmatprep.subr.bf16.mxu0 %v6618
        %6634 = vmatpush1.bf16.msra.mxu0 %v6617
        %6635 = vmatprep.subr.bf16.mxu0 %v6620
        %6636 = vmatpush1.bf16.msra.mxu0 %v6619
        %6637 = vmatprep.subr.bf16.mxu0 %v6622
        %6638 = vmatpush1.bf16.msra.mxu0 %v6621
        %6639 = vmatprep.subr.bf16.mxu0 %v6624
        %6640 = vmatpush1.bf16.msra.mxu0 %v6623
        %6641 = vmatprep.subr.bf16.mxu0 0
        %6642 = vmatpush1.bf16.msra.mxu0 0
        %6643 = vmatprep.subr.bf16.mxu0 0
        %6644 = vmatpush1.bf16.msra.mxu0 0
        %6645 = vmatprep.subr.bf16.mxu0 0
        %6646 = vmatpush1.bf16.msra.mxu0 0
        %6647 = vmatprep.subr.bf16.mxu0 0
        %6648 = vmatpush1.bf16.msra.mxu0 0
        %6649 = vmatprep.subr.bf16.mxu0 0
        %6650 = vmatpush1.bf16.msra.mxu0 0
        %6651 = vmatprep.subr.bf16.mxu0 0
        %6652 = vmatpush1.bf16.msra.mxu0 0
        %6653 = vmatprep.subr.bf16.mxu0 0
        %6654 = vmatpush1.bf16.msra.mxu0 0
        %6655 = vmatprep.subr.bf16.mxu0 0
        %6656 = vmatpush1.bf16.msra.mxu0 0
        %6657 = vmatprep.mubr.bf16.mxu0 0
        %6658 = vmatmul.mubr.bf16.gmra.mrb[0].mxu0 %v440
        %v6659 = vpop.f32.mrb[0].mxu0
        %v6660 = vadd.f32 %v2159, %v6659
        %v6661 = vpop.f32.mrb[0].mxu0
        %v6662 = vadd.f32 %v2159, %v6661
        %v6663 = vpop.f32.mrb[0].mxu0
        %v6664 = vpop.f32.mrb[0].mxu0
        %6665 = vdwg.mxu0
        %v6666 = vsel %vm483, %v6660, 0.0
        %v6667 = vsel %vm483, %v6662, 0.0
        %v6668 = vadd.f32 %v6666, %v6667
        %6669 = vadd.xlane.f32.xlu0 %v6668
        %v6670 = vpop.xlane.xlu0 %6669
        %v6671 = vrot.slane %v6670, 4
        %v6672 = vadd.f32 %v6670, %v6671
        %v6673 = vrot.slane %v6672, 2
        %v6674 = vadd.f32 %v6672, %v6673
        %v6675 = vrot.slane %v6674, 1
        %v6676 = vadd.f32 %v6674, %v6675
        %s6677 = vtos %v6676
        %v6678 = vmul.f32 %v6660, %v6660
        %v6679 = vmul.f32 %v6662, %v6662
        %v6680 = vsel %vm483, %v6678, 0.0
        %v6681 = vsel %vm483, %v6679, 0.0
        %v6682 = vadd.f32 %v6680, %v6681
        %6683 = vadd.xlane.f32.xlu0 %v6682
        %v6684 = vpop.xlane.xlu0 %6683
        %v6685 = vrot.slane %v6684, 4
        %v6686 = vadd.f32 %v6684, %v6685
        %v6687 = vrot.slane %v6686, 2
        %v6688 = vadd.f32 %v6686, %v6687
        %v6689 = vrot.slane %v6688, 1
        %v6690 = vadd.f32 %v6688, %v6689
        %s6691 = vtos %v6690
        %s6692 = smul.f32 %s6677, 0.0009765625
        %s6693 = smul.f32 %s6691, 0.0009765625
        %s6694 = smul.f32 %s6692, %s6692
        %s6695 = ssub.f32 %s6693, %s6694
        %s6696 = smax.f32 %s6695, 0.0
        %v6697 = vstv %s6692
        %v6698 = vsub.f32 %v6660, %v6697
        %v6699 = vsub.f32 %v6662, %v6697
        %s6700 = sadd.f32 %s6696, 1e-05
        %v6701 = vstv %s6700
        %v6702 = vrsqrt.pop %v6701
        %s6703 = vtos %v6702
        %v6704 = vstv %s6703
        %v6705 = vmul.f32 %v6698, %v6704
        %v6706 = vmul.f32 %v6699, %v6704
        %v6707 = vmul.f32 %v6705, %v2246
        %v6708 = vmul.f32 %v6706, %v2246
        %v6709 = vadd.f32 %v6707, %v2253
        %v6710 = vadd.f32 %v6708, %v2253
        %v6713 = vcombine.low %v6709, %v6710
        %s6715 = scalar_lea.vmem %s382, 24 [#allocation2]
        %6716 = vst [vmem:[%s6715] sm:$0xff] %v6713
        %s6717 = sand.u32 %s269, 1
        %s6718 = scalar_lea.sflag [#allocation3], %s6717
        %s6719 = sand.u32 %s269, 1
        %s6720 = smul.addr %s6719, 32
        %s6721 = scalar_lea.vmem [#allocation2], %s6720
        // Predicated region
        $region65: #{tpu_custom_call.1} parent=63 // pred_check
          %p6722 = pneg %p279
        $region66: #{tpu_custom_call.1} parent=63 // pred_check_branch
          %6724 = sbr.rel (%p6722) target = $region68
        $region67: #{tpu_custom_call.1} parent=63 // pred_region
          %s6725 = smul.u32 4, %s25
          %s6727 = ssub.s32 512, 512
          %6728 = vsyncadd %s6718, %s6727
          %s6729 = smul.addr %s6725, 2
          %s6730 = smul.addr %s6729, 64
          %s6731 = scalar_lea.hbm %s11, %s6730
          %s6732 = sshll.u32 %s6721, 4
          %s6733 = int_to_ptr.vmem [resolvable:$true] %s6732
          %6738 = dma.vmem_to_hbm [thread:$0]  %s6733, 512, %s6731, %s6718, 128, 128, 8
        $region68: #{tpu_custom_call.1} parent=63 // pred_fallthru
          _
      $region64: #{tpu_custom_call.1} parent=5 // pred_fallthru
        _
      %p6739 = scmp.le.s32.totalorder 2, %s20
      // Predicated region
      $region69: #{tpu_custom_call.1} parent=5 // pred_check
        %p6740 = pneg %p6739
      $region70: #{tpu_custom_call.1} parent=5 // pred_check_branch
        %6742 = sbr.rel (%p6740) target = $region72
      $region71: #{tpu_custom_call.1} parent=5 // pred_region
        %s6743 = ssub.s32 %s20, 2
        // Predicated region
        $region73: #{tpu_custom_call.1} parent=71 // pred_check
          %p6744 = pneg %p285
        $region74: #{tpu_custom_call.1} parent=71 // pred_check_branch
          %6746 = sbr.rel (%p6744) target = $region76
        $region75: #{tpu_custom_call.1} parent=71 // pred_region
          %s6747 = sand.u32 %s270, 1
          %s6748 = scalar_lea.sflag [#allocation3], %s6747
          %s6749 = sand.u32 %s270, 1
          %s6750 = smul.addr %s6749, 32
          %s6751 = scalar_lea.vmem [#allocation2], %s6750
          %6752 = dma.done %s6748, 512
        $region76: #{tpu_custom_call.1} parent=71 // pred_fallthru
          _
      $region72: #{tpu_custom_call.1} parent=5 // pred_fallthru
        _
    $region6: #{tpu_custom_call.1} parent=1 // loop_footer
      %s24 = sadd.s32 1, %s20
    $region7: #{tpu_custom_call.1} parent=1 // loop_footer_branch
      %19 = sbr.rel target = $region3
    $region8: #{tpu_custom_call.1} parent=1 // loop_exit
      _
    %6753 = vsyncpa [#allocation3], 1
    %s6754 = scalar_lea.sflag [#allocation3], 1
    %6755 = vsyncpa %s6754, 1

</llo_original>
